<compile_context>
chip_gen: v5e
topology: v5e:2x2
jax: 0.10.0
libtpu: 0.0.40
codegen_flags: <defaults>
</compile_context>

<pallas_src>
import math

import jax
import jax.numpy as jnp
from jax.experimental import pallas as pl
from jax.experimental.pallas import tpu as pltpu

_EPS = 1e-5
_HI = jax.lax.Precision.HIGHEST


def _mha_linear_kernel(x_ref, w1_ref, b1_ref, g1_ref, be1_ref, g2_ref, be2_ref,
                       head_oh_ref, head_oh_t_ref, fold_ref, o_ref):
    """Single grid step: the whole batch lives in VMEM."""
    x = x_ref[...].astype(jnp.float32)                        # (B, F)
    batch = x_ref.shape[0]
    inv_b = jnp.float32(1.0 / batch)
    ones_bt = jnp.ones((1, batch), jnp.float32)               # MXU column-sum row

    # ---- att: Linear(F -> F*H) ----
    h = jnp.dot(x, w1_ref[...], precision=_HI,
                preferred_element_type=jnp.float32) + b1_ref[...]   # (B, F*H)

    # ---- BatchNorm1d(F*H), train mode, two-pass (centered) statistics ----
    mu1 = jnp.dot(ones_bt, h, precision=_HI,
                  preferred_element_type=jnp.float32) * inv_b       # (1, F*H)
    c1 = h - mu1
    var1 = jnp.dot(ones_bt, c1 * c1, precision=_HI,
                   preferred_element_type=jnp.float32) * inv_b      # (1, F*H)
    scale1 = jax.lax.rsqrt(var1 + _EPS) * g1_ref[...]
    a = jnp.tanh(c1 * scale1 + be1_ref[...])                  # (B, F*H), in [-1, 1]
    # Dropout(p=0.0) is the identity.

    # ---- per-head softmax over feature dim, summed over heads (all MXU) ----
    # a is bounded, so exp cannot overflow: no max-subtraction, one EUP pass.
    e = jnp.exp(a)                                            # (B, F*H)
    # per-head denominator, then broadcast back per column via one-hot matmuls
    denom_h = jnp.dot(e, head_oh_ref[...], precision=_HI,
                      preferred_element_type=jnp.float32)     # (B, Hp)
    denom = jnp.dot(denom_h, head_oh_t_ref[...], precision=_HI,
                    preferred_element_type=jnp.float32)       # (B, F*H)
    p = e * pl.reciprocal(denom)                              # exact reciprocal
    # score_sum[b, f] = sum over heads of p[b, head*F + f]  (fold matrix).
    score_sum = jnp.dot(p, fold_ref[...], precision=_HI,
                        preferred_element_type=jnp.float32)   # (B, F)
    y = x * score_sum                                         # (B, F)

    # ---- BatchNorm1d(F), train mode, two-pass statistics, then tanh ----
    mu2 = jnp.dot(ones_bt, y, precision=_HI,
                  preferred_element_type=jnp.float32) * inv_b
    c2 = y - mu2
    var2 = jnp.dot(ones_bt, c2 * c2, precision=_HI,
                   preferred_element_type=jnp.float32) * inv_b
    scale2 = jax.lax.rsqrt(var2 + _EPS) * g2_ref[...]
    o_ref[...] = jnp.tanh(c2 * scale2 + be2_ref[...]).astype(o_ref.dtype)


def _head_matrices(feature_dim, num_heads):
    """0/1 matrices encoding the per-head segmented softmax as MXU matmuls."""
    fh = feature_dim * num_heads
    hp = -(-num_heads // 8) * 8                      # pad heads to sublane multiple
    idx = jnp.arange(fh)
    head_id = idx // feature_dim
    feat_id = idx % feature_dim
    # head_oh[i, h] = 1 iff column i belongs to head h          (F*H, Hp)
    head_oh = (head_id[:, None] == jnp.arange(hp)[None, :]).astype(jnp.float32)
    head_oh_t = head_oh.T                                       # (Hp, F*H)
    # fold[i, f] = 1 iff column i is feature f within its head  (F*H, F)
    fold = (feat_id[:, None] == jnp.arange(feature_dim)[None, :]).astype(jnp.float32)
    return head_oh, head_oh_t, fold


def multi_head_attention_linear_forward(x, w1, b1, gamma1, beta1, gamma2,
                                         beta2, *, num_heads):
    B, F = x.shape
    FH = F * num_heads
    assert w1.shape == (F, FH)

    head_oh, head_oh_t, fold = _head_matrices(F, num_heads)
    args = (x, w1, b1, gamma1, beta1, gamma2, beta2, head_oh, head_oh_t, fold)

    # Explicit VMEM budget: double-buffered ins/outs + in-kernel temporaries
    # (h, c1, a, e, p, denom at (B, F*H) f32; y/score_sum/c2 at (B, F) f32)
    # plus headroom, capped at v7x's 64 MiB scoped ceiling.
    in_bytes = sum(int(a.size) * a.dtype.itemsize for a in args)
    out_bytes = B * F * x.dtype.itemsize
    tmp_bytes = 7 * B * FH * 4 + 4 * B * F * 4
    footprint = 2 * (in_bytes + out_bytes) + tmp_bytes
    vmem_limit = int(min(64 * 2**20, 2 * footprint + 2 * 2**20))
    if footprint > 56 * 2**20:
        # TODO(synk): add a B-tiled multi-pass path (accumulate per-column
        # sum / sum-of-squares across batch tiles, then normalize per tile)
        # once the whole-batch block no longer fits v7x's 64 MiB VMEM.
        raise NotImplementedError("batch too large for single-block VMEM kernel")

    in_specs = [pl.BlockSpec(a.shape, lambda i: (0, 0)) for a in args]
    return pl.pallas_call(
        _mha_linear_kernel,
        out_shape=jax.ShapeDtypeStruct((B, F), x.dtype),
        grid=(1,),
        in_specs=in_specs,
        out_specs=pl.BlockSpec((B, F), lambda i: (0, 0)),
        compiler_params=pltpu.CompilerParams(
            dimension_semantics=("arbitrary",),
            vmem_limit_bytes=vmem_limit),
    )(*args)


def _reference_forward(x, w1, b1, gamma1, beta1, gamma2, beta2, *, num_heads):
    """Pure-JAX reference mirroring the PyTorch forward (train mode)."""
    B, F = x.shape
    h = jnp.dot(x, w1, precision=_HI) + b1
    mu1 = h.mean(0, keepdims=True)
    var1 = ((h - mu1) ** 2).mean(0, keepdims=True)
    h = jnp.tanh((h - mu1) / jnp.sqrt(var1 + _EPS) * gamma1 + beta1)
    scores = jax.nn.softmax(h.reshape(B, num_heads, F), axis=-1)
    y = jnp.sum(x[:, None, :] * scores, axis=1)
    mu2 = y.mean(0, keepdims=True)
    var2 = ((y - mu2) ** 2).mean(0, keepdims=True)
    return jnp.tanh((y - mu2) / jnp.sqrt(var2 + _EPS) * gamma2 + beta2)


if __name__ == "__main__":
    # Lane/sublane-friendly small shapes: F multiple of 128, B multiple of 8.
    B, F, H = 32, 128, 3   # batch, feature_dim, num_heads (hidden_dim=[])

    key = jax.random.PRNGKey(0)
    kx, kw, kb = jax.random.split(key, 3)

    x = jax.random.normal(kx, (B, F), dtype=jnp.float32)

    # Linear(F, F*H): synthetic init; stored already transposed as (in, out).
    bound = 1.0 / math.sqrt(F)
    w1 = jax.random.uniform(kw, (F, F * H), jnp.float32, -bound, bound)
    b1 = jax.random.uniform(kb, (1, F * H), jnp.float32, -bound, bound)

    # BatchNorm1d parameters at default init (weight=1, bias=0).
    gamma1 = jnp.ones((1, F * H), jnp.float32)
    beta1 = jnp.zeros((1, F * H), jnp.float32)
    gamma2 = jnp.ones((1, F), jnp.float32)
    beta2 = jnp.zeros((1, F), jnp.float32)

    out = multi_head_attention_linear_forward(
        x, w1, b1, gamma1, beta1, gamma2, beta2, num_heads=H)
    out = jax.block_until_ready(out)

    ref = _reference_forward(
        x, w1, b1, gamma1, beta1, gamma2, beta2, num_heads=H)
    assert out.shape == (B, F)
    assert jnp.allclose(out, ref, rtol=1e-4, atol=1e-4), "mismatch vs reference"

    print("KERNEL_OK")
</pallas_src>

<mosaic_0001>
module attributes {stable_mosaic.version = 11 : i64} {
  func.func @_mha_linear_kernel(%arg0: i32, %arg1: memref<32x128xf32, #tpu.memory_space<vmem>>, %arg2: memref<128x384xf32, #tpu.memory_space<vmem>>, %arg3: memref<1x384xf32, #tpu.memory_space<vmem>>, %arg4: memref<1x384xf32, #tpu.memory_space<vmem>>, %arg5: memref<1x384xf32, #tpu.memory_space<vmem>>, %arg6: memref<1x128xf32, #tpu.memory_space<vmem>>, %arg7: memref<1x128xf32, #tpu.memory_space<vmem>>, %arg8: memref<384x8xf32, #tpu.memory_space<vmem>>, %arg9: memref<8x384xf32, #tpu.memory_space<vmem>>, %arg10: memref<384x128xf32, #tpu.memory_space<vmem>>, %arg11: memref<32x128xf32, #tpu.memory_space<vmem>>) attributes {dimension_semantics = [#tpu.dimension_semantics<arbitrary>], iteration_bounds = array<i64: 1>, scalar_prefetch = 0 : i64, scratch_operands = 0 : i64, tpu.core_type = #tpu.core_type<tc>, window_params = [{pipeline_mode = #tpu.pipeline_mode<synchronous>, transform_indices = @transform_0, window_bounds = array<i64: 32, 128>}, {pipeline_mode = #tpu.pipeline_mode<synchronous>, transform_indices = @transform_1, window_bounds = array<i64: 128, 384>}, {pipeline_mode = #tpu.pipeline_mode<synchronous>, transform_indices = @transform_2, window_bounds = array<i64: 1, 384>}, {pipeline_mode = #tpu.pipeline_mode<synchronous>, transform_indices = @transform_3, window_bounds = array<i64: 1, 384>}, {pipeline_mode = #tpu.pipeline_mode<synchronous>, transform_indices = @transform_4, window_bounds = array<i64: 1, 384>}, {pipeline_mode = #tpu.pipeline_mode<synchronous>, transform_indices = @transform_5, window_bounds = array<i64: 1, 128>}, {pipeline_mode = #tpu.pipeline_mode<synchronous>, transform_indices = @transform_6, window_bounds = array<i64: 1, 128>}, {pipeline_mode = #tpu.pipeline_mode<synchronous>, transform_indices = @transform_7, window_bounds = array<i64: 384, 8>}, {pipeline_mode = #tpu.pipeline_mode<synchronous>, transform_indices = @transform_8, window_bounds = array<i64: 8, 384>}, {pipeline_mode = #tpu.pipeline_mode<synchronous>, transform_indices = @transform_9, window_bounds = array<i64: 384, 128>}, {pipeline_mode = #tpu.pipeline_mode<synchronous>, transform_indices = @transform_10, window_bounds = array<i64: 32, 128>}]} {
    %c0 = arith.constant 0 : index
    %c0_0 = arith.constant 0 : index
    %0 = vector.load %arg1[%c0, %c0_0] : memref<32x128xf32, #tpu.memory_space<vmem>>, vector<32x128xf32>
    %cst = arith.constant 1.000000e+00 : f32
    %1 = vector.broadcast %cst : f32 to vector<1x32xf32>
    %c0_1 = arith.constant 0 : index
    %c0_2 = arith.constant 0 : index
    %2 = vector.load %arg2[%c0_1, %c0_2] : memref<128x384xf32, #tpu.memory_space<vmem>>, vector<128x384xf32>
    %cst_3 = arith.constant dense<0.000000e+00> : vector<32x384xf32>
    %3 = tpu.matmul %0, %2, %cst_3 {dimension_numbers = #tpu.dot_dimension_numbers<[1], [0], [0], [1], [0, 0, 1, 1], [], []>, precision = #tpu.contract_precision<fp32>} : vector<32x128xf32>, vector<128x384xf32>, vector<32x384xf32> -> vector<32x384xf32>
    %c0_4 = arith.constant 0 : index
    %c0_5 = arith.constant 0 : index
    %4 = vector.load %arg3[%c0_4, %c0_5] : memref<1x384xf32, #tpu.memory_space<vmem>>, vector<1x384xf32>
    %5 = vector.broadcast %4 : vector<1x384xf32> to vector<32x384xf32>
    %6 = arith.addf %3, %5 : vector<32x384xf32>
    %cst_6 = arith.constant dense<0.000000e+00> : vector<1x384xf32>
    %7 = tpu.matmul %1, %6, %cst_6 {dimension_numbers = #tpu.dot_dimension_numbers<[1], [0], [0], [1], [0, 0, 1, 1], [], []>, precision = #tpu.contract_precision<fp32>} : vector<1x32xf32>, vector<32x384xf32>, vector<1x384xf32> -> vector<1x384xf32>
    %cst_7 = arith.constant 3.125000e-02 : f32
    %8 = vector.broadcast %cst_7 : f32 to vector<1x384xf32>
    %9 = arith.mulf %7, %8 : vector<1x384xf32>
    %10 = vector.broadcast %9 : vector<1x384xf32> to vector<32x384xf32>
    %11 = arith.subf %6, %10 : vector<32x384xf32>
    %12 = arith.mulf %11, %11 : vector<32x384xf32>
    %cst_8 = arith.constant dense<0.000000e+00> : vector<1x384xf32>
    %13 = tpu.matmul %1, %12, %cst_8 {dimension_numbers = #tpu.dot_dimension_numbers<[1], [0], [0], [1], [0, 0, 1, 1], [], []>, precision = #tpu.contract_precision<fp32>} : vector<1x32xf32>, vector<32x384xf32>, vector<1x384xf32> -> vector<1x384xf32>
    %cst_9 = arith.constant 3.125000e-02 : f32
    %14 = vector.broadcast %cst_9 : f32 to vector<1x384xf32>
    %15 = arith.mulf %13, %14 : vector<1x384xf32>
    %cst_10 = arith.constant 9.99999974E-6 : f32
    %16 = vector.broadcast %cst_10 : f32 to vector<1x384xf32>
    %17 = arith.addf %15, %16 : vector<1x384xf32>
    %18 = math.rsqrt %17 : vector<1x384xf32>
    %c0_11 = arith.constant 0 : index
    %c0_12 = arith.constant 0 : index
    %19 = vector.load %arg4[%c0_11, %c0_12] : memref<1x384xf32, #tpu.memory_space<vmem>>, vector<1x384xf32>
    %20 = arith.mulf %18, %19 : vector<1x384xf32>
    %21 = vector.broadcast %20 : vector<1x384xf32> to vector<32x384xf32>
    %22 = arith.mulf %11, %21 : vector<32x384xf32>
    %c0_13 = arith.constant 0 : index
    %c0_14 = arith.constant 0 : index
    %23 = vector.load %arg5[%c0_13, %c0_14] : memref<1x384xf32, #tpu.memory_space<vmem>>, vector<1x384xf32>
    %24 = vector.broadcast %23 : vector<1x384xf32> to vector<32x384xf32>
    %25 = arith.addf %22, %24 : vector<32x384xf32>
    %26 = math.tanh %25 : vector<32x384xf32>
    %27 = math.exp %26 : vector<32x384xf32>
    %c0_15 = arith.constant 0 : index
    %c0_16 = arith.constant 0 : index
    %28 = vector.load %arg8[%c0_15, %c0_16] : memref<384x8xf32, #tpu.memory_space<vmem>>, vector<384x8xf32>
    %cst_17 = arith.constant dense<0.000000e+00> : vector<32x8xf32>
    %29 = tpu.matmul %27, %28, %cst_17 {dimension_numbers = #tpu.dot_dimension_numbers<[1], [0], [0], [1], [0, 0, 1, 1], [], []>, precision = #tpu.contract_precision<fp32>} : vector<32x384xf32>, vector<384x8xf32>, vector<32x8xf32> -> vector<32x8xf32>
    %c0_18 = arith.constant 0 : index
    %c0_19 = arith.constant 0 : index
    %30 = vector.load %arg9[%c0_18, %c0_19] : memref<8x384xf32, #tpu.memory_space<vmem>>, vector<8x384xf32>
    %cst_20 = arith.constant dense<0.000000e+00> : vector<32x384xf32>
    %31 = tpu.matmul %29, %30, %cst_20 {dimension_numbers = #tpu.dot_dimension_numbers<[1], [0], [0], [1], [0, 0, 1, 1], [], []>, precision = #tpu.contract_precision<fp32>} : vector<32x8xf32>, vector<8x384xf32>, vector<32x384xf32> -> vector<32x384xf32>
    %32 = tpu.reciprocal %31 : vector<32x384xf32> -> vector<32x384xf32>
    %33 = arith.mulf %27, %32 : vector<32x384xf32>
    %c0_21 = arith.constant 0 : index
    %c0_22 = arith.constant 0 : index
    %34 = vector.load %arg10[%c0_21, %c0_22] : memref<384x128xf32, #tpu.memory_space<vmem>>, vector<384x128xf32>
    %cst_23 = arith.constant dense<0.000000e+00> : vector<32x128xf32>
    %35 = tpu.matmul %33, %34, %cst_23 {dimension_numbers = #tpu.dot_dimension_numbers<[1], [0], [0], [1], [0, 0, 1, 1], [], []>, precision = #tpu.contract_precision<fp32>} : vector<32x384xf32>, vector<384x128xf32>, vector<32x128xf32> -> vector<32x128xf32>
    %36 = arith.mulf %0, %35 : vector<32x128xf32>
    %cst_24 = arith.constant dense<0.000000e+00> : vector<1x128xf32>
    %37 = tpu.matmul %1, %36, %cst_24 {dimension_numbers = #tpu.dot_dimension_numbers<[1], [0], [0], [1], [0, 0, 1, 1], [], []>, precision = #tpu.contract_precision<fp32>} : vector<1x32xf32>, vector<32x128xf32>, vector<1x128xf32> -> vector<1x128xf32>
    %cst_25 = arith.constant 3.125000e-02 : f32
    %38 = vector.broadcast %cst_25 : f32 to vector<1x128xf32>
    %39 = arith.mulf %37, %38 : vector<1x128xf32>
    %40 = vector.broadcast %39 : vector<1x128xf32> to vector<32x128xf32>
    %41 = arith.subf %36, %40 : vector<32x128xf32>
    %42 = arith.mulf %41, %41 : vector<32x128xf32>
    %cst_26 = arith.constant dense<0.000000e+00> : vector<1x128xf32>
    %43 = tpu.matmul %1, %42, %cst_26 {dimension_numbers = #tpu.dot_dimension_numbers<[1], [0], [0], [1], [0, 0, 1, 1], [], []>, precision = #tpu.contract_precision<fp32>} : vector<1x32xf32>, vector<32x128xf32>, vector<1x128xf32> -> vector<1x128xf32>
    %cst_27 = arith.constant 3.125000e-02 : f32
    %44 = vector.broadcast %cst_27 : f32 to vector<1x128xf32>
    %45 = arith.mulf %43, %44 : vector<1x128xf32>
    %cst_28 = arith.constant 9.99999974E-6 : f32
    %46 = vector.broadcast %cst_28 : f32 to vector<1x128xf32>
    %47 = arith.addf %45, %46 : vector<1x128xf32>
    %48 = math.rsqrt %47 : vector<1x128xf32>
    %c0_29 = arith.constant 0 : index
    %c0_30 = arith.constant 0 : index
    %49 = vector.load %arg6[%c0_29, %c0_30] : memref<1x128xf32, #tpu.memory_space<vmem>>, vector<1x128xf32>
    %50 = arith.mulf %48, %49 : vector<1x128xf32>
    %51 = vector.broadcast %50 : vector<1x128xf32> to vector<32x128xf32>
    %52 = arith.mulf %41, %51 : vector<32x128xf32>
    %c0_31 = arith.constant 0 : index
    %c0_32 = arith.constant 0 : index
    %53 = vector.load %arg7[%c0_31, %c0_32] : memref<1x128xf32, #tpu.memory_space<vmem>>, vector<1x128xf32>
    %54 = vector.broadcast %53 : vector<1x128xf32> to vector<32x128xf32>
    %55 = arith.addf %52, %54 : vector<32x128xf32>
    %56 = math.tanh %55 : vector<32x128xf32>
    %c0_33 = arith.constant 0 : index
    %c0_34 = arith.constant 0 : index
    %57 = vector.load %arg11[%c0_33, %c0_34] : memref<32x128xf32, #tpu.memory_space<vmem>>, vector<32x128xf32>
    tpu.vector_store %arg11[%c0_33, %c0_34], %56 {strides = array<i32>} : memref<32x128xf32, #tpu.memory_space<vmem>>, vector<32x128xf32>,
    return
  }
  func.func @transform_0(%arg0: i32) -> (i32, i32) {
    %c0_i32 = arith.constant 0 : i32
    %c0_i32_0 = arith.constant 0 : i32
    %c0_i32_1 = arith.constant 0 : i32
    return %c0_i32, %c0_i32_0 : i32, i32
  }
  func.func @transform_1(%arg0: i32) -> (i32, i32) {
    %c0_i32 = arith.constant 0 : i32
    %c0_i32_0 = arith.constant 0 : i32
    %c0_i32_1 = arith.constant 0 : i32
    return %c0_i32, %c0_i32_0 : i32, i32
  }
  func.func @transform_2(%arg0: i32) -> (i32, i32) {
    %c0_i32 = arith.constant 0 : i32
    %c0_i32_0 = arith.constant 0 : i32
    %c0_i32_1 = arith.constant 0 : i32
    return %c0_i32, %c0_i32_0 : i32, i32
  }
  func.func @transform_3(%arg0: i32) -> (i32, i32) {
    %c0_i32 = arith.constant 0 : i32
    %c0_i32_0 = arith.constant 0 : i32
    %c0_i32_1 = arith.constant 0 : i32
    return %c0_i32, %c0_i32_0 : i32, i32
  }
  func.func @transform_4(%arg0: i32) -> (i32, i32) {
    %c0_i32 = arith.constant 0 : i32
    %c0_i32_0 = arith.constant 0 : i32
    %c0_i32_1 = arith.constant 0 : i32
    return %c0_i32, %c0_i32_0 : i32, i32
  }
  func.func @transform_5(%arg0: i32) -> (i32, i32) {
    %c0_i32 = arith.constant 0 : i32
    %c0_i32_0 = arith.constant 0 : i32
    %c0_i32_1 = arith.constant 0 : i32
    return %c0_i32, %c0_i32_0 : i32, i32
  }
  func.func @transform_6(%arg0: i32) -> (i32, i32) {
    %c0_i32 = arith.constant 0 : i32
    %c0_i32_0 = arith.constant 0 : i32
    %c0_i32_1 = arith.constant 0 : i32
    return %c0_i32, %c0_i32_0 : i32, i32
  }
  func.func @transform_7(%arg0: i32) -> (i32, i32) {
    %c0_i32 = arith.constant 0 : i32
    %c0_i32_0 = arith.constant 0 : i32
    %c0_i32_1 = arith.constant 0 : i32
    return %c0_i32, %c0_i32_0 : i32, i32
  }
  func.func @transform_8(%arg0: i32) -> (i32, i32) {
    %c0_i32 = arith.constant 0 : i32
    %c0_i32_0 = arith.constant 0 : i32
    %c0_i32_1 = arith.constant 0 : i32
    return %c0_i32, %c0_i32_0 : i32, i32
  }
  func.func @transform_9(%arg0: i32) -> (i32, i32) {
    %c0_i32 = arith.constant 0 : i32
    %c0_i32_0 = arith.constant 0 : i32
    %c0_i32_1 = arith.constant 0 : i32
    return %c0_i32, %c0_i32_0 : i32, i32
  }
  func.func @transform_10(%arg0: i32) -> (i32, i32) {
    %c0_i32 = arith.constant 0 : i32
    %c0_i32_0 = arith.constant 0 : i32
    %c0_i32_1 = arith.constant 0 : i32
    return %c0_i32, %c0_i32_0 : i32, i32
  }
}

</mosaic_0001>

<llo_original>
// kernel: tpu_custom_call.1
$region0: #{tpu_custom_call.1}
  #allocation0 [shape = 'u32[]', space=smem, size = 0x4, offset = 0x4, fixed_abs, tag = 'smem constant byte address 0x4 - core index']
  #allocation1 [shape = 'u32[72,128]{1,0:T(1,128)}', space=vmem, size = 0x9000, scoped, tag = 'internal scratch']
  %s0 = inlined_call_operand.hbm [shape: f32[32,128], index: 0, kind: input, shape index: {}]
  %s1 = inlined_call_operand.vmem [shape: f32[128,384], index: 1, kind: input, shape index: {}]
  %s2 = inlined_call_operand.hbm [shape: f32[1,384], index: 2, kind: input, shape index: {}]
  %s3 = inlined_call_operand.hbm [shape: f32[1,384], index: 3, kind: input, shape index: {}]
  %s4 = inlined_call_operand.hbm [shape: f32[1,384], index: 4, kind: input, shape index: {}]
  %s5 = inlined_call_operand.vmem [shape: f32[1,128], index: 5, kind: input, shape index: {}]
  %s6 = inlined_call_operand.vmem [shape: f32[1,128], index: 6, kind: input, shape index: {}]
  %s7 = inlined_call_operand.vmem [shape: f32[384,8], index: 7, kind: input, shape index: {}]
  %s8 = inlined_call_operand.vmem [shape: f32[8,384], index: 8, kind: input, shape index: {}]
  %s9 = inlined_call_operand.hbm [shape: f32[384,128], index: 9, kind: input, shape index: {}]
  %s10 = inlined_call_operand.hbm [shape: f32[32,128], index: 10, kind: output, shape index: {}]
  %s11 = sld [smem:[#allocation0]]
  $region70: #{tpu_custom_call.1} parent=0
    _
  %s13 = ssub.s32 1, %s11
  %s14 = scalar_select 0, %s13, %s11
  $region1: #{tpu_custom_call.1} parent=0
    #allocation2 [shape = 'u8[16384]{0}', space=vmem, size = 0x4000, scoped, tag = 'input window, operand 0, single buffered']
    #allocation3 [shape = 's32[1]{0}', space=sflag, size = 0x4, scoped, tag = 'scoped memory for tpu_custom_call.1']
    #allocation4 [shape = 's32[1]{0}', space=sflag, size = 0x4, scoped, tag = 'scoped memory for tpu_custom_call.1']
    #allocation5 [shape = 'u8[1536]{0}', space=vmem, size = 0x800, scoped, tag = 'input window, operand 2, single buffered']
    #allocation6 [shape = 's32[1]{0}', space=sflag, size = 0x4, scoped, tag = 'scoped memory for tpu_custom_call.1']
    #allocation7 [shape = 'u8[1536]{0}', space=vmem, size = 0x800, scoped, tag = 'input window, operand 3, single buffered']
    #allocation8 [shape = 'u8[1536]{0}', space=vmem, size = 0x800, scoped, tag = 'input window, operand 4, single buffered']
    #allocation9 [shape = 's32[1]{0}', space=sflag, size = 0x4, scoped, tag = 'scoped memory for tpu_custom_call.1']
    #allocation10 [shape = 'u8[196608]{0}', space=vmem, size = 0x30000, scoped, tag = 'input window, operand 9, single buffered']
    #allocation11 [shape = 'u8[16384]{0}', space=vmem, size = 0x4000, scoped, tag = 'output window, operand 0, single buffered']
    %15 = vsyncpa [#allocation3], 0
    %16 = vsyncpa [#allocation6], 0
    %17 = vsyncpa [#allocation9], 0
    %18 = vsyncpa [#allocation4], 0
    // Predicated region
    $region2: #{tpu_custom_call.1} parent=1 // pred_check
      _
    $region3: #{tpu_custom_call.1} parent=1 // pred_check_branch
      %20 = sbr.rel (0) target = $region5
    $region4: #{tpu_custom_call.1} parent=1 // pred_region
      %22 = vsyncadd [#allocation3], 0
      %s23 = sshll.u32 %s0, 4
      %s24 = int_to_ptr.hbm [resolvable:$true] %s23
      %s25 = sshll.u32 [#allocation2], 4
      %s26 = int_to_ptr.vmem [resolvable:$true] %s25
      %31 = dma.hbm_to_vmem [thread:$0]  %s24, 512, %s26, [#allocation3], 128, 128, 8
    $region5: #{tpu_custom_call.1} parent=1 // pred_fallthru
      _
    // Predicated region
    $region6: #{tpu_custom_call.1} parent=1 // pred_check
      _
    $region7: #{tpu_custom_call.1} parent=1 // pred_check_branch
      %33 = sbr.rel (0) target = $region9
    $region8: #{tpu_custom_call.1} parent=1 // pred_region
      _
    $region9: #{tpu_custom_call.1} parent=1 // pred_fallthru
      _
    // Predicated region
    $region10: #{tpu_custom_call.1} parent=1 // pred_check
      _
    $region11: #{tpu_custom_call.1} parent=1 // pred_check_branch
      %35 = sbr.rel (0) target = $region13
    $region12: #{tpu_custom_call.1} parent=1 // pred_region
      %37 = vsyncadd [#allocation6], 0
      %s39 = sshll.u32 %s2, 4
      %s40 = int_to_ptr.hbm [resolvable:$true] %s39
      %s41 = sshll.u32 [#allocation5], 4
      %s42 = int_to_ptr.vmem [resolvable:$true] %s41
      %44 = dma.hbm_to_vmem [thread:$0]  %s40, 48, %s42, [#allocation6]
    $region13: #{tpu_custom_call.1} parent=1 // pred_fallthru
      _
    // Predicated region
    $region14: #{tpu_custom_call.1} parent=1 // pred_check
      _
    $region15: #{tpu_custom_call.1} parent=1 // pred_check_branch
      %46 = sbr.rel (0) target = $region17
    $region16: #{tpu_custom_call.1} parent=1 // pred_region
      %48 = vsyncadd [#allocation6], 0
      %s50 = sshll.u32 %s3, 4
      %s51 = int_to_ptr.hbm [resolvable:$true] %s50
      %s52 = sshll.u32 [#allocation7], 4
      %s53 = int_to_ptr.vmem [resolvable:$true] %s52
      %55 = dma.hbm_to_vmem [thread:$0]  %s51, 48, %s53, [#allocation6]
    $region17: #{tpu_custom_call.1} parent=1 // pred_fallthru
      _
    // Predicated region
    $region18: #{tpu_custom_call.1} parent=1 // pred_check
      _
    $region19: #{tpu_custom_call.1} parent=1 // pred_check_branch
      %57 = sbr.rel (0) target = $region21
    $region20: #{tpu_custom_call.1} parent=1 // pred_region
      %59 = vsyncadd [#allocation9], 0
      %s61 = sshll.u32 %s4, 4
      %s62 = int_to_ptr.hbm [resolvable:$true] %s61
      %s63 = sshll.u32 [#allocation8], 4
      %s64 = int_to_ptr.vmem [resolvable:$true] %s63
      %66 = dma.hbm_to_vmem [thread:$0]  %s62, 48, %s64, [#allocation9]
    $region21: #{tpu_custom_call.1} parent=1 // pred_fallthru
      _
    // Predicated region
    $region22: #{tpu_custom_call.1} parent=1 // pred_check
      _
    $region23: #{tpu_custom_call.1} parent=1 // pred_check_branch
      %68 = sbr.rel (0) target = $region25
    $region24: #{tpu_custom_call.1} parent=1 // pred_region
      _
    $region25: #{tpu_custom_call.1} parent=1 // pred_fallthru
      _
    // Predicated region
    $region26: #{tpu_custom_call.1} parent=1 // pred_check
      _
    $region27: #{tpu_custom_call.1} parent=1 // pred_check_branch
      %70 = sbr.rel (0) target = $region29
    $region28: #{tpu_custom_call.1} parent=1 // pred_region
      _
    $region29: #{tpu_custom_call.1} parent=1 // pred_fallthru
      _
    // Predicated region
    $region30: #{tpu_custom_call.1} parent=1 // pred_check
      _
    $region31: #{tpu_custom_call.1} parent=1 // pred_check_branch
      %72 = sbr.rel (0) target = $region33
    $region32: #{tpu_custom_call.1} parent=1 // pred_region
      _
    $region33: #{tpu_custom_call.1} parent=1 // pred_fallthru
      _
    // Predicated region
    $region34: #{tpu_custom_call.1} parent=1 // pred_check
      _
    $region35: #{tpu_custom_call.1} parent=1 // pred_check_branch
      %74 = sbr.rel (0) target = $region37
    $region36: #{tpu_custom_call.1} parent=1 // pred_region
      _
    $region37: #{tpu_custom_call.1} parent=1 // pred_fallthru
      _
    // Predicated region
    $region38: #{tpu_custom_call.1} parent=1 // pred_check
      _
    $region39: #{tpu_custom_call.1} parent=1 // pred_check_branch
      %76 = sbr.rel (0) target = $region41
    $region40: #{tpu_custom_call.1} parent=1 // pred_region
      %78 = vsyncadd [#allocation9], 0
      %s79 = sshll.u32 %s9, 4
      %s80 = int_to_ptr.hbm [resolvable:$true] %s79
      %s81 = sshll.u32 [#allocation10], 4
      %s82 = int_to_ptr.vmem [resolvable:$true] %s81
      %87 = dma.hbm_to_vmem [thread:$0]  %s80, 6144, %s82, [#allocation9], 128, 128, 8
    $region41: #{tpu_custom_call.1} parent=1 // pred_fallthru
      _
    // Predicated region
    $region42: #{tpu_custom_call.1} parent=1 // pred_check
      _
    $region43: #{tpu_custom_call.1} parent=1 // pred_check_branch
      %89 = sbr.rel (0) target = $region45
    $region44: #{tpu_custom_call.1} parent=1 // pred_region
      %91 = dma.done [#allocation3], 512
    $region45: #{tpu_custom_call.1} parent=1 // pred_fallthru
      _
    // Predicated region
    $region46: #{tpu_custom_call.1} parent=1 // pred_check
      _
    $region47: #{tpu_custom_call.1} parent=1 // pred_check_branch
      %93 = sbr.rel (0) target = $region49
    $region48: #{tpu_custom_call.1} parent=1 // pred_region
      %95 = dma.done [#allocation6], 48
    $region49: #{tpu_custom_call.1} parent=1 // pred_fallthru
      _
    // Predicated region
    $region50: #{tpu_custom_call.1} parent=1 // pred_check
      _
    $region51: #{tpu_custom_call.1} parent=1 // pred_check_branch
      %97 = sbr.rel (0) target = $region53
    $region52: #{tpu_custom_call.1} parent=1 // pred_region
      %99 = dma.done [#allocation6], 48
    $region53: #{tpu_custom_call.1} parent=1 // pred_fallthru
      _
    // Predicated region
    $region54: #{tpu_custom_call.1} parent=1 // pred_check
      _
    $region55: #{tpu_custom_call.1} parent=1 // pred_check_branch
      %101 = sbr.rel (0) target = $region57
    $region56: #{tpu_custom_call.1} parent=1 // pred_region
      %103 = dma.done [#allocation9], 48
    $region57: #{tpu_custom_call.1} parent=1 // pred_fallthru
      _
    // Predicated region
    $region58: #{tpu_custom_call.1} parent=1 // pred_check
      _
    $region59: #{tpu_custom_call.1} parent=1 // pred_check_branch
      %105 = sbr.rel (0) target = $region61
    $region60: #{tpu_custom_call.1} parent=1 // pred_region
      %107 = dma.done [#allocation9], 6144
    $region61: #{tpu_custom_call.1} parent=1 // pred_fallthru
      _
    %v108 = vld [vmem:[#allocation2] sm:$0xff]
    %v109 = vld [vmem:[#allocation2 + $0x8] sm:$0xff]
    %v110 = vld [vmem:[#allocation2 + $0x10] sm:$0xff]
    %v111 = vld [vmem:[#allocation2 + $0x18] sm:$0xff]
    %v112 = vld [vmem:[%s1] sm:$0xff]
    %v113 = vld [vmem:[%s1 + $0x8] sm:$0xff]
    %v114 = vld [vmem:[%s1 + $0x10] sm:$0xff]
    %v115 = vld [vmem:[%s1 + $0x18] sm:$0xff]
    %v116 = vld [vmem:[%s1 + $0x20] sm:$0xff]
    %v117 = vld [vmem:[%s1 + $0x28] sm:$0xff]
    %v118 = vld [vmem:[%s1 + $0x30] sm:$0xff]
    %v119 = vld [vmem:[%s1 + $0x38] sm:$0xff]
    %v120 = vld [vmem:[%s1 + $0x40] sm:$0xff]
    %v121 = vld [vmem:[%s1 + $0x48] sm:$0xff]
    %v122 = vld [vmem:[%s1 + $0x50] sm:$0xff]
    %v123 = vld [vmem:[%s1 + $0x58] sm:$0xff]
    %v124 = vld [vmem:[%s1 + $0x60] sm:$0xff]
    %v125 = vld [vmem:[%s1 + $0x68] sm:$0xff]
    %v126 = vld [vmem:[%s1 + $0x70] sm:$0xff]
    %v127 = vld [vmem:[%s1 + $0x78] sm:$0xff]
    %v128 = vld [vmem:[%s1 + $0x80] sm:$0xff]
    %v129 = vld [vmem:[%s1 + $0x88] sm:$0xff]
    %v130 = vld [vmem:[%s1 + $0x90] sm:$0xff]
    %v131 = vld [vmem:[%s1 + $0x98] sm:$0xff]
    %v132 = vld [vmem:[%s1 + $0xa0] sm:$0xff]
    %v133 = vld [vmem:[%s1 + $0xa8] sm:$0xff]
    %v134 = vld [vmem:[%s1 + $0xb0] sm:$0xff]
    %v135 = vld [vmem:[%s1 + $0xb8] sm:$0xff]
    %v136 = vld [vmem:[%s1 + $0xc0] sm:$0xff]
    %v137 = vld [vmem:[%s1 + $0xc8] sm:$0xff]
    %v138 = vld [vmem:[%s1 + $0xd0] sm:$0xff]
    %v139 = vld [vmem:[%s1 + $0xd8] sm:$0xff]
    %v140 = vld [vmem:[%s1 + $0xe0] sm:$0xff]
    %v141 = vld [vmem:[%s1 + $0xe8] sm:$0xff]
    %v142 = vld [vmem:[%s1 + $0xf0] sm:$0xff]
    %v143 = vld [vmem:[%s1 + $0xf8] sm:$0xff]
    %v144 = vld [vmem:[%s1 + $0x100] sm:$0xff]
    %v145 = vld [vmem:[%s1 + $0x108] sm:$0xff]
    %v146 = vld [vmem:[%s1 + $0x110] sm:$0xff]
    %v147 = vld [vmem:[%s1 + $0x118] sm:$0xff]
    %v148 = vld [vmem:[%s1 + $0x120] sm:$0xff]
    %v149 = vld [vmem:[%s1 + $0x128] sm:$0xff]
    %v150 = vld [vmem:[%s1 + $0x130] sm:$0xff]
    %v151 = vld [vmem:[%s1 + $0x138] sm:$0xff]
    %v152 = vld [vmem:[%s1 + $0x140] sm:$0xff]
    %v153 = vld [vmem:[%s1 + $0x148] sm:$0xff]
    %v154 = vld [vmem:[%s1 + $0x150] sm:$0xff]
    %v155 = vld [vmem:[%s1 + $0x158] sm:$0xff]
    %v156 = vld [vmem:[%s1 + $0x160] sm:$0xff]
    %v157 = vld [vmem:[%s1 + $0x168] sm:$0xff]
    %v158 = vld [vmem:[%s1 + $0x170] sm:$0xff]
    %v159 = vld [vmem:[%s1 + $0x178] sm:$0xff]
    %v160 = vld [vmem:[#allocation5] sm:$0x7]
    %v162 = vperm.slane %v160, 0
    %v163 = vperm.slane %v160, 1
    %v164 = vperm.slane %v160, 2
    %v168 = vand.u32 %v157, 4294901760
    %169 = vmatpush.msra.mxu0 %v168
    %v170 = vand.u32 %v154, 4294901760
    %171 = vmatpush.msra.mxu0 %v170
    %v172 = vand.u32 %v151, 4294901760
    %173 = vmatpush.msra.mxu0 %v172
    %v174 = vand.u32 %v148, 4294901760
    %175 = vmatpush.msra.mxu0 %v174
    %v176 = vand.u32 %v145, 4294901760
    %177 = vmatpush.msra.mxu0 %v176
    %v178 = vand.u32 %v142, 4294901760
    %179 = vmatpush.msra.mxu0 %v178
    %v180 = vand.u32 %v139, 4294901760
    %181 = vmatpush.msra.mxu0 %v180
    %v182 = vand.u32 %v136, 4294901760
    %183 = vmatpush.msra.mxu0 %v182
    %v184 = vand.u32 %v133, 4294901760
    %185 = vmatpush.msra.mxu0 %v184
    %v186 = vand.u32 %v130, 4294901760
    %187 = vmatpush.msra.mxu0 %v186
    %v188 = vand.u32 %v127, 4294901760
    %189 = vmatpush.msra.mxu0 %v188
    %v190 = vand.u32 %v124, 4294901760
    %191 = vmatpush.msra.mxu0 %v190
    %v192 = vand.u32 %v121, 4294901760
    %193 = vmatpush.msra.mxu0 %v192
    %v194 = vand.u32 %v118, 4294901760
    %195 = vmatpush.msra.mxu0 %v194
    %v196 = vand.u32 %v115, 4294901760
    %197 = vmatpush.msra.mxu0 %v196
    %v198 = vand.u32 %v112, 4294901760
    %199 = vmatpush.msra.mxu0 %v198
    %v200 = vand.u32 %v108, 4294901760
    %v201 = vsub.f32 %v108, %v200
    %v202 = vand.u32 %v201, 4294901760
    %v203 = vsub.f32 %v201, %v202
    %v204 = vand.u32 %v203, 4294901760
    %205 = vmatmul.f32.gmra.mxu0 %v204
    %v206 = vpop.f32.mrf.mxu0
    %v207 = vadd.f32 %v162, %v206
    %v208 = vand.u32 %v109, 4294901760
    %v209 = vsub.f32 %v109, %v208
    %v210 = vand.u32 %v209, 4294901760
    %v211 = vsub.f32 %v209, %v210
    %v212 = vand.u32 %v211, 4294901760
    %213 = vmatmul.f32.gmra.mxu0 %v212
    %v214 = vpop.f32.mrf.mxu0
    %v215 = vadd.f32 %v162, %v214
    %v216 = vand.u32 %v110, 4294901760
    %v217 = vsub.f32 %v110, %v216
    %v218 = vand.u32 %v217, 4294901760
    %v219 = vsub.f32 %v217, %v218
    %v220 = vand.u32 %v219, 4294901760
    %221 = vmatmul.f32.gmra.mxu0 %v220
    %v222 = vpop.f32.mrf.mxu0
    %v223 = vadd.f32 %v162, %v222
    %v224 = vand.u32 %v111, 4294901760
    %v225 = vsub.f32 %v111, %v224
    %v226 = vand.u32 %v225, 4294901760
    %v227 = vsub.f32 %v225, %v226
    %v228 = vand.u32 %v227, 4294901760
    %229 = vmatmul.f32.gmra.mxu0 %v228
    %v230 = vpop.f32.mrf.mxu0
    %v231 = vadd.f32 %v162, %v230
    %232 = vdwg.mxu0
    %v233 = vand.u32 %v157, 4294901760
    %v234 = vsub.f32 %v157, %v233
    %v235 = vand.u32 %v234, 4294901760
    %v236 = vsub.f32 %v234, %v235
    %v237 = vand.u32 %v236, 4294901760
    %238 = vmatpush.msra.mxu0 %v237
    %v239 = vand.u32 %v154, 4294901760
    %v240 = vsub.f32 %v154, %v239
    %v241 = vand.u32 %v240, 4294901760
    %v242 = vsub.f32 %v240, %v241
    %v243 = vand.u32 %v242, 4294901760
    %244 = vmatpush.msra.mxu0 %v243
    %v245 = vand.u32 %v151, 4294901760
    %v246 = vsub.f32 %v151, %v245
    %v247 = vand.u32 %v246, 4294901760
    %v248 = vsub.f32 %v246, %v247
    %v249 = vand.u32 %v248, 4294901760
    %250 = vmatpush.msra.mxu0 %v249
    %v251 = vand.u32 %v148, 4294901760
    %v252 = vsub.f32 %v148, %v251
    %v253 = vand.u32 %v252, 4294901760
    %v254 = vsub.f32 %v252, %v253
    %v255 = vand.u32 %v254, 4294901760
    %256 = vmatpush.msra.mxu0 %v255
    %v257 = vand.u32 %v145, 4294901760
    %v258 = vsub.f32 %v145, %v257
    %v259 = vand.u32 %v258, 4294901760
    %v260 = vsub.f32 %v258, %v259
    %v261 = vand.u32 %v260, 4294901760
    %262 = vmatpush.msra.mxu0 %v261
    %v263 = vand.u32 %v142, 4294901760
    %v264 = vsub.f32 %v142, %v263
    %v265 = vand.u32 %v264, 4294901760
    %v266 = vsub.f32 %v264, %v265
    %v267 = vand.u32 %v266, 4294901760
    %268 = vmatpush.msra.mxu0 %v267
    %v269 = vand.u32 %v139, 4294901760
    %v270 = vsub.f32 %v139, %v269
    %v271 = vand.u32 %v270, 4294901760
    %v272 = vsub.f32 %v270, %v271
    %v273 = vand.u32 %v272, 4294901760
    %274 = vmatpush.msra.mxu0 %v273
    %v275 = vand.u32 %v136, 4294901760
    %v276 = vsub.f32 %v136, %v275
    %v277 = vand.u32 %v276, 4294901760
    %v278 = vsub.f32 %v276, %v277
    %v279 = vand.u32 %v278, 4294901760
    %280 = vmatpush.msra.mxu0 %v279
    %v281 = vand.u32 %v133, 4294901760
    %v282 = vsub.f32 %v133, %v281
    %v283 = vand.u32 %v282, 4294901760
    %v284 = vsub.f32 %v282, %v283
    %v285 = vand.u32 %v284, 4294901760
    %286 = vmatpush.msra.mxu0 %v285
    %v287 = vand.u32 %v130, 4294901760
    %v288 = vsub.f32 %v130, %v287
    %v289 = vand.u32 %v288, 4294901760
    %v290 = vsub.f32 %v288, %v289
    %v291 = vand.u32 %v290, 4294901760
    %292 = vmatpush.msra.mxu0 %v291
    %v293 = vand.u32 %v127, 4294901760
    %v294 = vsub.f32 %v127, %v293
    %v295 = vand.u32 %v294, 4294901760
    %v296 = vsub.f32 %v294, %v295
    %v297 = vand.u32 %v296, 4294901760
    %298 = vmatpush.msra.mxu0 %v297
    %v299 = vand.u32 %v124, 4294901760
    %v300 = vsub.f32 %v124, %v299
    %v301 = vand.u32 %v300, 4294901760
    %v302 = vsub.f32 %v300, %v301
    %v303 = vand.u32 %v302, 4294901760
    %304 = vmatpush.msra.mxu0 %v303
    %v305 = vand.u32 %v121, 4294901760
    %v306 = vsub.f32 %v121, %v305
    %v307 = vand.u32 %v306, 4294901760
    %v308 = vsub.f32 %v306, %v307
    %v309 = vand.u32 %v308, 4294901760
    %310 = vmatpush.msra.mxu0 %v309
    %v311 = vand.u32 %v118, 4294901760
    %v312 = vsub.f32 %v118, %v311
    %v313 = vand.u32 %v312, 4294901760
    %v314 = vsub.f32 %v312, %v313
    %v315 = vand.u32 %v314, 4294901760
    %316 = vmatpush.msra.mxu0 %v315
    %v317 = vand.u32 %v115, 4294901760
    %v318 = vsub.f32 %v115, %v317
    %v319 = vand.u32 %v318, 4294901760
    %v320 = vsub.f32 %v318, %v319
    %v321 = vand.u32 %v320, 4294901760
    %322 = vmatpush.msra.mxu0 %v321
    %v323 = vand.u32 %v112, 4294901760
    %v324 = vsub.f32 %v112, %v323
    %v325 = vand.u32 %v324, 4294901760
    %v326 = vsub.f32 %v324, %v325
    %v327 = vand.u32 %v326, 4294901760
    %328 = vmatpush.msra.mxu0 %v327
    %v329 = vand.u32 %v108, 4294901760
    %330 = vmatmul.f32.gmra.mxu0 %v329
    %v331 = vpop.f32.mrf.mxu0
    %v332 = vadd.f32 %v207, %v331
    %v333 = vand.u32 %v109, 4294901760
    %334 = vmatmul.f32.gmra.mxu0 %v333
    %v335 = vpop.f32.mrf.mxu0
    %v336 = vadd.f32 %v215, %v335
    %v337 = vand.u32 %v110, 4294901760
    %338 = vmatmul.f32.gmra.mxu0 %v337
    %v339 = vpop.f32.mrf.mxu0
    %v340 = vadd.f32 %v223, %v339
    %v341 = vand.u32 %v111, 4294901760
    %342 = vmatmul.f32.gmra.mxu0 %v341
    %v343 = vpop.f32.mrf.mxu0
    %v344 = vadd.f32 %v231, %v343
    %345 = vdwg.mxu0
    %v346 = vand.u32 %v157, 4294901760
    %v347 = vsub.f32 %v157, %v346
    %348 = vmatpush.msra.mxu0 %v347
    %v349 = vand.u32 %v154, 4294901760
    %v350 = vsub.f32 %v154, %v349
    %351 = vmatpush.msra.mxu0 %v350
    %v352 = vand.u32 %v151, 4294901760
    %v353 = vsub.f32 %v151, %v352
    %354 = vmatpush.msra.mxu0 %v353
    %v355 = vand.u32 %v148, 4294901760
    %v356 = vsub.f32 %v148, %v355
    %357 = vmatpush.msra.mxu0 %v356
    %v358 = vand.u32 %v145, 4294901760
    %v359 = vsub.f32 %v145, %v358
    %360 = vmatpush.msra.mxu0 %v359
    %v361 = vand.u32 %v142, 4294901760
    %v362 = vsub.f32 %v142, %v361
    %363 = vmatpush.msra.mxu0 %v362
    %v364 = vand.u32 %v139, 4294901760
    %v365 = vsub.f32 %v139, %v364
    %366 = vmatpush.msra.mxu0 %v365
    %v367 = vand.u32 %v136, 4294901760
    %v368 = vsub.f32 %v136, %v367
    %369 = vmatpush.msra.mxu0 %v368
    %v370 = vand.u32 %v133, 4294901760
    %v371 = vsub.f32 %v133, %v370
    %372 = vmatpush.msra.mxu0 %v371
    %v373 = vand.u32 %v130, 4294901760
    %v374 = vsub.f32 %v130, %v373
    %375 = vmatpush.msra.mxu0 %v374
    %v376 = vand.u32 %v127, 4294901760
    %v377 = vsub.f32 %v127, %v376
    %378 = vmatpush.msra.mxu0 %v377
    %v379 = vand.u32 %v124, 4294901760
    %v380 = vsub.f32 %v124, %v379
    %381 = vmatpush.msra.mxu0 %v380
    %v382 = vand.u32 %v121, 4294901760
    %v383 = vsub.f32 %v121, %v382
    %384 = vmatpush.msra.mxu0 %v383
    %v385 = vand.u32 %v118, 4294901760
    %v386 = vsub.f32 %v118, %v385
    %387 = vmatpush.msra.mxu0 %v386
    %v388 = vand.u32 %v115, 4294901760
    %v389 = vsub.f32 %v115, %v388
    %390 = vmatpush.msra.mxu0 %v389
    %v391 = vand.u32 %v112, 4294901760
    %v392 = vsub.f32 %v112, %v391
    %393 = vmatpush.msra.mxu0 %v392
    %v394 = vand.u32 %v108, 4294901760
    %v395 = vsub.f32 %v108, %v394
    %396 = vmatmul.f32.gmra.mxu0 %v395
    %v397 = vpop.f32.mrf.mxu0
    %v398 = vadd.f32 %v332, %v397
    %v399 = vand.u32 %v109, 4294901760
    %v400 = vsub.f32 %v109, %v399
    %401 = vmatmul.f32.gmra.mxu0 %v400
    %v402 = vpop.f32.mrf.mxu0
    %v403 = vadd.f32 %v336, %v402
    %v404 = vand.u32 %v110, 4294901760
    %v405 = vsub.f32 %v110, %v404
    %406 = vmatmul.f32.gmra.mxu0 %v405
    %v407 = vpop.f32.mrf.mxu0
    %v408 = vadd.f32 %v340, %v407
    %v409 = vand.u32 %v111, 4294901760
    %v410 = vsub.f32 %v111, %v409
    %411 = vmatmul.f32.gmra.mxu0 %v410
    %v412 = vpop.f32.mrf.mxu0
    %v413 = vadd.f32 %v344, %v412
    %414 = vdwg.mxu0
    %v415 = vand.u32 %v157, 4294901760
    %416 = vmatpush.msra.mxu0 %v415
    %v417 = vand.u32 %v154, 4294901760
    %418 = vmatpush.msra.mxu0 %v417
    %v419 = vand.u32 %v151, 4294901760
    %420 = vmatpush.msra.mxu0 %v419
    %v421 = vand.u32 %v148, 4294901760
    %422 = vmatpush.msra.mxu0 %v421
    %v423 = vand.u32 %v145, 4294901760
    %424 = vmatpush.msra.mxu0 %v423
    %v425 = vand.u32 %v142, 4294901760
    %426 = vmatpush.msra.mxu0 %v425
    %v427 = vand.u32 %v139, 4294901760
    %428 = vmatpush.msra.mxu0 %v427
    %v429 = vand.u32 %v136, 4294901760
    %430 = vmatpush.msra.mxu0 %v429
    %v431 = vand.u32 %v133, 4294901760
    %432 = vmatpush.msra.mxu0 %v431
    %v433 = vand.u32 %v130, 4294901760
    %434 = vmatpush.msra.mxu0 %v433
    %v435 = vand.u32 %v127, 4294901760
    %436 = vmatpush.msra.mxu0 %v435
    %v437 = vand.u32 %v124, 4294901760
    %438 = vmatpush.msra.mxu0 %v437
    %v439 = vand.u32 %v121, 4294901760
    %440 = vmatpush.msra.mxu0 %v439
    %v441 = vand.u32 %v118, 4294901760
    %442 = vmatpush.msra.mxu0 %v441
    %v443 = vand.u32 %v115, 4294901760
    %444 = vmatpush.msra.mxu0 %v443
    %v445 = vand.u32 %v112, 4294901760
    %446 = vmatpush.msra.mxu0 %v445
    %v447 = vand.u32 %v108, 4294901760
    %v448 = vsub.f32 %v108, %v447
    %v449 = vand.u32 %v448, 4294901760
    %450 = vmatmul.f32.gmra.mxu0 %v449
    %v451 = vpop.f32.mrf.mxu0
    %v452 = vadd.f32 %v398, %v451
    %v453 = vand.u32 %v109, 4294901760
    %v454 = vsub.f32 %v109, %v453
    %v455 = vand.u32 %v454, 4294901760
    %456 = vmatmul.f32.gmra.mxu0 %v455
    %v457 = vpop.f32.mrf.mxu0
    %v458 = vadd.f32 %v403, %v457
    %v459 = vand.u32 %v110, 4294901760
    %v460 = vsub.f32 %v110, %v459
    %v461 = vand.u32 %v460, 4294901760
    %462 = vmatmul.f32.gmra.mxu0 %v461
    %v463 = vpop.f32.mrf.mxu0
    %v464 = vadd.f32 %v408, %v463
    %v465 = vand.u32 %v111, 4294901760
    %v466 = vsub.f32 %v111, %v465
    %v467 = vand.u32 %v466, 4294901760
    %468 = vmatmul.f32.gmra.mxu0 %v467
    %v469 = vpop.f32.mrf.mxu0
    %v470 = vadd.f32 %v413, %v469
    %471 = vdwg.mxu0
    %v472 = vand.u32 %v157, 4294901760
    %v473 = vsub.f32 %v157, %v472
    %v474 = vand.u32 %v473, 4294901760
    %475 = vmatpush.msra.mxu0 %v474
    %v476 = vand.u32 %v154, 4294901760
    %v477 = vsub.f32 %v154, %v476
    %v478 = vand.u32 %v477, 4294901760
    %479 = vmatpush.msra.mxu0 %v478
    %v480 = vand.u32 %v151, 4294901760
    %v481 = vsub.f32 %v151, %v480
    %v482 = vand.u32 %v481, 4294901760
    %483 = vmatpush.msra.mxu0 %v482
    %v484 = vand.u32 %v148, 4294901760
    %v485 = vsub.f32 %v148, %v484
    %v486 = vand.u32 %v485, 4294901760
    %487 = vmatpush.msra.mxu0 %v486
    %v488 = vand.u32 %v145, 4294901760
    %v489 = vsub.f32 %v145, %v488
    %v490 = vand.u32 %v489, 4294901760
    %491 = vmatpush.msra.mxu0 %v490
    %v492 = vand.u32 %v142, 4294901760
    %v493 = vsub.f32 %v142, %v492
    %v494 = vand.u32 %v493, 4294901760
    %495 = vmatpush.msra.mxu0 %v494
    %v496 = vand.u32 %v139, 4294901760
    %v497 = vsub.f32 %v139, %v496
    %v498 = vand.u32 %v497, 4294901760
    %499 = vmatpush.msra.mxu0 %v498
    %v500 = vand.u32 %v136, 4294901760
    %v501 = vsub.f32 %v136, %v500
    %v502 = vand.u32 %v501, 4294901760
    %503 = vmatpush.msra.mxu0 %v502
    %v504 = vand.u32 %v133, 4294901760
    %v505 = vsub.f32 %v133, %v504
    %v506 = vand.u32 %v505, 4294901760
    %507 = vmatpush.msra.mxu0 %v506
    %v508 = vand.u32 %v130, 4294901760
    %v509 = vsub.f32 %v130, %v508
    %v510 = vand.u32 %v509, 4294901760
    %511 = vmatpush.msra.mxu0 %v510
    %v512 = vand.u32 %v127, 4294901760
    %v513 = vsub.f32 %v127, %v512
    %v514 = vand.u32 %v513, 4294901760
    %515 = vmatpush.msra.mxu0 %v514
    %v516 = vand.u32 %v124, 4294901760
    %v517 = vsub.f32 %v124, %v516
    %v518 = vand.u32 %v517, 4294901760
    %519 = vmatpush.msra.mxu0 %v518
    %v520 = vand.u32 %v121, 4294901760
    %v521 = vsub.f32 %v121, %v520
    %v522 = vand.u32 %v521, 4294901760
    %523 = vmatpush.msra.mxu0 %v522
    %v524 = vand.u32 %v118, 4294901760
    %v525 = vsub.f32 %v118, %v524
    %v526 = vand.u32 %v525, 4294901760
    %527 = vmatpush.msra.mxu0 %v526
    %v528 = vand.u32 %v115, 4294901760
    %v529 = vsub.f32 %v115, %v528
    %v530 = vand.u32 %v529, 4294901760
    %531 = vmatpush.msra.mxu0 %v530
    %v532 = vand.u32 %v112, 4294901760
    %v533 = vsub.f32 %v112, %v532
    %v534 = vand.u32 %v533, 4294901760
    %535 = vmatpush.msra.mxu0 %v534
    %v536 = vand.u32 %v108, 4294901760
    %537 = vmatmul.f32.gmra.mxu0 %v536
    %v538 = vpop.f32.mrf.mxu0
    %v539 = vadd.f32 %v452, %v538
    %v540 = vand.u32 %v109, 4294901760
    %541 = vmatmul.f32.gmra.mxu0 %v540
    %v542 = vpop.f32.mrf.mxu0
    %v543 = vadd.f32 %v458, %v542
    %v544 = vand.u32 %v110, 4294901760
    %545 = vmatmul.f32.gmra.mxu0 %v544
    %v546 = vpop.f32.mrf.mxu0
    %v547 = vadd.f32 %v464, %v546
    %v548 = vand.u32 %v111, 4294901760
    %549 = vmatmul.f32.gmra.mxu0 %v548
    %v550 = vpop.f32.mrf.mxu0
    %v551 = vadd.f32 %v470, %v550
    %552 = vdwg.mxu0
    %v553 = vand.u32 %v157, 4294901760
    %554 = vmatpush.msra.mxu0 %v553
    %v555 = vand.u32 %v154, 4294901760
    %556 = vmatpush.msra.mxu0 %v555
    %v557 = vand.u32 %v151, 4294901760
    %558 = vmatpush.msra.mxu0 %v557
    %v559 = vand.u32 %v148, 4294901760
    %560 = vmatpush.msra.mxu0 %v559
    %v561 = vand.u32 %v145, 4294901760
    %562 = vmatpush.msra.mxu0 %v561
    %v563 = vand.u32 %v142, 4294901760
    %564 = vmatpush.msra.mxu0 %v563
    %v565 = vand.u32 %v139, 4294901760
    %566 = vmatpush.msra.mxu0 %v565
    %v567 = vand.u32 %v136, 4294901760
    %568 = vmatpush.msra.mxu0 %v567
    %v569 = vand.u32 %v133, 4294901760
    %570 = vmatpush.msra.mxu0 %v569
    %v571 = vand.u32 %v130, 4294901760
    %572 = vmatpush.msra.mxu0 %v571
    %v573 = vand.u32 %v127, 4294901760
    %574 = vmatpush.msra.mxu0 %v573
    %v575 = vand.u32 %v124, 4294901760
    %576 = vmatpush.msra.mxu0 %v575
    %v577 = vand.u32 %v121, 4294901760
    %578 = vmatpush.msra.mxu0 %v577
    %v579 = vand.u32 %v118, 4294901760
    %580 = vmatpush.msra.mxu0 %v579
    %v581 = vand.u32 %v115, 4294901760
    %582 = vmatpush.msra.mxu0 %v581
    %v583 = vand.u32 %v112, 4294901760
    %584 = vmatpush.msra.mxu0 %v583
    %v585 = vand.u32 %v108, 4294901760
    %586 = vmatmul.f32.gmra.mxu0 %v585
    %v587 = vpop.f32.mrf.mxu0
    %v588 = vadd.f32 %v539, %v587
    %v589 = vand.u32 %v109, 4294901760
    %590 = vmatmul.f32.gmra.mxu0 %v589
    %v591 = vpop.f32.mrf.mxu0
    %v592 = vadd.f32 %v543, %v591
    %v593 = vand.u32 %v110, 4294901760
    %594 = vmatmul.f32.gmra.mxu0 %v593
    %v595 = vpop.f32.mrf.mxu0
    %v596 = vadd.f32 %v547, %v595
    %v597 = vand.u32 %v111, 4294901760
    %598 = vmatmul.f32.gmra.mxu0 %v597
    %v599 = vpop.f32.mrf.mxu0
    %v600 = vadd.f32 %v551, %v599
    %601 = vdwg.mxu0
    %v602 = vand.u32 %v158, 4294901760
    %603 = vmatpush.msra.mxu0 %v602
    %v604 = vand.u32 %v155, 4294901760
    %605 = vmatpush.msra.mxu0 %v604
    %v606 = vand.u32 %v152, 4294901760
    %607 = vmatpush.msra.mxu0 %v606
    %v608 = vand.u32 %v149, 4294901760
    %609 = vmatpush.msra.mxu0 %v608
    %v610 = vand.u32 %v146, 4294901760
    %611 = vmatpush.msra.mxu0 %v610
    %v612 = vand.u32 %v143, 4294901760
    %613 = vmatpush.msra.mxu0 %v612
    %v614 = vand.u32 %v140, 4294901760
    %615 = vmatpush.msra.mxu0 %v614
    %v616 = vand.u32 %v137, 4294901760
    %617 = vmatpush.msra.mxu0 %v616
    %v618 = vand.u32 %v134, 4294901760
    %619 = vmatpush.msra.mxu0 %v618
    %v620 = vand.u32 %v131, 4294901760
    %621 = vmatpush.msra.mxu0 %v620
    %v622 = vand.u32 %v128, 4294901760
    %623 = vmatpush.msra.mxu0 %v622
    %v624 = vand.u32 %v125, 4294901760
    %625 = vmatpush.msra.mxu0 %v624
    %v626 = vand.u32 %v122, 4294901760
    %627 = vmatpush.msra.mxu0 %v626
    %v628 = vand.u32 %v119, 4294901760
    %629 = vmatpush.msra.mxu0 %v628
    %v630 = vand.u32 %v116, 4294901760
    %631 = vmatpush.msra.mxu0 %v630
    %v632 = vand.u32 %v113, 4294901760
    %633 = vmatpush.msra.mxu0 %v632
    %v634 = vand.u32 %v108, 4294901760
    %v635 = vsub.f32 %v108, %v634
    %v636 = vand.u32 %v635, 4294901760
    %v637 = vsub.f32 %v635, %v636
    %v638 = vand.u32 %v637, 4294901760
    %639 = vmatmul.f32.gmra.mxu0 %v638
    %v640 = vpop.f32.mrf.mxu0
    %v641 = vadd.f32 %v163, %v640
    %v642 = vand.u32 %v109, 4294901760
    %v643 = vsub.f32 %v109, %v642
    %v644 = vand.u32 %v643, 4294901760
    %v645 = vsub.f32 %v643, %v644
    %v646 = vand.u32 %v645, 4294901760
    %647 = vmatmul.f32.gmra.mxu0 %v646
    %v648 = vpop.f32.mrf.mxu0
    %v649 = vadd.f32 %v163, %v648
    %v650 = vand.u32 %v110, 4294901760
    %v651 = vsub.f32 %v110, %v650
    %v652 = vand.u32 %v651, 4294901760
    %v653 = vsub.f32 %v651, %v652
    %v654 = vand.u32 %v653, 4294901760
    %655 = vmatmul.f32.gmra.mxu0 %v654
    %v656 = vpop.f32.mrf.mxu0
    %v657 = vadd.f32 %v163, %v656
    %v658 = vand.u32 %v111, 4294901760
    %v659 = vsub.f32 %v111, %v658
    %v660 = vand.u32 %v659, 4294901760
    %v661 = vsub.f32 %v659, %v660
    %v662 = vand.u32 %v661, 4294901760
    %663 = vmatmul.f32.gmra.mxu0 %v662
    %v664 = vpop.f32.mrf.mxu0
    %v665 = vadd.f32 %v163, %v664
    %666 = vdwg.mxu0
    %v667 = vand.u32 %v158, 4294901760
    %v668 = vsub.f32 %v158, %v667
    %v669 = vand.u32 %v668, 4294901760
    %v670 = vsub.f32 %v668, %v669
    %v671 = vand.u32 %v670, 4294901760
    %672 = vmatpush.msra.mxu0 %v671
    %v673 = vand.u32 %v155, 4294901760
    %v674 = vsub.f32 %v155, %v673
    %v675 = vand.u32 %v674, 4294901760
    %v676 = vsub.f32 %v674, %v675
    %v677 = vand.u32 %v676, 4294901760
    %678 = vmatpush.msra.mxu0 %v677
    %v679 = vand.u32 %v152, 4294901760
    %v680 = vsub.f32 %v152, %v679
    %v681 = vand.u32 %v680, 4294901760
    %v682 = vsub.f32 %v680, %v681
    %v683 = vand.u32 %v682, 4294901760
    %684 = vmatpush.msra.mxu0 %v683
    %v685 = vand.u32 %v149, 4294901760
    %v686 = vsub.f32 %v149, %v685
    %v687 = vand.u32 %v686, 4294901760
    %v688 = vsub.f32 %v686, %v687
    %v689 = vand.u32 %v688, 4294901760
    %690 = vmatpush.msra.mxu0 %v689
    %v691 = vand.u32 %v146, 4294901760
    %v692 = vsub.f32 %v146, %v691
    %v693 = vand.u32 %v692, 4294901760
    %v694 = vsub.f32 %v692, %v693
    %v695 = vand.u32 %v694, 4294901760
    %696 = vmatpush.msra.mxu0 %v695
    %v697 = vand.u32 %v143, 4294901760
    %v698 = vsub.f32 %v143, %v697
    %v699 = vand.u32 %v698, 4294901760
    %v700 = vsub.f32 %v698, %v699
    %v701 = vand.u32 %v700, 4294901760
    %702 = vmatpush.msra.mxu0 %v701
    %v703 = vand.u32 %v140, 4294901760
    %v704 = vsub.f32 %v140, %v703
    %v705 = vand.u32 %v704, 4294901760
    %v706 = vsub.f32 %v704, %v705
    %v707 = vand.u32 %v706, 4294901760
    %708 = vmatpush.msra.mxu0 %v707
    %v709 = vand.u32 %v137, 4294901760
    %v710 = vsub.f32 %v137, %v709
    %v711 = vand.u32 %v710, 4294901760
    %v712 = vsub.f32 %v710, %v711
    %v713 = vand.u32 %v712, 4294901760
    %714 = vmatpush.msra.mxu0 %v713
    %v715 = vand.u32 %v134, 4294901760
    %v716 = vsub.f32 %v134, %v715
    %v717 = vand.u32 %v716, 4294901760
    %v718 = vsub.f32 %v716, %v717
    %v719 = vand.u32 %v718, 4294901760
    %720 = vmatpush.msra.mxu0 %v719
    %v721 = vand.u32 %v131, 4294901760
    %v722 = vsub.f32 %v131, %v721
    %v723 = vand.u32 %v722, 4294901760
    %v724 = vsub.f32 %v722, %v723
    %v725 = vand.u32 %v724, 4294901760
    %726 = vmatpush.msra.mxu0 %v725
    %v727 = vand.u32 %v128, 4294901760
    %v728 = vsub.f32 %v128, %v727
    %v729 = vand.u32 %v728, 4294901760
    %v730 = vsub.f32 %v728, %v729
    %v731 = vand.u32 %v730, 4294901760
    %732 = vmatpush.msra.mxu0 %v731
    %v733 = vand.u32 %v125, 4294901760
    %v734 = vsub.f32 %v125, %v733
    %v735 = vand.u32 %v734, 4294901760
    %v736 = vsub.f32 %v734, %v735
    %v737 = vand.u32 %v736, 4294901760
    %738 = vmatpush.msra.mxu0 %v737
    %v739 = vand.u32 %v122, 4294901760
    %v740 = vsub.f32 %v122, %v739
    %v741 = vand.u32 %v740, 4294901760
    %v742 = vsub.f32 %v740, %v741
    %v743 = vand.u32 %v742, 4294901760
    %744 = vmatpush.msra.mxu0 %v743
    %v745 = vand.u32 %v119, 4294901760
    %v746 = vsub.f32 %v119, %v745
    %v747 = vand.u32 %v746, 4294901760
    %v748 = vsub.f32 %v746, %v747
    %v749 = vand.u32 %v748, 4294901760
    %750 = vmatpush.msra.mxu0 %v749
    %v751 = vand.u32 %v116, 4294901760
    %v752 = vsub.f32 %v116, %v751
    %v753 = vand.u32 %v752, 4294901760
    %v754 = vsub.f32 %v752, %v753
    %v755 = vand.u32 %v754, 4294901760
    %756 = vmatpush.msra.mxu0 %v755
    %v757 = vand.u32 %v113, 4294901760
    %v758 = vsub.f32 %v113, %v757
    %v759 = vand.u32 %v758, 4294901760
    %v760 = vsub.f32 %v758, %v759
    %v761 = vand.u32 %v760, 4294901760
    %762 = vmatpush.msra.mxu0 %v761
    %v763 = vand.u32 %v108, 4294901760
    %764 = vmatmul.f32.gmra.mxu0 %v763
    %v765 = vpop.f32.mrf.mxu0
    %v766 = vadd.f32 %v641, %v765
    %v767 = vand.u32 %v109, 4294901760
    %768 = vmatmul.f32.gmra.mxu0 %v767
    %v769 = vpop.f32.mrf.mxu0
    %v770 = vadd.f32 %v649, %v769
    %v771 = vand.u32 %v110, 4294901760
    %772 = vmatmul.f32.gmra.mxu0 %v771
    %v773 = vpop.f32.mrf.mxu0
    %v774 = vadd.f32 %v657, %v773
    %v775 = vand.u32 %v111, 4294901760
    %776 = vmatmul.f32.gmra.mxu0 %v775
    %v777 = vpop.f32.mrf.mxu0
    %v778 = vadd.f32 %v665, %v777
    %779 = vdwg.mxu0
    %v780 = vand.u32 %v158, 4294901760
    %v781 = vsub.f32 %v158, %v780
    %782 = vmatpush.msra.mxu0 %v781
    %v783 = vand.u32 %v155, 4294901760
    %v784 = vsub.f32 %v155, %v783
    %785 = vmatpush.msra.mxu0 %v784
    %v786 = vand.u32 %v152, 4294901760
    %v787 = vsub.f32 %v152, %v786
    %788 = vmatpush.msra.mxu0 %v787
    %v789 = vand.u32 %v149, 4294901760
    %v790 = vsub.f32 %v149, %v789
    %791 = vmatpush.msra.mxu0 %v790
    %v792 = vand.u32 %v146, 4294901760
    %v793 = vsub.f32 %v146, %v792
    %794 = vmatpush.msra.mxu0 %v793
    %v795 = vand.u32 %v143, 4294901760
    %v796 = vsub.f32 %v143, %v795
    %797 = vmatpush.msra.mxu0 %v796
    %v798 = vand.u32 %v140, 4294901760
    %v799 = vsub.f32 %v140, %v798
    %800 = vmatpush.msra.mxu0 %v799
    %v801 = vand.u32 %v137, 4294901760
    %v802 = vsub.f32 %v137, %v801
    %803 = vmatpush.msra.mxu0 %v802
    %v804 = vand.u32 %v134, 4294901760
    %v805 = vsub.f32 %v134, %v804
    %806 = vmatpush.msra.mxu0 %v805
    %v807 = vand.u32 %v131, 4294901760
    %v808 = vsub.f32 %v131, %v807
    %809 = vmatpush.msra.mxu0 %v808
    %v810 = vand.u32 %v128, 4294901760
    %v811 = vsub.f32 %v128, %v810
    %812 = vmatpush.msra.mxu0 %v811
    %v813 = vand.u32 %v125, 4294901760
    %v814 = vsub.f32 %v125, %v813
    %815 = vmatpush.msra.mxu0 %v814
    %v816 = vand.u32 %v122, 4294901760
    %v817 = vsub.f32 %v122, %v816
    %818 = vmatpush.msra.mxu0 %v817
    %v819 = vand.u32 %v119, 4294901760
    %v820 = vsub.f32 %v119, %v819
    %821 = vmatpush.msra.mxu0 %v820
    %v822 = vand.u32 %v116, 4294901760
    %v823 = vsub.f32 %v116, %v822
    %824 = vmatpush.msra.mxu0 %v823
    %v825 = vand.u32 %v113, 4294901760
    %v826 = vsub.f32 %v113, %v825
    %827 = vmatpush.msra.mxu0 %v826
    %v828 = vand.u32 %v108, 4294901760
    %v829 = vsub.f32 %v108, %v828
    %830 = vmatmul.f32.gmra.mxu0 %v829
    %v831 = vpop.f32.mrf.mxu0
    %v832 = vadd.f32 %v766, %v831
    %v833 = vand.u32 %v109, 4294901760
    %v834 = vsub.f32 %v109, %v833
    %835 = vmatmul.f32.gmra.mxu0 %v834
    %v836 = vpop.f32.mrf.mxu0
    %v837 = vadd.f32 %v770, %v836
    %v838 = vand.u32 %v110, 4294901760
    %v839 = vsub.f32 %v110, %v838
    %840 = vmatmul.f32.gmra.mxu0 %v839
    %v841 = vpop.f32.mrf.mxu0
    %v842 = vadd.f32 %v774, %v841
    %v843 = vand.u32 %v111, 4294901760
    %v844 = vsub.f32 %v111, %v843
    %845 = vmatmul.f32.gmra.mxu0 %v844
    %v846 = vpop.f32.mrf.mxu0
    %v847 = vadd.f32 %v778, %v846
    %848 = vdwg.mxu0
    %v849 = vand.u32 %v158, 4294901760
    %850 = vmatpush.msra.mxu0 %v849
    %v851 = vand.u32 %v155, 4294901760
    %852 = vmatpush.msra.mxu0 %v851
    %v853 = vand.u32 %v152, 4294901760
    %854 = vmatpush.msra.mxu0 %v853
    %v855 = vand.u32 %v149, 4294901760
    %856 = vmatpush.msra.mxu0 %v855
    %v857 = vand.u32 %v146, 4294901760
    %858 = vmatpush.msra.mxu0 %v857
    %v859 = vand.u32 %v143, 4294901760
    %860 = vmatpush.msra.mxu0 %v859
    %v861 = vand.u32 %v140, 4294901760
    %862 = vmatpush.msra.mxu0 %v861
    %v863 = vand.u32 %v137, 4294901760
    %864 = vmatpush.msra.mxu0 %v863
    %v865 = vand.u32 %v134, 4294901760
    %866 = vmatpush.msra.mxu0 %v865
    %v867 = vand.u32 %v131, 4294901760
    %868 = vmatpush.msra.mxu0 %v867
    %v869 = vand.u32 %v128, 4294901760
    %870 = vmatpush.msra.mxu0 %v869
    %v871 = vand.u32 %v125, 4294901760
    %872 = vmatpush.msra.mxu0 %v871
    %v873 = vand.u32 %v122, 4294901760
    %874 = vmatpush.msra.mxu0 %v873
    %v875 = vand.u32 %v119, 4294901760
    %876 = vmatpush.msra.mxu0 %v875
    %v877 = vand.u32 %v116, 4294901760
    %878 = vmatpush.msra.mxu0 %v877
    %v879 = vand.u32 %v113, 4294901760
    %880 = vmatpush.msra.mxu0 %v879
    %v881 = vand.u32 %v108, 4294901760
    %v882 = vsub.f32 %v108, %v881
    %v883 = vand.u32 %v882, 4294901760
    %884 = vmatmul.f32.gmra.mxu0 %v883
    %v885 = vpop.f32.mrf.mxu0
    %v886 = vadd.f32 %v832, %v885
    %v887 = vand.u32 %v109, 4294901760
    %v888 = vsub.f32 %v109, %v887
    %v889 = vand.u32 %v888, 4294901760
    %890 = vmatmul.f32.gmra.mxu0 %v889
    %v891 = vpop.f32.mrf.mxu0
    %v892 = vadd.f32 %v837, %v891
    %v893 = vand.u32 %v110, 4294901760
    %v894 = vsub.f32 %v110, %v893
    %v895 = vand.u32 %v894, 4294901760
    %896 = vmatmul.f32.gmra.mxu0 %v895
    %v897 = vpop.f32.mrf.mxu0
    %v898 = vadd.f32 %v842, %v897
    %v899 = vand.u32 %v111, 4294901760
    %v900 = vsub.f32 %v111, %v899
    %v901 = vand.u32 %v900, 4294901760
    %902 = vmatmul.f32.gmra.mxu0 %v901
    %v903 = vpop.f32.mrf.mxu0
    %v904 = vadd.f32 %v847, %v903
    %905 = vdwg.mxu0
    %v906 = vand.u32 %v158, 4294901760
    %v907 = vsub.f32 %v158, %v906
    %v908 = vand.u32 %v907, 4294901760
    %909 = vmatpush.msra.mxu0 %v908
    %v910 = vand.u32 %v155, 4294901760
    %v911 = vsub.f32 %v155, %v910
    %v912 = vand.u32 %v911, 4294901760
    %913 = vmatpush.msra.mxu0 %v912
    %v914 = vand.u32 %v152, 4294901760
    %v915 = vsub.f32 %v152, %v914
    %v916 = vand.u32 %v915, 4294901760
    %917 = vmatpush.msra.mxu0 %v916
    %v918 = vand.u32 %v149, 4294901760
    %v919 = vsub.f32 %v149, %v918
    %v920 = vand.u32 %v919, 4294901760
    %921 = vmatpush.msra.mxu0 %v920
    %v922 = vand.u32 %v146, 4294901760
    %v923 = vsub.f32 %v146, %v922
    %v924 = vand.u32 %v923, 4294901760
    %925 = vmatpush.msra.mxu0 %v924
    %v926 = vand.u32 %v143, 4294901760
    %v927 = vsub.f32 %v143, %v926
    %v928 = vand.u32 %v927, 4294901760
    %929 = vmatpush.msra.mxu0 %v928
    %v930 = vand.u32 %v140, 4294901760
    %v931 = vsub.f32 %v140, %v930
    %v932 = vand.u32 %v931, 4294901760
    %933 = vmatpush.msra.mxu0 %v932
    %v934 = vand.u32 %v137, 4294901760
    %v935 = vsub.f32 %v137, %v934
    %v936 = vand.u32 %v935, 4294901760
    %937 = vmatpush.msra.mxu0 %v936
    %v938 = vand.u32 %v134, 4294901760
    %v939 = vsub.f32 %v134, %v938
    %v940 = vand.u32 %v939, 4294901760
    %941 = vmatpush.msra.mxu0 %v940
    %v942 = vand.u32 %v131, 4294901760
    %v943 = vsub.f32 %v131, %v942
    %v944 = vand.u32 %v943, 4294901760
    %945 = vmatpush.msra.mxu0 %v944
    %v946 = vand.u32 %v128, 4294901760
    %v947 = vsub.f32 %v128, %v946
    %v948 = vand.u32 %v947, 4294901760
    %949 = vmatpush.msra.mxu0 %v948
    %v950 = vand.u32 %v125, 4294901760
    %v951 = vsub.f32 %v125, %v950
    %v952 = vand.u32 %v951, 4294901760
    %953 = vmatpush.msra.mxu0 %v952
    %v954 = vand.u32 %v122, 4294901760
    %v955 = vsub.f32 %v122, %v954
    %v956 = vand.u32 %v955, 4294901760
    %957 = vmatpush.msra.mxu0 %v956
    %v958 = vand.u32 %v119, 4294901760
    %v959 = vsub.f32 %v119, %v958
    %v960 = vand.u32 %v959, 4294901760
    %961 = vmatpush.msra.mxu0 %v960
    %v962 = vand.u32 %v116, 4294901760
    %v963 = vsub.f32 %v116, %v962
    %v964 = vand.u32 %v963, 4294901760
    %965 = vmatpush.msra.mxu0 %v964
    %v966 = vand.u32 %v113, 4294901760
    %v967 = vsub.f32 %v113, %v966
    %v968 = vand.u32 %v967, 4294901760
    %969 = vmatpush.msra.mxu0 %v968
    %v970 = vand.u32 %v108, 4294901760
    %971 = vmatmul.f32.gmra.mxu0 %v970
    %v972 = vpop.f32.mrf.mxu0
    %v973 = vadd.f32 %v886, %v972
    %v974 = vand.u32 %v109, 4294901760
    %975 = vmatmul.f32.gmra.mxu0 %v974
    %v976 = vpop.f32.mrf.mxu0
    %v977 = vadd.f32 %v892, %v976
    %v978 = vand.u32 %v110, 4294901760
    %979 = vmatmul.f32.gmra.mxu0 %v978
    %v980 = vpop.f32.mrf.mxu0
    %v981 = vadd.f32 %v898, %v980
    %v982 = vand.u32 %v111, 4294901760
    %983 = vmatmul.f32.gmra.mxu0 %v982
    %v984 = vpop.f32.mrf.mxu0
    %v985 = vadd.f32 %v904, %v984
    %986 = vdwg.mxu0
    %v987 = vand.u32 %v158, 4294901760
    %988 = vmatpush.msra.mxu0 %v987
    %v989 = vand.u32 %v155, 4294901760
    %990 = vmatpush.msra.mxu0 %v989
    %v991 = vand.u32 %v152, 4294901760
    %992 = vmatpush.msra.mxu0 %v991
    %v993 = vand.u32 %v149, 4294901760
    %994 = vmatpush.msra.mxu0 %v993
    %v995 = vand.u32 %v146, 4294901760
    %996 = vmatpush.msra.mxu0 %v995
    %v997 = vand.u32 %v143, 4294901760
    %998 = vmatpush.msra.mxu0 %v997
    %v999 = vand.u32 %v140, 4294901760
    %1000 = vmatpush.msra.mxu0 %v999
    %v1001 = vand.u32 %v137, 4294901760
    %1002 = vmatpush.msra.mxu0 %v1001
    %v1003 = vand.u32 %v134, 4294901760
    %1004 = vmatpush.msra.mxu0 %v1003
    %v1005 = vand.u32 %v131, 4294901760
    %1006 = vmatpush.msra.mxu0 %v1005
    %v1007 = vand.u32 %v128, 4294901760
    %1008 = vmatpush.msra.mxu0 %v1007
    %v1009 = vand.u32 %v125, 4294901760
    %1010 = vmatpush.msra.mxu0 %v1009
    %v1011 = vand.u32 %v122, 4294901760
    %1012 = vmatpush.msra.mxu0 %v1011
    %v1013 = vand.u32 %v119, 4294901760
    %1014 = vmatpush.msra.mxu0 %v1013
    %v1015 = vand.u32 %v116, 4294901760
    %1016 = vmatpush.msra.mxu0 %v1015
    %v1017 = vand.u32 %v113, 4294901760
    %1018 = vmatpush.msra.mxu0 %v1017
    %v1019 = vand.u32 %v108, 4294901760
    %1020 = vmatmul.f32.gmra.mxu0 %v1019
    %v1021 = vpop.f32.mrf.mxu0
    %v1022 = vadd.f32 %v973, %v1021
    %v1023 = vand.u32 %v109, 4294901760
    %1024 = vmatmul.f32.gmra.mxu0 %v1023
    %v1025 = vpop.f32.mrf.mxu0
    %v1026 = vadd.f32 %v977, %v1025
    %v1027 = vand.u32 %v110, 4294901760
    %1028 = vmatmul.f32.gmra.mxu0 %v1027
    %v1029 = vpop.f32.mrf.mxu0
    %v1030 = vadd.f32 %v981, %v1029
    %v1031 = vand.u32 %v111, 4294901760
    %1032 = vmatmul.f32.gmra.mxu0 %v1031
    %v1033 = vpop.f32.mrf.mxu0
    %v1034 = vadd.f32 %v985, %v1033
    %1035 = vdwg.mxu0
    %v1036 = vand.u32 %v159, 4294901760
    %1037 = vmatpush.msra.mxu0 %v1036
    %v1038 = vand.u32 %v156, 4294901760
    %1039 = vmatpush.msra.mxu0 %v1038
    %v1040 = vand.u32 %v153, 4294901760
    %1041 = vmatpush.msra.mxu0 %v1040
    %v1042 = vand.u32 %v150, 4294901760
    %1043 = vmatpush.msra.mxu0 %v1042
    %v1044 = vand.u32 %v147, 4294901760
    %1045 = vmatpush.msra.mxu0 %v1044
    %v1046 = vand.u32 %v144, 4294901760
    %1047 = vmatpush.msra.mxu0 %v1046
    %v1048 = vand.u32 %v141, 4294901760
    %1049 = vmatpush.msra.mxu0 %v1048
    %v1050 = vand.u32 %v138, 4294901760
    %1051 = vmatpush.msra.mxu0 %v1050
    %v1052 = vand.u32 %v135, 4294901760
    %1053 = vmatpush.msra.mxu0 %v1052
    %v1054 = vand.u32 %v132, 4294901760
    %1055 = vmatpush.msra.mxu0 %v1054
    %v1056 = vand.u32 %v129, 4294901760
    %1057 = vmatpush.msra.mxu0 %v1056
    %v1058 = vand.u32 %v126, 4294901760
    %1059 = vmatpush.msra.mxu0 %v1058
    %v1060 = vand.u32 %v123, 4294901760
    %1061 = vmatpush.msra.mxu0 %v1060
    %v1062 = vand.u32 %v120, 4294901760
    %1063 = vmatpush.msra.mxu0 %v1062
    %v1064 = vand.u32 %v117, 4294901760
    %1065 = vmatpush.msra.mxu0 %v1064
    %v1066 = vand.u32 %v114, 4294901760
    %1067 = vmatpush.msra.mxu0 %v1066
    %v1068 = vand.u32 %v108, 4294901760
    %v1069 = vsub.f32 %v108, %v1068
    %v1070 = vand.u32 %v1069, 4294901760
    %v1071 = vsub.f32 %v1069, %v1070
    %v1072 = vand.u32 %v1071, 4294901760
    %1073 = vmatmul.f32.gmra.mxu0 %v1072
    %v1074 = vpop.f32.mrf.mxu0
    %v1075 = vadd.f32 %v164, %v1074
    %v1076 = vand.u32 %v109, 4294901760
    %v1077 = vsub.f32 %v109, %v1076
    %v1078 = vand.u32 %v1077, 4294901760
    %v1079 = vsub.f32 %v1077, %v1078
    %v1080 = vand.u32 %v1079, 4294901760
    %1081 = vmatmul.f32.gmra.mxu0 %v1080
    %v1082 = vpop.f32.mrf.mxu0
    %v1083 = vadd.f32 %v164, %v1082
    %v1084 = vand.u32 %v110, 4294901760
    %v1085 = vsub.f32 %v110, %v1084
    %v1086 = vand.u32 %v1085, 4294901760
    %v1087 = vsub.f32 %v1085, %v1086
    %v1088 = vand.u32 %v1087, 4294901760
    %1089 = vmatmul.f32.gmra.mxu0 %v1088
    %v1090 = vpop.f32.mrf.mxu0
    %v1091 = vadd.f32 %v164, %v1090
    %v1092 = vand.u32 %v111, 4294901760
    %v1093 = vsub.f32 %v111, %v1092
    %v1094 = vand.u32 %v1093, 4294901760
    %v1095 = vsub.f32 %v1093, %v1094
    %v1096 = vand.u32 %v1095, 4294901760
    %1097 = vmatmul.f32.gmra.mxu0 %v1096
    %v1098 = vpop.f32.mrf.mxu0
    %v1099 = vadd.f32 %v164, %v1098
    %1100 = vdwg.mxu0
    %v1101 = vand.u32 %v159, 4294901760
    %v1102 = vsub.f32 %v159, %v1101
    %v1103 = vand.u32 %v1102, 4294901760
    %v1104 = vsub.f32 %v1102, %v1103
    %v1105 = vand.u32 %v1104, 4294901760
    %1106 = vmatpush.msra.mxu0 %v1105
    %v1107 = vand.u32 %v156, 4294901760
    %v1108 = vsub.f32 %v156, %v1107
    %v1109 = vand.u32 %v1108, 4294901760
    %v1110 = vsub.f32 %v1108, %v1109
    %v1111 = vand.u32 %v1110, 4294901760
    %1112 = vmatpush.msra.mxu0 %v1111
    %v1113 = vand.u32 %v153, 4294901760
    %v1114 = vsub.f32 %v153, %v1113
    %v1115 = vand.u32 %v1114, 4294901760
    %v1116 = vsub.f32 %v1114, %v1115
    %v1117 = vand.u32 %v1116, 4294901760
    %1118 = vmatpush.msra.mxu0 %v1117
    %v1119 = vand.u32 %v150, 4294901760
    %v1120 = vsub.f32 %v150, %v1119
    %v1121 = vand.u32 %v1120, 4294901760
    %v1122 = vsub.f32 %v1120, %v1121
    %v1123 = vand.u32 %v1122, 4294901760
    %1124 = vmatpush.msra.mxu0 %v1123
    %v1125 = vand.u32 %v147, 4294901760
    %v1126 = vsub.f32 %v147, %v1125
    %v1127 = vand.u32 %v1126, 4294901760
    %v1128 = vsub.f32 %v1126, %v1127
    %v1129 = vand.u32 %v1128, 4294901760
    %1130 = vmatpush.msra.mxu0 %v1129
    %v1131 = vand.u32 %v144, 4294901760
    %v1132 = vsub.f32 %v144, %v1131
    %v1133 = vand.u32 %v1132, 4294901760
    %v1134 = vsub.f32 %v1132, %v1133
    %v1135 = vand.u32 %v1134, 4294901760
    %1136 = vmatpush.msra.mxu0 %v1135
    %v1137 = vand.u32 %v141, 4294901760
    %v1138 = vsub.f32 %v141, %v1137
    %v1139 = vand.u32 %v1138, 4294901760
    %v1140 = vsub.f32 %v1138, %v1139
    %v1141 = vand.u32 %v1140, 4294901760
    %1142 = vmatpush.msra.mxu0 %v1141
    %v1143 = vand.u32 %v138, 4294901760
    %v1144 = vsub.f32 %v138, %v1143
    %v1145 = vand.u32 %v1144, 4294901760
    %v1146 = vsub.f32 %v1144, %v1145
    %v1147 = vand.u32 %v1146, 4294901760
    %1148 = vmatpush.msra.mxu0 %v1147
    %v1149 = vand.u32 %v135, 4294901760
    %v1150 = vsub.f32 %v135, %v1149
    %v1151 = vand.u32 %v1150, 4294901760
    %v1152 = vsub.f32 %v1150, %v1151
    %v1153 = vand.u32 %v1152, 4294901760
    %1154 = vmatpush.msra.mxu0 %v1153
    %v1155 = vand.u32 %v132, 4294901760
    %v1156 = vsub.f32 %v132, %v1155
    %v1157 = vand.u32 %v1156, 4294901760
    %v1158 = vsub.f32 %v1156, %v1157
    %v1159 = vand.u32 %v1158, 4294901760
    %1160 = vmatpush.msra.mxu0 %v1159
    %v1161 = vand.u32 %v129, 4294901760
    %v1162 = vsub.f32 %v129, %v1161
    %v1163 = vand.u32 %v1162, 4294901760
    %v1164 = vsub.f32 %v1162, %v1163
    %v1165 = vand.u32 %v1164, 4294901760
    %1166 = vmatpush.msra.mxu0 %v1165
    %v1167 = vand.u32 %v126, 4294901760
    %v1168 = vsub.f32 %v126, %v1167
    %v1169 = vand.u32 %v1168, 4294901760
    %v1170 = vsub.f32 %v1168, %v1169
    %v1171 = vand.u32 %v1170, 4294901760
    %1172 = vmatpush.msra.mxu0 %v1171
    %v1173 = vand.u32 %v123, 4294901760
    %v1174 = vsub.f32 %v123, %v1173
    %v1175 = vand.u32 %v1174, 4294901760
    %v1176 = vsub.f32 %v1174, %v1175
    %v1177 = vand.u32 %v1176, 4294901760
    %1178 = vmatpush.msra.mxu0 %v1177
    %v1179 = vand.u32 %v120, 4294901760
    %v1180 = vsub.f32 %v120, %v1179
    %v1181 = vand.u32 %v1180, 4294901760
    %v1182 = vsub.f32 %v1180, %v1181
    %v1183 = vand.u32 %v1182, 4294901760
    %1184 = vmatpush.msra.mxu0 %v1183
    %v1185 = vand.u32 %v117, 4294901760
    %v1186 = vsub.f32 %v117, %v1185
    %v1187 = vand.u32 %v1186, 4294901760
    %v1188 = vsub.f32 %v1186, %v1187
    %v1189 = vand.u32 %v1188, 4294901760
    %1190 = vmatpush.msra.mxu0 %v1189
    %v1191 = vand.u32 %v114, 4294901760
    %v1192 = vsub.f32 %v114, %v1191
    %v1193 = vand.u32 %v1192, 4294901760
    %v1194 = vsub.f32 %v1192, %v1193
    %v1195 = vand.u32 %v1194, 4294901760
    %1196 = vmatpush.msra.mxu0 %v1195
    %v1197 = vand.u32 %v108, 4294901760
    %1198 = vmatmul.f32.gmra.mxu0 %v1197
    %v1199 = vpop.f32.mrf.mxu0
    %v1200 = vadd.f32 %v1075, %v1199
    %v1201 = vand.u32 %v109, 4294901760
    %1202 = vmatmul.f32.gmra.mxu0 %v1201
    %v1203 = vpop.f32.mrf.mxu0
    %v1204 = vadd.f32 %v1083, %v1203
    %v1205 = vand.u32 %v110, 4294901760
    %1206 = vmatmul.f32.gmra.mxu0 %v1205
    %v1207 = vpop.f32.mrf.mxu0
    %v1208 = vadd.f32 %v1091, %v1207
    %v1209 = vand.u32 %v111, 4294901760
    %1210 = vmatmul.f32.gmra.mxu0 %v1209
    %v1211 = vpop.f32.mrf.mxu0
    %v1212 = vadd.f32 %v1099, %v1211
    %1213 = vdwg.mxu0
    %v1214 = vand.u32 %v159, 4294901760
    %v1215 = vsub.f32 %v159, %v1214
    %1216 = vmatpush.msra.mxu0 %v1215
    %v1217 = vand.u32 %v156, 4294901760
    %v1218 = vsub.f32 %v156, %v1217
    %1219 = vmatpush.msra.mxu0 %v1218
    %v1220 = vand.u32 %v153, 4294901760
    %v1221 = vsub.f32 %v153, %v1220
    %1222 = vmatpush.msra.mxu0 %v1221
    %v1223 = vand.u32 %v150, 4294901760
    %v1224 = vsub.f32 %v150, %v1223
    %1225 = vmatpush.msra.mxu0 %v1224
    %v1226 = vand.u32 %v147, 4294901760
    %v1227 = vsub.f32 %v147, %v1226
    %1228 = vmatpush.msra.mxu0 %v1227
    %v1229 = vand.u32 %v144, 4294901760
    %v1230 = vsub.f32 %v144, %v1229
    %1231 = vmatpush.msra.mxu0 %v1230
    %v1232 = vand.u32 %v141, 4294901760
    %v1233 = vsub.f32 %v141, %v1232
    %1234 = vmatpush.msra.mxu0 %v1233
    %v1235 = vand.u32 %v138, 4294901760
    %v1236 = vsub.f32 %v138, %v1235
    %1237 = vmatpush.msra.mxu0 %v1236
    %v1238 = vand.u32 %v135, 4294901760
    %v1239 = vsub.f32 %v135, %v1238
    %1240 = vmatpush.msra.mxu0 %v1239
    %v1241 = vand.u32 %v132, 4294901760
    %v1242 = vsub.f32 %v132, %v1241
    %1243 = vmatpush.msra.mxu0 %v1242
    %v1244 = vand.u32 %v129, 4294901760
    %v1245 = vsub.f32 %v129, %v1244
    %1246 = vmatpush.msra.mxu0 %v1245
    %v1247 = vand.u32 %v126, 4294901760
    %v1248 = vsub.f32 %v126, %v1247
    %1249 = vmatpush.msra.mxu0 %v1248
    %v1250 = vand.u32 %v123, 4294901760
    %v1251 = vsub.f32 %v123, %v1250
    %1252 = vmatpush.msra.mxu0 %v1251
    %v1253 = vand.u32 %v120, 4294901760
    %v1254 = vsub.f32 %v120, %v1253
    %1255 = vmatpush.msra.mxu0 %v1254
    %v1256 = vand.u32 %v117, 4294901760
    %v1257 = vsub.f32 %v117, %v1256
    %1258 = vmatpush.msra.mxu0 %v1257
    %v1259 = vand.u32 %v114, 4294901760
    %v1260 = vsub.f32 %v114, %v1259
    %1261 = vmatpush.msra.mxu0 %v1260
    %v1262 = vand.u32 %v108, 4294901760
    %v1263 = vsub.f32 %v108, %v1262
    %1264 = vmatmul.f32.gmra.mxu0 %v1263
    %v1265 = vpop.f32.mrf.mxu0
    %v1266 = vadd.f32 %v1200, %v1265
    %v1267 = vand.u32 %v109, 4294901760
    %v1268 = vsub.f32 %v109, %v1267
    %1269 = vmatmul.f32.gmra.mxu0 %v1268
    %v1270 = vpop.f32.mrf.mxu0
    %v1271 = vadd.f32 %v1204, %v1270
    %v1272 = vand.u32 %v110, 4294901760
    %v1273 = vsub.f32 %v110, %v1272
    %1274 = vmatmul.f32.gmra.mxu0 %v1273
    %v1275 = vpop.f32.mrf.mxu0
    %v1276 = vadd.f32 %v1208, %v1275
    %v1277 = vand.u32 %v111, 4294901760
    %v1278 = vsub.f32 %v111, %v1277
    %1279 = vmatmul.f32.gmra.mxu0 %v1278
    %v1280 = vpop.f32.mrf.mxu0
    %v1281 = vadd.f32 %v1212, %v1280
    %1282 = vdwg.mxu0
    %v1283 = vand.u32 %v159, 4294901760
    %1284 = vmatpush.msra.mxu0 %v1283
    %v1285 = vand.u32 %v156, 4294901760
    %1286 = vmatpush.msra.mxu0 %v1285
    %v1287 = vand.u32 %v153, 4294901760
    %1288 = vmatpush.msra.mxu0 %v1287
    %v1289 = vand.u32 %v150, 4294901760
    %1290 = vmatpush.msra.mxu0 %v1289
    %v1291 = vand.u32 %v147, 4294901760
    %1292 = vmatpush.msra.mxu0 %v1291
    %v1293 = vand.u32 %v144, 4294901760
    %1294 = vmatpush.msra.mxu0 %v1293
    %v1295 = vand.u32 %v141, 4294901760
    %1296 = vmatpush.msra.mxu0 %v1295
    %v1297 = vand.u32 %v138, 4294901760
    %1298 = vmatpush.msra.mxu0 %v1297
    %v1299 = vand.u32 %v135, 4294901760
    %1300 = vmatpush.msra.mxu0 %v1299
    %v1301 = vand.u32 %v132, 4294901760
    %1302 = vmatpush.msra.mxu0 %v1301
    %v1303 = vand.u32 %v129, 4294901760
    %1304 = vmatpush.msra.mxu0 %v1303
    %v1305 = vand.u32 %v126, 4294901760
    %1306 = vmatpush.msra.mxu0 %v1305
    %v1307 = vand.u32 %v123, 4294901760
    %1308 = vmatpush.msra.mxu0 %v1307
    %v1309 = vand.u32 %v120, 4294901760
    %1310 = vmatpush.msra.mxu0 %v1309
    %v1311 = vand.u32 %v117, 4294901760
    %1312 = vmatpush.msra.mxu0 %v1311
    %v1313 = vand.u32 %v114, 4294901760
    %1314 = vmatpush.msra.mxu0 %v1313
    %v1315 = vand.u32 %v108, 4294901760
    %v1316 = vsub.f32 %v108, %v1315
    %v1317 = vand.u32 %v1316, 4294901760
    %1318 = vmatmul.f32.gmra.mxu0 %v1317
    %v1319 = vpop.f32.mrf.mxu0
    %v1320 = vadd.f32 %v1266, %v1319
    %v1321 = vand.u32 %v109, 4294901760
    %v1322 = vsub.f32 %v109, %v1321
    %v1323 = vand.u32 %v1322, 4294901760
    %1324 = vmatmul.f32.gmra.mxu0 %v1323
    %v1325 = vpop.f32.mrf.mxu0
    %v1326 = vadd.f32 %v1271, %v1325
    %v1327 = vand.u32 %v110, 4294901760
    %v1328 = vsub.f32 %v110, %v1327
    %v1329 = vand.u32 %v1328, 4294901760
    %1330 = vmatmul.f32.gmra.mxu0 %v1329
    %v1331 = vpop.f32.mrf.mxu0
    %v1332 = vadd.f32 %v1276, %v1331
    %v1333 = vand.u32 %v111, 4294901760
    %v1334 = vsub.f32 %v111, %v1333
    %v1335 = vand.u32 %v1334, 4294901760
    %1336 = vmatmul.f32.gmra.mxu0 %v1335
    %v1337 = vpop.f32.mrf.mxu0
    %v1338 = vadd.f32 %v1281, %v1337
    %1339 = vdwg.mxu0
    %v1340 = vand.u32 %v159, 4294901760
    %v1341 = vsub.f32 %v159, %v1340
    %v1342 = vand.u32 %v1341, 4294901760
    %1343 = vmatpush.msra.mxu0 %v1342
    %v1344 = vand.u32 %v156, 4294901760
    %v1345 = vsub.f32 %v156, %v1344
    %v1346 = vand.u32 %v1345, 4294901760
    %1347 = vmatpush.msra.mxu0 %v1346
    %v1348 = vand.u32 %v153, 4294901760
    %v1349 = vsub.f32 %v153, %v1348
    %v1350 = vand.u32 %v1349, 4294901760
    %1351 = vmatpush.msra.mxu0 %v1350
    %v1352 = vand.u32 %v150, 4294901760
    %v1353 = vsub.f32 %v150, %v1352
    %v1354 = vand.u32 %v1353, 4294901760
    %1355 = vmatpush.msra.mxu0 %v1354
    %v1356 = vand.u32 %v147, 4294901760
    %v1357 = vsub.f32 %v147, %v1356
    %v1358 = vand.u32 %v1357, 4294901760
    %1359 = vmatpush.msra.mxu0 %v1358
    %v1360 = vand.u32 %v144, 4294901760
    %v1361 = vsub.f32 %v144, %v1360
    %v1362 = vand.u32 %v1361, 4294901760
    %1363 = vmatpush.msra.mxu0 %v1362
    %v1364 = vand.u32 %v141, 4294901760
    %v1365 = vsub.f32 %v141, %v1364
    %v1366 = vand.u32 %v1365, 4294901760
    %1367 = vmatpush.msra.mxu0 %v1366
    %v1368 = vand.u32 %v138, 4294901760
    %v1369 = vsub.f32 %v138, %v1368
    %v1370 = vand.u32 %v1369, 4294901760
    %1371 = vmatpush.msra.mxu0 %v1370
    %v1372 = vand.u32 %v135, 4294901760
    %v1373 = vsub.f32 %v135, %v1372
    %v1374 = vand.u32 %v1373, 4294901760
    %1375 = vmatpush.msra.mxu0 %v1374
    %v1376 = vand.u32 %v132, 4294901760
    %v1377 = vsub.f32 %v132, %v1376
    %v1378 = vand.u32 %v1377, 4294901760
    %1379 = vmatpush.msra.mxu0 %v1378
    %v1380 = vand.u32 %v129, 4294901760
    %v1381 = vsub.f32 %v129, %v1380
    %v1382 = vand.u32 %v1381, 4294901760
    %1383 = vmatpush.msra.mxu0 %v1382
    %v1384 = vand.u32 %v126, 4294901760
    %v1385 = vsub.f32 %v126, %v1384
    %v1386 = vand.u32 %v1385, 4294901760
    %1387 = vmatpush.msra.mxu0 %v1386
    %v1388 = vand.u32 %v123, 4294901760
    %v1389 = vsub.f32 %v123, %v1388
    %v1390 = vand.u32 %v1389, 4294901760
    %1391 = vmatpush.msra.mxu0 %v1390
    %v1392 = vand.u32 %v120, 4294901760
    %v1393 = vsub.f32 %v120, %v1392
    %v1394 = vand.u32 %v1393, 4294901760
    %1395 = vmatpush.msra.mxu0 %v1394
    %v1396 = vand.u32 %v117, 4294901760
    %v1397 = vsub.f32 %v117, %v1396
    %v1398 = vand.u32 %v1397, 4294901760
    %1399 = vmatpush.msra.mxu0 %v1398
    %v1400 = vand.u32 %v114, 4294901760
    %v1401 = vsub.f32 %v114, %v1400
    %v1402 = vand.u32 %v1401, 4294901760
    %1403 = vmatpush.msra.mxu0 %v1402
    %v1404 = vand.u32 %v108, 4294901760
    %1405 = vmatmul.f32.gmra.mxu0 %v1404
    %v1406 = vpop.f32.mrf.mxu0
    %v1407 = vadd.f32 %v1320, %v1406
    %v1408 = vand.u32 %v109, 4294901760
    %1409 = vmatmul.f32.gmra.mxu0 %v1408
    %v1410 = vpop.f32.mrf.mxu0
    %v1411 = vadd.f32 %v1326, %v1410
    %v1412 = vand.u32 %v110, 4294901760
    %1413 = vmatmul.f32.gmra.mxu0 %v1412
    %v1414 = vpop.f32.mrf.mxu0
    %v1415 = vadd.f32 %v1332, %v1414
    %v1416 = vand.u32 %v111, 4294901760
    %1417 = vmatmul.f32.gmra.mxu0 %v1416
    %v1418 = vpop.f32.mrf.mxu0
    %v1419 = vadd.f32 %v1338, %v1418
    %1420 = vdwg.mxu0
    %v1421 = vand.u32 %v159, 4294901760
    %1422 = vmatpush.msra.mxu0 %v1421
    %v1423 = vand.u32 %v156, 4294901760
    %1424 = vmatpush.msra.mxu0 %v1423
    %v1425 = vand.u32 %v153, 4294901760
    %1426 = vmatpush.msra.mxu0 %v1425
    %v1427 = vand.u32 %v150, 4294901760
    %1428 = vmatpush.msra.mxu0 %v1427
    %v1429 = vand.u32 %v147, 4294901760
    %1430 = vmatpush.msra.mxu0 %v1429
    %v1431 = vand.u32 %v144, 4294901760
    %1432 = vmatpush.msra.mxu0 %v1431
    %v1433 = vand.u32 %v141, 4294901760
    %1434 = vmatpush.msra.mxu0 %v1433
    %v1435 = vand.u32 %v138, 4294901760
    %1436 = vmatpush.msra.mxu0 %v1435
    %v1437 = vand.u32 %v135, 4294901760
    %1438 = vmatpush.msra.mxu0 %v1437
    %v1439 = vand.u32 %v132, 4294901760
    %1440 = vmatpush.msra.mxu0 %v1439
    %v1441 = vand.u32 %v129, 4294901760
    %1442 = vmatpush.msra.mxu0 %v1441
    %v1443 = vand.u32 %v126, 4294901760
    %1444 = vmatpush.msra.mxu0 %v1443
    %v1445 = vand.u32 %v123, 4294901760
    %1446 = vmatpush.msra.mxu0 %v1445
    %v1447 = vand.u32 %v120, 4294901760
    %1448 = vmatpush.msra.mxu0 %v1447
    %v1449 = vand.u32 %v117, 4294901760
    %1450 = vmatpush.msra.mxu0 %v1449
    %v1451 = vand.u32 %v114, 4294901760
    %1452 = vmatpush.msra.mxu0 %v1451
    %v1453 = vand.u32 %v108, 4294901760
    %1454 = vmatmul.f32.gmra.mxu0 %v1453
    %v1455 = vpop.f32.mrf.mxu0
    %v1456 = vadd.f32 %v1407, %v1455
    %v1457 = vand.u32 %v109, 4294901760
    %1458 = vmatmul.f32.gmra.mxu0 %v1457
    %v1459 = vpop.f32.mrf.mxu0
    %v1460 = vadd.f32 %v1411, %v1459
    %v1461 = vand.u32 %v110, 4294901760
    %1462 = vmatmul.f32.gmra.mxu0 %v1461
    %v1463 = vpop.f32.mrf.mxu0
    %v1464 = vadd.f32 %v1415, %v1463
    %v1465 = vand.u32 %v111, 4294901760
    %1466 = vmatmul.f32.gmra.mxu0 %v1465
    %v1467 = vpop.f32.mrf.mxu0
    %v1468 = vadd.f32 %v1419, %v1467
    %1469 = vdwg.mxu0
    %vm1470 = vcmask 261120
    %v1472 = vsel %vm1470, 1.0, 0
    %1474 = vmatpush.msra.mxu0 0.0
    %1475 = vmatpush.msra.mxu0 0.0
    %1476 = vmatpush.msra.mxu0 0.0
    %1477 = vmatpush.msra.mxu0 0.0
    %1478 = vmatpush.msra.mxu0 0.0
    %1479 = vmatpush.msra.mxu0 0.0
    %1480 = vmatpush.msra.mxu0 0.0
    %1481 = vmatpush.msra.mxu0 0.0
    %1482 = vmatpush.msra.mxu0 0.0
    %1483 = vmatpush.msra.mxu0 0.0
    %1484 = vmatpush.msra.mxu0 0.0
    %1485 = vmatpush.msra.mxu0 0.0
    %v1486 = vand.u32 %v600, 4294901760
    %1487 = vmatpush.msra.mxu0 %v1486
    %v1488 = vand.u32 %v596, 4294901760
    %1489 = vmatpush.msra.mxu0 %v1488
    %v1490 = vand.u32 %v592, 4294901760
    %1491 = vmatpush.msra.mxu0 %v1490
    %v1492 = vand.u32 %v588, 4294901760
    %1493 = vmatpush.msra.mxu0 %v1492
    %v1494 = vand.u32 %v1472, 4294901760
    %v1495 = vsub.f32 %v1472, %v1494
    %v1496 = vand.u32 %v1495, 4294901760
    %v1497 = vsub.f32 %v1495, %v1496
    %v1498 = vand.u32 %v1497, 4294901760
    %1499 = vmatmul.f32.gmra.mxu0 %v1498
    %v1500 = vpop.f32.mrf.mxu0
    %v1501 = vadd.f32 0.0, %v1500
    %1502 = vdwg.mxu0
    %1503 = vmatpush.msra.mxu0 0.0
    %1504 = vmatpush.msra.mxu0 0.0
    %1505 = vmatpush.msra.mxu0 0.0
    %1506 = vmatpush.msra.mxu0 0.0
    %1507 = vmatpush.msra.mxu0 0.0
    %1508 = vmatpush.msra.mxu0 0.0
    %1509 = vmatpush.msra.mxu0 0.0
    %1510 = vmatpush.msra.mxu0 0.0
    %1511 = vmatpush.msra.mxu0 0.0
    %1512 = vmatpush.msra.mxu0 0.0
    %1513 = vmatpush.msra.mxu0 0.0
    %1514 = vmatpush.msra.mxu0 0.0
    %v1515 = vand.u32 %v600, 4294901760
    %v1516 = vsub.f32 %v600, %v1515
    %v1517 = vand.u32 %v1516, 4294901760
    %v1518 = vsub.f32 %v1516, %v1517
    %v1519 = vand.u32 %v1518, 4294901760
    %1520 = vmatpush.msra.mxu0 %v1519
    %v1521 = vand.u32 %v596, 4294901760
    %v1522 = vsub.f32 %v596, %v1521
    %v1523 = vand.u32 %v1522, 4294901760
    %v1524 = vsub.f32 %v1522, %v1523
    %v1525 = vand.u32 %v1524, 4294901760
    %1526 = vmatpush.msra.mxu0 %v1525
    %v1527 = vand.u32 %v592, 4294901760
    %v1528 = vsub.f32 %v592, %v1527
    %v1529 = vand.u32 %v1528, 4294901760
    %v1530 = vsub.f32 %v1528, %v1529
    %v1531 = vand.u32 %v1530, 4294901760
    %1532 = vmatpush.msra.mxu0 %v1531
    %v1533 = vand.u32 %v588, 4294901760
    %v1534 = vsub.f32 %v588, %v1533
    %v1535 = vand.u32 %v1534, 4294901760
    %v1536 = vsub.f32 %v1534, %v1535
    %v1537 = vand.u32 %v1536, 4294901760
    %1538 = vmatpush.msra.mxu0 %v1537
    %v1539 = vand.u32 %v1472, 4294901760
    %1540 = vmatmul.f32.gmra.mxu0 %v1539
    %v1541 = vpop.f32.mrf.mxu0
    %v1542 = vadd.f32 %v1501, %v1541
    %1543 = vdwg.mxu0
    %1544 = vmatpush.msra.mxu0 0.0
    %1545 = vmatpush.msra.mxu0 0.0
    %1546 = vmatpush.msra.mxu0 0.0
    %1547 = vmatpush.msra.mxu0 0.0
    %1548 = vmatpush.msra.mxu0 0.0
    %1549 = vmatpush.msra.mxu0 0.0
    %1550 = vmatpush.msra.mxu0 0.0
    %1551 = vmatpush.msra.mxu0 0.0
    %1552 = vmatpush.msra.mxu0 0.0
    %1553 = vmatpush.msra.mxu0 0.0
    %1554 = vmatpush.msra.mxu0 0.0
    %1555 = vmatpush.msra.mxu0 0.0
    %v1556 = vand.u32 %v600, 4294901760
    %v1557 = vsub.f32 %v600, %v1556
    %1558 = vmatpush.msra.mxu0 %v1557
    %v1559 = vand.u32 %v596, 4294901760
    %v1560 = vsub.f32 %v596, %v1559
    %1561 = vmatpush.msra.mxu0 %v1560
    %v1562 = vand.u32 %v592, 4294901760
    %v1563 = vsub.f32 %v592, %v1562
    %1564 = vmatpush.msra.mxu0 %v1563
    %v1565 = vand.u32 %v588, 4294901760
    %v1566 = vsub.f32 %v588, %v1565
    %1567 = vmatpush.msra.mxu0 %v1566
    %v1568 = vand.u32 %v1472, 4294901760
    %v1569 = vsub.f32 %v1472, %v1568
    %1570 = vmatmul.f32.gmra.mxu0 %v1569
    %v1571 = vpop.f32.mrf.mxu0
    %v1572 = vadd.f32 %v1542, %v1571
    %1573 = vdwg.mxu0
    %1574 = vmatpush.msra.mxu0 0.0
    %1575 = vmatpush.msra.mxu0 0.0
    %1576 = vmatpush.msra.mxu0 0.0
    %1577 = vmatpush.msra.mxu0 0.0
    %1578 = vmatpush.msra.mxu0 0.0
    %1579 = vmatpush.msra.mxu0 0.0
    %1580 = vmatpush.msra.mxu0 0.0
    %1581 = vmatpush.msra.mxu0 0.0
    %1582 = vmatpush.msra.mxu0 0.0
    %1583 = vmatpush.msra.mxu0 0.0
    %1584 = vmatpush.msra.mxu0 0.0
    %1585 = vmatpush.msra.mxu0 0.0
    %v1586 = vand.u32 %v600, 4294901760
    %1587 = vmatpush.msra.mxu0 %v1586
    %v1588 = vand.u32 %v596, 4294901760
    %1589 = vmatpush.msra.mxu0 %v1588
    %v1590 = vand.u32 %v592, 4294901760
    %1591 = vmatpush.msra.mxu0 %v1590
    %v1592 = vand.u32 %v588, 4294901760
    %1593 = vmatpush.msra.mxu0 %v1592
    %v1594 = vand.u32 %v1472, 4294901760
    %v1595 = vsub.f32 %v1472, %v1594
    %v1596 = vand.u32 %v1595, 4294901760
    %1597 = vmatmul.f32.gmra.mxu0 %v1596
    %v1598 = vpop.f32.mrf.mxu0
    %v1599 = vadd.f32 %v1572, %v1598
    %1600 = vdwg.mxu0
    %1601 = vmatpush.msra.mxu0 0.0
    %1602 = vmatpush.msra.mxu0 0.0
    %1603 = vmatpush.msra.mxu0 0.0
    %1604 = vmatpush.msra.mxu0 0.0
    %1605 = vmatpush.msra.mxu0 0.0
    %1606 = vmatpush.msra.mxu0 0.0
    %1607 = vmatpush.msra.mxu0 0.0
    %1608 = vmatpush.msra.mxu0 0.0
    %1609 = vmatpush.msra.mxu0 0.0
    %1610 = vmatpush.msra.mxu0 0.0
    %1611 = vmatpush.msra.mxu0 0.0
    %1612 = vmatpush.msra.mxu0 0.0
    %v1613 = vand.u32 %v600, 4294901760
    %v1614 = vsub.f32 %v600, %v1613
    %v1615 = vand.u32 %v1614, 4294901760
    %1616 = vmatpush.msra.mxu0 %v1615
    %v1617 = vand.u32 %v596, 4294901760
    %v1618 = vsub.f32 %v596, %v1617
    %v1619 = vand.u32 %v1618, 4294901760
    %1620 = vmatpush.msra.mxu0 %v1619
    %v1621 = vand.u32 %v592, 4294901760
    %v1622 = vsub.f32 %v592, %v1621
    %v1623 = vand.u32 %v1622, 4294901760
    %1624 = vmatpush.msra.mxu0 %v1623
    %v1625 = vand.u32 %v588, 4294901760
    %v1626 = vsub.f32 %v588, %v1625
    %v1627 = vand.u32 %v1626, 4294901760
    %1628 = vmatpush.msra.mxu0 %v1627
    %v1629 = vand.u32 %v1472, 4294901760
    %1630 = vmatmul.f32.gmra.mxu0 %v1629
    %v1631 = vpop.f32.mrf.mxu0
    %v1632 = vadd.f32 %v1599, %v1631
    %1633 = vdwg.mxu0
    %1634 = vmatpush.msra.mxu0 0.0
    %1635 = vmatpush.msra.mxu0 0.0
    %1636 = vmatpush.msra.mxu0 0.0
    %1637 = vmatpush.msra.mxu0 0.0
    %1638 = vmatpush.msra.mxu0 0.0
    %1639 = vmatpush.msra.mxu0 0.0
    %1640 = vmatpush.msra.mxu0 0.0
    %1641 = vmatpush.msra.mxu0 0.0
    %1642 = vmatpush.msra.mxu0 0.0
    %1643 = vmatpush.msra.mxu0 0.0
    %1644 = vmatpush.msra.mxu0 0.0
    %1645 = vmatpush.msra.mxu0 0.0
    %v1646 = vand.u32 %v600, 4294901760
    %1647 = vmatpush.msra.mxu0 %v1646
    %v1648 = vand.u32 %v596, 4294901760
    %1649 = vmatpush.msra.mxu0 %v1648
    %v1650 = vand.u32 %v592, 4294901760
    %1651 = vmatpush.msra.mxu0 %v1650
    %v1652 = vand.u32 %v588, 4294901760
    %1653 = vmatpush.msra.mxu0 %v1652
    %v1654 = vand.u32 %v1472, 4294901760
    %1655 = vmatmul.f32.gmra.mxu0 %v1654
    %v1656 = vpop.f32.mrf.mxu0
    %v1657 = vadd.f32 %v1632, %v1656
    %1658 = vdwg.mxu0
    %1659 = vmatpush.msra.mxu0 0.0
    %1660 = vmatpush.msra.mxu0 0.0
    %1661 = vmatpush.msra.mxu0 0.0
    %1662 = vmatpush.msra.mxu0 0.0
    %1663 = vmatpush.msra.mxu0 0.0
    %1664 = vmatpush.msra.mxu0 0.0
    %1665 = vmatpush.msra.mxu0 0.0
    %1666 = vmatpush.msra.mxu0 0.0
    %1667 = vmatpush.msra.mxu0 0.0
    %1668 = vmatpush.msra.mxu0 0.0
    %1669 = vmatpush.msra.mxu0 0.0
    %1670 = vmatpush.msra.mxu0 0.0
    %v1671 = vand.u32 %v1034, 4294901760
    %1672 = vmatpush.msra.mxu0 %v1671
    %v1673 = vand.u32 %v1030, 4294901760
    %1674 = vmatpush.msra.mxu0 %v1673
    %v1675 = vand.u32 %v1026, 4294901760
    %1676 = vmatpush.msra.mxu0 %v1675
    %v1677 = vand.u32 %v1022, 4294901760
    %1678 = vmatpush.msra.mxu0 %v1677
    %v1679 = vand.u32 %v1472, 4294901760
    %v1680 = vsub.f32 %v1472, %v1679
    %v1681 = vand.u32 %v1680, 4294901760
    %v1682 = vsub.f32 %v1680, %v1681
    %v1683 = vand.u32 %v1682, 4294901760
    %1684 = vmatmul.f32.gmra.mxu0 %v1683
    %v1685 = vpop.f32.mrf.mxu0
    %v1686 = vadd.f32 0.0, %v1685
    %1687 = vdwg.mxu0
    %1688 = vmatpush.msra.mxu0 0.0
    %1689 = vmatpush.msra.mxu0 0.0
    %1690 = vmatpush.msra.mxu0 0.0
    %1691 = vmatpush.msra.mxu0 0.0
    %1692 = vmatpush.msra.mxu0 0.0
    %1693 = vmatpush.msra.mxu0 0.0
    %1694 = vmatpush.msra.mxu0 0.0
    %1695 = vmatpush.msra.mxu0 0.0
    %1696 = vmatpush.msra.mxu0 0.0
    %1697 = vmatpush.msra.mxu0 0.0
    %1698 = vmatpush.msra.mxu0 0.0
    %1699 = vmatpush.msra.mxu0 0.0
    %v1700 = vand.u32 %v1034, 4294901760
    %v1701 = vsub.f32 %v1034, %v1700
    %v1702 = vand.u32 %v1701, 4294901760
    %v1703 = vsub.f32 %v1701, %v1702
    %v1704 = vand.u32 %v1703, 4294901760
    %1705 = vmatpush.msra.mxu0 %v1704
    %v1706 = vand.u32 %v1030, 4294901760
    %v1707 = vsub.f32 %v1030, %v1706
    %v1708 = vand.u32 %v1707, 4294901760
    %v1709 = vsub.f32 %v1707, %v1708
    %v1710 = vand.u32 %v1709, 4294901760
    %1711 = vmatpush.msra.mxu0 %v1710
    %v1712 = vand.u32 %v1026, 4294901760
    %v1713 = vsub.f32 %v1026, %v1712
    %v1714 = vand.u32 %v1713, 4294901760
    %v1715 = vsub.f32 %v1713, %v1714
    %v1716 = vand.u32 %v1715, 4294901760
    %1717 = vmatpush.msra.mxu0 %v1716
    %v1718 = vand.u32 %v1022, 4294901760
    %v1719 = vsub.f32 %v1022, %v1718
    %v1720 = vand.u32 %v1719, 4294901760
    %v1721 = vsub.f32 %v1719, %v1720
    %v1722 = vand.u32 %v1721, 4294901760
    %1723 = vmatpush.msra.mxu0 %v1722
    %v1724 = vand.u32 %v1472, 4294901760
    %1725 = vmatmul.f32.gmra.mxu0 %v1724
    %v1726 = vpop.f32.mrf.mxu0
    %v1727 = vadd.f32 %v1686, %v1726
    %1728 = vdwg.mxu0
    %1729 = vmatpush.msra.mxu0 0.0
    %1730 = vmatpush.msra.mxu0 0.0
    %1731 = vmatpush.msra.mxu0 0.0
    %1732 = vmatpush.msra.mxu0 0.0
    %1733 = vmatpush.msra.mxu0 0.0
    %1734 = vmatpush.msra.mxu0 0.0
    %1735 = vmatpush.msra.mxu0 0.0
    %1736 = vmatpush.msra.mxu0 0.0
    %1737 = vmatpush.msra.mxu0 0.0
    %1738 = vmatpush.msra.mxu0 0.0
    %1739 = vmatpush.msra.mxu0 0.0
    %1740 = vmatpush.msra.mxu0 0.0
    %v1741 = vand.u32 %v1034, 4294901760
    %v1742 = vsub.f32 %v1034, %v1741
    %1743 = vmatpush.msra.mxu0 %v1742
    %v1744 = vand.u32 %v1030, 4294901760
    %v1745 = vsub.f32 %v1030, %v1744
    %1746 = vmatpush.msra.mxu0 %v1745
    %v1747 = vand.u32 %v1026, 4294901760
    %v1748 = vsub.f32 %v1026, %v1747
    %1749 = vmatpush.msra.mxu0 %v1748
    %v1750 = vand.u32 %v1022, 4294901760
    %v1751 = vsub.f32 %v1022, %v1750
    %1752 = vmatpush.msra.mxu0 %v1751
    %v1753 = vand.u32 %v1472, 4294901760
    %v1754 = vsub.f32 %v1472, %v1753
    %1755 = vmatmul.f32.gmra.mxu0 %v1754
    %v1756 = vpop.f32.mrf.mxu0
    %v1757 = vadd.f32 %v1727, %v1756
    %1758 = vdwg.mxu0
    %1759 = vmatpush.msra.mxu0 0.0
    %1760 = vmatpush.msra.mxu0 0.0
    %1761 = vmatpush.msra.mxu0 0.0
    %1762 = vmatpush.msra.mxu0 0.0
    %1763 = vmatpush.msra.mxu0 0.0
    %1764 = vmatpush.msra.mxu0 0.0
    %1765 = vmatpush.msra.mxu0 0.0
    %1766 = vmatpush.msra.mxu0 0.0
    %1767 = vmatpush.msra.mxu0 0.0
    %1768 = vmatpush.msra.mxu0 0.0
    %1769 = vmatpush.msra.mxu0 0.0
    %1770 = vmatpush.msra.mxu0 0.0
    %v1771 = vand.u32 %v1034, 4294901760
    %1772 = vmatpush.msra.mxu0 %v1771
    %v1773 = vand.u32 %v1030, 4294901760
    %1774 = vmatpush.msra.mxu0 %v1773
    %v1775 = vand.u32 %v1026, 4294901760
    %1776 = vmatpush.msra.mxu0 %v1775
    %v1777 = vand.u32 %v1022, 4294901760
    %1778 = vmatpush.msra.mxu0 %v1777
    %v1779 = vand.u32 %v1472, 4294901760
    %v1780 = vsub.f32 %v1472, %v1779
    %v1781 = vand.u32 %v1780, 4294901760
    %1782 = vmatmul.f32.gmra.mxu0 %v1781
    %v1783 = vpop.f32.mrf.mxu0
    %v1784 = vadd.f32 %v1757, %v1783
    %1785 = vdwg.mxu0
    %1786 = vmatpush.msra.mxu0 0.0
    %1787 = vmatpush.msra.mxu0 0.0
    %1788 = vmatpush.msra.mxu0 0.0
    %1789 = vmatpush.msra.mxu0 0.0
    %1790 = vmatpush.msra.mxu0 0.0
    %1791 = vmatpush.msra.mxu0 0.0
    %1792 = vmatpush.msra.mxu0 0.0
    %1793 = vmatpush.msra.mxu0 0.0
    %1794 = vmatpush.msra.mxu0 0.0
    %1795 = vmatpush.msra.mxu0 0.0
    %1796 = vmatpush.msra.mxu0 0.0
    %1797 = vmatpush.msra.mxu0 0.0
    %v1798 = vand.u32 %v1034, 4294901760
    %v1799 = vsub.f32 %v1034, %v1798
    %v1800 = vand.u32 %v1799, 4294901760
    %1801 = vmatpush.msra.mxu0 %v1800
    %v1802 = vand.u32 %v1030, 4294901760
    %v1803 = vsub.f32 %v1030, %v1802
    %v1804 = vand.u32 %v1803, 4294901760
    %1805 = vmatpush.msra.mxu0 %v1804
    %v1806 = vand.u32 %v1026, 4294901760
    %v1807 = vsub.f32 %v1026, %v1806
    %v1808 = vand.u32 %v1807, 4294901760
    %1809 = vmatpush.msra.mxu0 %v1808
    %v1810 = vand.u32 %v1022, 4294901760
    %v1811 = vsub.f32 %v1022, %v1810
    %v1812 = vand.u32 %v1811, 4294901760
    %1813 = vmatpush.msra.mxu0 %v1812
    %v1814 = vand.u32 %v1472, 4294901760
    %1815 = vmatmul.f32.gmra.mxu0 %v1814
    %v1816 = vpop.f32.mrf.mxu0
    %v1817 = vadd.f32 %v1784, %v1816
    %1818 = vdwg.mxu0
    %1819 = vmatpush.msra.mxu0 0.0
    %1820 = vmatpush.msra.mxu0 0.0
    %1821 = vmatpush.msra.mxu0 0.0
    %1822 = vmatpush.msra.mxu0 0.0
    %1823 = vmatpush.msra.mxu0 0.0
    %1824 = vmatpush.msra.mxu0 0.0
    %1825 = vmatpush.msra.mxu0 0.0
    %1826 = vmatpush.msra.mxu0 0.0
    %1827 = vmatpush.msra.mxu0 0.0
    %1828 = vmatpush.msra.mxu0 0.0
    %1829 = vmatpush.msra.mxu0 0.0
    %1830 = vmatpush.msra.mxu0 0.0
    %v1831 = vand.u32 %v1034, 4294901760
    %1832 = vmatpush.msra.mxu0 %v1831
    %v1833 = vand.u32 %v1030, 4294901760
    %1834 = vmatpush.msra.mxu0 %v1833
    %v1835 = vand.u32 %v1026, 4294901760
    %1836 = vmatpush.msra.mxu0 %v1835
    %v1837 = vand.u32 %v1022, 4294901760
    %1838 = vmatpush.msra.mxu0 %v1837
    %v1839 = vand.u32 %v1472, 4294901760
    %1840 = vmatmul.f32.gmra.mxu0 %v1839
    %v1841 = vpop.f32.mrf.mxu0
    %v1842 = vadd.f32 %v1817, %v1841
    %1843 = vdwg.mxu0
    %1844 = vmatpush.msra.mxu0 0.0
    %1845 = vmatpush.msra.mxu0 0.0
    %1846 = vmatpush.msra.mxu0 0.0
    %1847 = vmatpush.msra.mxu0 0.0
    %1848 = vmatpush.msra.mxu0 0.0
    %1849 = vmatpush.msra.mxu0 0.0
    %1850 = vmatpush.msra.mxu0 0.0
    %1851 = vmatpush.msra.mxu0 0.0
    %1852 = vmatpush.msra.mxu0 0.0
    %1853 = vmatpush.msra.mxu0 0.0
    %1854 = vmatpush.msra.mxu0 0.0
    %1855 = vmatpush.msra.mxu0 0.0
    %v1856 = vand.u32 %v1468, 4294901760
    %1857 = vmatpush.msra.mxu0 %v1856
    %v1858 = vand.u32 %v1464, 4294901760
    %1859 = vmatpush.msra.mxu0 %v1858
    %v1860 = vand.u32 %v1460, 4294901760
    %1861 = vmatpush.msra.mxu0 %v1860
    %v1862 = vand.u32 %v1456, 4294901760
    %1863 = vmatpush.msra.mxu0 %v1862
    %v1864 = vand.u32 %v1472, 4294901760
    %v1865 = vsub.f32 %v1472, %v1864
    %v1866 = vand.u32 %v1865, 4294901760
    %v1867 = vsub.f32 %v1865, %v1866
    %v1868 = vand.u32 %v1867, 4294901760
    %1869 = vmatmul.f32.gmra.mxu0 %v1868
    %v1870 = vpop.f32.mrf.mxu0
    %v1871 = vadd.f32 0.0, %v1870
    %1872 = vdwg.mxu0
    %1873 = vmatpush.msra.mxu0 0.0
    %1874 = vmatpush.msra.mxu0 0.0
    %1875 = vmatpush.msra.mxu0 0.0
    %1876 = vmatpush.msra.mxu0 0.0
    %1877 = vmatpush.msra.mxu0 0.0
    %1878 = vmatpush.msra.mxu0 0.0
    %1879 = vmatpush.msra.mxu0 0.0
    %1880 = vmatpush.msra.mxu0 0.0
    %1881 = vmatpush.msra.mxu0 0.0
    %1882 = vmatpush.msra.mxu0 0.0
    %1883 = vmatpush.msra.mxu0 0.0
    %1884 = vmatpush.msra.mxu0 0.0
    %v1885 = vand.u32 %v1468, 4294901760
    %v1886 = vsub.f32 %v1468, %v1885
    %v1887 = vand.u32 %v1886, 4294901760
    %v1888 = vsub.f32 %v1886, %v1887
    %v1889 = vand.u32 %v1888, 4294901760
    %1890 = vmatpush.msra.mxu0 %v1889
    %v1891 = vand.u32 %v1464, 4294901760
    %v1892 = vsub.f32 %v1464, %v1891
    %v1893 = vand.u32 %v1892, 4294901760
    %v1894 = vsub.f32 %v1892, %v1893
    %v1895 = vand.u32 %v1894, 4294901760
    %1896 = vmatpush.msra.mxu0 %v1895
    %v1897 = vand.u32 %v1460, 4294901760
    %v1898 = vsub.f32 %v1460, %v1897
    %v1899 = vand.u32 %v1898, 4294901760
    %v1900 = vsub.f32 %v1898, %v1899
    %v1901 = vand.u32 %v1900, 4294901760
    %1902 = vmatpush.msra.mxu0 %v1901
    %v1903 = vand.u32 %v1456, 4294901760
    %v1904 = vsub.f32 %v1456, %v1903
    %v1905 = vand.u32 %v1904, 4294901760
    %v1906 = vsub.f32 %v1904, %v1905
    %v1907 = vand.u32 %v1906, 4294901760
    %1908 = vmatpush.msra.mxu0 %v1907
    %v1909 = vand.u32 %v1472, 4294901760
    %1910 = vmatmul.f32.gmra.mxu0 %v1909
    %v1911 = vpop.f32.mrf.mxu0
    %v1912 = vadd.f32 %v1871, %v1911
    %1913 = vdwg.mxu0
    %1914 = vmatpush.msra.mxu0 0.0
    %1915 = vmatpush.msra.mxu0 0.0
    %1916 = vmatpush.msra.mxu0 0.0
    %1917 = vmatpush.msra.mxu0 0.0
    %1918 = vmatpush.msra.mxu0 0.0
    %1919 = vmatpush.msra.mxu0 0.0
    %1920 = vmatpush.msra.mxu0 0.0
    %1921 = vmatpush.msra.mxu0 0.0
    %1922 = vmatpush.msra.mxu0 0.0
    %1923 = vmatpush.msra.mxu0 0.0
    %1924 = vmatpush.msra.mxu0 0.0
    %1925 = vmatpush.msra.mxu0 0.0
    %v1926 = vand.u32 %v1468, 4294901760
    %v1927 = vsub.f32 %v1468, %v1926
    %1928 = vmatpush.msra.mxu0 %v1927
    %v1929 = vand.u32 %v1464, 4294901760
    %v1930 = vsub.f32 %v1464, %v1929
    %1931 = vmatpush.msra.mxu0 %v1930
    %v1932 = vand.u32 %v1460, 4294901760
    %v1933 = vsub.f32 %v1460, %v1932
    %1934 = vmatpush.msra.mxu0 %v1933
    %v1935 = vand.u32 %v1456, 4294901760
    %v1936 = vsub.f32 %v1456, %v1935
    %1937 = vmatpush.msra.mxu0 %v1936
    %v1938 = vand.u32 %v1472, 4294901760
    %v1939 = vsub.f32 %v1472, %v1938
    %1940 = vmatmul.f32.gmra.mxu0 %v1939
    %v1941 = vpop.f32.mrf.mxu0
    %v1942 = vadd.f32 %v1912, %v1941
    %1943 = vdwg.mxu0
    %1944 = vmatpush.msra.mxu0 0.0
    %1945 = vmatpush.msra.mxu0 0.0
    %1946 = vmatpush.msra.mxu0 0.0
    %1947 = vmatpush.msra.mxu0 0.0
    %1948 = vmatpush.msra.mxu0 0.0
    %1949 = vmatpush.msra.mxu0 0.0
    %1950 = vmatpush.msra.mxu0 0.0
    %1951 = vmatpush.msra.mxu0 0.0
    %1952 = vmatpush.msra.mxu0 0.0
    %1953 = vmatpush.msra.mxu0 0.0
    %1954 = vmatpush.msra.mxu0 0.0
    %1955 = vmatpush.msra.mxu0 0.0
    %v1956 = vand.u32 %v1468, 4294901760
    %1957 = vmatpush.msra.mxu0 %v1956
    %v1958 = vand.u32 %v1464, 4294901760
    %1959 = vmatpush.msra.mxu0 %v1958
    %v1960 = vand.u32 %v1460, 4294901760
    %1961 = vmatpush.msra.mxu0 %v1960
    %v1962 = vand.u32 %v1456, 4294901760
    %1963 = vmatpush.msra.mxu0 %v1962
    %v1964 = vand.u32 %v1472, 4294901760
    %v1965 = vsub.f32 %v1472, %v1964
    %v1966 = vand.u32 %v1965, 4294901760
    %1967 = vmatmul.f32.gmra.mxu0 %v1966
    %v1968 = vpop.f32.mrf.mxu0
    %v1969 = vadd.f32 %v1942, %v1968
    %1970 = vdwg.mxu0
    %1971 = vmatpush.msra.mxu0 0.0
    %1972 = vmatpush.msra.mxu0 0.0
    %1973 = vmatpush.msra.mxu0 0.0
    %1974 = vmatpush.msra.mxu0 0.0
    %1975 = vmatpush.msra.mxu0 0.0
    %1976 = vmatpush.msra.mxu0 0.0
    %1977 = vmatpush.msra.mxu0 0.0
    %1978 = vmatpush.msra.mxu0 0.0
    %1979 = vmatpush.msra.mxu0 0.0
    %1980 = vmatpush.msra.mxu0 0.0
    %1981 = vmatpush.msra.mxu0 0.0
    %1982 = vmatpush.msra.mxu0 0.0
    %v1983 = vand.u32 %v1468, 4294901760
    %v1984 = vsub.f32 %v1468, %v1983
    %v1985 = vand.u32 %v1984, 4294901760
    %1986 = vmatpush.msra.mxu0 %v1985
    %v1987 = vand.u32 %v1464, 4294901760
    %v1988 = vsub.f32 %v1464, %v1987
    %v1989 = vand.u32 %v1988, 4294901760
    %1990 = vmatpush.msra.mxu0 %v1989
    %v1991 = vand.u32 %v1460, 4294901760
    %v1992 = vsub.f32 %v1460, %v1991
    %v1993 = vand.u32 %v1992, 4294901760
    %1994 = vmatpush.msra.mxu0 %v1993
    %v1995 = vand.u32 %v1456, 4294901760
    %v1996 = vsub.f32 %v1456, %v1995
    %v1997 = vand.u32 %v1996, 4294901760
    %1998 = vmatpush.msra.mxu0 %v1997
    %v1999 = vand.u32 %v1472, 4294901760
    %2000 = vmatmul.f32.gmra.mxu0 %v1999
    %v2001 = vpop.f32.mrf.mxu0
    %v2002 = vadd.f32 %v1969, %v2001
    %2003 = vdwg.mxu0
    %2004 = vmatpush.msra.mxu0 0.0
    %2005 = vmatpush.msra.mxu0 0.0
    %2006 = vmatpush.msra.mxu0 0.0
    %2007 = vmatpush.msra.mxu0 0.0
    %2008 = vmatpush.msra.mxu0 0.0
    %2009 = vmatpush.msra.mxu0 0.0
    %2010 = vmatpush.msra.mxu0 0.0
    %2011 = vmatpush.msra.mxu0 0.0
    %2012 = vmatpush.msra.mxu0 0.0
    %2013 = vmatpush.msra.mxu0 0.0
    %2014 = vmatpush.msra.mxu0 0.0
    %2015 = vmatpush.msra.mxu0 0.0
    %v2016 = vand.u32 %v1468, 4294901760
    %2017 = vmatpush.msra.mxu0 %v2016
    %v2018 = vand.u32 %v1464, 4294901760
    %2019 = vmatpush.msra.mxu0 %v2018
    %v2020 = vand.u32 %v1460, 4294901760
    %2021 = vmatpush.msra.mxu0 %v2020
    %v2022 = vand.u32 %v1456, 4294901760
    %2023 = vmatpush.msra.mxu0 %v2022
    %v2024 = vand.u32 %v1472, 4294901760
    %2025 = vmatmul.f32.gmra.mxu0 %v2024
    %v2026 = vpop.f32.mrf.mxu0
    %v2027 = vadd.f32 %v2002, %v2026
    %2028 = vdwg.mxu0
    %v2029 = vmul.f32 %v1657, 0.03125
    %v2030 = vmul.f32 %v1842, 0.03125
    %v2031 = vmul.f32 %v2027, 0.03125
    %v2032 = vperm.slane %v2029, 0
    %v2033 = vperm.slane %v2030, 0
    %v2034 = vperm.slane %v2031, 0
    %v2035 = vsub.f32 %v588, %v2032
    %v2036 = vsub.f32 %v1022, %v2033
    %v2037 = vsub.f32 %v1456, %v2034
    %v2038 = vsub.f32 %v592, %v2032
    %v2039 = vsub.f32 %v1026, %v2033
    %v2040 = vsub.f32 %v1460, %v2034
    %v2041 = vsub.f32 %v596, %v2032
    %v2042 = vsub.f32 %v1030, %v2033
    %v2043 = vsub.f32 %v1464, %v2034
    %v2044 = vsub.f32 %v600, %v2032
    %v2045 = vsub.f32 %v1034, %v2033
    %v2046 = vsub.f32 %v1468, %v2034
    %v2047 = vmul.f32 %v2035, %v2035
    %v2048 = vmul.f32 %v2036, %v2036
    %v2049 = vmul.f32 %v2037, %v2037
    %v2050 = vmul.f32 %v2038, %v2038
    %v2051 = vmul.f32 %v2039, %v2039
    %v2052 = vmul.f32 %v2040, %v2040
    %v2053 = vmul.f32 %v2041, %v2041
    %v2054 = vmul.f32 %v2042, %v2042
    %v2055 = vmul.f32 %v2043, %v2043
    %v2056 = vmul.f32 %v2044, %v2044
    %v2057 = vmul.f32 %v2045, %v2045
    %v2058 = vmul.f32 %v2046, %v2046
    %2059 = vmatpush.msra.mxu0 0.0
    %2060 = vmatpush.msra.mxu0 0.0
    %2061 = vmatpush.msra.mxu0 0.0
    %2062 = vmatpush.msra.mxu0 0.0
    %2063 = vmatpush.msra.mxu0 0.0
    %2064 = vmatpush.msra.mxu0 0.0
    %2065 = vmatpush.msra.mxu0 0.0
    %2066 = vmatpush.msra.mxu0 0.0
    %2067 = vmatpush.msra.mxu0 0.0
    %2068 = vmatpush.msra.mxu0 0.0
    %2069 = vmatpush.msra.mxu0 0.0
    %2070 = vmatpush.msra.mxu0 0.0
    %v2071 = vand.u32 %v2056, 4294901760
    %2072 = vmatpush.msra.mxu0 %v2071
    %v2073 = vand.u32 %v2053, 4294901760
    %2074 = vmatpush.msra.mxu0 %v2073
    %v2075 = vand.u32 %v2050, 4294901760
    %2076 = vmatpush.msra.mxu0 %v2075
    %v2077 = vand.u32 %v2047, 4294901760
    %2078 = vmatpush.msra.mxu0 %v2077
    %v2079 = vand.u32 %v1472, 4294901760
    %v2080 = vsub.f32 %v1472, %v2079
    %v2081 = vand.u32 %v2080, 4294901760
    %v2082 = vsub.f32 %v2080, %v2081
    %v2083 = vand.u32 %v2082, 4294901760
    %2084 = vmatmul.f32.gmra.mxu0 %v2083
    %v2085 = vpop.f32.mrf.mxu0
    %v2086 = vadd.f32 0.0, %v2085
    %2087 = vdwg.mxu0
    %2088 = vmatpush.msra.mxu0 0.0
    %2089 = vmatpush.msra.mxu0 0.0
    %2090 = vmatpush.msra.mxu0 0.0
    %2091 = vmatpush.msra.mxu0 0.0
    %2092 = vmatpush.msra.mxu0 0.0
    %2093 = vmatpush.msra.mxu0 0.0
    %2094 = vmatpush.msra.mxu0 0.0
    %2095 = vmatpush.msra.mxu0 0.0
    %2096 = vmatpush.msra.mxu0 0.0
    %2097 = vmatpush.msra.mxu0 0.0
    %2098 = vmatpush.msra.mxu0 0.0
    %2099 = vmatpush.msra.mxu0 0.0
    %v2100 = vand.u32 %v2056, 4294901760
    %v2101 = vsub.f32 %v2056, %v2100
    %v2102 = vand.u32 %v2101, 4294901760
    %v2103 = vsub.f32 %v2101, %v2102
    %v2104 = vand.u32 %v2103, 4294901760
    %2105 = vmatpush.msra.mxu0 %v2104
    %v2106 = vand.u32 %v2053, 4294901760
    %v2107 = vsub.f32 %v2053, %v2106
    %v2108 = vand.u32 %v2107, 4294901760
    %v2109 = vsub.f32 %v2107, %v2108
    %v2110 = vand.u32 %v2109, 4294901760
    %2111 = vmatpush.msra.mxu0 %v2110
    %v2112 = vand.u32 %v2050, 4294901760
    %v2113 = vsub.f32 %v2050, %v2112
    %v2114 = vand.u32 %v2113, 4294901760
    %v2115 = vsub.f32 %v2113, %v2114
    %v2116 = vand.u32 %v2115, 4294901760
    %2117 = vmatpush.msra.mxu0 %v2116
    %v2118 = vand.u32 %v2047, 4294901760
    %v2119 = vsub.f32 %v2047, %v2118
    %v2120 = vand.u32 %v2119, 4294901760
    %v2121 = vsub.f32 %v2119, %v2120
    %v2122 = vand.u32 %v2121, 4294901760
    %2123 = vmatpush.msra.mxu0 %v2122
    %v2124 = vand.u32 %v1472, 4294901760
    %2125 = vmatmul.f32.gmra.mxu0 %v2124
    %v2126 = vpop.f32.mrf.mxu0
    %v2127 = vadd.f32 %v2086, %v2126
    %2128 = vdwg.mxu0
    %2129 = vmatpush.msra.mxu0 0.0
    %2130 = vmatpush.msra.mxu0 0.0
    %2131 = vmatpush.msra.mxu0 0.0
    %2132 = vmatpush.msra.mxu0 0.0
    %2133 = vmatpush.msra.mxu0 0.0
    %2134 = vmatpush.msra.mxu0 0.0
    %2135 = vmatpush.msra.mxu0 0.0
    %2136 = vmatpush.msra.mxu0 0.0
    %2137 = vmatpush.msra.mxu0 0.0
    %2138 = vmatpush.msra.mxu0 0.0
    %2139 = vmatpush.msra.mxu0 0.0
    %2140 = vmatpush.msra.mxu0 0.0
    %v2141 = vand.u32 %v2056, 4294901760
    %v2142 = vsub.f32 %v2056, %v2141
    %2143 = vmatpush.msra.mxu0 %v2142
    %v2144 = vand.u32 %v2053, 4294901760
    %v2145 = vsub.f32 %v2053, %v2144
    %2146 = vmatpush.msra.mxu0 %v2145
    %v2147 = vand.u32 %v2050, 4294901760
    %v2148 = vsub.f32 %v2050, %v2147
    %2149 = vmatpush.msra.mxu0 %v2148
    %v2150 = vand.u32 %v2047, 4294901760
    %v2151 = vsub.f32 %v2047, %v2150
    %2152 = vmatpush.msra.mxu0 %v2151
    %v2153 = vand.u32 %v1472, 4294901760
    %v2154 = vsub.f32 %v1472, %v2153
    %2155 = vmatmul.f32.gmra.mxu0 %v2154
    %v2156 = vpop.f32.mrf.mxu0
    %v2157 = vadd.f32 %v2127, %v2156
    %2158 = vdwg.mxu0
    %2159 = vmatpush.msra.mxu0 0.0
    %2160 = vmatpush.msra.mxu0 0.0
    %2161 = vmatpush.msra.mxu0 0.0
    %2162 = vmatpush.msra.mxu0 0.0
    %2163 = vmatpush.msra.mxu0 0.0
    %2164 = vmatpush.msra.mxu0 0.0
    %2165 = vmatpush.msra.mxu0 0.0
    %2166 = vmatpush.msra.mxu0 0.0
    %2167 = vmatpush.msra.mxu0 0.0
    %2168 = vmatpush.msra.mxu0 0.0
    %2169 = vmatpush.msra.mxu0 0.0
    %2170 = vmatpush.msra.mxu0 0.0
    %v2171 = vand.u32 %v2056, 4294901760
    %2172 = vmatpush.msra.mxu0 %v2171
    %v2173 = vand.u32 %v2053, 4294901760
    %2174 = vmatpush.msra.mxu0 %v2173
    %v2175 = vand.u32 %v2050, 4294901760
    %2176 = vmatpush.msra.mxu0 %v2175
    %v2177 = vand.u32 %v2047, 4294901760
    %2178 = vmatpush.msra.mxu0 %v2177
    %v2179 = vand.u32 %v1472, 4294901760
    %v2180 = vsub.f32 %v1472, %v2179
    %v2181 = vand.u32 %v2180, 4294901760
    %2182 = vmatmul.f32.gmra.mxu0 %v2181
    %v2183 = vpop.f32.mrf.mxu0
    %v2184 = vadd.f32 %v2157, %v2183
    %2185 = vdwg.mxu0
    %2186 = vmatpush.msra.mxu0 0.0
    %2187 = vmatpush.msra.mxu0 0.0
    %2188 = vmatpush.msra.mxu0 0.0
    %2189 = vmatpush.msra.mxu0 0.0
    %2190 = vmatpush.msra.mxu0 0.0
    %2191 = vmatpush.msra.mxu0 0.0
    %2192 = vmatpush.msra.mxu0 0.0
    %2193 = vmatpush.msra.mxu0 0.0
    %2194 = vmatpush.msra.mxu0 0.0
    %2195 = vmatpush.msra.mxu0 0.0
    %2196 = vmatpush.msra.mxu0 0.0
    %2197 = vmatpush.msra.mxu0 0.0
    %v2198 = vand.u32 %v2056, 4294901760
    %v2199 = vsub.f32 %v2056, %v2198
    %v2200 = vand.u32 %v2199, 4294901760
    %2201 = vmatpush.msra.mxu0 %v2200
    %v2202 = vand.u32 %v2053, 4294901760
    %v2203 = vsub.f32 %v2053, %v2202
    %v2204 = vand.u32 %v2203, 4294901760
    %2205 = vmatpush.msra.mxu0 %v2204
    %v2206 = vand.u32 %v2050, 4294901760
    %v2207 = vsub.f32 %v2050, %v2206
    %v2208 = vand.u32 %v2207, 4294901760
    %2209 = vmatpush.msra.mxu0 %v2208
    %v2210 = vand.u32 %v2047, 4294901760
    %v2211 = vsub.f32 %v2047, %v2210
    %v2212 = vand.u32 %v2211, 4294901760
    %2213 = vmatpush.msra.mxu0 %v2212
    %v2214 = vand.u32 %v1472, 4294901760
    %2215 = vmatmul.f32.gmra.mxu0 %v2214
    %v2216 = vpop.f32.mrf.mxu0
    %v2217 = vadd.f32 %v2184, %v2216
    %2218 = vdwg.mxu0
    %2219 = vmatpush.msra.mxu0 0.0
    %2220 = vmatpush.msra.mxu0 0.0
    %2221 = vmatpush.msra.mxu0 0.0
    %2222 = vmatpush.msra.mxu0 0.0
    %2223 = vmatpush.msra.mxu0 0.0
    %2224 = vmatpush.msra.mxu0 0.0
    %2225 = vmatpush.msra.mxu0 0.0
    %2226 = vmatpush.msra.mxu0 0.0
    %2227 = vmatpush.msra.mxu0 0.0
    %2228 = vmatpush.msra.mxu0 0.0
    %2229 = vmatpush.msra.mxu0 0.0
    %2230 = vmatpush.msra.mxu0 0.0
    %v2231 = vand.u32 %v2056, 4294901760
    %2232 = vmatpush.msra.mxu0 %v2231
    %v2233 = vand.u32 %v2053, 4294901760
    %2234 = vmatpush.msra.mxu0 %v2233
    %v2235 = vand.u32 %v2050, 4294901760
    %2236 = vmatpush.msra.mxu0 %v2235
    %v2237 = vand.u32 %v2047, 4294901760
    %2238 = vmatpush.msra.mxu0 %v2237
    %v2239 = vand.u32 %v1472, 4294901760
    %2240 = vmatmul.f32.gmra.mxu0 %v2239
    %v2241 = vpop.f32.mrf.mxu0
    %v2242 = vadd.f32 %v2217, %v2241
    %2243 = vdwg.mxu0
    %2244 = vmatpush.msra.mxu0 0.0
    %2245 = vmatpush.msra.mxu0 0.0
    %2246 = vmatpush.msra.mxu0 0.0
    %2247 = vmatpush.msra.mxu0 0.0
    %2248 = vmatpush.msra.mxu0 0.0
    %2249 = vmatpush.msra.mxu0 0.0
    %2250 = vmatpush.msra.mxu0 0.0
    %2251 = vmatpush.msra.mxu0 0.0
    %2252 = vmatpush.msra.mxu0 0.0
    %2253 = vmatpush.msra.mxu0 0.0
    %2254 = vmatpush.msra.mxu0 0.0
    %2255 = vmatpush.msra.mxu0 0.0
    %v2256 = vand.u32 %v2057, 4294901760
    %2257 = vmatpush.msra.mxu0 %v2256
    %v2258 = vand.u32 %v2054, 4294901760
    %2259 = vmatpush.msra.mxu0 %v2258
    %v2260 = vand.u32 %v2051, 4294901760
    %2261 = vmatpush.msra.mxu0 %v2260
    %v2262 = vand.u32 %v2048, 4294901760
    %2263 = vmatpush.msra.mxu0 %v2262
    %v2264 = vand.u32 %v1472, 4294901760
    %v2265 = vsub.f32 %v1472, %v2264
    %v2266 = vand.u32 %v2265, 4294901760
    %v2267 = vsub.f32 %v2265, %v2266
    %v2268 = vand.u32 %v2267, 4294901760
    %2269 = vmatmul.f32.gmra.mxu0 %v2268
    %v2270 = vpop.f32.mrf.mxu0
    %v2271 = vadd.f32 0.0, %v2270
    %2272 = vdwg.mxu0
    %2273 = vmatpush.msra.mxu0 0.0
    %2274 = vmatpush.msra.mxu0 0.0
    %2275 = vmatpush.msra.mxu0 0.0
    %2276 = vmatpush.msra.mxu0 0.0
    %2277 = vmatpush.msra.mxu0 0.0
    %2278 = vmatpush.msra.mxu0 0.0
    %2279 = vmatpush.msra.mxu0 0.0
    %2280 = vmatpush.msra.mxu0 0.0
    %2281 = vmatpush.msra.mxu0 0.0
    %2282 = vmatpush.msra.mxu0 0.0
    %2283 = vmatpush.msra.mxu0 0.0
    %2284 = vmatpush.msra.mxu0 0.0
    %v2285 = vand.u32 %v2057, 4294901760
    %v2286 = vsub.f32 %v2057, %v2285
    %v2287 = vand.u32 %v2286, 4294901760
    %v2288 = vsub.f32 %v2286, %v2287
    %v2289 = vand.u32 %v2288, 4294901760
    %2290 = vmatpush.msra.mxu0 %v2289
    %v2291 = vand.u32 %v2054, 4294901760
    %v2292 = vsub.f32 %v2054, %v2291
    %v2293 = vand.u32 %v2292, 4294901760
    %v2294 = vsub.f32 %v2292, %v2293
    %v2295 = vand.u32 %v2294, 4294901760
    %2296 = vmatpush.msra.mxu0 %v2295
    %v2297 = vand.u32 %v2051, 4294901760
    %v2298 = vsub.f32 %v2051, %v2297
    %v2299 = vand.u32 %v2298, 4294901760
    %v2300 = vsub.f32 %v2298, %v2299
    %v2301 = vand.u32 %v2300, 4294901760
    %2302 = vmatpush.msra.mxu0 %v2301
    %v2303 = vand.u32 %v2048, 4294901760
    %v2304 = vsub.f32 %v2048, %v2303
    %v2305 = vand.u32 %v2304, 4294901760
    %v2306 = vsub.f32 %v2304, %v2305
    %v2307 = vand.u32 %v2306, 4294901760
    %2308 = vmatpush.msra.mxu0 %v2307
    %v2309 = vand.u32 %v1472, 4294901760
    %2310 = vmatmul.f32.gmra.mxu0 %v2309
    %v2311 = vpop.f32.mrf.mxu0
    %v2312 = vadd.f32 %v2271, %v2311
    %2313 = vdwg.mxu0
    %2314 = vmatpush.msra.mxu0 0.0
    %2315 = vmatpush.msra.mxu0 0.0
    %2316 = vmatpush.msra.mxu0 0.0
    %2317 = vmatpush.msra.mxu0 0.0
    %2318 = vmatpush.msra.mxu0 0.0
    %2319 = vmatpush.msra.mxu0 0.0
    %2320 = vmatpush.msra.mxu0 0.0
    %2321 = vmatpush.msra.mxu0 0.0
    %2322 = vmatpush.msra.mxu0 0.0
    %2323 = vmatpush.msra.mxu0 0.0
    %2324 = vmatpush.msra.mxu0 0.0
    %2325 = vmatpush.msra.mxu0 0.0
    %v2326 = vand.u32 %v2057, 4294901760
    %v2327 = vsub.f32 %v2057, %v2326
    %2328 = vmatpush.msra.mxu0 %v2327
    %v2329 = vand.u32 %v2054, 4294901760
    %v2330 = vsub.f32 %v2054, %v2329
    %2331 = vmatpush.msra.mxu0 %v2330
    %v2332 = vand.u32 %v2051, 4294901760
    %v2333 = vsub.f32 %v2051, %v2332
    %2334 = vmatpush.msra.mxu0 %v2333
    %v2335 = vand.u32 %v2048, 4294901760
    %v2336 = vsub.f32 %v2048, %v2335
    %2337 = vmatpush.msra.mxu0 %v2336
    %v2338 = vand.u32 %v1472, 4294901760
    %v2339 = vsub.f32 %v1472, %v2338
    %2340 = vmatmul.f32.gmra.mxu0 %v2339
    %v2341 = vpop.f32.mrf.mxu0
    %v2342 = vadd.f32 %v2312, %v2341
    %2343 = vdwg.mxu0
    %2344 = vmatpush.msra.mxu0 0.0
    %2345 = vmatpush.msra.mxu0 0.0
    %2346 = vmatpush.msra.mxu0 0.0
    %2347 = vmatpush.msra.mxu0 0.0
    %2348 = vmatpush.msra.mxu0 0.0
    %2349 = vmatpush.msra.mxu0 0.0
    %2350 = vmatpush.msra.mxu0 0.0
    %2351 = vmatpush.msra.mxu0 0.0
    %2352 = vmatpush.msra.mxu0 0.0
    %2353 = vmatpush.msra.mxu0 0.0
    %2354 = vmatpush.msra.mxu0 0.0
    %2355 = vmatpush.msra.mxu0 0.0
    %v2356 = vand.u32 %v2057, 4294901760
    %2357 = vmatpush.msra.mxu0 %v2356
    %v2358 = vand.u32 %v2054, 4294901760
    %2359 = vmatpush.msra.mxu0 %v2358
    %v2360 = vand.u32 %v2051, 4294901760
    %2361 = vmatpush.msra.mxu0 %v2360
    %v2362 = vand.u32 %v2048, 4294901760
    %2363 = vmatpush.msra.mxu0 %v2362
    %v2364 = vand.u32 %v1472, 4294901760
    %v2365 = vsub.f32 %v1472, %v2364
    %v2366 = vand.u32 %v2365, 4294901760
    %2367 = vmatmul.f32.gmra.mxu0 %v2366
    %v2368 = vpop.f32.mrf.mxu0
    %v2369 = vadd.f32 %v2342, %v2368
    %2370 = vdwg.mxu0
    %2371 = vmatpush.msra.mxu0 0.0
    %2372 = vmatpush.msra.mxu0 0.0
    %2373 = vmatpush.msra.mxu0 0.0
    %2374 = vmatpush.msra.mxu0 0.0
    %2375 = vmatpush.msra.mxu0 0.0
    %2376 = vmatpush.msra.mxu0 0.0
    %2377 = vmatpush.msra.mxu0 0.0
    %2378 = vmatpush.msra.mxu0 0.0
    %2379 = vmatpush.msra.mxu0 0.0
    %2380 = vmatpush.msra.mxu0 0.0
    %2381 = vmatpush.msra.mxu0 0.0
    %2382 = vmatpush.msra.mxu0 0.0
    %v2383 = vand.u32 %v2057, 4294901760
    %v2384 = vsub.f32 %v2057, %v2383
    %v2385 = vand.u32 %v2384, 4294901760
    %2386 = vmatpush.msra.mxu0 %v2385
    %v2387 = vand.u32 %v2054, 4294901760
    %v2388 = vsub.f32 %v2054, %v2387
    %v2389 = vand.u32 %v2388, 4294901760
    %2390 = vmatpush.msra.mxu0 %v2389
    %v2391 = vand.u32 %v2051, 4294901760
    %v2392 = vsub.f32 %v2051, %v2391
    %v2393 = vand.u32 %v2392, 4294901760
    %2394 = vmatpush.msra.mxu0 %v2393
    %v2395 = vand.u32 %v2048, 4294901760
    %v2396 = vsub.f32 %v2048, %v2395
    %v2397 = vand.u32 %v2396, 4294901760
    %2398 = vmatpush.msra.mxu0 %v2397
    %v2399 = vand.u32 %v1472, 4294901760
    %2400 = vmatmul.f32.gmra.mxu0 %v2399
    %v2401 = vpop.f32.mrf.mxu0
    %v2402 = vadd.f32 %v2369, %v2401
    %2403 = vdwg.mxu0
    %2404 = vmatpush.msra.mxu0 0.0
    %2405 = vmatpush.msra.mxu0 0.0
    %2406 = vmatpush.msra.mxu0 0.0
    %2407 = vmatpush.msra.mxu0 0.0
    %2408 = vmatpush.msra.mxu0 0.0
    %2409 = vmatpush.msra.mxu0 0.0
    %2410 = vmatpush.msra.mxu0 0.0
    %2411 = vmatpush.msra.mxu0 0.0
    %2412 = vmatpush.msra.mxu0 0.0
    %2413 = vmatpush.msra.mxu0 0.0
    %2414 = vmatpush.msra.mxu0 0.0
    %2415 = vmatpush.msra.mxu0 0.0
    %v2416 = vand.u32 %v2057, 4294901760
    %2417 = vmatpush.msra.mxu0 %v2416
    %v2418 = vand.u32 %v2054, 4294901760
    %2419 = vmatpush.msra.mxu0 %v2418
    %v2420 = vand.u32 %v2051, 4294901760
    %2421 = vmatpush.msra.mxu0 %v2420
    %v2422 = vand.u32 %v2048, 4294901760
    %2423 = vmatpush.msra.mxu0 %v2422
    %v2424 = vand.u32 %v1472, 4294901760
    %2425 = vmatmul.f32.gmra.mxu0 %v2424
    %v2426 = vpop.f32.mrf.mxu0
    %v2427 = vadd.f32 %v2402, %v2426
    %2428 = vdwg.mxu0
    %2429 = vmatpush.msra.mxu0 0.0
    %2430 = vmatpush.msra.mxu0 0.0
    %2431 = vmatpush.msra.mxu0 0.0
    %2432 = vmatpush.msra.mxu0 0.0
    %2433 = vmatpush.msra.mxu0 0.0
    %2434 = vmatpush.msra.mxu0 0.0
    %2435 = vmatpush.msra.mxu0 0.0
    %2436 = vmatpush.msra.mxu0 0.0
    %2437 = vmatpush.msra.mxu0 0.0
    %2438 = vmatpush.msra.mxu0 0.0
    %2439 = vmatpush.msra.mxu0 0.0
    %2440 = vmatpush.msra.mxu0 0.0
    %v2441 = vand.u32 %v2058, 4294901760
    %2442 = vmatpush.msra.mxu0 %v2441
    %v2443 = vand.u32 %v2055, 4294901760
    %2444 = vmatpush.msra.mxu0 %v2443
    %v2445 = vand.u32 %v2052, 4294901760
    %2446 = vmatpush.msra.mxu0 %v2445
    %v2447 = vand.u32 %v2049, 4294901760
    %2448 = vmatpush.msra.mxu0 %v2447
    %v2449 = vand.u32 %v1472, 4294901760
    %v2450 = vsub.f32 %v1472, %v2449
    %v2451 = vand.u32 %v2450, 4294901760
    %v2452 = vsub.f32 %v2450, %v2451
    %v2453 = vand.u32 %v2452, 4294901760
    %2454 = vmatmul.f32.gmra.mxu0 %v2453
    %v2455 = vpop.f32.mrf.mxu0
    %v2456 = vadd.f32 0.0, %v2455
    %2457 = vdwg.mxu0
    %2458 = vmatpush.msra.mxu0 0.0
    %2459 = vmatpush.msra.mxu0 0.0
    %2460 = vmatpush.msra.mxu0 0.0
    %2461 = vmatpush.msra.mxu0 0.0
    %2462 = vmatpush.msra.mxu0 0.0
    %2463 = vmatpush.msra.mxu0 0.0
    %2464 = vmatpush.msra.mxu0 0.0
    %2465 = vmatpush.msra.mxu0 0.0
    %2466 = vmatpush.msra.mxu0 0.0
    %2467 = vmatpush.msra.mxu0 0.0
    %2468 = vmatpush.msra.mxu0 0.0
    %2469 = vmatpush.msra.mxu0 0.0
    %v2470 = vand.u32 %v2058, 4294901760
    %v2471 = vsub.f32 %v2058, %v2470
    %v2472 = vand.u32 %v2471, 4294901760
    %v2473 = vsub.f32 %v2471, %v2472
    %v2474 = vand.u32 %v2473, 4294901760
    %2475 = vmatpush.msra.mxu0 %v2474
    %v2476 = vand.u32 %v2055, 4294901760
    %v2477 = vsub.f32 %v2055, %v2476
    %v2478 = vand.u32 %v2477, 4294901760
    %v2479 = vsub.f32 %v2477, %v2478
    %v2480 = vand.u32 %v2479, 4294901760
    %2481 = vmatpush.msra.mxu0 %v2480
    %v2482 = vand.u32 %v2052, 4294901760
    %v2483 = vsub.f32 %v2052, %v2482
    %v2484 = vand.u32 %v2483, 4294901760
    %v2485 = vsub.f32 %v2483, %v2484
    %v2486 = vand.u32 %v2485, 4294901760
    %2487 = vmatpush.msra.mxu0 %v2486
    %v2488 = vand.u32 %v2049, 4294901760
    %v2489 = vsub.f32 %v2049, %v2488
    %v2490 = vand.u32 %v2489, 4294901760
    %v2491 = vsub.f32 %v2489, %v2490
    %v2492 = vand.u32 %v2491, 4294901760
    %2493 = vmatpush.msra.mxu0 %v2492
    %v2494 = vand.u32 %v1472, 4294901760
    %2495 = vmatmul.f32.gmra.mxu0 %v2494
    %v2496 = vpop.f32.mrf.mxu0
    %v2497 = vadd.f32 %v2456, %v2496
    %2498 = vdwg.mxu0
    %2499 = vmatpush.msra.mxu0 0.0
    %2500 = vmatpush.msra.mxu0 0.0
    %2501 = vmatpush.msra.mxu0 0.0
    %2502 = vmatpush.msra.mxu0 0.0
    %2503 = vmatpush.msra.mxu0 0.0
    %2504 = vmatpush.msra.mxu0 0.0
    %2505 = vmatpush.msra.mxu0 0.0
    %2506 = vmatpush.msra.mxu0 0.0
    %2507 = vmatpush.msra.mxu0 0.0
    %2508 = vmatpush.msra.mxu0 0.0
    %2509 = vmatpush.msra.mxu0 0.0
    %2510 = vmatpush.msra.mxu0 0.0
    %v2511 = vand.u32 %v2058, 4294901760
    %v2512 = vsub.f32 %v2058, %v2511
    %2513 = vmatpush.msra.mxu0 %v2512
    %v2514 = vand.u32 %v2055, 4294901760
    %v2515 = vsub.f32 %v2055, %v2514
    %2516 = vmatpush.msra.mxu0 %v2515
    %v2517 = vand.u32 %v2052, 4294901760
    %v2518 = vsub.f32 %v2052, %v2517
    %2519 = vmatpush.msra.mxu0 %v2518
    %v2520 = vand.u32 %v2049, 4294901760
    %v2521 = vsub.f32 %v2049, %v2520
    %2522 = vmatpush.msra.mxu0 %v2521
    %v2523 = vand.u32 %v1472, 4294901760
    %v2524 = vsub.f32 %v1472, %v2523
    %2525 = vmatmul.f32.gmra.mxu0 %v2524
    %v2526 = vpop.f32.mrf.mxu0
    %v2527 = vadd.f32 %v2497, %v2526
    %2528 = vdwg.mxu0
    %2529 = vmatpush.msra.mxu0 0.0
    %2530 = vmatpush.msra.mxu0 0.0
    %2531 = vmatpush.msra.mxu0 0.0
    %2532 = vmatpush.msra.mxu0 0.0
    %2533 = vmatpush.msra.mxu0 0.0
    %2534 = vmatpush.msra.mxu0 0.0
    %2535 = vmatpush.msra.mxu0 0.0
    %2536 = vmatpush.msra.mxu0 0.0
    %2537 = vmatpush.msra.mxu0 0.0
    %2538 = vmatpush.msra.mxu0 0.0
    %2539 = vmatpush.msra.mxu0 0.0
    %2540 = vmatpush.msra.mxu0 0.0
    %v2541 = vand.u32 %v2058, 4294901760
    %2542 = vmatpush.msra.mxu0 %v2541
    %v2543 = vand.u32 %v2055, 4294901760
    %2544 = vmatpush.msra.mxu0 %v2543
    %v2545 = vand.u32 %v2052, 4294901760
    %2546 = vmatpush.msra.mxu0 %v2545
    %v2547 = vand.u32 %v2049, 4294901760
    %2548 = vmatpush.msra.mxu0 %v2547
    %v2549 = vand.u32 %v1472, 4294901760
    %v2550 = vsub.f32 %v1472, %v2549
    %v2551 = vand.u32 %v2550, 4294901760
    %2552 = vmatmul.f32.gmra.mxu0 %v2551
    %v2553 = vpop.f32.mrf.mxu0
    %v2554 = vadd.f32 %v2527, %v2553
    %2555 = vdwg.mxu0
    %2556 = vmatpush.msra.mxu0 0.0
    %2557 = vmatpush.msra.mxu0 0.0
    %2558 = vmatpush.msra.mxu0 0.0
    %2559 = vmatpush.msra.mxu0 0.0
    %2560 = vmatpush.msra.mxu0 0.0
    %2561 = vmatpush.msra.mxu0 0.0
    %2562 = vmatpush.msra.mxu0 0.0
    %2563 = vmatpush.msra.mxu0 0.0
    %2564 = vmatpush.msra.mxu0 0.0
    %2565 = vmatpush.msra.mxu0 0.0
    %2566 = vmatpush.msra.mxu0 0.0
    %2567 = vmatpush.msra.mxu0 0.0
    %v2568 = vand.u32 %v2058, 4294901760
    %v2569 = vsub.f32 %v2058, %v2568
    %v2570 = vand.u32 %v2569, 4294901760
    %2571 = vmatpush.msra.mxu0 %v2570
    %v2572 = vand.u32 %v2055, 4294901760
    %v2573 = vsub.f32 %v2055, %v2572
    %v2574 = vand.u32 %v2573, 4294901760
    %2575 = vmatpush.msra.mxu0 %v2574
    %v2576 = vand.u32 %v2052, 4294901760
    %v2577 = vsub.f32 %v2052, %v2576
    %v2578 = vand.u32 %v2577, 4294901760
    %2579 = vmatpush.msra.mxu0 %v2578
    %v2580 = vand.u32 %v2049, 4294901760
    %v2581 = vsub.f32 %v2049, %v2580
    %v2582 = vand.u32 %v2581, 4294901760
    %2583 = vmatpush.msra.mxu0 %v2582
    %v2584 = vand.u32 %v1472, 4294901760
    %2585 = vmatmul.f32.gmra.mxu0 %v2584
    %v2586 = vpop.f32.mrf.mxu0
    %v2587 = vadd.f32 %v2554, %v2586
    %2588 = vdwg.mxu0
    %2589 = vmatpush.msra.mxu0 0.0
    %2590 = vmatpush.msra.mxu0 0.0
    %2591 = vmatpush.msra.mxu0 0.0
    %2592 = vmatpush.msra.mxu0 0.0
    %2593 = vmatpush.msra.mxu0 0.0
    %2594 = vmatpush.msra.mxu0 0.0
    %2595 = vmatpush.msra.mxu0 0.0
    %2596 = vmatpush.msra.mxu0 0.0
    %2597 = vmatpush.msra.mxu0 0.0
    %2598 = vmatpush.msra.mxu0 0.0
    %2599 = vmatpush.msra.mxu0 0.0
    %2600 = vmatpush.msra.mxu0 0.0
    %v2601 = vand.u32 %v2058, 4294901760
    %2602 = vmatpush.msra.mxu0 %v2601
    %v2603 = vand.u32 %v2055, 4294901760
    %2604 = vmatpush.msra.mxu0 %v2603
    %v2605 = vand.u32 %v2052, 4294901760
    %2606 = vmatpush.msra.mxu0 %v2605
    %v2607 = vand.u32 %v2049, 4294901760
    %2608 = vmatpush.msra.mxu0 %v2607
    %v2609 = vand.u32 %v1472, 4294901760
    %2610 = vmatmul.f32.gmra.mxu0 %v2609
    %v2611 = vpop.f32.mrf.mxu0
    %v2612 = vadd.f32 %v2587, %v2611
    %2613 = vdwg.mxu0
    %v2614 = vmul.f32 %v2242, 0.03125
    %v2615 = vmul.f32 %v2427, 0.03125
    %v2616 = vmul.f32 %v2612, 0.03125
    %v2617 = vadd.f32 %v2614, 1e-05
    %v2618 = vadd.f32 %v2615, 1e-05
    %v2619 = vadd.f32 %v2616, 1e-05
    %v2620 = vrsqrt.pop %v2617
    %v2621 = vmul.f32 %v2620, %v2617
    %v2622 = vmul.f32 %v2621, %v2620
    %v2623 = vmul.f32 0.5, %v2622
    %v2624 = vsub.f32 1.5, %v2623
    %v2625 = vmul.f32 %v2620, %v2624
    %vm2626 = vweird.f32 %v2617
    %vm2627 = vweird.f32 %v2620
    %vm2628 = vmor %vm2626, %vm2627
    %v2629 = vsel %vm2628, %v2620, %v2625
    %v2630 = vrsqrt.pop %v2618
    %v2631 = vmul.f32 %v2630, %v2618
    %v2632 = vmul.f32 %v2631, %v2630
    %v2633 = vmul.f32 0.5, %v2632
    %v2634 = vsub.f32 1.5, %v2633
    %v2635 = vmul.f32 %v2630, %v2634
    %vm2636 = vweird.f32 %v2618
    %vm2637 = vweird.f32 %v2630
    %vm2638 = vmor %vm2636, %vm2637
    %v2639 = vsel %vm2638, %v2630, %v2635
    %v2640 = vrsqrt.pop %v2619
    %v2641 = vmul.f32 %v2640, %v2619
    %v2642 = vmul.f32 %v2641, %v2640
    %v2643 = vmul.f32 0.5, %v2642
    %v2644 = vsub.f32 1.5, %v2643
    %v2645 = vmul.f32 %v2640, %v2644
    %vm2646 = vweird.f32 %v2619
    %vm2647 = vweird.f32 %v2640
    %vm2648 = vmor %vm2646, %vm2647
    %v2649 = vsel %vm2648, %v2640, %v2645
    %v2650 = vld [vmem:[#allocation7] sm:$0x7]
    %v2652 = vperm.slane %v2650, 0
    %v2653 = vperm.slane %v2650, 1
    %v2654 = vperm.slane %v2650, 2
    %v2658 = vmul.f32 %v2629, %v2652
    %v2659 = vmul.f32 %v2639, %v2653
    %v2660 = vmul.f32 %v2649, %v2654
    %v2661 = vperm.slane %v2658, 0
    %v2662 = vperm.slane %v2659, 0
    %v2663 = vperm.slane %v2660, 0
    %v2664 = vmul.f32 %v2035, %v2661
    %v2665 = vmul.f32 %v2036, %v2662
    %v2666 = vmul.f32 %v2037, %v2663
    %v2667 = vmul.f32 %v2038, %v2661
    %v2668 = vmul.f32 %v2039, %v2662
    %v2669 = vmul.f32 %v2040, %v2663
    %v2670 = vmul.f32 %v2041, %v2661
    %v2671 = vmul.f32 %v2042, %v2662
    %v2672 = vmul.f32 %v2043, %v2663
    %v2673 = vmul.f32 %v2044, %v2661
    %v2674 = vmul.f32 %v2045, %v2662
    %v2675 = vmul.f32 %v2046, %v2663
    %v2676 = vld [vmem:[#allocation8] sm:$0x7]
    %v2678 = vperm.slane %v2676, 0
    %v2679 = vperm.slane %v2676, 1
    %v2680 = vperm.slane %v2676, 2
    %v2684 = vadd.f32 %v2664, %v2678
    %v2685 = vadd.f32 %v2665, %v2679
    %v2686 = vadd.f32 %v2666, %v2680
    %v2687 = vadd.f32 %v2667, %v2678
    %v2688 = vadd.f32 %v2668, %v2679
    %v2689 = vadd.f32 %v2669, %v2680
    %v2690 = vadd.f32 %v2670, %v2678
    %v2691 = vadd.f32 %v2671, %v2679
    %v2692 = vadd.f32 %v2672, %v2680
    %v2693 = vadd.f32 %v2673, %v2678
    %v2694 = vadd.f32 %v2674, %v2679
    %v2695 = vadd.f32 %v2675, %v2680
    %v2696 = vtanh.pop %v2684
    %v2697 = vtanh.pop %v2685
    %v2698 = vtanh.pop %v2686
    %v2699 = vtanh.pop %v2687
    %v2700 = vtanh.pop %v2688
    %v2701 = vtanh.pop %v2689
    %v2702 = vtanh.pop %v2690
    %v2703 = vtanh.pop %v2691
    %v2704 = vtanh.pop %v2692
    %v2705 = vtanh.pop %v2693
    %v2706 = vtanh.pop %v2694
    %v2707 = vtanh.pop %v2695
    %v2708 = vmul.f32 %v2696, 1.442695
    %v2709 = vpow.pop %v2708
    %v2710 = vmul.f32 %v2697, 1.442695
    %v2711 = vpow.pop %v2710
    %v2712 = vmul.f32 %v2698, 1.442695
    %v2713 = vpow.pop %v2712
    %v2714 = vmul.f32 %v2699, 1.442695
    %v2715 = vpow.pop %v2714
    %v2716 = vmul.f32 %v2700, 1.442695
    %v2717 = vpow.pop %v2716
    %v2718 = vmul.f32 %v2701, 1.442695
    %v2719 = vpow.pop %v2718
    %v2720 = vmul.f32 %v2702, 1.442695
    %v2721 = vpow.pop %v2720
    %v2722 = vmul.f32 %v2703, 1.442695
    %v2723 = vpow.pop %v2722
    %v2724 = vmul.f32 %v2704, 1.442695
    %v2725 = vpow.pop %v2724
    %v2726 = vmul.f32 %v2705, 1.442695
    %v2727 = vpow.pop %v2726
    %v2728 = vmul.f32 %v2706, 1.442695
    %v2729 = vpow.pop %v2728
    %v2730 = vmul.f32 %v2707, 1.442695
    %v2731 = vpow.pop %v2730
    %v2732 = vld [vmem:[%s7] sm:$0xff]
    %v2733 = vld [vmem:[%s7 + $0x8] sm:$0xff]
    %v2734 = vld [vmem:[%s7 + $0x10] sm:$0xff]
    %v2735 = vld [vmem:[%s7 + $0x18] sm:$0xff]
    %v2736 = vld [vmem:[%s7 + $0x20] sm:$0xff]
    %v2737 = vld [vmem:[%s7 + $0x28] sm:$0xff]
    %v2738 = vld [vmem:[%s7 + $0x30] sm:$0xff]
    %v2739 = vld [vmem:[%s7 + $0x38] sm:$0xff]
    %v2740 = vld [vmem:[%s7 + $0x40] sm:$0xff]
    %v2741 = vld [vmem:[%s7 + $0x48] sm:$0xff]
    %v2742 = vld [vmem:[%s7 + $0x50] sm:$0xff]
    %v2743 = vld [vmem:[%s7 + $0x58] sm:$0xff]
    %v2744 = vld [vmem:[%s7 + $0x60] sm:$0xff]
    %v2745 = vld [vmem:[%s7 + $0x68] sm:$0xff]
    %v2746 = vld [vmem:[%s7 + $0x70] sm:$0xff]
    %v2747 = vld [vmem:[%s7 + $0x78] sm:$0xff]
    %v2748 = vld [vmem:[%s7 + $0x80] sm:$0xff]
    %v2749 = vld [vmem:[%s7 + $0x88] sm:$0xff]
    %v2750 = vld [vmem:[%s7 + $0x90] sm:$0xff]
    %v2751 = vld [vmem:[%s7 + $0x98] sm:$0xff]
    %v2752 = vld [vmem:[%s7 + $0xa0] sm:$0xff]
    %v2753 = vld [vmem:[%s7 + $0xa8] sm:$0xff]
    %v2754 = vld [vmem:[%s7 + $0xb0] sm:$0xff]
    %v2755 = vld [vmem:[%s7 + $0xb8] sm:$0xff]
    %v2756 = vld [vmem:[%s7 + $0xc0] sm:$0xff]
    %v2757 = vld [vmem:[%s7 + $0xc8] sm:$0xff]
    %v2758 = vld [vmem:[%s7 + $0xd0] sm:$0xff]
    %v2759 = vld [vmem:[%s7 + $0xd8] sm:$0xff]
    %v2760 = vld [vmem:[%s7 + $0xe0] sm:$0xff]
    %v2761 = vld [vmem:[%s7 + $0xe8] sm:$0xff]
    %v2762 = vld [vmem:[%s7 + $0xf0] sm:$0xff]
    %v2763 = vld [vmem:[%s7 + $0xf8] sm:$0xff]
    %v2764 = vld [vmem:[%s7 + $0x100] sm:$0xff]
    %v2765 = vld [vmem:[%s7 + $0x108] sm:$0xff]
    %v2766 = vld [vmem:[%s7 + $0x110] sm:$0xff]
    %v2767 = vld [vmem:[%s7 + $0x118] sm:$0xff]
    %v2768 = vld [vmem:[%s7 + $0x120] sm:$0xff]
    %v2769 = vld [vmem:[%s7 + $0x128] sm:$0xff]
    %v2770 = vld [vmem:[%s7 + $0x130] sm:$0xff]
    %v2771 = vld [vmem:[%s7 + $0x138] sm:$0xff]
    %v2772 = vld [vmem:[%s7 + $0x140] sm:$0xff]
    %v2773 = vld [vmem:[%s7 + $0x148] sm:$0xff]
    %v2774 = vld [vmem:[%s7 + $0x150] sm:$0xff]
    %v2775 = vld [vmem:[%s7 + $0x158] sm:$0xff]
    %v2776 = vld [vmem:[%s7 + $0x160] sm:$0xff]
    %v2777 = vld [vmem:[%s7 + $0x168] sm:$0xff]
    %v2778 = vld [vmem:[%s7 + $0x170] sm:$0xff]
    %v2779 = vld [vmem:[%s7 + $0x178] sm:$0xff]
    %v2780 = vand.u32 %v2747, 4294901760
    %2781 = vmatpush.msra.mxu0 %v2780
    %v2782 = vand.u32 %v2746, 4294901760
    %2783 = vmatpush.msra.mxu0 %v2782
    %v2784 = vand.u32 %v2745, 4294901760
    %2785 = vmatpush.msra.mxu0 %v2784
    %v2786 = vand.u32 %v2744, 4294901760
    %2787 = vmatpush.msra.mxu0 %v2786
    %v2788 = vand.u32 %v2743, 4294901760
    %2789 = vmatpush.msra.mxu0 %v2788
    %v2790 = vand.u32 %v2742, 4294901760
    %2791 = vmatpush.msra.mxu0 %v2790
    %v2792 = vand.u32 %v2741, 4294901760
    %2793 = vmatpush.msra.mxu0 %v2792
    %v2794 = vand.u32 %v2740, 4294901760
    %2795 = vmatpush.msra.mxu0 %v2794
    %v2796 = vand.u32 %v2739, 4294901760
    %2797 = vmatpush.msra.mxu0 %v2796
    %v2798 = vand.u32 %v2738, 4294901760
    %2799 = vmatpush.msra.mxu0 %v2798
    %v2800 = vand.u32 %v2737, 4294901760
    %2801 = vmatpush.msra.mxu0 %v2800
    %v2802 = vand.u32 %v2736, 4294901760
    %2803 = vmatpush.msra.mxu0 %v2802
    %v2804 = vand.u32 %v2735, 4294901760
    %2805 = vmatpush.msra.mxu0 %v2804
    %v2806 = vand.u32 %v2734, 4294901760
    %2807 = vmatpush.msra.mxu0 %v2806
    %v2808 = vand.u32 %v2733, 4294901760
    %2809 = vmatpush.msra.mxu0 %v2808
    %v2810 = vand.u32 %v2732, 4294901760
    %2811 = vmatpush.msra.mxu0 %v2810
    %v2812 = vand.u32 %v2709, 4294901760
    %v2813 = vsub.f32 %v2709, %v2812
    %v2814 = vand.u32 %v2813, 4294901760
    %v2815 = vsub.f32 %v2813, %v2814
    %v2816 = vand.u32 %v2815, 4294901760
    %2817 = vmatmul.f32.gmra.mxu0 %v2816
    %v2818 = vpop.f32.mrf.mxu0
    %v2819 = vadd.f32 0.0, %v2818
    %v2820 = vand.u32 %v2715, 4294901760
    %v2821 = vsub.f32 %v2715, %v2820
    %v2822 = vand.u32 %v2821, 4294901760
    %v2823 = vsub.f32 %v2821, %v2822
    %v2824 = vand.u32 %v2823, 4294901760
    %2825 = vmatmul.f32.gmra.mxu0 %v2824
    %v2826 = vpop.f32.mrf.mxu0
    %v2827 = vadd.f32 0.0, %v2826
    %v2828 = vand.u32 %v2721, 4294901760
    %v2829 = vsub.f32 %v2721, %v2828
    %v2830 = vand.u32 %v2829, 4294901760
    %v2831 = vsub.f32 %v2829, %v2830
    %v2832 = vand.u32 %v2831, 4294901760
    %2833 = vmatmul.f32.gmra.mxu0 %v2832
    %v2834 = vpop.f32.mrf.mxu0
    %v2835 = vadd.f32 0.0, %v2834
    %v2836 = vand.u32 %v2727, 4294901760
    %v2837 = vsub.f32 %v2727, %v2836
    %v2838 = vand.u32 %v2837, 4294901760
    %v2839 = vsub.f32 %v2837, %v2838
    %v2840 = vand.u32 %v2839, 4294901760
    %2841 = vmatmul.f32.gmra.mxu0 %v2840
    %v2842 = vpop.f32.mrf.mxu0
    %v2843 = vadd.f32 0.0, %v2842
    %2844 = vdwg.mxu0
    %v2845 = vand.u32 %v2747, 4294901760
    %v2846 = vsub.f32 %v2747, %v2845
    %v2847 = vand.u32 %v2846, 4294901760
    %v2848 = vsub.f32 %v2846, %v2847
    %v2849 = vand.u32 %v2848, 4294901760
    %2850 = vmatpush.msra.mxu0 %v2849
    %v2851 = vand.u32 %v2746, 4294901760
    %v2852 = vsub.f32 %v2746, %v2851
    %v2853 = vand.u32 %v2852, 4294901760
    %v2854 = vsub.f32 %v2852, %v2853
    %v2855 = vand.u32 %v2854, 4294901760
    %2856 = vmatpush.msra.mxu0 %v2855
    %v2857 = vand.u32 %v2745, 4294901760
    %v2858 = vsub.f32 %v2745, %v2857
    %v2859 = vand.u32 %v2858, 4294901760
    %v2860 = vsub.f32 %v2858, %v2859
    %v2861 = vand.u32 %v2860, 4294901760
    %2862 = vmatpush.msra.mxu0 %v2861
    %v2863 = vand.u32 %v2744, 4294901760
    %v2864 = vsub.f32 %v2744, %v2863
    %v2865 = vand.u32 %v2864, 4294901760
    %v2866 = vsub.f32 %v2864, %v2865
    %v2867 = vand.u32 %v2866, 4294901760
    %2868 = vmatpush.msra.mxu0 %v2867
    %v2869 = vand.u32 %v2743, 4294901760
    %v2870 = vsub.f32 %v2743, %v2869
    %v2871 = vand.u32 %v2870, 4294901760
    %v2872 = vsub.f32 %v2870, %v2871
    %v2873 = vand.u32 %v2872, 4294901760
    %2874 = vmatpush.msra.mxu0 %v2873
    %v2875 = vand.u32 %v2742, 4294901760
    %v2876 = vsub.f32 %v2742, %v2875
    %v2877 = vand.u32 %v2876, 4294901760
    %v2878 = vsub.f32 %v2876, %v2877
    %v2879 = vand.u32 %v2878, 4294901760
    %2880 = vmatpush.msra.mxu0 %v2879
    %v2881 = vand.u32 %v2741, 4294901760
    %v2882 = vsub.f32 %v2741, %v2881
    %v2883 = vand.u32 %v2882, 4294901760
    %v2884 = vsub.f32 %v2882, %v2883
    %v2885 = vand.u32 %v2884, 4294901760
    %2886 = vmatpush.msra.mxu0 %v2885
    %v2887 = vand.u32 %v2740, 4294901760
    %v2888 = vsub.f32 %v2740, %v2887
    %v2889 = vand.u32 %v2888, 4294901760
    %v2890 = vsub.f32 %v2888, %v2889
    %v2891 = vand.u32 %v2890, 4294901760
    %2892 = vmatpush.msra.mxu0 %v2891
    %v2893 = vand.u32 %v2739, 4294901760
    %v2894 = vsub.f32 %v2739, %v2893
    %v2895 = vand.u32 %v2894, 4294901760
    %v2896 = vsub.f32 %v2894, %v2895
    %v2897 = vand.u32 %v2896, 4294901760
    %2898 = vmatpush.msra.mxu0 %v2897
    %v2899 = vand.u32 %v2738, 4294901760
    %v2900 = vsub.f32 %v2738, %v2899
    %v2901 = vand.u32 %v2900, 4294901760
    %v2902 = vsub.f32 %v2900, %v2901
    %v2903 = vand.u32 %v2902, 4294901760
    %2904 = vmatpush.msra.mxu0 %v2903
    %v2905 = vand.u32 %v2737, 4294901760
    %v2906 = vsub.f32 %v2737, %v2905
    %v2907 = vand.u32 %v2906, 4294901760
    %v2908 = vsub.f32 %v2906, %v2907
    %v2909 = vand.u32 %v2908, 4294901760
    %2910 = vmatpush.msra.mxu0 %v2909
    %v2911 = vand.u32 %v2736, 4294901760
    %v2912 = vsub.f32 %v2736, %v2911
    %v2913 = vand.u32 %v2912, 4294901760
    %v2914 = vsub.f32 %v2912, %v2913
    %v2915 = vand.u32 %v2914, 4294901760
    %2916 = vmatpush.msra.mxu0 %v2915
    %v2917 = vand.u32 %v2735, 4294901760
    %v2918 = vsub.f32 %v2735, %v2917
    %v2919 = vand.u32 %v2918, 4294901760
    %v2920 = vsub.f32 %v2918, %v2919
    %v2921 = vand.u32 %v2920, 4294901760
    %2922 = vmatpush.msra.mxu0 %v2921
    %v2923 = vand.u32 %v2734, 4294901760
    %v2924 = vsub.f32 %v2734, %v2923
    %v2925 = vand.u32 %v2924, 4294901760
    %v2926 = vsub.f32 %v2924, %v2925
    %v2927 = vand.u32 %v2926, 4294901760
    %2928 = vmatpush.msra.mxu0 %v2927
    %v2929 = vand.u32 %v2733, 4294901760
    %v2930 = vsub.f32 %v2733, %v2929
    %v2931 = vand.u32 %v2930, 4294901760
    %v2932 = vsub.f32 %v2930, %v2931
    %v2933 = vand.u32 %v2932, 4294901760
    %2934 = vmatpush.msra.mxu0 %v2933
    %v2935 = vand.u32 %v2732, 4294901760
    %v2936 = vsub.f32 %v2732, %v2935
    %v2937 = vand.u32 %v2936, 4294901760
    %v2938 = vsub.f32 %v2936, %v2937
    %v2939 = vand.u32 %v2938, 4294901760
    %2940 = vmatpush.msra.mxu0 %v2939
    %v2941 = vand.u32 %v2709, 4294901760
    %2942 = vmatmul.f32.gmra.mxu0 %v2941
    %v2943 = vpop.f32.mrf.mxu0
    %v2944 = vadd.f32 %v2819, %v2943
    %v2945 = vand.u32 %v2715, 4294901760
    %2946 = vmatmul.f32.gmra.mxu0 %v2945
    %v2947 = vpop.f32.mrf.mxu0
    %v2948 = vadd.f32 %v2827, %v2947
    %v2949 = vand.u32 %v2721, 4294901760
    %2950 = vmatmul.f32.gmra.mxu0 %v2949
    %v2951 = vpop.f32.mrf.mxu0
    %v2952 = vadd.f32 %v2835, %v2951
    %v2953 = vand.u32 %v2727, 4294901760
    %2954 = vmatmul.f32.gmra.mxu0 %v2953
    %v2955 = vpop.f32.mrf.mxu0
    %v2956 = vadd.f32 %v2843, %v2955
    %2957 = vdwg.mxu0
    %v2958 = vand.u32 %v2747, 4294901760
    %v2959 = vsub.f32 %v2747, %v2958
    %2960 = vmatpush.msra.mxu0 %v2959
    %v2961 = vand.u32 %v2746, 4294901760
    %v2962 = vsub.f32 %v2746, %v2961
    %2963 = vmatpush.msra.mxu0 %v2962
    %v2964 = vand.u32 %v2745, 4294901760
    %v2965 = vsub.f32 %v2745, %v2964
    %2966 = vmatpush.msra.mxu0 %v2965
    %v2967 = vand.u32 %v2744, 4294901760
    %v2968 = vsub.f32 %v2744, %v2967
    %2969 = vmatpush.msra.mxu0 %v2968
    %v2970 = vand.u32 %v2743, 4294901760
    %v2971 = vsub.f32 %v2743, %v2970
    %2972 = vmatpush.msra.mxu0 %v2971
    %v2973 = vand.u32 %v2742, 4294901760
    %v2974 = vsub.f32 %v2742, %v2973
    %2975 = vmatpush.msra.mxu0 %v2974
    %v2976 = vand.u32 %v2741, 4294901760
    %v2977 = vsub.f32 %v2741, %v2976
    %2978 = vmatpush.msra.mxu0 %v2977
    %v2979 = vand.u32 %v2740, 4294901760
    %v2980 = vsub.f32 %v2740, %v2979
    %2981 = vmatpush.msra.mxu0 %v2980
    %v2982 = vand.u32 %v2739, 4294901760
    %v2983 = vsub.f32 %v2739, %v2982
    %2984 = vmatpush.msra.mxu0 %v2983
    %v2985 = vand.u32 %v2738, 4294901760
    %v2986 = vsub.f32 %v2738, %v2985
    %2987 = vmatpush.msra.mxu0 %v2986
    %v2988 = vand.u32 %v2737, 4294901760
    %v2989 = vsub.f32 %v2737, %v2988
    %2990 = vmatpush.msra.mxu0 %v2989
    %v2991 = vand.u32 %v2736, 4294901760
    %v2992 = vsub.f32 %v2736, %v2991
    %2993 = vmatpush.msra.mxu0 %v2992
    %v2994 = vand.u32 %v2735, 4294901760
    %v2995 = vsub.f32 %v2735, %v2994
    %2996 = vmatpush.msra.mxu0 %v2995
    %v2997 = vand.u32 %v2734, 4294901760
    %v2998 = vsub.f32 %v2734, %v2997
    %2999 = vmatpush.msra.mxu0 %v2998
    %v3000 = vand.u32 %v2733, 4294901760
    %v3001 = vsub.f32 %v2733, %v3000
    %3002 = vmatpush.msra.mxu0 %v3001
    %v3003 = vand.u32 %v2732, 4294901760
    %v3004 = vsub.f32 %v2732, %v3003
    %3005 = vmatpush.msra.mxu0 %v3004
    %v3006 = vand.u32 %v2709, 4294901760
    %v3007 = vsub.f32 %v2709, %v3006
    %3008 = vmatmul.f32.gmra.mxu0 %v3007
    %v3009 = vpop.f32.mrf.mxu0
    %v3010 = vadd.f32 %v2944, %v3009
    %v3011 = vand.u32 %v2715, 4294901760
    %v3012 = vsub.f32 %v2715, %v3011
    %3013 = vmatmul.f32.gmra.mxu0 %v3012
    %v3014 = vpop.f32.mrf.mxu0
    %v3015 = vadd.f32 %v2948, %v3014
    %v3016 = vand.u32 %v2721, 4294901760
    %v3017 = vsub.f32 %v2721, %v3016
    %3018 = vmatmul.f32.gmra.mxu0 %v3017
    %v3019 = vpop.f32.mrf.mxu0
    %v3020 = vadd.f32 %v2952, %v3019
    %v3021 = vand.u32 %v2727, 4294901760
    %v3022 = vsub.f32 %v2727, %v3021
    %3023 = vmatmul.f32.gmra.mxu0 %v3022
    %v3024 = vpop.f32.mrf.mxu0
    %v3025 = vadd.f32 %v2956, %v3024
    %3026 = vdwg.mxu0
    %v3027 = vand.u32 %v2747, 4294901760
    %3028 = vmatpush.msra.mxu0 %v3027
    %v3029 = vand.u32 %v2746, 4294901760
    %3030 = vmatpush.msra.mxu0 %v3029
    %v3031 = vand.u32 %v2745, 4294901760
    %3032 = vmatpush.msra.mxu0 %v3031
    %v3033 = vand.u32 %v2744, 4294901760
    %3034 = vmatpush.msra.mxu0 %v3033
    %v3035 = vand.u32 %v2743, 4294901760
    %3036 = vmatpush.msra.mxu0 %v3035
    %v3037 = vand.u32 %v2742, 4294901760
    %3038 = vmatpush.msra.mxu0 %v3037
    %v3039 = vand.u32 %v2741, 4294901760
    %3040 = vmatpush.msra.mxu0 %v3039
    %v3041 = vand.u32 %v2740, 4294901760
    %3042 = vmatpush.msra.mxu0 %v3041
    %v3043 = vand.u32 %v2739, 4294901760
    %3044 = vmatpush.msra.mxu0 %v3043
    %v3045 = vand.u32 %v2738, 4294901760
    %3046 = vmatpush.msra.mxu0 %v3045
    %v3047 = vand.u32 %v2737, 4294901760
    %3048 = vmatpush.msra.mxu0 %v3047
    %v3049 = vand.u32 %v2736, 4294901760
    %3050 = vmatpush.msra.mxu0 %v3049
    %v3051 = vand.u32 %v2735, 4294901760
    %3052 = vmatpush.msra.mxu0 %v3051
    %v3053 = vand.u32 %v2734, 4294901760
    %3054 = vmatpush.msra.mxu0 %v3053
    %v3055 = vand.u32 %v2733, 4294901760
    %3056 = vmatpush.msra.mxu0 %v3055
    %v3057 = vand.u32 %v2732, 4294901760
    %3058 = vmatpush.msra.mxu0 %v3057
    %v3059 = vand.u32 %v2709, 4294901760
    %v3060 = vsub.f32 %v2709, %v3059
    %v3061 = vand.u32 %v3060, 4294901760
    %3062 = vmatmul.f32.gmra.mxu0 %v3061
    %v3063 = vpop.f32.mrf.mxu0
    %v3064 = vadd.f32 %v3010, %v3063
    %v3065 = vand.u32 %v2715, 4294901760
    %v3066 = vsub.f32 %v2715, %v3065
    %v3067 = vand.u32 %v3066, 4294901760
    %3068 = vmatmul.f32.gmra.mxu0 %v3067
    %v3069 = vpop.f32.mrf.mxu0
    %v3070 = vadd.f32 %v3015, %v3069
    %v3071 = vand.u32 %v2721, 4294901760
    %v3072 = vsub.f32 %v2721, %v3071
    %v3073 = vand.u32 %v3072, 4294901760
    %3074 = vmatmul.f32.gmra.mxu0 %v3073
    %v3075 = vpop.f32.mrf.mxu0
    %v3076 = vadd.f32 %v3020, %v3075
    %v3077 = vand.u32 %v2727, 4294901760
    %v3078 = vsub.f32 %v2727, %v3077
    %v3079 = vand.u32 %v3078, 4294901760
    %3080 = vmatmul.f32.gmra.mxu0 %v3079
    %v3081 = vpop.f32.mrf.mxu0
    %v3082 = vadd.f32 %v3025, %v3081
    %3083 = vdwg.mxu0
    %v3084 = vand.u32 %v2747, 4294901760
    %v3085 = vsub.f32 %v2747, %v3084
    %v3086 = vand.u32 %v3085, 4294901760
    %3087 = vmatpush.msra.mxu0 %v3086
    %v3088 = vand.u32 %v2746, 4294901760
    %v3089 = vsub.f32 %v2746, %v3088
    %v3090 = vand.u32 %v3089, 4294901760
    %3091 = vmatpush.msra.mxu0 %v3090
    %v3092 = vand.u32 %v2745, 4294901760
    %v3093 = vsub.f32 %v2745, %v3092
    %v3094 = vand.u32 %v3093, 4294901760
    %3095 = vmatpush.msra.mxu0 %v3094
    %v3096 = vand.u32 %v2744, 4294901760
    %v3097 = vsub.f32 %v2744, %v3096
    %v3098 = vand.u32 %v3097, 4294901760
    %3099 = vmatpush.msra.mxu0 %v3098
    %v3100 = vand.u32 %v2743, 4294901760
    %v3101 = vsub.f32 %v2743, %v3100
    %v3102 = vand.u32 %v3101, 4294901760
    %3103 = vmatpush.msra.mxu0 %v3102
    %v3104 = vand.u32 %v2742, 4294901760
    %v3105 = vsub.f32 %v2742, %v3104
    %v3106 = vand.u32 %v3105, 4294901760
    %3107 = vmatpush.msra.mxu0 %v3106
    %v3108 = vand.u32 %v2741, 4294901760
    %v3109 = vsub.f32 %v2741, %v3108
    %v3110 = vand.u32 %v3109, 4294901760
    %3111 = vmatpush.msra.mxu0 %v3110
    %v3112 = vand.u32 %v2740, 4294901760
    %v3113 = vsub.f32 %v2740, %v3112
    %v3114 = vand.u32 %v3113, 4294901760
    %3115 = vmatpush.msra.mxu0 %v3114
    %v3116 = vand.u32 %v2739, 4294901760
    %v3117 = vsub.f32 %v2739, %v3116
    %v3118 = vand.u32 %v3117, 4294901760
    %3119 = vmatpush.msra.mxu0 %v3118
    %v3120 = vand.u32 %v2738, 4294901760
    %v3121 = vsub.f32 %v2738, %v3120
    %v3122 = vand.u32 %v3121, 4294901760
    %3123 = vmatpush.msra.mxu0 %v3122
    %v3124 = vand.u32 %v2737, 4294901760
    %v3125 = vsub.f32 %v2737, %v3124
    %v3126 = vand.u32 %v3125, 4294901760
    %3127 = vmatpush.msra.mxu0 %v3126
    %v3128 = vand.u32 %v2736, 4294901760
    %v3129 = vsub.f32 %v2736, %v3128
    %v3130 = vand.u32 %v3129, 4294901760
    %3131 = vmatpush.msra.mxu0 %v3130
    %v3132 = vand.u32 %v2735, 4294901760
    %v3133 = vsub.f32 %v2735, %v3132
    %v3134 = vand.u32 %v3133, 4294901760
    %3135 = vmatpush.msra.mxu0 %v3134
    %v3136 = vand.u32 %v2734, 4294901760
    %v3137 = vsub.f32 %v2734, %v3136
    %v3138 = vand.u32 %v3137, 4294901760
    %3139 = vmatpush.msra.mxu0 %v3138
    %v3140 = vand.u32 %v2733, 4294901760
    %v3141 = vsub.f32 %v2733, %v3140
    %v3142 = vand.u32 %v3141, 4294901760
    %3143 = vmatpush.msra.mxu0 %v3142
    %v3144 = vand.u32 %v2732, 4294901760
    %v3145 = vsub.f32 %v2732, %v3144
    %v3146 = vand.u32 %v3145, 4294901760
    %3147 = vmatpush.msra.mxu0 %v3146
    %v3148 = vand.u32 %v2709, 4294901760
    %3149 = vmatmul.f32.gmra.mxu0 %v3148
    %v3150 = vpop.f32.mrf.mxu0
    %v3151 = vadd.f32 %v3064, %v3150
    %v3152 = vand.u32 %v2715, 4294901760
    %3153 = vmatmul.f32.gmra.mxu0 %v3152
    %v3154 = vpop.f32.mrf.mxu0
    %v3155 = vadd.f32 %v3070, %v3154
    %v3156 = vand.u32 %v2721, 4294901760
    %3157 = vmatmul.f32.gmra.mxu0 %v3156
    %v3158 = vpop.f32.mrf.mxu0
    %v3159 = vadd.f32 %v3076, %v3158
    %v3160 = vand.u32 %v2727, 4294901760
    %3161 = vmatmul.f32.gmra.mxu0 %v3160
    %v3162 = vpop.f32.mrf.mxu0
    %v3163 = vadd.f32 %v3082, %v3162
    %3164 = vdwg.mxu0
    %v3165 = vand.u32 %v2747, 4294901760
    %3166 = vmatpush.msra.mxu0 %v3165
    %v3167 = vand.u32 %v2746, 4294901760
    %3168 = vmatpush.msra.mxu0 %v3167
    %v3169 = vand.u32 %v2745, 4294901760
    %3170 = vmatpush.msra.mxu0 %v3169
    %v3171 = vand.u32 %v2744, 4294901760
    %3172 = vmatpush.msra.mxu0 %v3171
    %v3173 = vand.u32 %v2743, 4294901760
    %3174 = vmatpush.msra.mxu0 %v3173
    %v3175 = vand.u32 %v2742, 4294901760
    %3176 = vmatpush.msra.mxu0 %v3175
    %v3177 = vand.u32 %v2741, 4294901760
    %3178 = vmatpush.msra.mxu0 %v3177
    %v3179 = vand.u32 %v2740, 4294901760
    %3180 = vmatpush.msra.mxu0 %v3179
    %v3181 = vand.u32 %v2739, 4294901760
    %3182 = vmatpush.msra.mxu0 %v3181
    %v3183 = vand.u32 %v2738, 4294901760
    %3184 = vmatpush.msra.mxu0 %v3183
    %v3185 = vand.u32 %v2737, 4294901760
    %3186 = vmatpush.msra.mxu0 %v3185
    %v3187 = vand.u32 %v2736, 4294901760
    %3188 = vmatpush.msra.mxu0 %v3187
    %v3189 = vand.u32 %v2735, 4294901760
    %3190 = vmatpush.msra.mxu0 %v3189
    %v3191 = vand.u32 %v2734, 4294901760
    %3192 = vmatpush.msra.mxu0 %v3191
    %v3193 = vand.u32 %v2733, 4294901760
    %3194 = vmatpush.msra.mxu0 %v3193
    %v3195 = vand.u32 %v2732, 4294901760
    %3196 = vmatpush.msra.mxu0 %v3195
    %v3197 = vand.u32 %v2709, 4294901760
    %3198 = vmatmul.f32.gmra.mxu0 %v3197
    %v3199 = vpop.f32.mrf.mxu0
    %v3200 = vadd.f32 %v3151, %v3199
    %v3201 = vand.u32 %v2715, 4294901760
    %3202 = vmatmul.f32.gmra.mxu0 %v3201
    %v3203 = vpop.f32.mrf.mxu0
    %v3204 = vadd.f32 %v3155, %v3203
    %v3205 = vand.u32 %v2721, 4294901760
    %3206 = vmatmul.f32.gmra.mxu0 %v3205
    %v3207 = vpop.f32.mrf.mxu0
    %v3208 = vadd.f32 %v3159, %v3207
    %v3209 = vand.u32 %v2727, 4294901760
    %3210 = vmatmul.f32.gmra.mxu0 %v3209
    %v3211 = vpop.f32.mrf.mxu0
    %v3212 = vadd.f32 %v3163, %v3211
    %3213 = vdwg.mxu0
    %v3214 = vand.u32 %v2763, 4294901760
    %3215 = vmatpush.msra.mxu0 %v3214
    %v3216 = vand.u32 %v2762, 4294901760
    %3217 = vmatpush.msra.mxu0 %v3216
    %v3218 = vand.u32 %v2761, 4294901760
    %3219 = vmatpush.msra.mxu0 %v3218
    %v3220 = vand.u32 %v2760, 4294901760
    %3221 = vmatpush.msra.mxu0 %v3220
    %v3222 = vand.u32 %v2759, 4294901760
    %3223 = vmatpush.msra.mxu0 %v3222
    %v3224 = vand.u32 %v2758, 4294901760
    %3225 = vmatpush.msra.mxu0 %v3224
    %v3226 = vand.u32 %v2757, 4294901760
    %3227 = vmatpush.msra.mxu0 %v3226
    %v3228 = vand.u32 %v2756, 4294901760
    %3229 = vmatpush.msra.mxu0 %v3228
    %v3230 = vand.u32 %v2755, 4294901760
    %3231 = vmatpush.msra.mxu0 %v3230
    %v3232 = vand.u32 %v2754, 4294901760
    %3233 = vmatpush.msra.mxu0 %v3232
    %v3234 = vand.u32 %v2753, 4294901760
    %3235 = vmatpush.msra.mxu0 %v3234
    %v3236 = vand.u32 %v2752, 4294901760
    %3237 = vmatpush.msra.mxu0 %v3236
    %v3238 = vand.u32 %v2751, 4294901760
    %3239 = vmatpush.msra.mxu0 %v3238
    %v3240 = vand.u32 %v2750, 4294901760
    %3241 = vmatpush.msra.mxu0 %v3240
    %v3242 = vand.u32 %v2749, 4294901760
    %3243 = vmatpush.msra.mxu0 %v3242
    %v3244 = vand.u32 %v2748, 4294901760
    %3245 = vmatpush.msra.mxu0 %v3244
    %v3246 = vand.u32 %v2711, 4294901760
    %v3247 = vsub.f32 %v2711, %v3246
    %v3248 = vand.u32 %v3247, 4294901760
    %v3249 = vsub.f32 %v3247, %v3248
    %v3250 = vand.u32 %v3249, 4294901760
    %3251 = vmatmul.f32.gmra.mxu0 %v3250
    %v3252 = vpop.f32.mrf.mxu0
    %v3253 = vadd.f32 %v3200, %v3252
    %v3254 = vand.u32 %v2717, 4294901760
    %v3255 = vsub.f32 %v2717, %v3254
    %v3256 = vand.u32 %v3255, 4294901760
    %v3257 = vsub.f32 %v3255, %v3256
    %v3258 = vand.u32 %v3257, 4294901760
    %3259 = vmatmul.f32.gmra.mxu0 %v3258
    %v3260 = vpop.f32.mrf.mxu0
    %v3261 = vadd.f32 %v3204, %v3260
    %v3262 = vand.u32 %v2723, 4294901760
    %v3263 = vsub.f32 %v2723, %v3262
    %v3264 = vand.u32 %v3263, 4294901760
    %v3265 = vsub.f32 %v3263, %v3264
    %v3266 = vand.u32 %v3265, 4294901760
    %3267 = vmatmul.f32.gmra.mxu0 %v3266
    %v3268 = vpop.f32.mrf.mxu0
    %v3269 = vadd.f32 %v3208, %v3268
    %v3270 = vand.u32 %v2729, 4294901760
    %v3271 = vsub.f32 %v2729, %v3270
    %v3272 = vand.u32 %v3271, 4294901760
    %v3273 = vsub.f32 %v3271, %v3272
    %v3274 = vand.u32 %v3273, 4294901760
    %3275 = vmatmul.f32.gmra.mxu0 %v3274
    %v3276 = vpop.f32.mrf.mxu0
    %v3277 = vadd.f32 %v3212, %v3276
    %3278 = vdwg.mxu0
    %v3279 = vand.u32 %v2763, 4294901760
    %v3280 = vsub.f32 %v2763, %v3279
    %v3281 = vand.u32 %v3280, 4294901760
    %v3282 = vsub.f32 %v3280, %v3281
    %v3283 = vand.u32 %v3282, 4294901760
    %3284 = vmatpush.msra.mxu0 %v3283
    %v3285 = vand.u32 %v2762, 4294901760
    %v3286 = vsub.f32 %v2762, %v3285
    %v3287 = vand.u32 %v3286, 4294901760
    %v3288 = vsub.f32 %v3286, %v3287
    %v3289 = vand.u32 %v3288, 4294901760
    %3290 = vmatpush.msra.mxu0 %v3289
    %v3291 = vand.u32 %v2761, 4294901760
    %v3292 = vsub.f32 %v2761, %v3291
    %v3293 = vand.u32 %v3292, 4294901760
    %v3294 = vsub.f32 %v3292, %v3293
    %v3295 = vand.u32 %v3294, 4294901760
    %3296 = vmatpush.msra.mxu0 %v3295
    %v3297 = vand.u32 %v2760, 4294901760
    %v3298 = vsub.f32 %v2760, %v3297
    %v3299 = vand.u32 %v3298, 4294901760
    %v3300 = vsub.f32 %v3298, %v3299
    %v3301 = vand.u32 %v3300, 4294901760
    %3302 = vmatpush.msra.mxu0 %v3301
    %v3303 = vand.u32 %v2759, 4294901760
    %v3304 = vsub.f32 %v2759, %v3303
    %v3305 = vand.u32 %v3304, 4294901760
    %v3306 = vsub.f32 %v3304, %v3305
    %v3307 = vand.u32 %v3306, 4294901760
    %3308 = vmatpush.msra.mxu0 %v3307
    %v3309 = vand.u32 %v2758, 4294901760
    %v3310 = vsub.f32 %v2758, %v3309
    %v3311 = vand.u32 %v3310, 4294901760
    %v3312 = vsub.f32 %v3310, %v3311
    %v3313 = vand.u32 %v3312, 4294901760
    %3314 = vmatpush.msra.mxu0 %v3313
    %v3315 = vand.u32 %v2757, 4294901760
    %v3316 = vsub.f32 %v2757, %v3315
    %v3317 = vand.u32 %v3316, 4294901760
    %v3318 = vsub.f32 %v3316, %v3317
    %v3319 = vand.u32 %v3318, 4294901760
    %3320 = vmatpush.msra.mxu0 %v3319
    %v3321 = vand.u32 %v2756, 4294901760
    %v3322 = vsub.f32 %v2756, %v3321
    %v3323 = vand.u32 %v3322, 4294901760
    %v3324 = vsub.f32 %v3322, %v3323
    %v3325 = vand.u32 %v3324, 4294901760
    %3326 = vmatpush.msra.mxu0 %v3325
    %v3327 = vand.u32 %v2755, 4294901760
    %v3328 = vsub.f32 %v2755, %v3327
    %v3329 = vand.u32 %v3328, 4294901760
    %v3330 = vsub.f32 %v3328, %v3329
    %v3331 = vand.u32 %v3330, 4294901760
    %3332 = vmatpush.msra.mxu0 %v3331
    %v3333 = vand.u32 %v2754, 4294901760
    %v3334 = vsub.f32 %v2754, %v3333
    %v3335 = vand.u32 %v3334, 4294901760
    %v3336 = vsub.f32 %v3334, %v3335
    %v3337 = vand.u32 %v3336, 4294901760
    %3338 = vmatpush.msra.mxu0 %v3337
    %v3339 = vand.u32 %v2753, 4294901760
    %v3340 = vsub.f32 %v2753, %v3339
    %v3341 = vand.u32 %v3340, 4294901760
    %v3342 = vsub.f32 %v3340, %v3341
    %v3343 = vand.u32 %v3342, 4294901760
    %3344 = vmatpush.msra.mxu0 %v3343
    %v3345 = vand.u32 %v2752, 4294901760
    %v3346 = vsub.f32 %v2752, %v3345
    %v3347 = vand.u32 %v3346, 4294901760
    %v3348 = vsub.f32 %v3346, %v3347
    %v3349 = vand.u32 %v3348, 4294901760
    %3350 = vmatpush.msra.mxu0 %v3349
    %v3351 = vand.u32 %v2751, 4294901760
    %v3352 = vsub.f32 %v2751, %v3351
    %v3353 = vand.u32 %v3352, 4294901760
    %v3354 = vsub.f32 %v3352, %v3353
    %v3355 = vand.u32 %v3354, 4294901760
    %3356 = vmatpush.msra.mxu0 %v3355
    %v3357 = vand.u32 %v2750, 4294901760
    %v3358 = vsub.f32 %v2750, %v3357
    %v3359 = vand.u32 %v3358, 4294901760
    %v3360 = vsub.f32 %v3358, %v3359
    %v3361 = vand.u32 %v3360, 4294901760
    %3362 = vmatpush.msra.mxu0 %v3361
    %v3363 = vand.u32 %v2749, 4294901760
    %v3364 = vsub.f32 %v2749, %v3363
    %v3365 = vand.u32 %v3364, 4294901760
    %v3366 = vsub.f32 %v3364, %v3365
    %v3367 = vand.u32 %v3366, 4294901760
    %3368 = vmatpush.msra.mxu0 %v3367
    %v3369 = vand.u32 %v2748, 4294901760
    %v3370 = vsub.f32 %v2748, %v3369
    %v3371 = vand.u32 %v3370, 4294901760
    %v3372 = vsub.f32 %v3370, %v3371
    %v3373 = vand.u32 %v3372, 4294901760
    %3374 = vmatpush.msra.mxu0 %v3373
    %v3375 = vand.u32 %v2711, 4294901760
    %3376 = vmatmul.f32.gmra.mxu0 %v3375
    %v3377 = vpop.f32.mrf.mxu0
    %v3378 = vadd.f32 %v3253, %v3377
    %v3379 = vand.u32 %v2717, 4294901760
    %3380 = vmatmul.f32.gmra.mxu0 %v3379
    %v3381 = vpop.f32.mrf.mxu0
    %v3382 = vadd.f32 %v3261, %v3381
    %v3383 = vand.u32 %v2723, 4294901760
    %3384 = vmatmul.f32.gmra.mxu0 %v3383
    %v3385 = vpop.f32.mrf.mxu0
    %v3386 = vadd.f32 %v3269, %v3385
    %v3387 = vand.u32 %v2729, 4294901760
    %3388 = vmatmul.f32.gmra.mxu0 %v3387
    %v3389 = vpop.f32.mrf.mxu0
    %v3390 = vadd.f32 %v3277, %v3389
    %3391 = vdwg.mxu0
    %v3392 = vand.u32 %v2763, 4294901760
    %v3393 = vsub.f32 %v2763, %v3392
    %3394 = vmatpush.msra.mxu0 %v3393
    %v3395 = vand.u32 %v2762, 4294901760
    %v3396 = vsub.f32 %v2762, %v3395
    %3397 = vmatpush.msra.mxu0 %v3396
    %v3398 = vand.u32 %v2761, 4294901760
    %v3399 = vsub.f32 %v2761, %v3398
    %3400 = vmatpush.msra.mxu0 %v3399
    %v3401 = vand.u32 %v2760, 4294901760
    %v3402 = vsub.f32 %v2760, %v3401
    %3403 = vmatpush.msra.mxu0 %v3402
    %v3404 = vand.u32 %v2759, 4294901760
    %v3405 = vsub.f32 %v2759, %v3404
    %3406 = vmatpush.msra.mxu0 %v3405
    %v3407 = vand.u32 %v2758, 4294901760
    %v3408 = vsub.f32 %v2758, %v3407
    %3409 = vmatpush.msra.mxu0 %v3408
    %v3410 = vand.u32 %v2757, 4294901760
    %v3411 = vsub.f32 %v2757, %v3410
    %3412 = vmatpush.msra.mxu0 %v3411
    %v3413 = vand.u32 %v2756, 4294901760
    %v3414 = vsub.f32 %v2756, %v3413
    %3415 = vmatpush.msra.mxu0 %v3414
    %v3416 = vand.u32 %v2755, 4294901760
    %v3417 = vsub.f32 %v2755, %v3416
    %3418 = vmatpush.msra.mxu0 %v3417
    %v3419 = vand.u32 %v2754, 4294901760
    %v3420 = vsub.f32 %v2754, %v3419
    %3421 = vmatpush.msra.mxu0 %v3420
    %v3422 = vand.u32 %v2753, 4294901760
    %v3423 = vsub.f32 %v2753, %v3422
    %3424 = vmatpush.msra.mxu0 %v3423
    %v3425 = vand.u32 %v2752, 4294901760
    %v3426 = vsub.f32 %v2752, %v3425
    %3427 = vmatpush.msra.mxu0 %v3426
    %v3428 = vand.u32 %v2751, 4294901760
    %v3429 = vsub.f32 %v2751, %v3428
    %3430 = vmatpush.msra.mxu0 %v3429
    %v3431 = vand.u32 %v2750, 4294901760
    %v3432 = vsub.f32 %v2750, %v3431
    %3433 = vmatpush.msra.mxu0 %v3432
    %v3434 = vand.u32 %v2749, 4294901760
    %v3435 = vsub.f32 %v2749, %v3434
    %3436 = vmatpush.msra.mxu0 %v3435
    %v3437 = vand.u32 %v2748, 4294901760
    %v3438 = vsub.f32 %v2748, %v3437
    %3439 = vmatpush.msra.mxu0 %v3438
    %v3440 = vand.u32 %v2711, 4294901760
    %v3441 = vsub.f32 %v2711, %v3440
    %3442 = vmatmul.f32.gmra.mxu0 %v3441
    %v3443 = vpop.f32.mrf.mxu0
    %v3444 = vadd.f32 %v3378, %v3443
    %v3445 = vand.u32 %v2717, 4294901760
    %v3446 = vsub.f32 %v2717, %v3445
    %3447 = vmatmul.f32.gmra.mxu0 %v3446
    %v3448 = vpop.f32.mrf.mxu0
    %v3449 = vadd.f32 %v3382, %v3448
    %v3450 = vand.u32 %v2723, 4294901760
    %v3451 = vsub.f32 %v2723, %v3450
    %3452 = vmatmul.f32.gmra.mxu0 %v3451
    %v3453 = vpop.f32.mrf.mxu0
    %v3454 = vadd.f32 %v3386, %v3453
    %v3455 = vand.u32 %v2729, 4294901760
    %v3456 = vsub.f32 %v2729, %v3455
    %3457 = vmatmul.f32.gmra.mxu0 %v3456
    %v3458 = vpop.f32.mrf.mxu0
    %v3459 = vadd.f32 %v3390, %v3458
    %3460 = vdwg.mxu0
    %v3461 = vand.u32 %v2763, 4294901760
    %3462 = vmatpush.msra.mxu0 %v3461
    %v3463 = vand.u32 %v2762, 4294901760
    %3464 = vmatpush.msra.mxu0 %v3463
    %v3465 = vand.u32 %v2761, 4294901760
    %3466 = vmatpush.msra.mxu0 %v3465
    %v3467 = vand.u32 %v2760, 4294901760
    %3468 = vmatpush.msra.mxu0 %v3467
    %v3469 = vand.u32 %v2759, 4294901760
    %3470 = vmatpush.msra.mxu0 %v3469
    %v3471 = vand.u32 %v2758, 4294901760
    %3472 = vmatpush.msra.mxu0 %v3471
    %v3473 = vand.u32 %v2757, 4294901760
    %3474 = vmatpush.msra.mxu0 %v3473
    %v3475 = vand.u32 %v2756, 4294901760
    %3476 = vmatpush.msra.mxu0 %v3475
    %v3477 = vand.u32 %v2755, 4294901760
    %3478 = vmatpush.msra.mxu0 %v3477
    %v3479 = vand.u32 %v2754, 4294901760
    %3480 = vmatpush.msra.mxu0 %v3479
    %v3481 = vand.u32 %v2753, 4294901760
    %3482 = vmatpush.msra.mxu0 %v3481
    %v3483 = vand.u32 %v2752, 4294901760
    %3484 = vmatpush.msra.mxu0 %v3483
    %v3485 = vand.u32 %v2751, 4294901760
    %3486 = vmatpush.msra.mxu0 %v3485
    %v3487 = vand.u32 %v2750, 4294901760
    %3488 = vmatpush.msra.mxu0 %v3487
    %v3489 = vand.u32 %v2749, 4294901760
    %3490 = vmatpush.msra.mxu0 %v3489
    %v3491 = vand.u32 %v2748, 4294901760
    %3492 = vmatpush.msra.mxu0 %v3491
    %v3493 = vand.u32 %v2711, 4294901760
    %v3494 = vsub.f32 %v2711, %v3493
    %v3495 = vand.u32 %v3494, 4294901760
    %3496 = vmatmul.f32.gmra.mxu0 %v3495
    %v3497 = vpop.f32.mrf.mxu0
    %v3498 = vadd.f32 %v3444, %v3497
    %v3499 = vand.u32 %v2717, 4294901760
    %v3500 = vsub.f32 %v2717, %v3499
    %v3501 = vand.u32 %v3500, 4294901760
    %3502 = vmatmul.f32.gmra.mxu0 %v3501
    %v3503 = vpop.f32.mrf.mxu0
    %v3504 = vadd.f32 %v3449, %v3503
    %v3505 = vand.u32 %v2723, 4294901760
    %v3506 = vsub.f32 %v2723, %v3505
    %v3507 = vand.u32 %v3506, 4294901760
    %3508 = vmatmul.f32.gmra.mxu0 %v3507
    %v3509 = vpop.f32.mrf.mxu0
    %v3510 = vadd.f32 %v3454, %v3509
    %v3511 = vand.u32 %v2729, 4294901760
    %v3512 = vsub.f32 %v2729, %v3511
    %v3513 = vand.u32 %v3512, 4294901760
    %3514 = vmatmul.f32.gmra.mxu0 %v3513
    %v3515 = vpop.f32.mrf.mxu0
    %v3516 = vadd.f32 %v3459, %v3515
    %3517 = vdwg.mxu0
    %v3518 = vand.u32 %v2763, 4294901760
    %v3519 = vsub.f32 %v2763, %v3518
    %v3520 = vand.u32 %v3519, 4294901760
    %3521 = vmatpush.msra.mxu0 %v3520
    %v3522 = vand.u32 %v2762, 4294901760
    %v3523 = vsub.f32 %v2762, %v3522
    %v3524 = vand.u32 %v3523, 4294901760
    %3525 = vmatpush.msra.mxu0 %v3524
    %v3526 = vand.u32 %v2761, 4294901760
    %v3527 = vsub.f32 %v2761, %v3526
    %v3528 = vand.u32 %v3527, 4294901760
    %3529 = vmatpush.msra.mxu0 %v3528
    %v3530 = vand.u32 %v2760, 4294901760
    %v3531 = vsub.f32 %v2760, %v3530
    %v3532 = vand.u32 %v3531, 4294901760
    %3533 = vmatpush.msra.mxu0 %v3532
    %v3534 = vand.u32 %v2759, 4294901760
    %v3535 = vsub.f32 %v2759, %v3534
    %v3536 = vand.u32 %v3535, 4294901760
    %3537 = vmatpush.msra.mxu0 %v3536
    %v3538 = vand.u32 %v2758, 4294901760
    %v3539 = vsub.f32 %v2758, %v3538
    %v3540 = vand.u32 %v3539, 4294901760
    %3541 = vmatpush.msra.mxu0 %v3540
    %v3542 = vand.u32 %v2757, 4294901760
    %v3543 = vsub.f32 %v2757, %v3542
    %v3544 = vand.u32 %v3543, 4294901760
    %3545 = vmatpush.msra.mxu0 %v3544
    %v3546 = vand.u32 %v2756, 4294901760
    %v3547 = vsub.f32 %v2756, %v3546
    %v3548 = vand.u32 %v3547, 4294901760
    %3549 = vmatpush.msra.mxu0 %v3548
    %v3550 = vand.u32 %v2755, 4294901760
    %v3551 = vsub.f32 %v2755, %v3550
    %v3552 = vand.u32 %v3551, 4294901760
    %3553 = vmatpush.msra.mxu0 %v3552
    %v3554 = vand.u32 %v2754, 4294901760
    %v3555 = vsub.f32 %v2754, %v3554
    %v3556 = vand.u32 %v3555, 4294901760
    %3557 = vmatpush.msra.mxu0 %v3556
    %v3558 = vand.u32 %v2753, 4294901760
    %v3559 = vsub.f32 %v2753, %v3558
    %v3560 = vand.u32 %v3559, 4294901760
    %3561 = vmatpush.msra.mxu0 %v3560
    %v3562 = vand.u32 %v2752, 4294901760
    %v3563 = vsub.f32 %v2752, %v3562
    %v3564 = vand.u32 %v3563, 4294901760
    %3565 = vmatpush.msra.mxu0 %v3564
    %v3566 = vand.u32 %v2751, 4294901760
    %v3567 = vsub.f32 %v2751, %v3566
    %v3568 = vand.u32 %v3567, 4294901760
    %3569 = vmatpush.msra.mxu0 %v3568
    %v3570 = vand.u32 %v2750, 4294901760
    %v3571 = vsub.f32 %v2750, %v3570
    %v3572 = vand.u32 %v3571, 4294901760
    %3573 = vmatpush.msra.mxu0 %v3572
    %v3574 = vand.u32 %v2749, 4294901760
    %v3575 = vsub.f32 %v2749, %v3574
    %v3576 = vand.u32 %v3575, 4294901760
    %3577 = vmatpush.msra.mxu0 %v3576
    %v3578 = vand.u32 %v2748, 4294901760
    %v3579 = vsub.f32 %v2748, %v3578
    %v3580 = vand.u32 %v3579, 4294901760
    %3581 = vmatpush.msra.mxu0 %v3580
    %v3582 = vand.u32 %v2711, 4294901760
    %3583 = vmatmul.f32.gmra.mxu0 %v3582
    %v3584 = vpop.f32.mrf.mxu0
    %v3585 = vadd.f32 %v3498, %v3584
    %v3586 = vand.u32 %v2717, 4294901760
    %3587 = vmatmul.f32.gmra.mxu0 %v3586
    %v3588 = vpop.f32.mrf.mxu0
    %v3589 = vadd.f32 %v3504, %v3588
    %v3590 = vand.u32 %v2723, 4294901760
    %3591 = vmatmul.f32.gmra.mxu0 %v3590
    %v3592 = vpop.f32.mrf.mxu0
    %v3593 = vadd.f32 %v3510, %v3592
    %v3594 = vand.u32 %v2729, 4294901760
    %3595 = vmatmul.f32.gmra.mxu0 %v3594
    %v3596 = vpop.f32.mrf.mxu0
    %v3597 = vadd.f32 %v3516, %v3596
    %3598 = vdwg.mxu0
    %v3599 = vand.u32 %v2763, 4294901760
    %3600 = vmatpush.msra.mxu0 %v3599
    %v3601 = vand.u32 %v2762, 4294901760
    %3602 = vmatpush.msra.mxu0 %v3601
    %v3603 = vand.u32 %v2761, 4294901760
    %3604 = vmatpush.msra.mxu0 %v3603
    %v3605 = vand.u32 %v2760, 4294901760
    %3606 = vmatpush.msra.mxu0 %v3605
    %v3607 = vand.u32 %v2759, 4294901760
    %3608 = vmatpush.msra.mxu0 %v3607
    %v3609 = vand.u32 %v2758, 4294901760
    %3610 = vmatpush.msra.mxu0 %v3609
    %v3611 = vand.u32 %v2757, 4294901760
    %3612 = vmatpush.msra.mxu0 %v3611
    %v3613 = vand.u32 %v2756, 4294901760
    %3614 = vmatpush.msra.mxu0 %v3613
    %v3615 = vand.u32 %v2755, 4294901760
    %3616 = vmatpush.msra.mxu0 %v3615
    %v3617 = vand.u32 %v2754, 4294901760
    %3618 = vmatpush.msra.mxu0 %v3617
    %v3619 = vand.u32 %v2753, 4294901760
    %3620 = vmatpush.msra.mxu0 %v3619
    %v3621 = vand.u32 %v2752, 4294901760
    %3622 = vmatpush.msra.mxu0 %v3621
    %v3623 = vand.u32 %v2751, 4294901760
    %3624 = vmatpush.msra.mxu0 %v3623
    %v3625 = vand.u32 %v2750, 4294901760
    %3626 = vmatpush.msra.mxu0 %v3625
    %v3627 = vand.u32 %v2749, 4294901760
    %3628 = vmatpush.msra.mxu0 %v3627
    %v3629 = vand.u32 %v2748, 4294901760
    %3630 = vmatpush.msra.mxu0 %v3629
    %v3631 = vand.u32 %v2711, 4294901760
    %3632 = vmatmul.f32.gmra.mxu0 %v3631
    %v3633 = vpop.f32.mrf.mxu0
    %v3634 = vadd.f32 %v3585, %v3633
    %v3635 = vand.u32 %v2717, 4294901760
    %3636 = vmatmul.f32.gmra.mxu0 %v3635
    %v3637 = vpop.f32.mrf.mxu0
    %v3638 = vadd.f32 %v3589, %v3637
    %v3639 = vand.u32 %v2723, 4294901760
    %3640 = vmatmul.f32.gmra.mxu0 %v3639
    %v3641 = vpop.f32.mrf.mxu0
    %v3642 = vadd.f32 %v3593, %v3641
    %v3643 = vand.u32 %v2729, 4294901760
    %3644 = vmatmul.f32.gmra.mxu0 %v3643
    %v3645 = vpop.f32.mrf.mxu0
    %v3646 = vadd.f32 %v3597, %v3645
    %3647 = vdwg.mxu0
    %v3648 = vand.u32 %v2779, 4294901760
    %3649 = vmatpush.msra.mxu0 %v3648
    %v3650 = vand.u32 %v2778, 4294901760
    %3651 = vmatpush.msra.mxu0 %v3650
    %v3652 = vand.u32 %v2777, 4294901760
    %3653 = vmatpush.msra.mxu0 %v3652
    %v3654 = vand.u32 %v2776, 4294901760
    %3655 = vmatpush.msra.mxu0 %v3654
    %v3656 = vand.u32 %v2775, 4294901760
    %3657 = vmatpush.msra.mxu0 %v3656
    %v3658 = vand.u32 %v2774, 4294901760
    %3659 = vmatpush.msra.mxu0 %v3658
    %v3660 = vand.u32 %v2773, 4294901760
    %3661 = vmatpush.msra.mxu0 %v3660
    %v3662 = vand.u32 %v2772, 4294901760
    %3663 = vmatpush.msra.mxu0 %v3662
    %v3664 = vand.u32 %v2771, 4294901760
    %3665 = vmatpush.msra.mxu0 %v3664
    %v3666 = vand.u32 %v2770, 4294901760
    %3667 = vmatpush.msra.mxu0 %v3666
    %v3668 = vand.u32 %v2769, 4294901760
    %3669 = vmatpush.msra.mxu0 %v3668
    %v3670 = vand.u32 %v2768, 4294901760
    %3671 = vmatpush.msra.mxu0 %v3670
    %v3672 = vand.u32 %v2767, 4294901760
    %3673 = vmatpush.msra.mxu0 %v3672
    %v3674 = vand.u32 %v2766, 4294901760
    %3675 = vmatpush.msra.mxu0 %v3674
    %v3676 = vand.u32 %v2765, 4294901760
    %3677 = vmatpush.msra.mxu0 %v3676
    %v3678 = vand.u32 %v2764, 4294901760
    %3679 = vmatpush.msra.mxu0 %v3678
    %v3680 = vand.u32 %v2713, 4294901760
    %v3681 = vsub.f32 %v2713, %v3680
    %v3682 = vand.u32 %v3681, 4294901760
    %v3683 = vsub.f32 %v3681, %v3682
    %v3684 = vand.u32 %v3683, 4294901760
    %3685 = vmatmul.f32.gmra.mxu0 %v3684
    %v3686 = vpop.f32.mrf.mxu0
    %v3687 = vadd.f32 %v3634, %v3686
    %v3688 = vand.u32 %v2719, 4294901760
    %v3689 = vsub.f32 %v2719, %v3688
    %v3690 = vand.u32 %v3689, 4294901760
    %v3691 = vsub.f32 %v3689, %v3690
    %v3692 = vand.u32 %v3691, 4294901760
    %3693 = vmatmul.f32.gmra.mxu0 %v3692
    %v3694 = vpop.f32.mrf.mxu0
    %v3695 = vadd.f32 %v3638, %v3694
    %v3696 = vand.u32 %v2725, 4294901760
    %v3697 = vsub.f32 %v2725, %v3696
    %v3698 = vand.u32 %v3697, 4294901760
    %v3699 = vsub.f32 %v3697, %v3698
    %v3700 = vand.u32 %v3699, 4294901760
    %3701 = vmatmul.f32.gmra.mxu0 %v3700
    %v3702 = vpop.f32.mrf.mxu0
    %v3703 = vadd.f32 %v3642, %v3702
    %v3704 = vand.u32 %v2731, 4294901760
    %v3705 = vsub.f32 %v2731, %v3704
    %v3706 = vand.u32 %v3705, 4294901760
    %v3707 = vsub.f32 %v3705, %v3706
    %v3708 = vand.u32 %v3707, 4294901760
    %3709 = vmatmul.f32.gmra.mxu0 %v3708
    %v3710 = vpop.f32.mrf.mxu0
    %v3711 = vadd.f32 %v3646, %v3710
    %3712 = vdwg.mxu0
    %v3713 = vand.u32 %v2779, 4294901760
    %v3714 = vsub.f32 %v2779, %v3713
    %v3715 = vand.u32 %v3714, 4294901760
    %v3716 = vsub.f32 %v3714, %v3715
    %v3717 = vand.u32 %v3716, 4294901760
    %3718 = vmatpush.msra.mxu0 %v3717
    %v3719 = vand.u32 %v2778, 4294901760
    %v3720 = vsub.f32 %v2778, %v3719
    %v3721 = vand.u32 %v3720, 4294901760
    %v3722 = vsub.f32 %v3720, %v3721
    %v3723 = vand.u32 %v3722, 4294901760
    %3724 = vmatpush.msra.mxu0 %v3723
    %v3725 = vand.u32 %v2777, 4294901760
    %v3726 = vsub.f32 %v2777, %v3725
    %v3727 = vand.u32 %v3726, 4294901760
    %v3728 = vsub.f32 %v3726, %v3727
    %v3729 = vand.u32 %v3728, 4294901760
    %3730 = vmatpush.msra.mxu0 %v3729
    %v3731 = vand.u32 %v2776, 4294901760
    %v3732 = vsub.f32 %v2776, %v3731
    %v3733 = vand.u32 %v3732, 4294901760
    %v3734 = vsub.f32 %v3732, %v3733
    %v3735 = vand.u32 %v3734, 4294901760
    %3736 = vmatpush.msra.mxu0 %v3735
    %v3737 = vand.u32 %v2775, 4294901760
    %v3738 = vsub.f32 %v2775, %v3737
    %v3739 = vand.u32 %v3738, 4294901760
    %v3740 = vsub.f32 %v3738, %v3739
    %v3741 = vand.u32 %v3740, 4294901760
    %3742 = vmatpush.msra.mxu0 %v3741
    %v3743 = vand.u32 %v2774, 4294901760
    %v3744 = vsub.f32 %v2774, %v3743
    %v3745 = vand.u32 %v3744, 4294901760
    %v3746 = vsub.f32 %v3744, %v3745
    %v3747 = vand.u32 %v3746, 4294901760
    %3748 = vmatpush.msra.mxu0 %v3747
    %v3749 = vand.u32 %v2773, 4294901760
    %v3750 = vsub.f32 %v2773, %v3749
    %v3751 = vand.u32 %v3750, 4294901760
    %v3752 = vsub.f32 %v3750, %v3751
    %v3753 = vand.u32 %v3752, 4294901760
    %3754 = vmatpush.msra.mxu0 %v3753
    %v3755 = vand.u32 %v2772, 4294901760
    %v3756 = vsub.f32 %v2772, %v3755
    %v3757 = vand.u32 %v3756, 4294901760
    %v3758 = vsub.f32 %v3756, %v3757
    %v3759 = vand.u32 %v3758, 4294901760
    %3760 = vmatpush.msra.mxu0 %v3759
    %v3761 = vand.u32 %v2771, 4294901760
    %v3762 = vsub.f32 %v2771, %v3761
    %v3763 = vand.u32 %v3762, 4294901760
    %v3764 = vsub.f32 %v3762, %v3763
    %v3765 = vand.u32 %v3764, 4294901760
    %3766 = vmatpush.msra.mxu0 %v3765
    %v3767 = vand.u32 %v2770, 4294901760
    %v3768 = vsub.f32 %v2770, %v3767
    %v3769 = vand.u32 %v3768, 4294901760
    %v3770 = vsub.f32 %v3768, %v3769
    %v3771 = vand.u32 %v3770, 4294901760
    %3772 = vmatpush.msra.mxu0 %v3771
    %v3773 = vand.u32 %v2769, 4294901760
    %v3774 = vsub.f32 %v2769, %v3773
    %v3775 = vand.u32 %v3774, 4294901760
    %v3776 = vsub.f32 %v3774, %v3775
    %v3777 = vand.u32 %v3776, 4294901760
    %3778 = vmatpush.msra.mxu0 %v3777
    %v3779 = vand.u32 %v2768, 4294901760
    %v3780 = vsub.f32 %v2768, %v3779
    %v3781 = vand.u32 %v3780, 4294901760
    %v3782 = vsub.f32 %v3780, %v3781
    %v3783 = vand.u32 %v3782, 4294901760
    %3784 = vmatpush.msra.mxu0 %v3783
    %v3785 = vand.u32 %v2767, 4294901760
    %v3786 = vsub.f32 %v2767, %v3785
    %v3787 = vand.u32 %v3786, 4294901760
    %v3788 = vsub.f32 %v3786, %v3787
    %v3789 = vand.u32 %v3788, 4294901760
    %3790 = vmatpush.msra.mxu0 %v3789
    %v3791 = vand.u32 %v2766, 4294901760
    %v3792 = vsub.f32 %v2766, %v3791
    %v3793 = vand.u32 %v3792, 4294901760
    %v3794 = vsub.f32 %v3792, %v3793
    %v3795 = vand.u32 %v3794, 4294901760
    %3796 = vmatpush.msra.mxu0 %v3795
    %v3797 = vand.u32 %v2765, 4294901760
    %v3798 = vsub.f32 %v2765, %v3797
    %v3799 = vand.u32 %v3798, 4294901760
    %v3800 = vsub.f32 %v3798, %v3799
    %v3801 = vand.u32 %v3800, 4294901760
    %3802 = vmatpush.msra.mxu0 %v3801
    %v3803 = vand.u32 %v2764, 4294901760
    %v3804 = vsub.f32 %v2764, %v3803
    %v3805 = vand.u32 %v3804, 4294901760
    %v3806 = vsub.f32 %v3804, %v3805
    %v3807 = vand.u32 %v3806, 4294901760
    %3808 = vmatpush.msra.mxu0 %v3807
    %v3809 = vand.u32 %v2713, 4294901760
    %3810 = vmatmul.f32.gmra.mxu0 %v3809
    %v3811 = vpop.f32.mrf.mxu0
    %v3812 = vadd.f32 %v3687, %v3811
    %v3813 = vand.u32 %v2719, 4294901760
    %3814 = vmatmul.f32.gmra.mxu0 %v3813
    %v3815 = vpop.f32.mrf.mxu0
    %v3816 = vadd.f32 %v3695, %v3815
    %v3817 = vand.u32 %v2725, 4294901760
    %3818 = vmatmul.f32.gmra.mxu0 %v3817
    %v3819 = vpop.f32.mrf.mxu0
    %v3820 = vadd.f32 %v3703, %v3819
    %v3821 = vand.u32 %v2731, 4294901760
    %3822 = vmatmul.f32.gmra.mxu0 %v3821
    %v3823 = vpop.f32.mrf.mxu0
    %v3824 = vadd.f32 %v3711, %v3823
    %3825 = vdwg.mxu0
    %v3826 = vand.u32 %v2779, 4294901760
    %v3827 = vsub.f32 %v2779, %v3826
    %3828 = vmatpush.msra.mxu0 %v3827
    %v3829 = vand.u32 %v2778, 4294901760
    %v3830 = vsub.f32 %v2778, %v3829
    %3831 = vmatpush.msra.mxu0 %v3830
    %v3832 = vand.u32 %v2777, 4294901760
    %v3833 = vsub.f32 %v2777, %v3832
    %3834 = vmatpush.msra.mxu0 %v3833
    %v3835 = vand.u32 %v2776, 4294901760
    %v3836 = vsub.f32 %v2776, %v3835
    %3837 = vmatpush.msra.mxu0 %v3836
    %v3838 = vand.u32 %v2775, 4294901760
    %v3839 = vsub.f32 %v2775, %v3838
    %3840 = vmatpush.msra.mxu0 %v3839
    %v3841 = vand.u32 %v2774, 4294901760
    %v3842 = vsub.f32 %v2774, %v3841
    %3843 = vmatpush.msra.mxu0 %v3842
    %v3844 = vand.u32 %v2773, 4294901760
    %v3845 = vsub.f32 %v2773, %v3844
    %3846 = vmatpush.msra.mxu0 %v3845
    %v3847 = vand.u32 %v2772, 4294901760
    %v3848 = vsub.f32 %v2772, %v3847
    %3849 = vmatpush.msra.mxu0 %v3848
    %v3850 = vand.u32 %v2771, 4294901760
    %v3851 = vsub.f32 %v2771, %v3850
    %3852 = vmatpush.msra.mxu0 %v3851
    %v3853 = vand.u32 %v2770, 4294901760
    %v3854 = vsub.f32 %v2770, %v3853
    %3855 = vmatpush.msra.mxu0 %v3854
    %v3856 = vand.u32 %v2769, 4294901760
    %v3857 = vsub.f32 %v2769, %v3856
    %3858 = vmatpush.msra.mxu0 %v3857
    %v3859 = vand.u32 %v2768, 4294901760
    %v3860 = vsub.f32 %v2768, %v3859
    %3861 = vmatpush.msra.mxu0 %v3860
    %v3862 = vand.u32 %v2767, 4294901760
    %v3863 = vsub.f32 %v2767, %v3862
    %3864 = vmatpush.msra.mxu0 %v3863
    %v3865 = vand.u32 %v2766, 4294901760
    %v3866 = vsub.f32 %v2766, %v3865
    %3867 = vmatpush.msra.mxu0 %v3866
    %v3868 = vand.u32 %v2765, 4294901760
    %v3869 = vsub.f32 %v2765, %v3868
    %3870 = vmatpush.msra.mxu0 %v3869
    %v3871 = vand.u32 %v2764, 4294901760
    %v3872 = vsub.f32 %v2764, %v3871
    %3873 = vmatpush.msra.mxu0 %v3872
    %v3874 = vand.u32 %v2713, 4294901760
    %v3875 = vsub.f32 %v2713, %v3874
    %3876 = vmatmul.f32.gmra.mxu0 %v3875
    %v3877 = vpop.f32.mrf.mxu0
    %v3878 = vadd.f32 %v3812, %v3877
    %v3879 = vand.u32 %v2719, 4294901760
    %v3880 = vsub.f32 %v2719, %v3879
    %3881 = vmatmul.f32.gmra.mxu0 %v3880
    %v3882 = vpop.f32.mrf.mxu0
    %v3883 = vadd.f32 %v3816, %v3882
    %v3884 = vand.u32 %v2725, 4294901760
    %v3885 = vsub.f32 %v2725, %v3884
    %3886 = vmatmul.f32.gmra.mxu0 %v3885
    %v3887 = vpop.f32.mrf.mxu0
    %v3888 = vadd.f32 %v3820, %v3887
    %v3889 = vand.u32 %v2731, 4294901760
    %v3890 = vsub.f32 %v2731, %v3889
    %3891 = vmatmul.f32.gmra.mxu0 %v3890
    %v3892 = vpop.f32.mrf.mxu0
    %v3893 = vadd.f32 %v3824, %v3892
    %3894 = vdwg.mxu0
    %v3895 = vand.u32 %v2779, 4294901760
    %3896 = vmatpush.msra.mxu0 %v3895
    %v3897 = vand.u32 %v2778, 4294901760
    %3898 = vmatpush.msra.mxu0 %v3897
    %v3899 = vand.u32 %v2777, 4294901760
    %3900 = vmatpush.msra.mxu0 %v3899
    %v3901 = vand.u32 %v2776, 4294901760
    %3902 = vmatpush.msra.mxu0 %v3901
    %v3903 = vand.u32 %v2775, 4294901760
    %3904 = vmatpush.msra.mxu0 %v3903
    %v3905 = vand.u32 %v2774, 4294901760
    %3906 = vmatpush.msra.mxu0 %v3905
    %v3907 = vand.u32 %v2773, 4294901760
    %3908 = vmatpush.msra.mxu0 %v3907
    %v3909 = vand.u32 %v2772, 4294901760
    %3910 = vmatpush.msra.mxu0 %v3909
    %v3911 = vand.u32 %v2771, 4294901760
    %3912 = vmatpush.msra.mxu0 %v3911
    %v3913 = vand.u32 %v2770, 4294901760
    %3914 = vmatpush.msra.mxu0 %v3913
    %v3915 = vand.u32 %v2769, 4294901760
    %3916 = vmatpush.msra.mxu0 %v3915
    %v3917 = vand.u32 %v2768, 4294901760
    %3918 = vmatpush.msra.mxu0 %v3917
    %v3919 = vand.u32 %v2767, 4294901760
    %3920 = vmatpush.msra.mxu0 %v3919
    %v3921 = vand.u32 %v2766, 4294901760
    %3922 = vmatpush.msra.mxu0 %v3921
    %v3923 = vand.u32 %v2765, 4294901760
    %3924 = vmatpush.msra.mxu0 %v3923
    %v3925 = vand.u32 %v2764, 4294901760
    %3926 = vmatpush.msra.mxu0 %v3925
    %v3927 = vand.u32 %v2713, 4294901760
    %v3928 = vsub.f32 %v2713, %v3927
    %v3929 = vand.u32 %v3928, 4294901760
    %3930 = vmatmul.f32.gmra.mxu0 %v3929
    %v3931 = vpop.f32.mrf.mxu0
    %v3932 = vadd.f32 %v3878, %v3931
    %v3933 = vand.u32 %v2719, 4294901760
    %v3934 = vsub.f32 %v2719, %v3933
    %v3935 = vand.u32 %v3934, 4294901760
    %3936 = vmatmul.f32.gmra.mxu0 %v3935
    %v3937 = vpop.f32.mrf.mxu0
    %v3938 = vadd.f32 %v3883, %v3937
    %v3939 = vand.u32 %v2725, 4294901760
    %v3940 = vsub.f32 %v2725, %v3939
    %v3941 = vand.u32 %v3940, 4294901760
    %3942 = vmatmul.f32.gmra.mxu0 %v3941
    %v3943 = vpop.f32.mrf.mxu0
    %v3944 = vadd.f32 %v3888, %v3943
    %v3945 = vand.u32 %v2731, 4294901760
    %v3946 = vsub.f32 %v2731, %v3945
    %v3947 = vand.u32 %v3946, 4294901760
    %3948 = vmatmul.f32.gmra.mxu0 %v3947
    %v3949 = vpop.f32.mrf.mxu0
    %v3950 = vadd.f32 %v3893, %v3949
    %3951 = vdwg.mxu0
    %v3952 = vand.u32 %v2779, 4294901760
    %v3953 = vsub.f32 %v2779, %v3952
    %v3954 = vand.u32 %v3953, 4294901760
    %3955 = vmatpush.msra.mxu0 %v3954
    %v3956 = vand.u32 %v2778, 4294901760
    %v3957 = vsub.f32 %v2778, %v3956
    %v3958 = vand.u32 %v3957, 4294901760
    %3959 = vmatpush.msra.mxu0 %v3958
    %v3960 = vand.u32 %v2777, 4294901760
    %v3961 = vsub.f32 %v2777, %v3960
    %v3962 = vand.u32 %v3961, 4294901760
    %3963 = vmatpush.msra.mxu0 %v3962
    %v3964 = vand.u32 %v2776, 4294901760
    %v3965 = vsub.f32 %v2776, %v3964
    %v3966 = vand.u32 %v3965, 4294901760
    %3967 = vmatpush.msra.mxu0 %v3966
    %v3968 = vand.u32 %v2775, 4294901760
    %v3969 = vsub.f32 %v2775, %v3968
    %v3970 = vand.u32 %v3969, 4294901760
    %3971 = vmatpush.msra.mxu0 %v3970
    %v3972 = vand.u32 %v2774, 4294901760
    %v3973 = vsub.f32 %v2774, %v3972
    %v3974 = vand.u32 %v3973, 4294901760
    %3975 = vmatpush.msra.mxu0 %v3974
    %v3976 = vand.u32 %v2773, 4294901760
    %v3977 = vsub.f32 %v2773, %v3976
    %v3978 = vand.u32 %v3977, 4294901760
    %3979 = vmatpush.msra.mxu0 %v3978
    %v3980 = vand.u32 %v2772, 4294901760
    %v3981 = vsub.f32 %v2772, %v3980
    %v3982 = vand.u32 %v3981, 4294901760
    %3983 = vmatpush.msra.mxu0 %v3982
    %v3984 = vand.u32 %v2771, 4294901760
    %v3985 = vsub.f32 %v2771, %v3984
    %v3986 = vand.u32 %v3985, 4294901760
    %3987 = vmatpush.msra.mxu0 %v3986
    %v3988 = vand.u32 %v2770, 4294901760
    %v3989 = vsub.f32 %v2770, %v3988
    %v3990 = vand.u32 %v3989, 4294901760
    %3991 = vmatpush.msra.mxu0 %v3990
    %v3992 = vand.u32 %v2769, 4294901760
    %v3993 = vsub.f32 %v2769, %v3992
    %v3994 = vand.u32 %v3993, 4294901760
    %3995 = vmatpush.msra.mxu0 %v3994
    %v3996 = vand.u32 %v2768, 4294901760
    %v3997 = vsub.f32 %v2768, %v3996
    %v3998 = vand.u32 %v3997, 4294901760
    %3999 = vmatpush.msra.mxu0 %v3998
    %v4000 = vand.u32 %v2767, 4294901760
    %v4001 = vsub.f32 %v2767, %v4000
    %v4002 = vand.u32 %v4001, 4294901760
    %4003 = vmatpush.msra.mxu0 %v4002
    %v4004 = vand.u32 %v2766, 4294901760
    %v4005 = vsub.f32 %v2766, %v4004
    %v4006 = vand.u32 %v4005, 4294901760
    %4007 = vmatpush.msra.mxu0 %v4006
    %v4008 = vand.u32 %v2765, 4294901760
    %v4009 = vsub.f32 %v2765, %v4008
    %v4010 = vand.u32 %v4009, 4294901760
    %4011 = vmatpush.msra.mxu0 %v4010
    %v4012 = vand.u32 %v2764, 4294901760
    %v4013 = vsub.f32 %v2764, %v4012
    %v4014 = vand.u32 %v4013, 4294901760
    %4015 = vmatpush.msra.mxu0 %v4014
    %v4016 = vand.u32 %v2713, 4294901760
    %4017 = vmatmul.f32.gmra.mxu0 %v4016
    %v4018 = vpop.f32.mrf.mxu0
    %v4019 = vadd.f32 %v3932, %v4018
    %v4020 = vand.u32 %v2719, 4294901760
    %4021 = vmatmul.f32.gmra.mxu0 %v4020
    %v4022 = vpop.f32.mrf.mxu0
    %v4023 = vadd.f32 %v3938, %v4022
    %v4024 = vand.u32 %v2725, 4294901760
    %4025 = vmatmul.f32.gmra.mxu0 %v4024
    %v4026 = vpop.f32.mrf.mxu0
    %v4027 = vadd.f32 %v3944, %v4026
    %v4028 = vand.u32 %v2731, 4294901760
    %4029 = vmatmul.f32.gmra.mxu0 %v4028
    %v4030 = vpop.f32.mrf.mxu0
    %v4031 = vadd.f32 %v3950, %v4030
    %4032 = vdwg.mxu0
    %v4033 = vand.u32 %v2779, 4294901760
    %4034 = vmatpush.msra.mxu0 %v4033
    %v4035 = vand.u32 %v2778, 4294901760
    %4036 = vmatpush.msra.mxu0 %v4035
    %v4037 = vand.u32 %v2777, 4294901760
    %4038 = vmatpush.msra.mxu0 %v4037
    %v4039 = vand.u32 %v2776, 4294901760
    %4040 = vmatpush.msra.mxu0 %v4039
    %v4041 = vand.u32 %v2775, 4294901760
    %4042 = vmatpush.msra.mxu0 %v4041
    %v4043 = vand.u32 %v2774, 4294901760
    %4044 = vmatpush.msra.mxu0 %v4043
    %v4045 = vand.u32 %v2773, 4294901760
    %4046 = vmatpush.msra.mxu0 %v4045
    %v4047 = vand.u32 %v2772, 4294901760
    %4048 = vmatpush.msra.mxu0 %v4047
    %v4049 = vand.u32 %v2771, 4294901760
    %4050 = vmatpush.msra.mxu0 %v4049
    %v4051 = vand.u32 %v2770, 4294901760
    %4052 = vmatpush.msra.mxu0 %v4051
    %v4053 = vand.u32 %v2769, 4294901760
    %4054 = vmatpush.msra.mxu0 %v4053
    %v4055 = vand.u32 %v2768, 4294901760
    %4056 = vmatpush.msra.mxu0 %v4055
    %v4057 = vand.u32 %v2767, 4294901760
    %4058 = vmatpush.msra.mxu0 %v4057
    %v4059 = vand.u32 %v2766, 4294901760
    %4060 = vmatpush.msra.mxu0 %v4059
    %v4061 = vand.u32 %v2765, 4294901760
    %4062 = vmatpush.msra.mxu0 %v4061
    %v4063 = vand.u32 %v2764, 4294901760
    %4064 = vmatpush.msra.mxu0 %v4063
    %v4065 = vand.u32 %v2713, 4294901760
    %4066 = vmatmul.f32.gmra.mxu0 %v4065
    %v4067 = vpop.f32.mrf.mxu0
    %v4068 = vadd.f32 %v4019, %v4067
    %v4069 = vand.u32 %v2719, 4294901760
    %4070 = vmatmul.f32.gmra.mxu0 %v4069
    %v4071 = vpop.f32.mrf.mxu0
    %v4072 = vadd.f32 %v4023, %v4071
    %v4073 = vand.u32 %v2725, 4294901760
    %4074 = vmatmul.f32.gmra.mxu0 %v4073
    %v4075 = vpop.f32.mrf.mxu0
    %v4076 = vadd.f32 %v4027, %v4075
    %v4077 = vand.u32 %v2731, 4294901760
    %4078 = vmatmul.f32.gmra.mxu0 %v4077
    %v4079 = vpop.f32.mrf.mxu0
    %v4080 = vadd.f32 %v4031, %v4079
    %4081 = vdwg.mxu0
    %v4082 = vld [vmem:[%s8] sm:$0xff]
    %v4083 = vld [vmem:[%s8 + $0x8] sm:$0xff]
    %v4084 = vld [vmem:[%s8 + $0x10] sm:$0xff]
    %vm4085 = vcmask 64512
    %v4087 = vsel %vm4085, %v4068, 0
    %v4090 = vsel %vm4085, %v4072, 0
    %v4093 = vsel %vm4085, %v4076, 0
    %v4096 = vsel %vm4085, %v4080, 0
    %4098 = vmatpush.msra.mxu0 0.0
    %4099 = vmatpush.msra.mxu0 0.0
    %4100 = vmatpush.msra.mxu0 0.0
    %4101 = vmatpush.msra.mxu0 0.0
    %4102 = vmatpush.msra.mxu0 0.0
    %4103 = vmatpush.msra.mxu0 0.0
    %4104 = vmatpush.msra.mxu0 0.0
    %4105 = vmatpush.msra.mxu0 0.0
    %4106 = vmatpush.msra.mxu0 0.0
    %4107 = vmatpush.msra.mxu0 0.0
    %4108 = vmatpush.msra.mxu0 0.0
    %4109 = vmatpush.msra.mxu0 0.0
    %4110 = vmatpush.msra.mxu0 0.0
    %4111 = vmatpush.msra.mxu0 0.0
    %4112 = vmatpush.msra.mxu0 0.0
    %v4113 = vand.u32 %v4082, 4294901760
    %4114 = vmatpush.msra.mxu0 %v4113
    %v4115 = vand.u32 %v4087, 4294901760
    %v4116 = vsub.f32 %v4087, %v4115
    %v4117 = vand.u32 %v4116, 4294901760
    %v4118 = vsub.f32 %v4116, %v4117
    %v4119 = vand.u32 %v4118, 4294901760
    %4120 = vmatmul.f32.gmra.mxu0 %v4119
    %v4121 = vpop.f32.mrf.mxu0
    %v4122 = vadd.f32 0.0, %v4121
    %v4123 = vand.u32 %v4090, 4294901760
    %v4124 = vsub.f32 %v4090, %v4123
    %v4125 = vand.u32 %v4124, 4294901760
    %v4126 = vsub.f32 %v4124, %v4125
    %v4127 = vand.u32 %v4126, 4294901760
    %4128 = vmatmul.f32.gmra.mxu0 %v4127
    %v4129 = vpop.f32.mrf.mxu0
    %v4130 = vadd.f32 0.0, %v4129
    %v4131 = vand.u32 %v4093, 4294901760
    %v4132 = vsub.f32 %v4093, %v4131
    %v4133 = vand.u32 %v4132, 4294901760
    %v4134 = vsub.f32 %v4132, %v4133
    %v4135 = vand.u32 %v4134, 4294901760
    %4136 = vmatmul.f32.gmra.mxu0 %v4135
    %v4137 = vpop.f32.mrf.mxu0
    %v4138 = vadd.f32 0.0, %v4137
    %v4139 = vand.u32 %v4096, 4294901760
    %v4140 = vsub.f32 %v4096, %v4139
    %v4141 = vand.u32 %v4140, 4294901760
    %v4142 = vsub.f32 %v4140, %v4141
    %v4143 = vand.u32 %v4142, 4294901760
    %4144 = vmatmul.f32.gmra.mxu0 %v4143
    %v4145 = vpop.f32.mrf.mxu0
    %v4146 = vadd.f32 0.0, %v4145
    %4147 = vdwg.mxu0
    %4148 = vmatpush.msra.mxu0 0.0
    %4149 = vmatpush.msra.mxu0 0.0
    %4150 = vmatpush.msra.mxu0 0.0
    %4151 = vmatpush.msra.mxu0 0.0
    %4152 = vmatpush.msra.mxu0 0.0
    %4153 = vmatpush.msra.mxu0 0.0
    %4154 = vmatpush.msra.mxu0 0.0
    %4155 = vmatpush.msra.mxu0 0.0
    %4156 = vmatpush.msra.mxu0 0.0
    %4157 = vmatpush.msra.mxu0 0.0
    %4158 = vmatpush.msra.mxu0 0.0
    %4159 = vmatpush.msra.mxu0 0.0
    %4160 = vmatpush.msra.mxu0 0.0
    %4161 = vmatpush.msra.mxu0 0.0
    %4162 = vmatpush.msra.mxu0 0.0
    %v4163 = vand.u32 %v4082, 4294901760
    %v4164 = vsub.f32 %v4082, %v4163
    %v4165 = vand.u32 %v4164, 4294901760
    %v4166 = vsub.f32 %v4164, %v4165
    %v4167 = vand.u32 %v4166, 4294901760
    %4168 = vmatpush.msra.mxu0 %v4167
    %v4169 = vand.u32 %v4087, 4294901760
    %4170 = vmatmul.f32.gmra.mxu0 %v4169
    %v4171 = vpop.f32.mrf.mxu0
    %v4172 = vadd.f32 %v4122, %v4171
    %v4173 = vand.u32 %v4090, 4294901760
    %4174 = vmatmul.f32.gmra.mxu0 %v4173
    %v4175 = vpop.f32.mrf.mxu0
    %v4176 = vadd.f32 %v4130, %v4175
    %v4177 = vand.u32 %v4093, 4294901760
    %4178 = vmatmul.f32.gmra.mxu0 %v4177
    %v4179 = vpop.f32.mrf.mxu0
    %v4180 = vadd.f32 %v4138, %v4179
    %v4181 = vand.u32 %v4096, 4294901760
    %4182 = vmatmul.f32.gmra.mxu0 %v4181
    %v4183 = vpop.f32.mrf.mxu0
    %v4184 = vadd.f32 %v4146, %v4183
    %4185 = vdwg.mxu0
    %4186 = vmatpush.msra.mxu0 0.0
    %4187 = vmatpush.msra.mxu0 0.0
    %4188 = vmatpush.msra.mxu0 0.0
    %4189 = vmatpush.msra.mxu0 0.0
    %4190 = vmatpush.msra.mxu0 0.0
    %4191 = vmatpush.msra.mxu0 0.0
    %4192 = vmatpush.msra.mxu0 0.0
    %4193 = vmatpush.msra.mxu0 0.0
    %4194 = vmatpush.msra.mxu0 0.0
    %4195 = vmatpush.msra.mxu0 0.0
    %4196 = vmatpush.msra.mxu0 0.0
    %4197 = vmatpush.msra.mxu0 0.0
    %4198 = vmatpush.msra.mxu0 0.0
    %4199 = vmatpush.msra.mxu0 0.0
    %4200 = vmatpush.msra.mxu0 0.0
    %v4201 = vand.u32 %v4082, 4294901760
    %v4202 = vsub.f32 %v4082, %v4201
    %4203 = vmatpush.msra.mxu0 %v4202
    %v4204 = vand.u32 %v4087, 4294901760
    %v4205 = vsub.f32 %v4087, %v4204
    %4206 = vmatmul.f32.gmra.mxu0 %v4205
    %v4207 = vpop.f32.mrf.mxu0
    %v4208 = vadd.f32 %v4172, %v4207
    %v4209 = vand.u32 %v4090, 4294901760
    %v4210 = vsub.f32 %v4090, %v4209
    %4211 = vmatmul.f32.gmra.mxu0 %v4210
    %v4212 = vpop.f32.mrf.mxu0
    %v4213 = vadd.f32 %v4176, %v4212
    %v4214 = vand.u32 %v4093, 4294901760
    %v4215 = vsub.f32 %v4093, %v4214
    %4216 = vmatmul.f32.gmra.mxu0 %v4215
    %v4217 = vpop.f32.mrf.mxu0
    %v4218 = vadd.f32 %v4180, %v4217
    %v4219 = vand.u32 %v4096, 4294901760
    %v4220 = vsub.f32 %v4096, %v4219
    %4221 = vmatmul.f32.gmra.mxu0 %v4220
    %v4222 = vpop.f32.mrf.mxu0
    %v4223 = vadd.f32 %v4184, %v4222
    %4224 = vdwg.mxu0
    %4225 = vmatpush.msra.mxu0 0.0
    %4226 = vmatpush.msra.mxu0 0.0
    %4227 = vmatpush.msra.mxu0 0.0
    %4228 = vmatpush.msra.mxu0 0.0
    %4229 = vmatpush.msra.mxu0 0.0
    %4230 = vmatpush.msra.mxu0 0.0
    %4231 = vmatpush.msra.mxu0 0.0
    %4232 = vmatpush.msra.mxu0 0.0
    %4233 = vmatpush.msra.mxu0 0.0
    %4234 = vmatpush.msra.mxu0 0.0
    %4235 = vmatpush.msra.mxu0 0.0
    %4236 = vmatpush.msra.mxu0 0.0
    %4237 = vmatpush.msra.mxu0 0.0
    %4238 = vmatpush.msra.mxu0 0.0
    %4239 = vmatpush.msra.mxu0 0.0
    %v4240 = vand.u32 %v4082, 4294901760
    %4241 = vmatpush.msra.mxu0 %v4240
    %v4242 = vand.u32 %v4087, 4294901760
    %v4243 = vsub.f32 %v4087, %v4242
    %v4244 = vand.u32 %v4243, 4294901760
    %4245 = vmatmul.f32.gmra.mxu0 %v4244
    %v4246 = vpop.f32.mrf.mxu0
    %v4247 = vadd.f32 %v4208, %v4246
    %v4248 = vand.u32 %v4090, 4294901760
    %v4249 = vsub.f32 %v4090, %v4248
    %v4250 = vand.u32 %v4249, 4294901760
    %4251 = vmatmul.f32.gmra.mxu0 %v4250
    %v4252 = vpop.f32.mrf.mxu0
    %v4253 = vadd.f32 %v4213, %v4252
    %v4254 = vand.u32 %v4093, 4294901760
    %v4255 = vsub.f32 %v4093, %v4254
    %v4256 = vand.u32 %v4255, 4294901760
    %4257 = vmatmul.f32.gmra.mxu0 %v4256
    %v4258 = vpop.f32.mrf.mxu0
    %v4259 = vadd.f32 %v4218, %v4258
    %v4260 = vand.u32 %v4096, 4294901760
    %v4261 = vsub.f32 %v4096, %v4260
    %v4262 = vand.u32 %v4261, 4294901760
    %4263 = vmatmul.f32.gmra.mxu0 %v4262
    %v4264 = vpop.f32.mrf.mxu0
    %v4265 = vadd.f32 %v4223, %v4264
    %4266 = vdwg.mxu0
    %4267 = vmatpush.msra.mxu0 0.0
    %4268 = vmatpush.msra.mxu0 0.0
    %4269 = vmatpush.msra.mxu0 0.0
    %4270 = vmatpush.msra.mxu0 0.0
    %4271 = vmatpush.msra.mxu0 0.0
    %4272 = vmatpush.msra.mxu0 0.0
    %4273 = vmatpush.msra.mxu0 0.0
    %4274 = vmatpush.msra.mxu0 0.0
    %4275 = vmatpush.msra.mxu0 0.0
    %4276 = vmatpush.msra.mxu0 0.0
    %4277 = vmatpush.msra.mxu0 0.0
    %4278 = vmatpush.msra.mxu0 0.0
    %4279 = vmatpush.msra.mxu0 0.0
    %4280 = vmatpush.msra.mxu0 0.0
    %4281 = vmatpush.msra.mxu0 0.0
    %v4282 = vand.u32 %v4082, 4294901760
    %v4283 = vsub.f32 %v4082, %v4282
    %v4284 = vand.u32 %v4283, 4294901760
    %4285 = vmatpush.msra.mxu0 %v4284
    %v4286 = vand.u32 %v4087, 4294901760
    %4287 = vmatmul.f32.gmra.mxu0 %v4286
    %v4288 = vpop.f32.mrf.mxu0
    %v4289 = vadd.f32 %v4247, %v4288
    %v4290 = vand.u32 %v4090, 4294901760
    %4291 = vmatmul.f32.gmra.mxu0 %v4290
    %v4292 = vpop.f32.mrf.mxu0
    %v4293 = vadd.f32 %v4253, %v4292
    %v4294 = vand.u32 %v4093, 4294901760
    %4295 = vmatmul.f32.gmra.mxu0 %v4294
    %v4296 = vpop.f32.mrf.mxu0
    %v4297 = vadd.f32 %v4259, %v4296
    %v4298 = vand.u32 %v4096, 4294901760
    %4299 = vmatmul.f32.gmra.mxu0 %v4298
    %v4300 = vpop.f32.mrf.mxu0
    %v4301 = vadd.f32 %v4265, %v4300
    %4302 = vdwg.mxu0
    %4303 = vmatpush.msra.mxu0 0.0
    %4304 = vmatpush.msra.mxu0 0.0
    %4305 = vmatpush.msra.mxu0 0.0
    %4306 = vmatpush.msra.mxu0 0.0
    %4307 = vmatpush.msra.mxu0 0.0
    %4308 = vmatpush.msra.mxu0 0.0
    %4309 = vmatpush.msra.mxu0 0.0
    %4310 = vmatpush.msra.mxu0 0.0
    %4311 = vmatpush.msra.mxu0 0.0
    %4312 = vmatpush.msra.mxu0 0.0
    %4313 = vmatpush.msra.mxu0 0.0
    %4314 = vmatpush.msra.mxu0 0.0
    %4315 = vmatpush.msra.mxu0 0.0
    %4316 = vmatpush.msra.mxu0 0.0
    %4317 = vmatpush.msra.mxu0 0.0
    %v4318 = vand.u32 %v4082, 4294901760
    %4319 = vmatpush.msra.mxu0 %v4318
    %v4320 = vand.u32 %v4087, 4294901760
    %4321 = vmatmul.f32.gmra.mxu0 %v4320
    %v4322 = vpop.f32.mrf.mxu0
    %v4323 = vadd.f32 %v4289, %v4322
    %v4324 = vand.u32 %v4090, 4294901760
    %4325 = vmatmul.f32.gmra.mxu0 %v4324
    %v4326 = vpop.f32.mrf.mxu0
    %v4327 = vadd.f32 %v4293, %v4326
    %v4328 = vand.u32 %v4093, 4294901760
    %4329 = vmatmul.f32.gmra.mxu0 %v4328
    %v4330 = vpop.f32.mrf.mxu0
    %v4331 = vadd.f32 %v4297, %v4330
    %v4332 = vand.u32 %v4096, 4294901760
    %4333 = vmatmul.f32.gmra.mxu0 %v4332
    %v4334 = vpop.f32.mrf.mxu0
    %v4335 = vadd.f32 %v4301, %v4334
    %4336 = vdwg.mxu0
    %4337 = vmatpush.msra.mxu0 0.0
    %4338 = vmatpush.msra.mxu0 0.0
    %4339 = vmatpush.msra.mxu0 0.0
    %4340 = vmatpush.msra.mxu0 0.0
    %4341 = vmatpush.msra.mxu0 0.0
    %4342 = vmatpush.msra.mxu0 0.0
    %4343 = vmatpush.msra.mxu0 0.0
    %4344 = vmatpush.msra.mxu0 0.0
    %4345 = vmatpush.msra.mxu0 0.0
    %4346 = vmatpush.msra.mxu0 0.0
    %4347 = vmatpush.msra.mxu0 0.0
    %4348 = vmatpush.msra.mxu0 0.0
    %4349 = vmatpush.msra.mxu0 0.0
    %4350 = vmatpush.msra.mxu0 0.0
    %4351 = vmatpush.msra.mxu0 0.0
    %v4352 = vand.u32 %v4083, 4294901760
    %4353 = vmatpush.msra.mxu0 %v4352
    %v4354 = vand.u32 %v4087, 4294901760
    %v4355 = vsub.f32 %v4087, %v4354
    %v4356 = vand.u32 %v4355, 4294901760
    %v4357 = vsub.f32 %v4355, %v4356
    %v4358 = vand.u32 %v4357, 4294901760
    %4359 = vmatmul.f32.gmra.mxu0 %v4358
    %v4360 = vpop.f32.mrf.mxu0
    %v4361 = vadd.f32 0.0, %v4360
    %v4362 = vand.u32 %v4090, 4294901760
    %v4363 = vsub.f32 %v4090, %v4362
    %v4364 = vand.u32 %v4363, 4294901760
    %v4365 = vsub.f32 %v4363, %v4364
    %v4366 = vand.u32 %v4365, 4294901760
    %4367 = vmatmul.f32.gmra.mxu0 %v4366
    %v4368 = vpop.f32.mrf.mxu0
    %v4369 = vadd.f32 0.0, %v4368
    %v4370 = vand.u32 %v4093, 4294901760
    %v4371 = vsub.f32 %v4093, %v4370
    %v4372 = vand.u32 %v4371, 4294901760
    %v4373 = vsub.f32 %v4371, %v4372
    %v4374 = vand.u32 %v4373, 4294901760
    %4375 = vmatmul.f32.gmra.mxu0 %v4374
    %v4376 = vpop.f32.mrf.mxu0
    %v4377 = vadd.f32 0.0, %v4376
    %v4378 = vand.u32 %v4096, 4294901760
    %v4379 = vsub.f32 %v4096, %v4378
    %v4380 = vand.u32 %v4379, 4294901760
    %v4381 = vsub.f32 %v4379, %v4380
    %v4382 = vand.u32 %v4381, 4294901760
    %4383 = vmatmul.f32.gmra.mxu0 %v4382
    %v4384 = vpop.f32.mrf.mxu0
    %v4385 = vadd.f32 0.0, %v4384
    %4386 = vdwg.mxu0
    %4387 = vmatpush.msra.mxu0 0.0
    %4388 = vmatpush.msra.mxu0 0.0
    %4389 = vmatpush.msra.mxu0 0.0
    %4390 = vmatpush.msra.mxu0 0.0
    %4391 = vmatpush.msra.mxu0 0.0
    %4392 = vmatpush.msra.mxu0 0.0
    %4393 = vmatpush.msra.mxu0 0.0
    %4394 = vmatpush.msra.mxu0 0.0
    %4395 = vmatpush.msra.mxu0 0.0
    %4396 = vmatpush.msra.mxu0 0.0
    %4397 = vmatpush.msra.mxu0 0.0
    %4398 = vmatpush.msra.mxu0 0.0
    %4399 = vmatpush.msra.mxu0 0.0
    %4400 = vmatpush.msra.mxu0 0.0
    %4401 = vmatpush.msra.mxu0 0.0
    %v4402 = vand.u32 %v4083, 4294901760
    %v4403 = vsub.f32 %v4083, %v4402
    %v4404 = vand.u32 %v4403, 4294901760
    %v4405 = vsub.f32 %v4403, %v4404
    %v4406 = vand.u32 %v4405, 4294901760
    %4407 = vmatpush.msra.mxu0 %v4406
    %v4408 = vand.u32 %v4087, 4294901760
    %4409 = vmatmul.f32.gmra.mxu0 %v4408
    %v4410 = vpop.f32.mrf.mxu0
    %v4411 = vadd.f32 %v4361, %v4410
    %v4412 = vand.u32 %v4090, 4294901760
    %4413 = vmatmul.f32.gmra.mxu0 %v4412
    %v4414 = vpop.f32.mrf.mxu0
    %v4415 = vadd.f32 %v4369, %v4414
    %v4416 = vand.u32 %v4093, 4294901760
    %4417 = vmatmul.f32.gmra.mxu0 %v4416
    %v4418 = vpop.f32.mrf.mxu0
    %v4419 = vadd.f32 %v4377, %v4418
    %v4420 = vand.u32 %v4096, 4294901760
    %4421 = vmatmul.f32.gmra.mxu0 %v4420
    %v4422 = vpop.f32.mrf.mxu0
    %v4423 = vadd.f32 %v4385, %v4422
    %4424 = vdwg.mxu0
    %4425 = vmatpush.msra.mxu0 0.0
    %4426 = vmatpush.msra.mxu0 0.0
    %4427 = vmatpush.msra.mxu0 0.0
    %4428 = vmatpush.msra.mxu0 0.0
    %4429 = vmatpush.msra.mxu0 0.0
    %4430 = vmatpush.msra.mxu0 0.0
    %4431 = vmatpush.msra.mxu0 0.0
    %4432 = vmatpush.msra.mxu0 0.0
    %4433 = vmatpush.msra.mxu0 0.0
    %4434 = vmatpush.msra.mxu0 0.0
    %4435 = vmatpush.msra.mxu0 0.0
    %4436 = vmatpush.msra.mxu0 0.0
    %4437 = vmatpush.msra.mxu0 0.0
    %4438 = vmatpush.msra.mxu0 0.0
    %4439 = vmatpush.msra.mxu0 0.0
    %v4440 = vand.u32 %v4083, 4294901760
    %v4441 = vsub.f32 %v4083, %v4440
    %4442 = vmatpush.msra.mxu0 %v4441
    %v4443 = vand.u32 %v4087, 4294901760
    %v4444 = vsub.f32 %v4087, %v4443
    %4445 = vmatmul.f32.gmra.mxu0 %v4444
    %v4446 = vpop.f32.mrf.mxu0
    %v4447 = vadd.f32 %v4411, %v4446
    %v4448 = vand.u32 %v4090, 4294901760
    %v4449 = vsub.f32 %v4090, %v4448
    %4450 = vmatmul.f32.gmra.mxu0 %v4449
    %v4451 = vpop.f32.mrf.mxu0
    %v4452 = vadd.f32 %v4415, %v4451
    %v4453 = vand.u32 %v4093, 4294901760
    %v4454 = vsub.f32 %v4093, %v4453
    %4455 = vmatmul.f32.gmra.mxu0 %v4454
    %v4456 = vpop.f32.mrf.mxu0
    %v4457 = vadd.f32 %v4419, %v4456
    %v4458 = vand.u32 %v4096, 4294901760
    %v4459 = vsub.f32 %v4096, %v4458
    %4460 = vmatmul.f32.gmra.mxu0 %v4459
    %v4461 = vpop.f32.mrf.mxu0
    %v4462 = vadd.f32 %v4423, %v4461
    %4463 = vdwg.mxu0
    %4464 = vmatpush.msra.mxu0 0.0
    %4465 = vmatpush.msra.mxu0 0.0
    %4466 = vmatpush.msra.mxu0 0.0
    %4467 = vmatpush.msra.mxu0 0.0
    %4468 = vmatpush.msra.mxu0 0.0
    %4469 = vmatpush.msra.mxu0 0.0
    %4470 = vmatpush.msra.mxu0 0.0
    %4471 = vmatpush.msra.mxu0 0.0
    %4472 = vmatpush.msra.mxu0 0.0
    %4473 = vmatpush.msra.mxu0 0.0
    %4474 = vmatpush.msra.mxu0 0.0
    %4475 = vmatpush.msra.mxu0 0.0
    %4476 = vmatpush.msra.mxu0 0.0
    %4477 = vmatpush.msra.mxu0 0.0
    %4478 = vmatpush.msra.mxu0 0.0
    %v4479 = vand.u32 %v4083, 4294901760
    %4480 = vmatpush.msra.mxu0 %v4479
    %v4481 = vand.u32 %v4087, 4294901760
    %v4482 = vsub.f32 %v4087, %v4481
    %v4483 = vand.u32 %v4482, 4294901760
    %4484 = vmatmul.f32.gmra.mxu0 %v4483
    %v4485 = vpop.f32.mrf.mxu0
    %v4486 = vadd.f32 %v4447, %v4485
    %v4487 = vand.u32 %v4090, 4294901760
    %v4488 = vsub.f32 %v4090, %v4487
    %v4489 = vand.u32 %v4488, 4294901760
    %4490 = vmatmul.f32.gmra.mxu0 %v4489
    %v4491 = vpop.f32.mrf.mxu0
    %v4492 = vadd.f32 %v4452, %v4491
    %v4493 = vand.u32 %v4093, 4294901760
    %v4494 = vsub.f32 %v4093, %v4493
    %v4495 = vand.u32 %v4494, 4294901760
    %4496 = vmatmul.f32.gmra.mxu0 %v4495
    %v4497 = vpop.f32.mrf.mxu0
    %v4498 = vadd.f32 %v4457, %v4497
    %v4499 = vand.u32 %v4096, 4294901760
    %v4500 = vsub.f32 %v4096, %v4499
    %v4501 = vand.u32 %v4500, 4294901760
    %4502 = vmatmul.f32.gmra.mxu0 %v4501
    %v4503 = vpop.f32.mrf.mxu0
    %v4504 = vadd.f32 %v4462, %v4503
    %4505 = vdwg.mxu0
    %4506 = vmatpush.msra.mxu0 0.0
    %4507 = vmatpush.msra.mxu0 0.0
    %4508 = vmatpush.msra.mxu0 0.0
    %4509 = vmatpush.msra.mxu0 0.0
    %4510 = vmatpush.msra.mxu0 0.0
    %4511 = vmatpush.msra.mxu0 0.0
    %4512 = vmatpush.msra.mxu0 0.0
    %4513 = vmatpush.msra.mxu0 0.0
    %4514 = vmatpush.msra.mxu0 0.0
    %4515 = vmatpush.msra.mxu0 0.0
    %4516 = vmatpush.msra.mxu0 0.0
    %4517 = vmatpush.msra.mxu0 0.0
    %4518 = vmatpush.msra.mxu0 0.0
    %4519 = vmatpush.msra.mxu0 0.0
    %4520 = vmatpush.msra.mxu0 0.0
    %v4521 = vand.u32 %v4083, 4294901760
    %v4522 = vsub.f32 %v4083, %v4521
    %v4523 = vand.u32 %v4522, 4294901760
    %4524 = vmatpush.msra.mxu0 %v4523
    %v4525 = vand.u32 %v4087, 4294901760
    %4526 = vmatmul.f32.gmra.mxu0 %v4525
    %v4527 = vpop.f32.mrf.mxu0
    %v4528 = vadd.f32 %v4486, %v4527
    %v4529 = vand.u32 %v4090, 4294901760
    %4530 = vmatmul.f32.gmra.mxu0 %v4529
    %v4531 = vpop.f32.mrf.mxu0
    %v4532 = vadd.f32 %v4492, %v4531
    %v4533 = vand.u32 %v4093, 4294901760
    %4534 = vmatmul.f32.gmra.mxu0 %v4533
    %v4535 = vpop.f32.mrf.mxu0
    %v4536 = vadd.f32 %v4498, %v4535
    %v4537 = vand.u32 %v4096, 4294901760
    %4538 = vmatmul.f32.gmra.mxu0 %v4537
    %v4539 = vpop.f32.mrf.mxu0
    %v4540 = vadd.f32 %v4504, %v4539
    %4541 = vdwg.mxu0
    %4542 = vmatpush.msra.mxu0 0.0
    %4543 = vmatpush.msra.mxu0 0.0
    %4544 = vmatpush.msra.mxu0 0.0
    %4545 = vmatpush.msra.mxu0 0.0
    %4546 = vmatpush.msra.mxu0 0.0
    %4547 = vmatpush.msra.mxu0 0.0
    %4548 = vmatpush.msra.mxu0 0.0
    %4549 = vmatpush.msra.mxu0 0.0
    %4550 = vmatpush.msra.mxu0 0.0
    %4551 = vmatpush.msra.mxu0 0.0
    %4552 = vmatpush.msra.mxu0 0.0
    %4553 = vmatpush.msra.mxu0 0.0
    %4554 = vmatpush.msra.mxu0 0.0
    %4555 = vmatpush.msra.mxu0 0.0
    %4556 = vmatpush.msra.mxu0 0.0
    %v4557 = vand.u32 %v4083, 4294901760
    %4558 = vmatpush.msra.mxu0 %v4557
    %v4559 = vand.u32 %v4087, 4294901760
    %4560 = vmatmul.f32.gmra.mxu0 %v4559
    %v4561 = vpop.f32.mrf.mxu0
    %v4562 = vadd.f32 %v4528, %v4561
    %v4563 = vand.u32 %v4090, 4294901760
    %4564 = vmatmul.f32.gmra.mxu0 %v4563
    %v4565 = vpop.f32.mrf.mxu0
    %v4566 = vadd.f32 %v4532, %v4565
    %v4567 = vand.u32 %v4093, 4294901760
    %4568 = vmatmul.f32.gmra.mxu0 %v4567
    %v4569 = vpop.f32.mrf.mxu0
    %v4570 = vadd.f32 %v4536, %v4569
    %v4571 = vand.u32 %v4096, 4294901760
    %4572 = vmatmul.f32.gmra.mxu0 %v4571
    %v4573 = vpop.f32.mrf.mxu0
    %v4574 = vadd.f32 %v4540, %v4573
    %4575 = vdwg.mxu0
    %4576 = vmatpush.msra.mxu0 0.0
    %4577 = vmatpush.msra.mxu0 0.0
    %4578 = vmatpush.msra.mxu0 0.0
    %4579 = vmatpush.msra.mxu0 0.0
    %4580 = vmatpush.msra.mxu0 0.0
    %4581 = vmatpush.msra.mxu0 0.0
    %4582 = vmatpush.msra.mxu0 0.0
    %4583 = vmatpush.msra.mxu0 0.0
    %4584 = vmatpush.msra.mxu0 0.0
    %4585 = vmatpush.msra.mxu0 0.0
    %4586 = vmatpush.msra.mxu0 0.0
    %4587 = vmatpush.msra.mxu0 0.0
    %4588 = vmatpush.msra.mxu0 0.0
    %4589 = vmatpush.msra.mxu0 0.0
    %4590 = vmatpush.msra.mxu0 0.0
    %v4591 = vand.u32 %v4084, 4294901760
    %4592 = vmatpush.msra.mxu0 %v4591
    %v4593 = vand.u32 %v4087, 4294901760
    %v4594 = vsub.f32 %v4087, %v4593
    %v4595 = vand.u32 %v4594, 4294901760
    %v4596 = vsub.f32 %v4594, %v4595
    %v4597 = vand.u32 %v4596, 4294901760
    %4598 = vmatmul.f32.gmra.mxu0 %v4597
    %v4599 = vpop.f32.mrf.mxu0
    %v4600 = vadd.f32 0.0, %v4599
    %v4601 = vand.u32 %v4090, 4294901760
    %v4602 = vsub.f32 %v4090, %v4601
    %v4603 = vand.u32 %v4602, 4294901760
    %v4604 = vsub.f32 %v4602, %v4603
    %v4605 = vand.u32 %v4604, 4294901760
    %4606 = vmatmul.f32.gmra.mxu0 %v4605
    %v4607 = vpop.f32.mrf.mxu0
    %v4608 = vadd.f32 0.0, %v4607
    %v4609 = vand.u32 %v4093, 4294901760
    %v4610 = vsub.f32 %v4093, %v4609
    %v4611 = vand.u32 %v4610, 4294901760
    %v4612 = vsub.f32 %v4610, %v4611
    %v4613 = vand.u32 %v4612, 4294901760
    %4614 = vmatmul.f32.gmra.mxu0 %v4613
    %v4615 = vpop.f32.mrf.mxu0
    %v4616 = vadd.f32 0.0, %v4615
    %v4617 = vand.u32 %v4096, 4294901760
    %v4618 = vsub.f32 %v4096, %v4617
    %v4619 = vand.u32 %v4618, 4294901760
    %v4620 = vsub.f32 %v4618, %v4619
    %v4621 = vand.u32 %v4620, 4294901760
    %4622 = vmatmul.f32.gmra.mxu0 %v4621
    %v4623 = vpop.f32.mrf.mxu0
    %v4624 = vadd.f32 0.0, %v4623
    %4625 = vdwg.mxu0
    %4626 = vmatpush.msra.mxu0 0.0
    %4627 = vmatpush.msra.mxu0 0.0
    %4628 = vmatpush.msra.mxu0 0.0
    %4629 = vmatpush.msra.mxu0 0.0
    %4630 = vmatpush.msra.mxu0 0.0
    %4631 = vmatpush.msra.mxu0 0.0
    %4632 = vmatpush.msra.mxu0 0.0
    %4633 = vmatpush.msra.mxu0 0.0
    %4634 = vmatpush.msra.mxu0 0.0
    %4635 = vmatpush.msra.mxu0 0.0
    %4636 = vmatpush.msra.mxu0 0.0
    %4637 = vmatpush.msra.mxu0 0.0
    %4638 = vmatpush.msra.mxu0 0.0
    %4639 = vmatpush.msra.mxu0 0.0
    %4640 = vmatpush.msra.mxu0 0.0
    %v4641 = vand.u32 %v4084, 4294901760
    %v4642 = vsub.f32 %v4084, %v4641
    %v4643 = vand.u32 %v4642, 4294901760
    %v4644 = vsub.f32 %v4642, %v4643
    %v4645 = vand.u32 %v4644, 4294901760
    %4646 = vmatpush.msra.mxu0 %v4645
    %v4647 = vand.u32 %v4087, 4294901760
    %4648 = vmatmul.f32.gmra.mxu0 %v4647
    %v4649 = vpop.f32.mrf.mxu0
    %v4650 = vadd.f32 %v4600, %v4649
    %v4651 = vand.u32 %v4090, 4294901760
    %4652 = vmatmul.f32.gmra.mxu0 %v4651
    %v4653 = vpop.f32.mrf.mxu0
    %v4654 = vadd.f32 %v4608, %v4653
    %v4655 = vand.u32 %v4093, 4294901760
    %4656 = vmatmul.f32.gmra.mxu0 %v4655
    %v4657 = vpop.f32.mrf.mxu0
    %v4658 = vadd.f32 %v4616, %v4657
    %v4659 = vand.u32 %v4096, 4294901760
    %4660 = vmatmul.f32.gmra.mxu0 %v4659
    %v4661 = vpop.f32.mrf.mxu0
    %v4662 = vadd.f32 %v4624, %v4661
    %4663 = vdwg.mxu0
    %4664 = vmatpush.msra.mxu0 0.0
    %4665 = vmatpush.msra.mxu0 0.0
    %4666 = vmatpush.msra.mxu0 0.0
    %4667 = vmatpush.msra.mxu0 0.0
    %4668 = vmatpush.msra.mxu0 0.0
    %4669 = vmatpush.msra.mxu0 0.0
    %4670 = vmatpush.msra.mxu0 0.0
    %4671 = vmatpush.msra.mxu0 0.0
    %4672 = vmatpush.msra.mxu0 0.0
    %4673 = vmatpush.msra.mxu0 0.0
    %4674 = vmatpush.msra.mxu0 0.0
    %4675 = vmatpush.msra.mxu0 0.0
    %4676 = vmatpush.msra.mxu0 0.0
    %4677 = vmatpush.msra.mxu0 0.0
    %4678 = vmatpush.msra.mxu0 0.0
    %v4679 = vand.u32 %v4084, 4294901760
    %v4680 = vsub.f32 %v4084, %v4679
    %4681 = vmatpush.msra.mxu0 %v4680
    %v4682 = vand.u32 %v4087, 4294901760
    %v4683 = vsub.f32 %v4087, %v4682
    %4684 = vmatmul.f32.gmra.mxu0 %v4683
    %v4685 = vpop.f32.mrf.mxu0
    %v4686 = vadd.f32 %v4650, %v4685
    %v4687 = vand.u32 %v4090, 4294901760
    %v4688 = vsub.f32 %v4090, %v4687
    %4689 = vmatmul.f32.gmra.mxu0 %v4688
    %v4690 = vpop.f32.mrf.mxu0
    %v4691 = vadd.f32 %v4654, %v4690
    %v4692 = vand.u32 %v4093, 4294901760
    %v4693 = vsub.f32 %v4093, %v4692
    %4694 = vmatmul.f32.gmra.mxu0 %v4693
    %v4695 = vpop.f32.mrf.mxu0
    %v4696 = vadd.f32 %v4658, %v4695
    %v4697 = vand.u32 %v4096, 4294901760
    %v4698 = vsub.f32 %v4096, %v4697
    %4699 = vmatmul.f32.gmra.mxu0 %v4698
    %v4700 = vpop.f32.mrf.mxu0
    %v4701 = vadd.f32 %v4662, %v4700
    %4702 = vdwg.mxu0
    %4703 = vmatpush.msra.mxu0 0.0
    %4704 = vmatpush.msra.mxu0 0.0
    %4705 = vmatpush.msra.mxu0 0.0
    %4706 = vmatpush.msra.mxu0 0.0
    %4707 = vmatpush.msra.mxu0 0.0
    %4708 = vmatpush.msra.mxu0 0.0
    %4709 = vmatpush.msra.mxu0 0.0
    %4710 = vmatpush.msra.mxu0 0.0
    %4711 = vmatpush.msra.mxu0 0.0
    %4712 = vmatpush.msra.mxu0 0.0
    %4713 = vmatpush.msra.mxu0 0.0
    %4714 = vmatpush.msra.mxu0 0.0
    %4715 = vmatpush.msra.mxu0 0.0
    %4716 = vmatpush.msra.mxu0 0.0
    %4717 = vmatpush.msra.mxu0 0.0
    %v4718 = vand.u32 %v4084, 4294901760
    %4719 = vmatpush.msra.mxu0 %v4718
    %v4720 = vand.u32 %v4087, 4294901760
    %v4721 = vsub.f32 %v4087, %v4720
    %v4722 = vand.u32 %v4721, 4294901760
    %4723 = vmatmul.f32.gmra.mxu0 %v4722
    %v4724 = vpop.f32.mrf.mxu0
    %v4725 = vadd.f32 %v4686, %v4724
    %v4726 = vand.u32 %v4090, 4294901760
    %v4727 = vsub.f32 %v4090, %v4726
    %v4728 = vand.u32 %v4727, 4294901760
    %4729 = vmatmul.f32.gmra.mxu0 %v4728
    %v4730 = vpop.f32.mrf.mxu0
    %v4731 = vadd.f32 %v4691, %v4730
    %v4732 = vand.u32 %v4093, 4294901760
    %v4733 = vsub.f32 %v4093, %v4732
    %v4734 = vand.u32 %v4733, 4294901760
    %4735 = vmatmul.f32.gmra.mxu0 %v4734
    %v4736 = vpop.f32.mrf.mxu0
    %v4737 = vadd.f32 %v4696, %v4736
    %v4738 = vand.u32 %v4096, 4294901760
    %v4739 = vsub.f32 %v4096, %v4738
    %v4740 = vand.u32 %v4739, 4294901760
    %4741 = vmatmul.f32.gmra.mxu0 %v4740
    %v4742 = vpop.f32.mrf.mxu0
    %v4743 = vadd.f32 %v4701, %v4742
    %4744 = vdwg.mxu0
    %4745 = vmatpush.msra.mxu0 0.0
    %4746 = vmatpush.msra.mxu0 0.0
    %4747 = vmatpush.msra.mxu0 0.0
    %4748 = vmatpush.msra.mxu0 0.0
    %4749 = vmatpush.msra.mxu0 0.0
    %4750 = vmatpush.msra.mxu0 0.0
    %4751 = vmatpush.msra.mxu0 0.0
    %4752 = vmatpush.msra.mxu0 0.0
    %4753 = vmatpush.msra.mxu0 0.0
    %4754 = vmatpush.msra.mxu0 0.0
    %4755 = vmatpush.msra.mxu0 0.0
    %4756 = vmatpush.msra.mxu0 0.0
    %4757 = vmatpush.msra.mxu0 0.0
    %4758 = vmatpush.msra.mxu0 0.0
    %4759 = vmatpush.msra.mxu0 0.0
    %v4760 = vand.u32 %v4084, 4294901760
    %v4761 = vsub.f32 %v4084, %v4760
    %v4762 = vand.u32 %v4761, 4294901760
    %4763 = vmatpush.msra.mxu0 %v4762
    %v4764 = vand.u32 %v4087, 4294901760
    %4765 = vmatmul.f32.gmra.mxu0 %v4764
    %v4766 = vpop.f32.mrf.mxu0
    %v4767 = vadd.f32 %v4725, %v4766
    %v4768 = vand.u32 %v4090, 4294901760
    %4769 = vmatmul.f32.gmra.mxu0 %v4768
    %v4770 = vpop.f32.mrf.mxu0
    %v4771 = vadd.f32 %v4731, %v4770
    %v4772 = vand.u32 %v4093, 4294901760
    %4773 = vmatmul.f32.gmra.mxu0 %v4772
    %v4774 = vpop.f32.mrf.mxu0
    %v4775 = vadd.f32 %v4737, %v4774
    %v4776 = vand.u32 %v4096, 4294901760
    %4777 = vmatmul.f32.gmra.mxu0 %v4776
    %v4778 = vpop.f32.mrf.mxu0
    %v4779 = vadd.f32 %v4743, %v4778
    %4780 = vdwg.mxu0
    %4781 = vmatpush.msra.mxu0 0.0
    %4782 = vmatpush.msra.mxu0 0.0
    %4783 = vmatpush.msra.mxu0 0.0
    %4784 = vmatpush.msra.mxu0 0.0
    %4785 = vmatpush.msra.mxu0 0.0
    %4786 = vmatpush.msra.mxu0 0.0
    %4787 = vmatpush.msra.mxu0 0.0
    %4788 = vmatpush.msra.mxu0 0.0
    %4789 = vmatpush.msra.mxu0 0.0
    %4790 = vmatpush.msra.mxu0 0.0
    %4791 = vmatpush.msra.mxu0 0.0
    %4792 = vmatpush.msra.mxu0 0.0
    %4793 = vmatpush.msra.mxu0 0.0
    %4794 = vmatpush.msra.mxu0 0.0
    %4795 = vmatpush.msra.mxu0 0.0
    %v4796 = vand.u32 %v4084, 4294901760
    %4797 = vmatpush.msra.mxu0 %v4796
    %v4798 = vand.u32 %v4087, 4294901760
    %4799 = vmatmul.f32.gmra.mxu0 %v4798
    %v4800 = vpop.f32.mrf.mxu0
    %v4801 = vadd.f32 %v4767, %v4800
    %v4802 = vand.u32 %v4090, 4294901760
    %4803 = vmatmul.f32.gmra.mxu0 %v4802
    %v4804 = vpop.f32.mrf.mxu0
    %v4805 = vadd.f32 %v4771, %v4804
    %v4806 = vand.u32 %v4093, 4294901760
    %4807 = vmatmul.f32.gmra.mxu0 %v4806
    %v4808 = vpop.f32.mrf.mxu0
    %v4809 = vadd.f32 %v4775, %v4808
    %v4810 = vand.u32 %v4096, 4294901760
    %4811 = vmatmul.f32.gmra.mxu0 %v4810
    %v4812 = vpop.f32.mrf.mxu0
    %v4813 = vadd.f32 %v4779, %v4812
    %4814 = vdwg.mxu0
    %v4815 = vrcp.pop %v4323
    %v4816 = vmul.f32 %v4323, %v4815
    %v4817 = vsub.f32 1.0, %v4816
    %v4818 = vmul.f32 %v4815, %v4817
    %v4819 = vadd.f32 %v4815, %v4818
    %vm4820 = vweird.f32 %v4323
    %vm4821 = vweird.f32 %v4815
    %vm4822 = vmor %vm4820, %vm4821
    %v4823 = vsel %vm4822, %v4815, %v4819
    %v4824 = vand.u32 2147483647, %v4323
    %vm4825 = vcmp.eq.f32.partialorder %v4824, 8.507059e+37
    %v4826 = vand.u32 %v4323, 2147483648
    %v4827 = vor.u32 1.1754944e-38, %v4826
    %v4828 = vsel %vm4825, %v4827, %v4823
    %v4829 = vrcp.pop %v4562
    %v4830 = vmul.f32 %v4562, %v4829
    %v4831 = vsub.f32 1.0, %v4830
    %v4832 = vmul.f32 %v4829, %v4831
    %v4833 = vadd.f32 %v4829, %v4832
    %vm4834 = vweird.f32 %v4562
    %vm4835 = vweird.f32 %v4829
    %vm4836 = vmor %vm4834, %vm4835
    %v4837 = vsel %vm4836, %v4829, %v4833
    %v4838 = vand.u32 2147483647, %v4562
    %vm4839 = vcmp.eq.f32.partialorder %v4838, 8.507059e+37
    %v4840 = vand.u32 %v4562, 2147483648
    %v4841 = vor.u32 1.1754944e-38, %v4840
    %v4842 = vsel %vm4839, %v4841, %v4837
    %v4843 = vrcp.pop %v4801
    %v4844 = vmul.f32 %v4801, %v4843
    %v4845 = vsub.f32 1.0, %v4844
    %v4846 = vmul.f32 %v4843, %v4845
    %v4847 = vadd.f32 %v4843, %v4846
    %vm4848 = vweird.f32 %v4801
    %vm4849 = vweird.f32 %v4843
    %vm4850 = vmor %vm4848, %vm4849
    %v4851 = vsel %vm4850, %v4843, %v4847
    %v4852 = vand.u32 2147483647, %v4801
    %vm4853 = vcmp.eq.f32.partialorder %v4852, 8.507059e+37
    %v4854 = vand.u32 %v4801, 2147483648
    %v4855 = vor.u32 1.1754944e-38, %v4854
    %v4856 = vsel %vm4853, %v4855, %v4851
    %v4857 = vrcp.pop %v4327
    %v4858 = vmul.f32 %v4327, %v4857
    %v4859 = vsub.f32 1.0, %v4858
    %v4860 = vmul.f32 %v4857, %v4859
    %v4861 = vadd.f32 %v4857, %v4860
    %vm4862 = vweird.f32 %v4327
    %vm4863 = vweird.f32 %v4857
    %vm4864 = vmor %vm4862, %vm4863
    %v4865 = vsel %vm4864, %v4857, %v4861
    %v4866 = vand.u32 2147483647, %v4327
    %vm4867 = vcmp.eq.f32.partialorder %v4866, 8.507059e+37
    %v4868 = vand.u32 %v4327, 2147483648
    %v4869 = vor.u32 1.1754944e-38, %v4868
    %v4870 = vsel %vm4867, %v4869, %v4865
    %v4871 = vrcp.pop %v4566
    %v4872 = vmul.f32 %v4566, %v4871
    %v4873 = vsub.f32 1.0, %v4872
    %v4874 = vmul.f32 %v4871, %v4873
    %v4875 = vadd.f32 %v4871, %v4874
    %vm4876 = vweird.f32 %v4566
    %vm4877 = vweird.f32 %v4871
    %vm4878 = vmor %vm4876, %vm4877
    %v4879 = vsel %vm4878, %v4871, %v4875
    %v4880 = vand.u32 2147483647, %v4566
    %vm4881 = vcmp.eq.f32.partialorder %v4880, 8.507059e+37
    %v4882 = vand.u32 %v4566, 2147483648
    %v4883 = vor.u32 1.1754944e-38, %v4882
    %v4884 = vsel %vm4881, %v4883, %v4879
    %v4885 = vrcp.pop %v4805
    %v4886 = vmul.f32 %v4805, %v4885
    %v4887 = vsub.f32 1.0, %v4886
    %v4888 = vmul.f32 %v4885, %v4887
    %v4889 = vadd.f32 %v4885, %v4888
    %vm4890 = vweird.f32 %v4805
    %vm4891 = vweird.f32 %v4885
    %vm4892 = vmor %vm4890, %vm4891
    %v4893 = vsel %vm4892, %v4885, %v4889
    %v4894 = vand.u32 2147483647, %v4805
    %vm4895 = vcmp.eq.f32.partialorder %v4894, 8.507059e+37
    %v4896 = vand.u32 %v4805, 2147483648
    %v4897 = vor.u32 1.1754944e-38, %v4896
    %v4898 = vsel %vm4895, %v4897, %v4893
    %v4899 = vrcp.pop %v4331
    %v4900 = vmul.f32 %v4331, %v4899
    %v4901 = vsub.f32 1.0, %v4900
    %v4902 = vmul.f32 %v4899, %v4901
    %v4903 = vadd.f32 %v4899, %v4902
    %vm4904 = vweird.f32 %v4331
    %vm4905 = vweird.f32 %v4899
    %vm4906 = vmor %vm4904, %vm4905
    %v4907 = vsel %vm4906, %v4899, %v4903
    %v4908 = vand.u32 2147483647, %v4331
    %vm4909 = vcmp.eq.f32.partialorder %v4908, 8.507059e+37
    %v4910 = vand.u32 %v4331, 2147483648
    %v4911 = vor.u32 1.1754944e-38, %v4910
    %v4912 = vsel %vm4909, %v4911, %v4907
    %v4913 = vrcp.pop %v4570
    %v4914 = vmul.f32 %v4570, %v4913
    %v4915 = vsub.f32 1.0, %v4914
    %v4916 = vmul.f32 %v4913, %v4915
    %v4917 = vadd.f32 %v4913, %v4916
    %vm4918 = vweird.f32 %v4570
    %vm4919 = vweird.f32 %v4913
    %vm4920 = vmor %vm4918, %vm4919
    %v4921 = vsel %vm4920, %v4913, %v4917
    %v4922 = vand.u32 2147483647, %v4570
    %vm4923 = vcmp.eq.f32.partialorder %v4922, 8.507059e+37
    %v4924 = vand.u32 %v4570, 2147483648
    %v4925 = vor.u32 1.1754944e-38, %v4924
    %v4926 = vsel %vm4923, %v4925, %v4921
    %v4927 = vrcp.pop %v4809
    %v4928 = vmul.f32 %v4809, %v4927
    %v4929 = vsub.f32 1.0, %v4928
    %v4930 = vmul.f32 %v4927, %v4929
    %v4931 = vadd.f32 %v4927, %v4930
    %vm4932 = vweird.f32 %v4809
    %vm4933 = vweird.f32 %v4927
    %vm4934 = vmor %vm4932, %vm4933
    %v4935 = vsel %vm4934, %v4927, %v4931
    %v4936 = vand.u32 2147483647, %v4809
    %vm4937 = vcmp.eq.f32.partialorder %v4936, 8.507059e+37
    %v4938 = vand.u32 %v4809, 2147483648
    %v4939 = vor.u32 1.1754944e-38, %v4938
    %v4940 = vsel %vm4937, %v4939, %v4935
    %v4941 = vrcp.pop %v4335
    %v4942 = vmul.f32 %v4335, %v4941
    %v4943 = vsub.f32 1.0, %v4942
    %v4944 = vmul.f32 %v4941, %v4943
    %v4945 = vadd.f32 %v4941, %v4944
    %vm4946 = vweird.f32 %v4335
    %vm4947 = vweird.f32 %v4941
    %vm4948 = vmor %vm4946, %vm4947
    %v4949 = vsel %vm4948, %v4941, %v4945
    %v4950 = vand.u32 2147483647, %v4335
    %vm4951 = vcmp.eq.f32.partialorder %v4950, 8.507059e+37
    %v4952 = vand.u32 %v4335, 2147483648
    %v4953 = vor.u32 1.1754944e-38, %v4952
    %v4954 = vsel %vm4951, %v4953, %v4949
    %v4955 = vrcp.pop %v4574
    %v4956 = vmul.f32 %v4574, %v4955
    %v4957 = vsub.f32 1.0, %v4956
    %v4958 = vmul.f32 %v4955, %v4957
    %v4959 = vadd.f32 %v4955, %v4958
    %vm4960 = vweird.f32 %v4574
    %vm4961 = vweird.f32 %v4955
    %vm4962 = vmor %vm4960, %vm4961
    %v4963 = vsel %vm4962, %v4955, %v4959
    %v4964 = vand.u32 2147483647, %v4574
    %vm4965 = vcmp.eq.f32.partialorder %v4964, 8.507059e+37
    %v4966 = vand.u32 %v4574, 2147483648
    %v4967 = vor.u32 1.1754944e-38, %v4966
    %v4968 = vsel %vm4965, %v4967, %v4963
    %v4969 = vrcp.pop %v4813
    %v4970 = vmul.f32 %v4813, %v4969
    %v4971 = vsub.f32 1.0, %v4970
    %v4972 = vmul.f32 %v4969, %v4971
    %v4973 = vadd.f32 %v4969, %v4972
    %vm4974 = vweird.f32 %v4813
    %vm4975 = vweird.f32 %v4969
    %vm4976 = vmor %vm4974, %vm4975
    %v4977 = vsel %vm4976, %v4969, %v4973
    %v4978 = vand.u32 2147483647, %v4813
    %vm4979 = vcmp.eq.f32.partialorder %v4978, 8.507059e+37
    %v4980 = vand.u32 %v4813, 2147483648
    %v4981 = vor.u32 1.1754944e-38, %v4980
    %v4982 = vsel %vm4979, %v4981, %v4977
    %v4983 = vmul.f32 %v2709, %v4828
    %v4984 = vmul.f32 %v2711, %v4842
    %v4985 = vmul.f32 %v2713, %v4856
    %v4986 = vmul.f32 %v2715, %v4870
    %v4987 = vmul.f32 %v2717, %v4884
    %v4988 = vmul.f32 %v2719, %v4898
    %v4989 = vmul.f32 %v2721, %v4912
    %v4990 = vmul.f32 %v2723, %v4926
    %v4991 = vmul.f32 %v2725, %v4940
    %v4992 = vmul.f32 %v2727, %v4954
    %v4993 = vmul.f32 %v2729, %v4968
    %v4994 = vmul.f32 %v2731, %v4982
    %v4995 = vld [vmem:[#allocation10] sm:$0xff]
    %v4996 = vld [vmem:[#allocation10 + $0x8] sm:$0xff]
    %v4997 = vld [vmem:[#allocation10 + $0x10] sm:$0xff]
    %v4998 = vld [vmem:[#allocation10 + $0x18] sm:$0xff]
    %v4999 = vld [vmem:[#allocation10 + $0x20] sm:$0xff]
    %v5000 = vld [vmem:[#allocation10 + $0x28] sm:$0xff]
    %v5001 = vld [vmem:[#allocation10 + $0x30] sm:$0xff]
    %v5002 = vld [vmem:[#allocation10 + $0x38] sm:$0xff]
    %v5003 = vld [vmem:[#allocation10 + $0x40] sm:$0xff]
    %v5004 = vld [vmem:[#allocation10 + $0x48] sm:$0xff]
    %v5005 = vld [vmem:[#allocation10 + $0x50] sm:$0xff]
    %v5006 = vld [vmem:[#allocation10 + $0x58] sm:$0xff]
    %v5007 = vld [vmem:[#allocation10 + $0x60] sm:$0xff]
    %v5008 = vld [vmem:[#allocation10 + $0x68] sm:$0xff]
    %v5009 = vld [vmem:[#allocation10 + $0x70] sm:$0xff]
    %v5010 = vld [vmem:[#allocation10 + $0x78] sm:$0xff]
    %v5011 = vld [vmem:[#allocation10 + $0x80] sm:$0xff]
    %v5012 = vld [vmem:[#allocation10 + $0x88] sm:$0xff]
    %v5013 = vld [vmem:[#allocation10 + $0x90] sm:$0xff]
    %v5014 = vld [vmem:[#allocation10 + $0x98] sm:$0xff]
    %v5015 = vld [vmem:[#allocation10 + $0xa0] sm:$0xff]
    %v5016 = vld [vmem:[#allocation10 + $0xa8] sm:$0xff]
    %v5017 = vld [vmem:[#allocation10 + $0xb0] sm:$0xff]
    %v5018 = vld [vmem:[#allocation10 + $0xb8] sm:$0xff]
    %v5019 = vld [vmem:[#allocation10 + $0xc0] sm:$0xff]
    %v5020 = vld [vmem:[#allocation10 + $0xc8] sm:$0xff]
    %v5021 = vld [vmem:[#allocation10 + $0xd0] sm:$0xff]
    %v5022 = vld [vmem:[#allocation10 + $0xd8] sm:$0xff]
    %v5023 = vld [vmem:[#allocation10 + $0xe0] sm:$0xff]
    %v5024 = vld [vmem:[#allocation10 + $0xe8] sm:$0xff]
    %v5025 = vld [vmem:[#allocation10 + $0xf0] sm:$0xff]
    %v5026 = vld [vmem:[#allocation10 + $0xf8] sm:$0xff]
    %v5027 = vld [vmem:[#allocation10 + $0x100] sm:$0xff]
    %v5028 = vld [vmem:[#allocation10 + $0x108] sm:$0xff]
    %v5029 = vld [vmem:[#allocation10 + $0x110] sm:$0xff]
    %v5030 = vld [vmem:[#allocation10 + $0x118] sm:$0xff]
    %v5031 = vld [vmem:[#allocation10 + $0x120] sm:$0xff]
    %v5032 = vld [vmem:[#allocation10 + $0x128] sm:$0xff]
    %v5033 = vld [vmem:[#allocation10 + $0x130] sm:$0xff]
    %v5034 = vld [vmem:[#allocation10 + $0x138] sm:$0xff]
    %v5035 = vld [vmem:[#allocation10 + $0x140] sm:$0xff]
    %v5036 = vld [vmem:[#allocation10 + $0x148] sm:$0xff]
    %v5037 = vld [vmem:[#allocation10 + $0x150] sm:$0xff]
    %v5038 = vld [vmem:[#allocation10 + $0x158] sm:$0xff]
    %v5039 = vld [vmem:[#allocation10 + $0x160] sm:$0xff]
    %v5040 = vld [vmem:[#allocation10 + $0x168] sm:$0xff]
    %v5041 = vld [vmem:[#allocation10 + $0x170] sm:$0xff]
    %v5042 = vld [vmem:[#allocation10 + $0x178] sm:$0xff]
    %v5043 = vand.u32 %v5010, 4294901760
    %5044 = vmatpush.msra.mxu0 %v5043
    %v5045 = vand.u32 %v5009, 4294901760
    %5046 = vmatpush.msra.mxu0 %v5045
    %v5047 = vand.u32 %v5008, 4294901760
    %5048 = vmatpush.msra.mxu0 %v5047
    %v5049 = vand.u32 %v5007, 4294901760
    %5050 = vmatpush.msra.mxu0 %v5049
    %v5051 = vand.u32 %v5006, 4294901760
    %5052 = vmatpush.msra.mxu0 %v5051
    %v5053 = vand.u32 %v5005, 4294901760
    %5054 = vmatpush.msra.mxu0 %v5053
    %v5055 = vand.u32 %v5004, 4294901760
    %5056 = vmatpush.msra.mxu0 %v5055
    %v5057 = vand.u32 %v5003, 4294901760
    %5058 = vmatpush.msra.mxu0 %v5057
    %v5059 = vand.u32 %v5002, 4294901760
    %5060 = vmatpush.msra.mxu0 %v5059
    %v5061 = vand.u32 %v5001, 4294901760
    %5062 = vmatpush.msra.mxu0 %v5061
    %v5063 = vand.u32 %v5000, 4294901760
    %5064 = vmatpush.msra.mxu0 %v5063
    %v5065 = vand.u32 %v4999, 4294901760
    %5066 = vmatpush.msra.mxu0 %v5065
    %v5067 = vand.u32 %v4998, 4294901760
    %5068 = vmatpush.msra.mxu0 %v5067
    %v5069 = vand.u32 %v4997, 4294901760
    %5070 = vmatpush.msra.mxu0 %v5069
    %v5071 = vand.u32 %v4996, 4294901760
    %5072 = vmatpush.msra.mxu0 %v5071
    %v5073 = vand.u32 %v4995, 4294901760
    %5074 = vmatpush.msra.mxu0 %v5073
    %v5075 = vand.u32 %v4983, 4294901760
    %v5076 = vsub.f32 %v4983, %v5075
    %v5077 = vand.u32 %v5076, 4294901760
    %v5078 = vsub.f32 %v5076, %v5077
    %v5079 = vand.u32 %v5078, 4294901760
    %5080 = vmatmul.f32.gmra.mxu0 %v5079
    %v5081 = vpop.f32.mrf.mxu0
    %v5082 = vadd.f32 0.0, %v5081
    %v5083 = vand.u32 %v4986, 4294901760
    %v5084 = vsub.f32 %v4986, %v5083
    %v5085 = vand.u32 %v5084, 4294901760
    %v5086 = vsub.f32 %v5084, %v5085
    %v5087 = vand.u32 %v5086, 4294901760
    %5088 = vmatmul.f32.gmra.mxu0 %v5087
    %v5089 = vpop.f32.mrf.mxu0
    %v5090 = vadd.f32 0.0, %v5089
    %v5091 = vand.u32 %v4989, 4294901760
    %v5092 = vsub.f32 %v4989, %v5091
    %v5093 = vand.u32 %v5092, 4294901760
    %v5094 = vsub.f32 %v5092, %v5093
    %v5095 = vand.u32 %v5094, 4294901760
    %5096 = vmatmul.f32.gmra.mxu0 %v5095
    %v5097 = vpop.f32.mrf.mxu0
    %v5098 = vadd.f32 0.0, %v5097
    %v5099 = vand.u32 %v4992, 4294901760
    %v5100 = vsub.f32 %v4992, %v5099
    %v5101 = vand.u32 %v5100, 4294901760
    %v5102 = vsub.f32 %v5100, %v5101
    %v5103 = vand.u32 %v5102, 4294901760
    %5104 = vmatmul.f32.gmra.mxu0 %v5103
    %v5105 = vpop.f32.mrf.mxu0
    %v5106 = vadd.f32 0.0, %v5105
    %5107 = vdwg.mxu0
    %v5108 = vand.u32 %v5010, 4294901760
    %v5109 = vsub.f32 %v5010, %v5108
    %v5110 = vand.u32 %v5109, 4294901760
    %v5111 = vsub.f32 %v5109, %v5110
    %v5112 = vand.u32 %v5111, 4294901760
    %5113 = vmatpush.msra.mxu0 %v5112
    %v5114 = vand.u32 %v5009, 4294901760
    %v5115 = vsub.f32 %v5009, %v5114
    %v5116 = vand.u32 %v5115, 4294901760
    %v5117 = vsub.f32 %v5115, %v5116
    %v5118 = vand.u32 %v5117, 4294901760
    %5119 = vmatpush.msra.mxu0 %v5118
    %v5120 = vand.u32 %v5008, 4294901760
    %v5121 = vsub.f32 %v5008, %v5120
    %v5122 = vand.u32 %v5121, 4294901760
    %v5123 = vsub.f32 %v5121, %v5122
    %v5124 = vand.u32 %v5123, 4294901760
    %5125 = vmatpush.msra.mxu0 %v5124
    %v5126 = vand.u32 %v5007, 4294901760
    %v5127 = vsub.f32 %v5007, %v5126
    %v5128 = vand.u32 %v5127, 4294901760
    %v5129 = vsub.f32 %v5127, %v5128
    %v5130 = vand.u32 %v5129, 4294901760
    %5131 = vmatpush.msra.mxu0 %v5130
    %v5132 = vand.u32 %v5006, 4294901760
    %v5133 = vsub.f32 %v5006, %v5132
    %v5134 = vand.u32 %v5133, 4294901760
    %v5135 = vsub.f32 %v5133, %v5134
    %v5136 = vand.u32 %v5135, 4294901760
    %5137 = vmatpush.msra.mxu0 %v5136
    %v5138 = vand.u32 %v5005, 4294901760
    %v5139 = vsub.f32 %v5005, %v5138
    %v5140 = vand.u32 %v5139, 4294901760
    %v5141 = vsub.f32 %v5139, %v5140
    %v5142 = vand.u32 %v5141, 4294901760
    %5143 = vmatpush.msra.mxu0 %v5142
    %v5144 = vand.u32 %v5004, 4294901760
    %v5145 = vsub.f32 %v5004, %v5144
    %v5146 = vand.u32 %v5145, 4294901760
    %v5147 = vsub.f32 %v5145, %v5146
    %v5148 = vand.u32 %v5147, 4294901760
    %5149 = vmatpush.msra.mxu0 %v5148
    %v5150 = vand.u32 %v5003, 4294901760
    %v5151 = vsub.f32 %v5003, %v5150
    %v5152 = vand.u32 %v5151, 4294901760
    %v5153 = vsub.f32 %v5151, %v5152
    %v5154 = vand.u32 %v5153, 4294901760
    %5155 = vmatpush.msra.mxu0 %v5154
    %v5156 = vand.u32 %v5002, 4294901760
    %v5157 = vsub.f32 %v5002, %v5156
    %v5158 = vand.u32 %v5157, 4294901760
    %v5159 = vsub.f32 %v5157, %v5158
    %v5160 = vand.u32 %v5159, 4294901760
    %5161 = vmatpush.msra.mxu0 %v5160
    %v5162 = vand.u32 %v5001, 4294901760
    %v5163 = vsub.f32 %v5001, %v5162
    %v5164 = vand.u32 %v5163, 4294901760
    %v5165 = vsub.f32 %v5163, %v5164
    %v5166 = vand.u32 %v5165, 4294901760
    %5167 = vmatpush.msra.mxu0 %v5166
    %v5168 = vand.u32 %v5000, 4294901760
    %v5169 = vsub.f32 %v5000, %v5168
    %v5170 = vand.u32 %v5169, 4294901760
    %v5171 = vsub.f32 %v5169, %v5170
    %v5172 = vand.u32 %v5171, 4294901760
    %5173 = vmatpush.msra.mxu0 %v5172
    %v5174 = vand.u32 %v4999, 4294901760
    %v5175 = vsub.f32 %v4999, %v5174
    %v5176 = vand.u32 %v5175, 4294901760
    %v5177 = vsub.f32 %v5175, %v5176
    %v5178 = vand.u32 %v5177, 4294901760
    %5179 = vmatpush.msra.mxu0 %v5178
    %v5180 = vand.u32 %v4998, 4294901760
    %v5181 = vsub.f32 %v4998, %v5180
    %v5182 = vand.u32 %v5181, 4294901760
    %v5183 = vsub.f32 %v5181, %v5182
    %v5184 = vand.u32 %v5183, 4294901760
    %5185 = vmatpush.msra.mxu0 %v5184
    %v5186 = vand.u32 %v4997, 4294901760
    %v5187 = vsub.f32 %v4997, %v5186
    %v5188 = vand.u32 %v5187, 4294901760
    %v5189 = vsub.f32 %v5187, %v5188
    %v5190 = vand.u32 %v5189, 4294901760
    %5191 = vmatpush.msra.mxu0 %v5190
    %v5192 = vand.u32 %v4996, 4294901760
    %v5193 = vsub.f32 %v4996, %v5192
    %v5194 = vand.u32 %v5193, 4294901760
    %v5195 = vsub.f32 %v5193, %v5194
    %v5196 = vand.u32 %v5195, 4294901760
    %5197 = vmatpush.msra.mxu0 %v5196
    %v5198 = vand.u32 %v4995, 4294901760
    %v5199 = vsub.f32 %v4995, %v5198
    %v5200 = vand.u32 %v5199, 4294901760
    %v5201 = vsub.f32 %v5199, %v5200
    %v5202 = vand.u32 %v5201, 4294901760
    %5203 = vmatpush.msra.mxu0 %v5202
    %v5204 = vand.u32 %v4983, 4294901760
    %5205 = vmatmul.f32.gmra.mxu0 %v5204
    %v5206 = vpop.f32.mrf.mxu0
    %v5207 = vadd.f32 %v5082, %v5206
    %v5208 = vand.u32 %v4986, 4294901760
    %5209 = vmatmul.f32.gmra.mxu0 %v5208
    %v5210 = vpop.f32.mrf.mxu0
    %v5211 = vadd.f32 %v5090, %v5210
    %v5212 = vand.u32 %v4989, 4294901760
    %5213 = vmatmul.f32.gmra.mxu0 %v5212
    %v5214 = vpop.f32.mrf.mxu0
    %v5215 = vadd.f32 %v5098, %v5214
    %v5216 = vand.u32 %v4992, 4294901760
    %5217 = vmatmul.f32.gmra.mxu0 %v5216
    %v5218 = vpop.f32.mrf.mxu0
    %v5219 = vadd.f32 %v5106, %v5218
    %5220 = vdwg.mxu0
    %v5221 = vand.u32 %v5010, 4294901760
    %v5222 = vsub.f32 %v5010, %v5221
    %5223 = vmatpush.msra.mxu0 %v5222
    %v5224 = vand.u32 %v5009, 4294901760
    %v5225 = vsub.f32 %v5009, %v5224
    %5226 = vmatpush.msra.mxu0 %v5225
    %v5227 = vand.u32 %v5008, 4294901760
    %v5228 = vsub.f32 %v5008, %v5227
    %5229 = vmatpush.msra.mxu0 %v5228
    %v5230 = vand.u32 %v5007, 4294901760
    %v5231 = vsub.f32 %v5007, %v5230
    %5232 = vmatpush.msra.mxu0 %v5231
    %v5233 = vand.u32 %v5006, 4294901760
    %v5234 = vsub.f32 %v5006, %v5233
    %5235 = vmatpush.msra.mxu0 %v5234
    %v5236 = vand.u32 %v5005, 4294901760
    %v5237 = vsub.f32 %v5005, %v5236
    %5238 = vmatpush.msra.mxu0 %v5237
    %v5239 = vand.u32 %v5004, 4294901760
    %v5240 = vsub.f32 %v5004, %v5239
    %5241 = vmatpush.msra.mxu0 %v5240
    %v5242 = vand.u32 %v5003, 4294901760
    %v5243 = vsub.f32 %v5003, %v5242
    %5244 = vmatpush.msra.mxu0 %v5243
    %v5245 = vand.u32 %v5002, 4294901760
    %v5246 = vsub.f32 %v5002, %v5245
    %5247 = vmatpush.msra.mxu0 %v5246
    %v5248 = vand.u32 %v5001, 4294901760
    %v5249 = vsub.f32 %v5001, %v5248
    %5250 = vmatpush.msra.mxu0 %v5249
    %v5251 = vand.u32 %v5000, 4294901760
    %v5252 = vsub.f32 %v5000, %v5251
    %5253 = vmatpush.msra.mxu0 %v5252
    %v5254 = vand.u32 %v4999, 4294901760
    %v5255 = vsub.f32 %v4999, %v5254
    %5256 = vmatpush.msra.mxu0 %v5255
    %v5257 = vand.u32 %v4998, 4294901760
    %v5258 = vsub.f32 %v4998, %v5257
    %5259 = vmatpush.msra.mxu0 %v5258
    %v5260 = vand.u32 %v4997, 4294901760
    %v5261 = vsub.f32 %v4997, %v5260
    %5262 = vmatpush.msra.mxu0 %v5261
    %v5263 = vand.u32 %v4996, 4294901760
    %v5264 = vsub.f32 %v4996, %v5263
    %5265 = vmatpush.msra.mxu0 %v5264
    %v5266 = vand.u32 %v4995, 4294901760
    %v5267 = vsub.f32 %v4995, %v5266
    %5268 = vmatpush.msra.mxu0 %v5267
    %v5269 = vand.u32 %v4983, 4294901760
    %v5270 = vsub.f32 %v4983, %v5269
    %5271 = vmatmul.f32.gmra.mxu0 %v5270
    %v5272 = vpop.f32.mrf.mxu0
    %v5273 = vadd.f32 %v5207, %v5272
    %v5274 = vand.u32 %v4986, 4294901760
    %v5275 = vsub.f32 %v4986, %v5274
    %5276 = vmatmul.f32.gmra.mxu0 %v5275
    %v5277 = vpop.f32.mrf.mxu0
    %v5278 = vadd.f32 %v5211, %v5277
    %v5279 = vand.u32 %v4989, 4294901760
    %v5280 = vsub.f32 %v4989, %v5279
    %5281 = vmatmul.f32.gmra.mxu0 %v5280
    %v5282 = vpop.f32.mrf.mxu0
    %v5283 = vadd.f32 %v5215, %v5282
    %v5284 = vand.u32 %v4992, 4294901760
    %v5285 = vsub.f32 %v4992, %v5284
    %5286 = vmatmul.f32.gmra.mxu0 %v5285
    %v5287 = vpop.f32.mrf.mxu0
    %v5288 = vadd.f32 %v5219, %v5287
    %5289 = vdwg.mxu0
    %v5290 = vand.u32 %v5010, 4294901760
    %5291 = vmatpush.msra.mxu0 %v5290
    %v5292 = vand.u32 %v5009, 4294901760
    %5293 = vmatpush.msra.mxu0 %v5292
    %v5294 = vand.u32 %v5008, 4294901760
    %5295 = vmatpush.msra.mxu0 %v5294
    %v5296 = vand.u32 %v5007, 4294901760
    %5297 = vmatpush.msra.mxu0 %v5296
    %v5298 = vand.u32 %v5006, 4294901760
    %5299 = vmatpush.msra.mxu0 %v5298
    %v5300 = vand.u32 %v5005, 4294901760
    %5301 = vmatpush.msra.mxu0 %v5300
    %v5302 = vand.u32 %v5004, 4294901760
    %5303 = vmatpush.msra.mxu0 %v5302
    %v5304 = vand.u32 %v5003, 4294901760
    %5305 = vmatpush.msra.mxu0 %v5304
    %v5306 = vand.u32 %v5002, 4294901760
    %5307 = vmatpush.msra.mxu0 %v5306
    %v5308 = vand.u32 %v5001, 4294901760
    %5309 = vmatpush.msra.mxu0 %v5308
    %v5310 = vand.u32 %v5000, 4294901760
    %5311 = vmatpush.msra.mxu0 %v5310
    %v5312 = vand.u32 %v4999, 4294901760
    %5313 = vmatpush.msra.mxu0 %v5312
    %v5314 = vand.u32 %v4998, 4294901760
    %5315 = vmatpush.msra.mxu0 %v5314
    %v5316 = vand.u32 %v4997, 4294901760
    %5317 = vmatpush.msra.mxu0 %v5316
    %v5318 = vand.u32 %v4996, 4294901760
    %5319 = vmatpush.msra.mxu0 %v5318
    %v5320 = vand.u32 %v4995, 4294901760
    %5321 = vmatpush.msra.mxu0 %v5320
    %v5322 = vand.u32 %v4983, 4294901760
    %v5323 = vsub.f32 %v4983, %v5322
    %v5324 = vand.u32 %v5323, 4294901760
    %5325 = vmatmul.f32.gmra.mxu0 %v5324
    %v5326 = vpop.f32.mrf.mxu0
    %v5327 = vadd.f32 %v5273, %v5326
    %v5328 = vand.u32 %v4986, 4294901760
    %v5329 = vsub.f32 %v4986, %v5328
    %v5330 = vand.u32 %v5329, 4294901760
    %5331 = vmatmul.f32.gmra.mxu0 %v5330
    %v5332 = vpop.f32.mrf.mxu0
    %v5333 = vadd.f32 %v5278, %v5332
    %v5334 = vand.u32 %v4989, 4294901760
    %v5335 = vsub.f32 %v4989, %v5334
    %v5336 = vand.u32 %v5335, 4294901760
    %5337 = vmatmul.f32.gmra.mxu0 %v5336
    %v5338 = vpop.f32.mrf.mxu0
    %v5339 = vadd.f32 %v5283, %v5338
    %v5340 = vand.u32 %v4992, 4294901760
    %v5341 = vsub.f32 %v4992, %v5340
    %v5342 = vand.u32 %v5341, 4294901760
    %5343 = vmatmul.f32.gmra.mxu0 %v5342
    %v5344 = vpop.f32.mrf.mxu0
    %v5345 = vadd.f32 %v5288, %v5344
    %5346 = vdwg.mxu0
    %v5347 = vand.u32 %v5010, 4294901760
    %v5348 = vsub.f32 %v5010, %v5347
    %v5349 = vand.u32 %v5348, 4294901760
    %5350 = vmatpush.msra.mxu0 %v5349
    %v5351 = vand.u32 %v5009, 4294901760
    %v5352 = vsub.f32 %v5009, %v5351
    %v5353 = vand.u32 %v5352, 4294901760
    %5354 = vmatpush.msra.mxu0 %v5353
    %v5355 = vand.u32 %v5008, 4294901760
    %v5356 = vsub.f32 %v5008, %v5355
    %v5357 = vand.u32 %v5356, 4294901760
    %5358 = vmatpush.msra.mxu0 %v5357
    %v5359 = vand.u32 %v5007, 4294901760
    %v5360 = vsub.f32 %v5007, %v5359
    %v5361 = vand.u32 %v5360, 4294901760
    %5362 = vmatpush.msra.mxu0 %v5361
    %v5363 = vand.u32 %v5006, 4294901760
    %v5364 = vsub.f32 %v5006, %v5363
    %v5365 = vand.u32 %v5364, 4294901760
    %5366 = vmatpush.msra.mxu0 %v5365
    %v5367 = vand.u32 %v5005, 4294901760
    %v5368 = vsub.f32 %v5005, %v5367
    %v5369 = vand.u32 %v5368, 4294901760
    %5370 = vmatpush.msra.mxu0 %v5369
    %v5371 = vand.u32 %v5004, 4294901760
    %v5372 = vsub.f32 %v5004, %v5371
    %v5373 = vand.u32 %v5372, 4294901760
    %5374 = vmatpush.msra.mxu0 %v5373
    %v5375 = vand.u32 %v5003, 4294901760
    %v5376 = vsub.f32 %v5003, %v5375
    %v5377 = vand.u32 %v5376, 4294901760
    %5378 = vmatpush.msra.mxu0 %v5377
    %v5379 = vand.u32 %v5002, 4294901760
    %v5380 = vsub.f32 %v5002, %v5379
    %v5381 = vand.u32 %v5380, 4294901760
    %5382 = vmatpush.msra.mxu0 %v5381
    %v5383 = vand.u32 %v5001, 4294901760
    %v5384 = vsub.f32 %v5001, %v5383
    %v5385 = vand.u32 %v5384, 4294901760
    %5386 = vmatpush.msra.mxu0 %v5385
    %v5387 = vand.u32 %v5000, 4294901760
    %v5388 = vsub.f32 %v5000, %v5387
    %v5389 = vand.u32 %v5388, 4294901760
    %5390 = vmatpush.msra.mxu0 %v5389
    %v5391 = vand.u32 %v4999, 4294901760
    %v5392 = vsub.f32 %v4999, %v5391
    %v5393 = vand.u32 %v5392, 4294901760
    %5394 = vmatpush.msra.mxu0 %v5393
    %v5395 = vand.u32 %v4998, 4294901760
    %v5396 = vsub.f32 %v4998, %v5395
    %v5397 = vand.u32 %v5396, 4294901760
    %5398 = vmatpush.msra.mxu0 %v5397
    %v5399 = vand.u32 %v4997, 4294901760
    %v5400 = vsub.f32 %v4997, %v5399
    %v5401 = vand.u32 %v5400, 4294901760
    %5402 = vmatpush.msra.mxu0 %v5401
    %v5403 = vand.u32 %v4996, 4294901760
    %v5404 = vsub.f32 %v4996, %v5403
    %v5405 = vand.u32 %v5404, 4294901760
    %5406 = vmatpush.msra.mxu0 %v5405
    %v5407 = vand.u32 %v4995, 4294901760
    %v5408 = vsub.f32 %v4995, %v5407
    %v5409 = vand.u32 %v5408, 4294901760
    %5410 = vmatpush.msra.mxu0 %v5409
    %v5411 = vand.u32 %v4983, 4294901760
    %5412 = vmatmul.f32.gmra.mxu0 %v5411
    %v5413 = vpop.f32.mrf.mxu0
    %v5414 = vadd.f32 %v5327, %v5413
    %v5415 = vand.u32 %v4986, 4294901760
    %5416 = vmatmul.f32.gmra.mxu0 %v5415
    %v5417 = vpop.f32.mrf.mxu0
    %v5418 = vadd.f32 %v5333, %v5417
    %v5419 = vand.u32 %v4989, 4294901760
    %5420 = vmatmul.f32.gmra.mxu0 %v5419
    %v5421 = vpop.f32.mrf.mxu0
    %v5422 = vadd.f32 %v5339, %v5421
    %v5423 = vand.u32 %v4992, 4294901760
    %5424 = vmatmul.f32.gmra.mxu0 %v5423
    %v5425 = vpop.f32.mrf.mxu0
    %v5426 = vadd.f32 %v5345, %v5425
    %5427 = vdwg.mxu0
    %v5428 = vand.u32 %v5010, 4294901760
    %5429 = vmatpush.msra.mxu0 %v5428
    %v5430 = vand.u32 %v5009, 4294901760
    %5431 = vmatpush.msra.mxu0 %v5430
    %v5432 = vand.u32 %v5008, 4294901760
    %5433 = vmatpush.msra.mxu0 %v5432
    %v5434 = vand.u32 %v5007, 4294901760
    %5435 = vmatpush.msra.mxu0 %v5434
    %v5436 = vand.u32 %v5006, 4294901760
    %5437 = vmatpush.msra.mxu0 %v5436
    %v5438 = vand.u32 %v5005, 4294901760
    %5439 = vmatpush.msra.mxu0 %v5438
    %v5440 = vand.u32 %v5004, 4294901760
    %5441 = vmatpush.msra.mxu0 %v5440
    %v5442 = vand.u32 %v5003, 4294901760
    %5443 = vmatpush.msra.mxu0 %v5442
    %v5444 = vand.u32 %v5002, 4294901760
    %5445 = vmatpush.msra.mxu0 %v5444
    %v5446 = vand.u32 %v5001, 4294901760
    %5447 = vmatpush.msra.mxu0 %v5446
    %v5448 = vand.u32 %v5000, 4294901760
    %5449 = vmatpush.msra.mxu0 %v5448
    %v5450 = vand.u32 %v4999, 4294901760
    %5451 = vmatpush.msra.mxu0 %v5450
    %v5452 = vand.u32 %v4998, 4294901760
    %5453 = vmatpush.msra.mxu0 %v5452
    %v5454 = vand.u32 %v4997, 4294901760
    %5455 = vmatpush.msra.mxu0 %v5454
    %v5456 = vand.u32 %v4996, 4294901760
    %5457 = vmatpush.msra.mxu0 %v5456
    %v5458 = vand.u32 %v4995, 4294901760
    %5459 = vmatpush.msra.mxu0 %v5458
    %v5460 = vand.u32 %v4983, 4294901760
    %5461 = vmatmul.f32.gmra.mxu0 %v5460
    %v5462 = vpop.f32.mrf.mxu0
    %v5463 = vadd.f32 %v5414, %v5462
    %v5464 = vand.u32 %v4986, 4294901760
    %5465 = vmatmul.f32.gmra.mxu0 %v5464
    %v5466 = vpop.f32.mrf.mxu0
    %v5467 = vadd.f32 %v5418, %v5466
    %v5468 = vand.u32 %v4989, 4294901760
    %5469 = vmatmul.f32.gmra.mxu0 %v5468
    %v5470 = vpop.f32.mrf.mxu0
    %v5471 = vadd.f32 %v5422, %v5470
    %v5472 = vand.u32 %v4992, 4294901760
    %5473 = vmatmul.f32.gmra.mxu0 %v5472
    %v5474 = vpop.f32.mrf.mxu0
    %v5475 = vadd.f32 %v5426, %v5474
    %5476 = vdwg.mxu0
    %v5477 = vand.u32 %v5026, 4294901760
    %5478 = vmatpush.msra.mxu0 %v5477
    %v5479 = vand.u32 %v5025, 4294901760
    %5480 = vmatpush.msra.mxu0 %v5479
    %v5481 = vand.u32 %v5024, 4294901760
    %5482 = vmatpush.msra.mxu0 %v5481
    %v5483 = vand.u32 %v5023, 4294901760
    %5484 = vmatpush.msra.mxu0 %v5483
    %v5485 = vand.u32 %v5022, 4294901760
    %5486 = vmatpush.msra.mxu0 %v5485
    %v5487 = vand.u32 %v5021, 4294901760
    %5488 = vmatpush.msra.mxu0 %v5487
    %v5489 = vand.u32 %v5020, 4294901760
    %5490 = vmatpush.msra.mxu0 %v5489
    %v5491 = vand.u32 %v5019, 4294901760
    %5492 = vmatpush.msra.mxu0 %v5491
    %v5493 = vand.u32 %v5018, 4294901760
    %5494 = vmatpush.msra.mxu0 %v5493
    %v5495 = vand.u32 %v5017, 4294901760
    %5496 = vmatpush.msra.mxu0 %v5495
    %v5497 = vand.u32 %v5016, 4294901760
    %5498 = vmatpush.msra.mxu0 %v5497
    %v5499 = vand.u32 %v5015, 4294901760
    %5500 = vmatpush.msra.mxu0 %v5499
    %v5501 = vand.u32 %v5014, 4294901760
    %5502 = vmatpush.msra.mxu0 %v5501
    %v5503 = vand.u32 %v5013, 4294901760
    %5504 = vmatpush.msra.mxu0 %v5503
    %v5505 = vand.u32 %v5012, 4294901760
    %5506 = vmatpush.msra.mxu0 %v5505
    %v5507 = vand.u32 %v5011, 4294901760
    %5508 = vmatpush.msra.mxu0 %v5507
    %v5509 = vand.u32 %v4984, 4294901760
    %v5510 = vsub.f32 %v4984, %v5509
    %v5511 = vand.u32 %v5510, 4294901760
    %v5512 = vsub.f32 %v5510, %v5511
    %v5513 = vand.u32 %v5512, 4294901760
    %5514 = vmatmul.f32.gmra.mxu0 %v5513
    %v5515 = vpop.f32.mrf.mxu0
    %v5516 = vadd.f32 %v5463, %v5515
    %v5517 = vand.u32 %v4987, 4294901760
    %v5518 = vsub.f32 %v4987, %v5517
    %v5519 = vand.u32 %v5518, 4294901760
    %v5520 = vsub.f32 %v5518, %v5519
    %v5521 = vand.u32 %v5520, 4294901760
    %5522 = vmatmul.f32.gmra.mxu0 %v5521
    %v5523 = vpop.f32.mrf.mxu0
    %v5524 = vadd.f32 %v5467, %v5523
    %v5525 = vand.u32 %v4990, 4294901760
    %v5526 = vsub.f32 %v4990, %v5525
    %v5527 = vand.u32 %v5526, 4294901760
    %v5528 = vsub.f32 %v5526, %v5527
    %v5529 = vand.u32 %v5528, 4294901760
    %5530 = vmatmul.f32.gmra.mxu0 %v5529
    %v5531 = vpop.f32.mrf.mxu0
    %v5532 = vadd.f32 %v5471, %v5531
    %v5533 = vand.u32 %v4993, 4294901760
    %v5534 = vsub.f32 %v4993, %v5533
    %v5535 = vand.u32 %v5534, 4294901760
    %v5536 = vsub.f32 %v5534, %v5535
    %v5537 = vand.u32 %v5536, 4294901760
    %5538 = vmatmul.f32.gmra.mxu0 %v5537
    %v5539 = vpop.f32.mrf.mxu0
    %v5540 = vadd.f32 %v5475, %v5539
    %5541 = vdwg.mxu0
    %v5542 = vand.u32 %v5026, 4294901760
    %v5543 = vsub.f32 %v5026, %v5542
    %v5544 = vand.u32 %v5543, 4294901760
    %v5545 = vsub.f32 %v5543, %v5544
    %v5546 = vand.u32 %v5545, 4294901760
    %5547 = vmatpush.msra.mxu0 %v5546
    %v5548 = vand.u32 %v5025, 4294901760
    %v5549 = vsub.f32 %v5025, %v5548
    %v5550 = vand.u32 %v5549, 4294901760
    %v5551 = vsub.f32 %v5549, %v5550
    %v5552 = vand.u32 %v5551, 4294901760
    %5553 = vmatpush.msra.mxu0 %v5552
    %v5554 = vand.u32 %v5024, 4294901760
    %v5555 = vsub.f32 %v5024, %v5554
    %v5556 = vand.u32 %v5555, 4294901760
    %v5557 = vsub.f32 %v5555, %v5556
    %v5558 = vand.u32 %v5557, 4294901760
    %5559 = vmatpush.msra.mxu0 %v5558
    %v5560 = vand.u32 %v5023, 4294901760
    %v5561 = vsub.f32 %v5023, %v5560
    %v5562 = vand.u32 %v5561, 4294901760
    %v5563 = vsub.f32 %v5561, %v5562
    %v5564 = vand.u32 %v5563, 4294901760
    %5565 = vmatpush.msra.mxu0 %v5564
    %v5566 = vand.u32 %v5022, 4294901760
    %v5567 = vsub.f32 %v5022, %v5566
    %v5568 = vand.u32 %v5567, 4294901760
    %v5569 = vsub.f32 %v5567, %v5568
    %v5570 = vand.u32 %v5569, 4294901760
    %5571 = vmatpush.msra.mxu0 %v5570
    %v5572 = vand.u32 %v5021, 4294901760
    %v5573 = vsub.f32 %v5021, %v5572
    %v5574 = vand.u32 %v5573, 4294901760
    %v5575 = vsub.f32 %v5573, %v5574
    %v5576 = vand.u32 %v5575, 4294901760
    %5577 = vmatpush.msra.mxu0 %v5576
    %v5578 = vand.u32 %v5020, 4294901760
    %v5579 = vsub.f32 %v5020, %v5578
    %v5580 = vand.u32 %v5579, 4294901760
    %v5581 = vsub.f32 %v5579, %v5580
    %v5582 = vand.u32 %v5581, 4294901760
    %5583 = vmatpush.msra.mxu0 %v5582
    %v5584 = vand.u32 %v5019, 4294901760
    %v5585 = vsub.f32 %v5019, %v5584
    %v5586 = vand.u32 %v5585, 4294901760
    %v5587 = vsub.f32 %v5585, %v5586
    %v5588 = vand.u32 %v5587, 4294901760
    %5589 = vmatpush.msra.mxu0 %v5588
    %v5590 = vand.u32 %v5018, 4294901760
    %v5591 = vsub.f32 %v5018, %v5590
    %v5592 = vand.u32 %v5591, 4294901760
    %v5593 = vsub.f32 %v5591, %v5592
    %v5594 = vand.u32 %v5593, 4294901760
    %5595 = vmatpush.msra.mxu0 %v5594
    %v5596 = vand.u32 %v5017, 4294901760
    %v5597 = vsub.f32 %v5017, %v5596
    %v5598 = vand.u32 %v5597, 4294901760
    %v5599 = vsub.f32 %v5597, %v5598
    %v5600 = vand.u32 %v5599, 4294901760
    %5601 = vmatpush.msra.mxu0 %v5600
    %v5602 = vand.u32 %v5016, 4294901760
    %v5603 = vsub.f32 %v5016, %v5602
    %v5604 = vand.u32 %v5603, 4294901760
    %v5605 = vsub.f32 %v5603, %v5604
    %v5606 = vand.u32 %v5605, 4294901760
    %5607 = vmatpush.msra.mxu0 %v5606
    %v5608 = vand.u32 %v5015, 4294901760
    %v5609 = vsub.f32 %v5015, %v5608
    %v5610 = vand.u32 %v5609, 4294901760
    %v5611 = vsub.f32 %v5609, %v5610
    %v5612 = vand.u32 %v5611, 4294901760
    %5613 = vmatpush.msra.mxu0 %v5612
    %v5614 = vand.u32 %v5014, 4294901760
    %v5615 = vsub.f32 %v5014, %v5614
    %v5616 = vand.u32 %v5615, 4294901760
    %v5617 = vsub.f32 %v5615, %v5616
    %v5618 = vand.u32 %v5617, 4294901760
    %5619 = vmatpush.msra.mxu0 %v5618
    %v5620 = vand.u32 %v5013, 4294901760
    %v5621 = vsub.f32 %v5013, %v5620
    %v5622 = vand.u32 %v5621, 4294901760
    %v5623 = vsub.f32 %v5621, %v5622
    %v5624 = vand.u32 %v5623, 4294901760
    %5625 = vmatpush.msra.mxu0 %v5624
    %v5626 = vand.u32 %v5012, 4294901760
    %v5627 = vsub.f32 %v5012, %v5626
    %v5628 = vand.u32 %v5627, 4294901760
    %v5629 = vsub.f32 %v5627, %v5628
    %v5630 = vand.u32 %v5629, 4294901760
    %5631 = vmatpush.msra.mxu0 %v5630
    %v5632 = vand.u32 %v5011, 4294901760
    %v5633 = vsub.f32 %v5011, %v5632
    %v5634 = vand.u32 %v5633, 4294901760
    %v5635 = vsub.f32 %v5633, %v5634
    %v5636 = vand.u32 %v5635, 4294901760
    %5637 = vmatpush.msra.mxu0 %v5636
    %v5638 = vand.u32 %v4984, 4294901760
    %5639 = vmatmul.f32.gmra.mxu0 %v5638
    %v5640 = vpop.f32.mrf.mxu0
    %v5641 = vadd.f32 %v5516, %v5640
    %v5642 = vand.u32 %v4987, 4294901760
    %5643 = vmatmul.f32.gmra.mxu0 %v5642
    %v5644 = vpop.f32.mrf.mxu0
    %v5645 = vadd.f32 %v5524, %v5644
    %v5646 = vand.u32 %v4990, 4294901760
    %5647 = vmatmul.f32.gmra.mxu0 %v5646
    %v5648 = vpop.f32.mrf.mxu0
    %v5649 = vadd.f32 %v5532, %v5648
    %v5650 = vand.u32 %v4993, 4294901760
    %5651 = vmatmul.f32.gmra.mxu0 %v5650
    %v5652 = vpop.f32.mrf.mxu0
    %v5653 = vadd.f32 %v5540, %v5652
    %5654 = vdwg.mxu0
    %v5655 = vand.u32 %v5026, 4294901760
    %v5656 = vsub.f32 %v5026, %v5655
    %5657 = vmatpush.msra.mxu0 %v5656
    %v5658 = vand.u32 %v5025, 4294901760
    %v5659 = vsub.f32 %v5025, %v5658
    %5660 = vmatpush.msra.mxu0 %v5659
    %v5661 = vand.u32 %v5024, 4294901760
    %v5662 = vsub.f32 %v5024, %v5661
    %5663 = vmatpush.msra.mxu0 %v5662
    %v5664 = vand.u32 %v5023, 4294901760
    %v5665 = vsub.f32 %v5023, %v5664
    %5666 = vmatpush.msra.mxu0 %v5665
    %v5667 = vand.u32 %v5022, 4294901760
    %v5668 = vsub.f32 %v5022, %v5667
    %5669 = vmatpush.msra.mxu0 %v5668
    %v5670 = vand.u32 %v5021, 4294901760
    %v5671 = vsub.f32 %v5021, %v5670
    %5672 = vmatpush.msra.mxu0 %v5671
    %v5673 = vand.u32 %v5020, 4294901760
    %v5674 = vsub.f32 %v5020, %v5673
    %5675 = vmatpush.msra.mxu0 %v5674
    %v5676 = vand.u32 %v5019, 4294901760
    %v5677 = vsub.f32 %v5019, %v5676
    %5678 = vmatpush.msra.mxu0 %v5677
    %v5679 = vand.u32 %v5018, 4294901760
    %v5680 = vsub.f32 %v5018, %v5679
    %5681 = vmatpush.msra.mxu0 %v5680
    %v5682 = vand.u32 %v5017, 4294901760
    %v5683 = vsub.f32 %v5017, %v5682
    %5684 = vmatpush.msra.mxu0 %v5683
    %v5685 = vand.u32 %v5016, 4294901760
    %v5686 = vsub.f32 %v5016, %v5685
    %5687 = vmatpush.msra.mxu0 %v5686
    %v5688 = vand.u32 %v5015, 4294901760
    %v5689 = vsub.f32 %v5015, %v5688
    %5690 = vmatpush.msra.mxu0 %v5689
    %v5691 = vand.u32 %v5014, 4294901760
    %v5692 = vsub.f32 %v5014, %v5691
    %5693 = vmatpush.msra.mxu0 %v5692
    %v5694 = vand.u32 %v5013, 4294901760
    %v5695 = vsub.f32 %v5013, %v5694
    %5696 = vmatpush.msra.mxu0 %v5695
    %v5697 = vand.u32 %v5012, 4294901760
    %v5698 = vsub.f32 %v5012, %v5697
    %5699 = vmatpush.msra.mxu0 %v5698
    %v5700 = vand.u32 %v5011, 4294901760
    %v5701 = vsub.f32 %v5011, %v5700
    %5702 = vmatpush.msra.mxu0 %v5701
    %v5703 = vand.u32 %v4984, 4294901760
    %v5704 = vsub.f32 %v4984, %v5703
    %5705 = vmatmul.f32.gmra.mxu0 %v5704
    %v5706 = vpop.f32.mrf.mxu0
    %v5707 = vadd.f32 %v5641, %v5706
    %v5708 = vand.u32 %v4987, 4294901760
    %v5709 = vsub.f32 %v4987, %v5708
    %5710 = vmatmul.f32.gmra.mxu0 %v5709
    %v5711 = vpop.f32.mrf.mxu0
    %v5712 = vadd.f32 %v5645, %v5711
    %v5713 = vand.u32 %v4990, 4294901760
    %v5714 = vsub.f32 %v4990, %v5713
    %5715 = vmatmul.f32.gmra.mxu0 %v5714
    %v5716 = vpop.f32.mrf.mxu0
    %v5717 = vadd.f32 %v5649, %v5716
    %v5718 = vand.u32 %v4993, 4294901760
    %v5719 = vsub.f32 %v4993, %v5718
    %5720 = vmatmul.f32.gmra.mxu0 %v5719
    %v5721 = vpop.f32.mrf.mxu0
    %v5722 = vadd.f32 %v5653, %v5721
    %5723 = vdwg.mxu0
    %v5724 = vand.u32 %v5026, 4294901760
    %5725 = vmatpush.msra.mxu0 %v5724
    %v5726 = vand.u32 %v5025, 4294901760
    %5727 = vmatpush.msra.mxu0 %v5726
    %v5728 = vand.u32 %v5024, 4294901760
    %5729 = vmatpush.msra.mxu0 %v5728
    %v5730 = vand.u32 %v5023, 4294901760
    %5731 = vmatpush.msra.mxu0 %v5730
    %v5732 = vand.u32 %v5022, 4294901760
    %5733 = vmatpush.msra.mxu0 %v5732
    %v5734 = vand.u32 %v5021, 4294901760
    %5735 = vmatpush.msra.mxu0 %v5734
    %v5736 = vand.u32 %v5020, 4294901760
    %5737 = vmatpush.msra.mxu0 %v5736
    %v5738 = vand.u32 %v5019, 4294901760
    %5739 = vmatpush.msra.mxu0 %v5738
    %v5740 = vand.u32 %v5018, 4294901760
    %5741 = vmatpush.msra.mxu0 %v5740
    %v5742 = vand.u32 %v5017, 4294901760
    %5743 = vmatpush.msra.mxu0 %v5742
    %v5744 = vand.u32 %v5016, 4294901760
    %5745 = vmatpush.msra.mxu0 %v5744
    %v5746 = vand.u32 %v5015, 4294901760
    %5747 = vmatpush.msra.mxu0 %v5746
    %v5748 = vand.u32 %v5014, 4294901760
    %5749 = vmatpush.msra.mxu0 %v5748
    %v5750 = vand.u32 %v5013, 4294901760
    %5751 = vmatpush.msra.mxu0 %v5750
    %v5752 = vand.u32 %v5012, 4294901760
    %5753 = vmatpush.msra.mxu0 %v5752
    %v5754 = vand.u32 %v5011, 4294901760
    %5755 = vmatpush.msra.mxu0 %v5754
    %v5756 = vand.u32 %v4984, 4294901760
    %v5757 = vsub.f32 %v4984, %v5756
    %v5758 = vand.u32 %v5757, 4294901760
    %5759 = vmatmul.f32.gmra.mxu0 %v5758
    %v5760 = vpop.f32.mrf.mxu0
    %v5761 = vadd.f32 %v5707, %v5760
    %v5762 = vand.u32 %v4987, 4294901760
    %v5763 = vsub.f32 %v4987, %v5762
    %v5764 = vand.u32 %v5763, 4294901760
    %5765 = vmatmul.f32.gmra.mxu0 %v5764
    %v5766 = vpop.f32.mrf.mxu0
    %v5767 = vadd.f32 %v5712, %v5766
    %v5768 = vand.u32 %v4990, 4294901760
    %v5769 = vsub.f32 %v4990, %v5768
    %v5770 = vand.u32 %v5769, 4294901760
    %5771 = vmatmul.f32.gmra.mxu0 %v5770
    %v5772 = vpop.f32.mrf.mxu0
    %v5773 = vadd.f32 %v5717, %v5772
    %v5774 = vand.u32 %v4993, 4294901760
    %v5775 = vsub.f32 %v4993, %v5774
    %v5776 = vand.u32 %v5775, 4294901760
    %5777 = vmatmul.f32.gmra.mxu0 %v5776
    %v5778 = vpop.f32.mrf.mxu0
    %v5779 = vadd.f32 %v5722, %v5778
    %5780 = vdwg.mxu0
    %v5781 = vand.u32 %v5026, 4294901760
    %v5782 = vsub.f32 %v5026, %v5781
    %v5783 = vand.u32 %v5782, 4294901760
    %5784 = vmatpush.msra.mxu0 %v5783
    %v5785 = vand.u32 %v5025, 4294901760
    %v5786 = vsub.f32 %v5025, %v5785
    %v5787 = vand.u32 %v5786, 4294901760
    %5788 = vmatpush.msra.mxu0 %v5787
    %v5789 = vand.u32 %v5024, 4294901760
    %v5790 = vsub.f32 %v5024, %v5789
    %v5791 = vand.u32 %v5790, 4294901760
    %5792 = vmatpush.msra.mxu0 %v5791
    %v5793 = vand.u32 %v5023, 4294901760
    %v5794 = vsub.f32 %v5023, %v5793
    %v5795 = vand.u32 %v5794, 4294901760
    %5796 = vmatpush.msra.mxu0 %v5795
    %v5797 = vand.u32 %v5022, 4294901760
    %v5798 = vsub.f32 %v5022, %v5797
    %v5799 = vand.u32 %v5798, 4294901760
    %5800 = vmatpush.msra.mxu0 %v5799
    %v5801 = vand.u32 %v5021, 4294901760
    %v5802 = vsub.f32 %v5021, %v5801
    %v5803 = vand.u32 %v5802, 4294901760
    %5804 = vmatpush.msra.mxu0 %v5803
    %v5805 = vand.u32 %v5020, 4294901760
    %v5806 = vsub.f32 %v5020, %v5805
    %v5807 = vand.u32 %v5806, 4294901760
    %5808 = vmatpush.msra.mxu0 %v5807
    %v5809 = vand.u32 %v5019, 4294901760
    %v5810 = vsub.f32 %v5019, %v5809
    %v5811 = vand.u32 %v5810, 4294901760
    %5812 = vmatpush.msra.mxu0 %v5811
    %v5813 = vand.u32 %v5018, 4294901760
    %v5814 = vsub.f32 %v5018, %v5813
    %v5815 = vand.u32 %v5814, 4294901760
    %5816 = vmatpush.msra.mxu0 %v5815
    %v5817 = vand.u32 %v5017, 4294901760
    %v5818 = vsub.f32 %v5017, %v5817
    %v5819 = vand.u32 %v5818, 4294901760
    %5820 = vmatpush.msra.mxu0 %v5819
    %v5821 = vand.u32 %v5016, 4294901760
    %v5822 = vsub.f32 %v5016, %v5821
    %v5823 = vand.u32 %v5822, 4294901760
    %5824 = vmatpush.msra.mxu0 %v5823
    %v5825 = vand.u32 %v5015, 4294901760
    %v5826 = vsub.f32 %v5015, %v5825
    %v5827 = vand.u32 %v5826, 4294901760
    %5828 = vmatpush.msra.mxu0 %v5827
    %v5829 = vand.u32 %v5014, 4294901760
    %v5830 = vsub.f32 %v5014, %v5829
    %v5831 = vand.u32 %v5830, 4294901760
    %5832 = vmatpush.msra.mxu0 %v5831
    %v5833 = vand.u32 %v5013, 4294901760
    %v5834 = vsub.f32 %v5013, %v5833
    %v5835 = vand.u32 %v5834, 4294901760
    %5836 = vmatpush.msra.mxu0 %v5835
    %v5837 = vand.u32 %v5012, 4294901760
    %v5838 = vsub.f32 %v5012, %v5837
    %v5839 = vand.u32 %v5838, 4294901760
    %5840 = vmatpush.msra.mxu0 %v5839
    %v5841 = vand.u32 %v5011, 4294901760
    %v5842 = vsub.f32 %v5011, %v5841
    %v5843 = vand.u32 %v5842, 4294901760
    %5844 = vmatpush.msra.mxu0 %v5843
    %v5845 = vand.u32 %v4984, 4294901760
    %5846 = vmatmul.f32.gmra.mxu0 %v5845
    %v5847 = vpop.f32.mrf.mxu0
    %v5848 = vadd.f32 %v5761, %v5847
    %v5849 = vand.u32 %v4987, 4294901760
    %5850 = vmatmul.f32.gmra.mxu0 %v5849
    %v5851 = vpop.f32.mrf.mxu0
    %v5852 = vadd.f32 %v5767, %v5851
    %v5853 = vand.u32 %v4990, 4294901760
    %5854 = vmatmul.f32.gmra.mxu0 %v5853
    %v5855 = vpop.f32.mrf.mxu0
    %v5856 = vadd.f32 %v5773, %v5855
    %v5857 = vand.u32 %v4993, 4294901760
    %5858 = vmatmul.f32.gmra.mxu0 %v5857
    %v5859 = vpop.f32.mrf.mxu0
    %v5860 = vadd.f32 %v5779, %v5859
    %5861 = vdwg.mxu0
    %v5862 = vand.u32 %v5026, 4294901760
    %5863 = vmatpush.msra.mxu0 %v5862
    %v5864 = vand.u32 %v5025, 4294901760
    %5865 = vmatpush.msra.mxu0 %v5864
    %v5866 = vand.u32 %v5024, 4294901760
    %5867 = vmatpush.msra.mxu0 %v5866
    %v5868 = vand.u32 %v5023, 4294901760
    %5869 = vmatpush.msra.mxu0 %v5868
    %v5870 = vand.u32 %v5022, 4294901760
    %5871 = vmatpush.msra.mxu0 %v5870
    %v5872 = vand.u32 %v5021, 4294901760
    %5873 = vmatpush.msra.mxu0 %v5872
    %v5874 = vand.u32 %v5020, 4294901760
    %5875 = vmatpush.msra.mxu0 %v5874
    %v5876 = vand.u32 %v5019, 4294901760
    %5877 = vmatpush.msra.mxu0 %v5876
    %v5878 = vand.u32 %v5018, 4294901760
    %5879 = vmatpush.msra.mxu0 %v5878
    %v5880 = vand.u32 %v5017, 4294901760
    %5881 = vmatpush.msra.mxu0 %v5880
    %v5882 = vand.u32 %v5016, 4294901760
    %5883 = vmatpush.msra.mxu0 %v5882
    %v5884 = vand.u32 %v5015, 4294901760
    %5885 = vmatpush.msra.mxu0 %v5884
    %v5886 = vand.u32 %v5014, 4294901760
    %5887 = vmatpush.msra.mxu0 %v5886
    %v5888 = vand.u32 %v5013, 4294901760
    %5889 = vmatpush.msra.mxu0 %v5888
    %v5890 = vand.u32 %v5012, 4294901760
    %5891 = vmatpush.msra.mxu0 %v5890
    %v5892 = vand.u32 %v5011, 4294901760
    %5893 = vmatpush.msra.mxu0 %v5892
    %v5894 = vand.u32 %v4984, 4294901760
    %5895 = vmatmul.f32.gmra.mxu0 %v5894
    %v5896 = vpop.f32.mrf.mxu0
    %v5897 = vadd.f32 %v5848, %v5896
    %v5898 = vand.u32 %v4987, 4294901760
    %5899 = vmatmul.f32.gmra.mxu0 %v5898
    %v5900 = vpop.f32.mrf.mxu0
    %v5901 = vadd.f32 %v5852, %v5900
    %v5902 = vand.u32 %v4990, 4294901760
    %5903 = vmatmul.f32.gmra.mxu0 %v5902
    %v5904 = vpop.f32.mrf.mxu0
    %v5905 = vadd.f32 %v5856, %v5904
    %v5906 = vand.u32 %v4993, 4294901760
    %5907 = vmatmul.f32.gmra.mxu0 %v5906
    %v5908 = vpop.f32.mrf.mxu0
    %v5909 = vadd.f32 %v5860, %v5908
    %5910 = vdwg.mxu0
    %v5911 = vand.u32 %v5042, 4294901760
    %5912 = vmatpush.msra.mxu0 %v5911
    %v5913 = vand.u32 %v5041, 4294901760
    %5914 = vmatpush.msra.mxu0 %v5913
    %v5915 = vand.u32 %v5040, 4294901760
    %5916 = vmatpush.msra.mxu0 %v5915
    %v5917 = vand.u32 %v5039, 4294901760
    %5918 = vmatpush.msra.mxu0 %v5917
    %v5919 = vand.u32 %v5038, 4294901760
    %5920 = vmatpush.msra.mxu0 %v5919
    %v5921 = vand.u32 %v5037, 4294901760
    %5922 = vmatpush.msra.mxu0 %v5921
    %v5923 = vand.u32 %v5036, 4294901760
    %5924 = vmatpush.msra.mxu0 %v5923
    %v5925 = vand.u32 %v5035, 4294901760
    %5926 = vmatpush.msra.mxu0 %v5925
    %v5927 = vand.u32 %v5034, 4294901760
    %5928 = vmatpush.msra.mxu0 %v5927
    %v5929 = vand.u32 %v5033, 4294901760
    %5930 = vmatpush.msra.mxu0 %v5929
    %v5931 = vand.u32 %v5032, 4294901760
    %5932 = vmatpush.msra.mxu0 %v5931
    %v5933 = vand.u32 %v5031, 4294901760
    %5934 = vmatpush.msra.mxu0 %v5933
    %v5935 = vand.u32 %v5030, 4294901760
    %5936 = vmatpush.msra.mxu0 %v5935
    %v5937 = vand.u32 %v5029, 4294901760
    %5938 = vmatpush.msra.mxu0 %v5937
    %v5939 = vand.u32 %v5028, 4294901760
    %5940 = vmatpush.msra.mxu0 %v5939
    %v5941 = vand.u32 %v5027, 4294901760
    %5942 = vmatpush.msra.mxu0 %v5941
    %v5943 = vand.u32 %v4985, 4294901760
    %v5944 = vsub.f32 %v4985, %v5943
    %v5945 = vand.u32 %v5944, 4294901760
    %v5946 = vsub.f32 %v5944, %v5945
    %v5947 = vand.u32 %v5946, 4294901760
    %5948 = vmatmul.f32.gmra.mxu0 %v5947
    %v5949 = vpop.f32.mrf.mxu0
    %v5950 = vadd.f32 %v5897, %v5949
    %v5951 = vand.u32 %v4988, 4294901760
    %v5952 = vsub.f32 %v4988, %v5951
    %v5953 = vand.u32 %v5952, 4294901760
    %v5954 = vsub.f32 %v5952, %v5953
    %v5955 = vand.u32 %v5954, 4294901760
    %5956 = vmatmul.f32.gmra.mxu0 %v5955
    %v5957 = vpop.f32.mrf.mxu0
    %v5958 = vadd.f32 %v5901, %v5957
    %v5959 = vand.u32 %v4991, 4294901760
    %v5960 = vsub.f32 %v4991, %v5959
    %v5961 = vand.u32 %v5960, 4294901760
    %v5962 = vsub.f32 %v5960, %v5961
    %v5963 = vand.u32 %v5962, 4294901760
    %5964 = vmatmul.f32.gmra.mxu0 %v5963
    %v5965 = vpop.f32.mrf.mxu0
    %v5966 = vadd.f32 %v5905, %v5965
    %v5967 = vand.u32 %v4994, 4294901760
    %v5968 = vsub.f32 %v4994, %v5967
    %v5969 = vand.u32 %v5968, 4294901760
    %v5970 = vsub.f32 %v5968, %v5969
    %v5971 = vand.u32 %v5970, 4294901760
    %5972 = vmatmul.f32.gmra.mxu0 %v5971
    %v5973 = vpop.f32.mrf.mxu0
    %v5974 = vadd.f32 %v5909, %v5973
    %5975 = vdwg.mxu0
    %v5976 = vand.u32 %v5042, 4294901760
    %v5977 = vsub.f32 %v5042, %v5976
    %v5978 = vand.u32 %v5977, 4294901760
    %v5979 = vsub.f32 %v5977, %v5978
    %v5980 = vand.u32 %v5979, 4294901760
    %5981 = vmatpush.msra.mxu0 %v5980
    %v5982 = vand.u32 %v5041, 4294901760
    %v5983 = vsub.f32 %v5041, %v5982
    %v5984 = vand.u32 %v5983, 4294901760
    %v5985 = vsub.f32 %v5983, %v5984
    %v5986 = vand.u32 %v5985, 4294901760
    %5987 = vmatpush.msra.mxu0 %v5986
    %v5988 = vand.u32 %v5040, 4294901760
    %v5989 = vsub.f32 %v5040, %v5988
    %v5990 = vand.u32 %v5989, 4294901760
    %v5991 = vsub.f32 %v5989, %v5990
    %v5992 = vand.u32 %v5991, 4294901760
    %5993 = vmatpush.msra.mxu0 %v5992
    %v5994 = vand.u32 %v5039, 4294901760
    %v5995 = vsub.f32 %v5039, %v5994
    %v5996 = vand.u32 %v5995, 4294901760
    %v5997 = vsub.f32 %v5995, %v5996
    %v5998 = vand.u32 %v5997, 4294901760
    %5999 = vmatpush.msra.mxu0 %v5998
    %v6000 = vand.u32 %v5038, 4294901760
    %v6001 = vsub.f32 %v5038, %v6000
    %v6002 = vand.u32 %v6001, 4294901760
    %v6003 = vsub.f32 %v6001, %v6002
    %v6004 = vand.u32 %v6003, 4294901760
    %6005 = vmatpush.msra.mxu0 %v6004
    %v6006 = vand.u32 %v5037, 4294901760
    %v6007 = vsub.f32 %v5037, %v6006
    %v6008 = vand.u32 %v6007, 4294901760
    %v6009 = vsub.f32 %v6007, %v6008
    %v6010 = vand.u32 %v6009, 4294901760
    %6011 = vmatpush.msra.mxu0 %v6010
    %v6012 = vand.u32 %v5036, 4294901760
    %v6013 = vsub.f32 %v5036, %v6012
    %v6014 = vand.u32 %v6013, 4294901760
    %v6015 = vsub.f32 %v6013, %v6014
    %v6016 = vand.u32 %v6015, 4294901760
    %6017 = vmatpush.msra.mxu0 %v6016
    %v6018 = vand.u32 %v5035, 4294901760
    %v6019 = vsub.f32 %v5035, %v6018
    %v6020 = vand.u32 %v6019, 4294901760
    %v6021 = vsub.f32 %v6019, %v6020
    %v6022 = vand.u32 %v6021, 4294901760
    %6023 = vmatpush.msra.mxu0 %v6022
    %v6024 = vand.u32 %v5034, 4294901760
    %v6025 = vsub.f32 %v5034, %v6024
    %v6026 = vand.u32 %v6025, 4294901760
    %v6027 = vsub.f32 %v6025, %v6026
    %v6028 = vand.u32 %v6027, 4294901760
    %6029 = vmatpush.msra.mxu0 %v6028
    %v6030 = vand.u32 %v5033, 4294901760
    %v6031 = vsub.f32 %v5033, %v6030
    %v6032 = vand.u32 %v6031, 4294901760
    %v6033 = vsub.f32 %v6031, %v6032
    %v6034 = vand.u32 %v6033, 4294901760
    %6035 = vmatpush.msra.mxu0 %v6034
    %v6036 = vand.u32 %v5032, 4294901760
    %v6037 = vsub.f32 %v5032, %v6036
    %v6038 = vand.u32 %v6037, 4294901760
    %v6039 = vsub.f32 %v6037, %v6038
    %v6040 = vand.u32 %v6039, 4294901760
    %6041 = vmatpush.msra.mxu0 %v6040
    %v6042 = vand.u32 %v5031, 4294901760
    %v6043 = vsub.f32 %v5031, %v6042
    %v6044 = vand.u32 %v6043, 4294901760
    %v6045 = vsub.f32 %v6043, %v6044
    %v6046 = vand.u32 %v6045, 4294901760
    %6047 = vmatpush.msra.mxu0 %v6046
    %v6048 = vand.u32 %v5030, 4294901760
    %v6049 = vsub.f32 %v5030, %v6048
    %v6050 = vand.u32 %v6049, 4294901760
    %v6051 = vsub.f32 %v6049, %v6050
    %v6052 = vand.u32 %v6051, 4294901760
    %6053 = vmatpush.msra.mxu0 %v6052
    %v6054 = vand.u32 %v5029, 4294901760
    %v6055 = vsub.f32 %v5029, %v6054
    %v6056 = vand.u32 %v6055, 4294901760
    %v6057 = vsub.f32 %v6055, %v6056
    %v6058 = vand.u32 %v6057, 4294901760
    %6059 = vmatpush.msra.mxu0 %v6058
    %v6060 = vand.u32 %v5028, 4294901760
    %v6061 = vsub.f32 %v5028, %v6060
    %v6062 = vand.u32 %v6061, 4294901760
    %v6063 = vsub.f32 %v6061, %v6062
    %v6064 = vand.u32 %v6063, 4294901760
    %6065 = vmatpush.msra.mxu0 %v6064
    %v6066 = vand.u32 %v5027, 4294901760
    %v6067 = vsub.f32 %v5027, %v6066
    %v6068 = vand.u32 %v6067, 4294901760
    %v6069 = vsub.f32 %v6067, %v6068
    %v6070 = vand.u32 %v6069, 4294901760
    %6071 = vmatpush.msra.mxu0 %v6070
    %v6072 = vand.u32 %v4985, 4294901760
    %6073 = vmatmul.f32.gmra.mxu0 %v6072
    %v6074 = vpop.f32.mrf.mxu0
    %v6075 = vadd.f32 %v5950, %v6074
    %v6076 = vand.u32 %v4988, 4294901760
    %6077 = vmatmul.f32.gmra.mxu0 %v6076
    %v6078 = vpop.f32.mrf.mxu0
    %v6079 = vadd.f32 %v5958, %v6078
    %v6080 = vand.u32 %v4991, 4294901760
    %6081 = vmatmul.f32.gmra.mxu0 %v6080
    %v6082 = vpop.f32.mrf.mxu0
    %v6083 = vadd.f32 %v5966, %v6082
    %v6084 = vand.u32 %v4994, 4294901760
    %6085 = vmatmul.f32.gmra.mxu0 %v6084
    %v6086 = vpop.f32.mrf.mxu0
    %v6087 = vadd.f32 %v5974, %v6086
    %6088 = vdwg.mxu0
    %v6089 = vand.u32 %v5042, 4294901760
    %v6090 = vsub.f32 %v5042, %v6089
    %6091 = vmatpush.msra.mxu0 %v6090
    %v6092 = vand.u32 %v5041, 4294901760
    %v6093 = vsub.f32 %v5041, %v6092
    %6094 = vmatpush.msra.mxu0 %v6093
    %v6095 = vand.u32 %v5040, 4294901760
    %v6096 = vsub.f32 %v5040, %v6095
    %6097 = vmatpush.msra.mxu0 %v6096
    %v6098 = vand.u32 %v5039, 4294901760
    %v6099 = vsub.f32 %v5039, %v6098
    %6100 = vmatpush.msra.mxu0 %v6099
    %v6101 = vand.u32 %v5038, 4294901760
    %v6102 = vsub.f32 %v5038, %v6101
    %6103 = vmatpush.msra.mxu0 %v6102
    %v6104 = vand.u32 %v5037, 4294901760
    %v6105 = vsub.f32 %v5037, %v6104
    %6106 = vmatpush.msra.mxu0 %v6105
    %v6107 = vand.u32 %v5036, 4294901760
    %v6108 = vsub.f32 %v5036, %v6107
    %6109 = vmatpush.msra.mxu0 %v6108
    %v6110 = vand.u32 %v5035, 4294901760
    %v6111 = vsub.f32 %v5035, %v6110
    %6112 = vmatpush.msra.mxu0 %v6111
    %v6113 = vand.u32 %v5034, 4294901760
    %v6114 = vsub.f32 %v5034, %v6113
    %6115 = vmatpush.msra.mxu0 %v6114
    %v6116 = vand.u32 %v5033, 4294901760
    %v6117 = vsub.f32 %v5033, %v6116
    %6118 = vmatpush.msra.mxu0 %v6117
    %v6119 = vand.u32 %v5032, 4294901760
    %v6120 = vsub.f32 %v5032, %v6119
    %6121 = vmatpush.msra.mxu0 %v6120
    %v6122 = vand.u32 %v5031, 4294901760
    %v6123 = vsub.f32 %v5031, %v6122
    %6124 = vmatpush.msra.mxu0 %v6123
    %v6125 = vand.u32 %v5030, 4294901760
    %v6126 = vsub.f32 %v5030, %v6125
    %6127 = vmatpush.msra.mxu0 %v6126
    %v6128 = vand.u32 %v5029, 4294901760
    %v6129 = vsub.f32 %v5029, %v6128
    %6130 = vmatpush.msra.mxu0 %v6129
    %v6131 = vand.u32 %v5028, 4294901760
    %v6132 = vsub.f32 %v5028, %v6131
    %6133 = vmatpush.msra.mxu0 %v6132
    %v6134 = vand.u32 %v5027, 4294901760
    %v6135 = vsub.f32 %v5027, %v6134
    %6136 = vmatpush.msra.mxu0 %v6135
    %v6137 = vand.u32 %v4985, 4294901760
    %v6138 = vsub.f32 %v4985, %v6137
    %6139 = vmatmul.f32.gmra.mxu0 %v6138
    %v6140 = vpop.f32.mrf.mxu0
    %v6141 = vadd.f32 %v6075, %v6140
    %v6142 = vand.u32 %v4988, 4294901760
    %v6143 = vsub.f32 %v4988, %v6142
    %6144 = vmatmul.f32.gmra.mxu0 %v6143
    %v6145 = vpop.f32.mrf.mxu0
    %v6146 = vadd.f32 %v6079, %v6145
    %v6147 = vand.u32 %v4991, 4294901760
    %v6148 = vsub.f32 %v4991, %v6147
    %6149 = vmatmul.f32.gmra.mxu0 %v6148
    %v6150 = vpop.f32.mrf.mxu0
    %v6151 = vadd.f32 %v6083, %v6150
    %v6152 = vand.u32 %v4994, 4294901760
    %v6153 = vsub.f32 %v4994, %v6152
    %6154 = vmatmul.f32.gmra.mxu0 %v6153
    %v6155 = vpop.f32.mrf.mxu0
    %v6156 = vadd.f32 %v6087, %v6155
    %6157 = vdwg.mxu0
    %v6158 = vand.u32 %v5042, 4294901760
    %6159 = vmatpush.msra.mxu0 %v6158
    %v6160 = vand.u32 %v5041, 4294901760
    %6161 = vmatpush.msra.mxu0 %v6160
    %v6162 = vand.u32 %v5040, 4294901760
    %6163 = vmatpush.msra.mxu0 %v6162
    %v6164 = vand.u32 %v5039, 4294901760
    %6165 = vmatpush.msra.mxu0 %v6164
    %v6166 = vand.u32 %v5038, 4294901760
    %6167 = vmatpush.msra.mxu0 %v6166
    %v6168 = vand.u32 %v5037, 4294901760
    %6169 = vmatpush.msra.mxu0 %v6168
    %v6170 = vand.u32 %v5036, 4294901760
    %6171 = vmatpush.msra.mxu0 %v6170
    %v6172 = vand.u32 %v5035, 4294901760
    %6173 = vmatpush.msra.mxu0 %v6172
    %v6174 = vand.u32 %v5034, 4294901760
    %6175 = vmatpush.msra.mxu0 %v6174
    %v6176 = vand.u32 %v5033, 4294901760
    %6177 = vmatpush.msra.mxu0 %v6176
    %v6178 = vand.u32 %v5032, 4294901760
    %6179 = vmatpush.msra.mxu0 %v6178
    %v6180 = vand.u32 %v5031, 4294901760
    %6181 = vmatpush.msra.mxu0 %v6180
    %v6182 = vand.u32 %v5030, 4294901760
    %6183 = vmatpush.msra.mxu0 %v6182
    %v6184 = vand.u32 %v5029, 4294901760
    %6185 = vmatpush.msra.mxu0 %v6184
    %v6186 = vand.u32 %v5028, 4294901760
    %6187 = vmatpush.msra.mxu0 %v6186
    %v6188 = vand.u32 %v5027, 4294901760
    %6189 = vmatpush.msra.mxu0 %v6188
    %v6190 = vand.u32 %v4985, 4294901760
    %v6191 = vsub.f32 %v4985, %v6190
    %v6192 = vand.u32 %v6191, 4294901760
    %6193 = vmatmul.f32.gmra.mxu0 %v6192
    %v6194 = vpop.f32.mrf.mxu0
    %v6195 = vadd.f32 %v6141, %v6194
    %v6196 = vand.u32 %v4988, 4294901760
    %v6197 = vsub.f32 %v4988, %v6196
    %v6198 = vand.u32 %v6197, 4294901760
    %6199 = vmatmul.f32.gmra.mxu0 %v6198
    %v6200 = vpop.f32.mrf.mxu0
    %v6201 = vadd.f32 %v6146, %v6200
    %v6202 = vand.u32 %v4991, 4294901760
    %v6203 = vsub.f32 %v4991, %v6202
    %v6204 = vand.u32 %v6203, 4294901760
    %6205 = vmatmul.f32.gmra.mxu0 %v6204
    %v6206 = vpop.f32.mrf.mxu0
    %v6207 = vadd.f32 %v6151, %v6206
    %v6208 = vand.u32 %v4994, 4294901760
    %v6209 = vsub.f32 %v4994, %v6208
    %v6210 = vand.u32 %v6209, 4294901760
    %6211 = vmatmul.f32.gmra.mxu0 %v6210
    %v6212 = vpop.f32.mrf.mxu0
    %v6213 = vadd.f32 %v6156, %v6212
    %6214 = vdwg.mxu0
    %v6215 = vand.u32 %v5042, 4294901760
    %v6216 = vsub.f32 %v5042, %v6215
    %v6217 = vand.u32 %v6216, 4294901760
    %6218 = vmatpush.msra.mxu0 %v6217
    %v6219 = vand.u32 %v5041, 4294901760
    %v6220 = vsub.f32 %v5041, %v6219
    %v6221 = vand.u32 %v6220, 4294901760
    %6222 = vmatpush.msra.mxu0 %v6221
    %v6223 = vand.u32 %v5040, 4294901760
    %v6224 = vsub.f32 %v5040, %v6223
    %v6225 = vand.u32 %v6224, 4294901760
    %6226 = vmatpush.msra.mxu0 %v6225
    %v6227 = vand.u32 %v5039, 4294901760
    %v6228 = vsub.f32 %v5039, %v6227
    %v6229 = vand.u32 %v6228, 4294901760
    %6230 = vmatpush.msra.mxu0 %v6229
    %v6231 = vand.u32 %v5038, 4294901760
    %v6232 = vsub.f32 %v5038, %v6231
    %v6233 = vand.u32 %v6232, 4294901760
    %6234 = vmatpush.msra.mxu0 %v6233
    %v6235 = vand.u32 %v5037, 4294901760
    %v6236 = vsub.f32 %v5037, %v6235
    %v6237 = vand.u32 %v6236, 4294901760
    %6238 = vmatpush.msra.mxu0 %v6237
    %v6239 = vand.u32 %v5036, 4294901760
    %v6240 = vsub.f32 %v5036, %v6239
    %v6241 = vand.u32 %v6240, 4294901760
    %6242 = vmatpush.msra.mxu0 %v6241
    %v6243 = vand.u32 %v5035, 4294901760
    %v6244 = vsub.f32 %v5035, %v6243
    %v6245 = vand.u32 %v6244, 4294901760
    %6246 = vmatpush.msra.mxu0 %v6245
    %v6247 = vand.u32 %v5034, 4294901760
    %v6248 = vsub.f32 %v5034, %v6247
    %v6249 = vand.u32 %v6248, 4294901760
    %6250 = vmatpush.msra.mxu0 %v6249
    %v6251 = vand.u32 %v5033, 4294901760
    %v6252 = vsub.f32 %v5033, %v6251
    %v6253 = vand.u32 %v6252, 4294901760
    %6254 = vmatpush.msra.mxu0 %v6253
    %v6255 = vand.u32 %v5032, 4294901760
    %v6256 = vsub.f32 %v5032, %v6255
    %v6257 = vand.u32 %v6256, 4294901760
    %6258 = vmatpush.msra.mxu0 %v6257
    %v6259 = vand.u32 %v5031, 4294901760
    %v6260 = vsub.f32 %v5031, %v6259
    %v6261 = vand.u32 %v6260, 4294901760
    %6262 = vmatpush.msra.mxu0 %v6261
    %v6263 = vand.u32 %v5030, 4294901760
    %v6264 = vsub.f32 %v5030, %v6263
    %v6265 = vand.u32 %v6264, 4294901760
    %6266 = vmatpush.msra.mxu0 %v6265
    %v6267 = vand.u32 %v5029, 4294901760
    %v6268 = vsub.f32 %v5029, %v6267
    %v6269 = vand.u32 %v6268, 4294901760
    %6270 = vmatpush.msra.mxu0 %v6269
    %v6271 = vand.u32 %v5028, 4294901760
    %v6272 = vsub.f32 %v5028, %v6271
    %v6273 = vand.u32 %v6272, 4294901760
    %6274 = vmatpush.msra.mxu0 %v6273
    %v6275 = vand.u32 %v5027, 4294901760
    %v6276 = vsub.f32 %v5027, %v6275
    %v6277 = vand.u32 %v6276, 4294901760
    %6278 = vmatpush.msra.mxu0 %v6277
    %v6279 = vand.u32 %v4985, 4294901760
    %6280 = vmatmul.f32.gmra.mxu0 %v6279
    %v6281 = vpop.f32.mrf.mxu0
    %v6282 = vadd.f32 %v6195, %v6281
    %v6283 = vand.u32 %v4988, 4294901760
    %6284 = vmatmul.f32.gmra.mxu0 %v6283
    %v6285 = vpop.f32.mrf.mxu0
    %v6286 = vadd.f32 %v6201, %v6285
    %v6287 = vand.u32 %v4991, 4294901760
    %6288 = vmatmul.f32.gmra.mxu0 %v6287
    %v6289 = vpop.f32.mrf.mxu0
    %v6290 = vadd.f32 %v6207, %v6289
    %v6291 = vand.u32 %v4994, 4294901760
    %6292 = vmatmul.f32.gmra.mxu0 %v6291
    %v6293 = vpop.f32.mrf.mxu0
    %v6294 = vadd.f32 %v6213, %v6293
    %6295 = vdwg.mxu0
    %v6296 = vand.u32 %v5042, 4294901760
    %6297 = vmatpush.msra.mxu0 %v6296
    %v6298 = vand.u32 %v5041, 4294901760
    %6299 = vmatpush.msra.mxu0 %v6298
    %v6300 = vand.u32 %v5040, 4294901760
    %6301 = vmatpush.msra.mxu0 %v6300
    %v6302 = vand.u32 %v5039, 4294901760
    %6303 = vmatpush.msra.mxu0 %v6302
    %v6304 = vand.u32 %v5038, 4294901760
    %6305 = vmatpush.msra.mxu0 %v6304
    %v6306 = vand.u32 %v5037, 4294901760
    %6307 = vmatpush.msra.mxu0 %v6306
    %v6308 = vand.u32 %v5036, 4294901760
    %6309 = vmatpush.msra.mxu0 %v6308
    %v6310 = vand.u32 %v5035, 4294901760
    %6311 = vmatpush.msra.mxu0 %v6310
    %v6312 = vand.u32 %v5034, 4294901760
    %6313 = vmatpush.msra.mxu0 %v6312
    %v6314 = vand.u32 %v5033, 4294901760
    %6315 = vmatpush.msra.mxu0 %v6314
    %v6316 = vand.u32 %v5032, 4294901760
    %6317 = vmatpush.msra.mxu0 %v6316
    %v6318 = vand.u32 %v5031, 4294901760
    %6319 = vmatpush.msra.mxu0 %v6318
    %v6320 = vand.u32 %v5030, 4294901760
    %6321 = vmatpush.msra.mxu0 %v6320
    %v6322 = vand.u32 %v5029, 4294901760
    %6323 = vmatpush.msra.mxu0 %v6322
    %v6324 = vand.u32 %v5028, 4294901760
    %6325 = vmatpush.msra.mxu0 %v6324
    %v6326 = vand.u32 %v5027, 4294901760
    %6327 = vmatpush.msra.mxu0 %v6326
    %v6328 = vand.u32 %v4985, 4294901760
    %6329 = vmatmul.f32.gmra.mxu0 %v6328
    %v6330 = vpop.f32.mrf.mxu0
    %v6331 = vadd.f32 %v6282, %v6330
    %v6332 = vand.u32 %v4988, 4294901760
    %6333 = vmatmul.f32.gmra.mxu0 %v6332
    %v6334 = vpop.f32.mrf.mxu0
    %v6335 = vadd.f32 %v6286, %v6334
    %v6336 = vand.u32 %v4991, 4294901760
    %6337 = vmatmul.f32.gmra.mxu0 %v6336
    %v6338 = vpop.f32.mrf.mxu0
    %v6339 = vadd.f32 %v6290, %v6338
    %v6340 = vand.u32 %v4994, 4294901760
    %6341 = vmatmul.f32.gmra.mxu0 %v6340
    %v6342 = vpop.f32.mrf.mxu0
    %v6343 = vadd.f32 %v6294, %v6342
    %6344 = vdwg.mxu0
    %v6345 = vmul.f32 %v108, %v6331
    %v6346 = vmul.f32 %v109, %v6335
    %v6347 = vmul.f32 %v110, %v6339
    %v6348 = vmul.f32 %v111, %v6343
    %6349 = vmatpush.msra.mxu0 0.0
    %6350 = vmatpush.msra.mxu0 0.0
    %6351 = vmatpush.msra.mxu0 0.0
    %6352 = vmatpush.msra.mxu0 0.0
    %6353 = vmatpush.msra.mxu0 0.0
    %6354 = vmatpush.msra.mxu0 0.0
    %6355 = vmatpush.msra.mxu0 0.0
    %6356 = vmatpush.msra.mxu0 0.0
    %6357 = vmatpush.msra.mxu0 0.0
    %6358 = vmatpush.msra.mxu0 0.0
    %6359 = vmatpush.msra.mxu0 0.0
    %6360 = vmatpush.msra.mxu0 0.0
    %v6361 = vand.u32 %v6348, 4294901760
    %6362 = vmatpush.msra.mxu0 %v6361
    %v6363 = vand.u32 %v6347, 4294901760
    %6364 = vmatpush.msra.mxu0 %v6363
    %v6365 = vand.u32 %v6346, 4294901760
    %6366 = vmatpush.msra.mxu0 %v6365
    %v6367 = vand.u32 %v6345, 4294901760
    %6368 = vmatpush.msra.mxu0 %v6367
    %v6369 = vand.u32 %v1472, 4294901760
    %v6370 = vsub.f32 %v1472, %v6369
    %v6371 = vand.u32 %v6370, 4294901760
    %v6372 = vsub.f32 %v6370, %v6371
    %v6373 = vand.u32 %v6372, 4294901760
    %6374 = vmatmul.f32.gmra.mxu0 %v6373
    %v6375 = vpop.f32.mrf.mxu0
    %v6376 = vadd.f32 0.0, %v6375
    %6377 = vdwg.mxu0
    %6378 = vmatpush.msra.mxu0 0.0
    %6379 = vmatpush.msra.mxu0 0.0
    %6380 = vmatpush.msra.mxu0 0.0
    %6381 = vmatpush.msra.mxu0 0.0
    %6382 = vmatpush.msra.mxu0 0.0
    %6383 = vmatpush.msra.mxu0 0.0
    %6384 = vmatpush.msra.mxu0 0.0
    %6385 = vmatpush.msra.mxu0 0.0
    %6386 = vmatpush.msra.mxu0 0.0
    %6387 = vmatpush.msra.mxu0 0.0
    %6388 = vmatpush.msra.mxu0 0.0
    %6389 = vmatpush.msra.mxu0 0.0
    %v6390 = vand.u32 %v6348, 4294901760
    %v6391 = vsub.f32 %v6348, %v6390
    %v6392 = vand.u32 %v6391, 4294901760
    %v6393 = vsub.f32 %v6391, %v6392
    %v6394 = vand.u32 %v6393, 4294901760
    %6395 = vmatpush.msra.mxu0 %v6394
    %v6396 = vand.u32 %v6347, 4294901760
    %v6397 = vsub.f32 %v6347, %v6396
    %v6398 = vand.u32 %v6397, 4294901760
    %v6399 = vsub.f32 %v6397, %v6398
    %v6400 = vand.u32 %v6399, 4294901760
    %6401 = vmatpush.msra.mxu0 %v6400
    %v6402 = vand.u32 %v6346, 4294901760
    %v6403 = vsub.f32 %v6346, %v6402
    %v6404 = vand.u32 %v6403, 4294901760
    %v6405 = vsub.f32 %v6403, %v6404
    %v6406 = vand.u32 %v6405, 4294901760
    %6407 = vmatpush.msra.mxu0 %v6406
    %v6408 = vand.u32 %v6345, 4294901760
    %v6409 = vsub.f32 %v6345, %v6408
    %v6410 = vand.u32 %v6409, 4294901760
    %v6411 = vsub.f32 %v6409, %v6410
    %v6412 = vand.u32 %v6411, 4294901760
    %6413 = vmatpush.msra.mxu0 %v6412
    %v6414 = vand.u32 %v1472, 4294901760
    %6415 = vmatmul.f32.gmra.mxu0 %v6414
    %v6416 = vpop.f32.mrf.mxu0
    %v6417 = vadd.f32 %v6376, %v6416
    %6418 = vdwg.mxu0
    %6419 = vmatpush.msra.mxu0 0.0
    %6420 = vmatpush.msra.mxu0 0.0
    %6421 = vmatpush.msra.mxu0 0.0
    %6422 = vmatpush.msra.mxu0 0.0
    %6423 = vmatpush.msra.mxu0 0.0
    %6424 = vmatpush.msra.mxu0 0.0
    %6425 = vmatpush.msra.mxu0 0.0
    %6426 = vmatpush.msra.mxu0 0.0
    %6427 = vmatpush.msra.mxu0 0.0
    %6428 = vmatpush.msra.mxu0 0.0
    %6429 = vmatpush.msra.mxu0 0.0
    %6430 = vmatpush.msra.mxu0 0.0
    %v6431 = vand.u32 %v6348, 4294901760
    %v6432 = vsub.f32 %v6348, %v6431
    %6433 = vmatpush.msra.mxu0 %v6432
    %v6434 = vand.u32 %v6347, 4294901760
    %v6435 = vsub.f32 %v6347, %v6434
    %6436 = vmatpush.msra.mxu0 %v6435
    %v6437 = vand.u32 %v6346, 4294901760
    %v6438 = vsub.f32 %v6346, %v6437
    %6439 = vmatpush.msra.mxu0 %v6438
    %v6440 = vand.u32 %v6345, 4294901760
    %v6441 = vsub.f32 %v6345, %v6440
    %6442 = vmatpush.msra.mxu0 %v6441
    %v6443 = vand.u32 %v1472, 4294901760
    %v6444 = vsub.f32 %v1472, %v6443
    %6445 = vmatmul.f32.gmra.mxu0 %v6444
    %v6446 = vpop.f32.mrf.mxu0
    %v6447 = vadd.f32 %v6417, %v6446
    %6448 = vdwg.mxu0
    %6449 = vmatpush.msra.mxu0 0.0
    %6450 = vmatpush.msra.mxu0 0.0
    %6451 = vmatpush.msra.mxu0 0.0
    %6452 = vmatpush.msra.mxu0 0.0
    %6453 = vmatpush.msra.mxu0 0.0
    %6454 = vmatpush.msra.mxu0 0.0
    %6455 = vmatpush.msra.mxu0 0.0
    %6456 = vmatpush.msra.mxu0 0.0
    %6457 = vmatpush.msra.mxu0 0.0
    %6458 = vmatpush.msra.mxu0 0.0
    %6459 = vmatpush.msra.mxu0 0.0
    %6460 = vmatpush.msra.mxu0 0.0
    %v6461 = vand.u32 %v6348, 4294901760
    %6462 = vmatpush.msra.mxu0 %v6461
    %v6463 = vand.u32 %v6347, 4294901760
    %6464 = vmatpush.msra.mxu0 %v6463
    %v6465 = vand.u32 %v6346, 4294901760
    %6466 = vmatpush.msra.mxu0 %v6465
    %v6467 = vand.u32 %v6345, 4294901760
    %6468 = vmatpush.msra.mxu0 %v6467
    %v6469 = vand.u32 %v1472, 4294901760
    %v6470 = vsub.f32 %v1472, %v6469
    %v6471 = vand.u32 %v6470, 4294901760
    %6472 = vmatmul.f32.gmra.mxu0 %v6471
    %v6473 = vpop.f32.mrf.mxu0
    %v6474 = vadd.f32 %v6447, %v6473
    %6475 = vdwg.mxu0
    %6476 = vmatpush.msra.mxu0 0.0
    %6477 = vmatpush.msra.mxu0 0.0
    %6478 = vmatpush.msra.mxu0 0.0
    %6479 = vmatpush.msra.mxu0 0.0
    %6480 = vmatpush.msra.mxu0 0.0
    %6481 = vmatpush.msra.mxu0 0.0
    %6482 = vmatpush.msra.mxu0 0.0
    %6483 = vmatpush.msra.mxu0 0.0
    %6484 = vmatpush.msra.mxu0 0.0
    %6485 = vmatpush.msra.mxu0 0.0
    %6486 = vmatpush.msra.mxu0 0.0
    %6487 = vmatpush.msra.mxu0 0.0
    %v6488 = vand.u32 %v6348, 4294901760
    %v6489 = vsub.f32 %v6348, %v6488
    %v6490 = vand.u32 %v6489, 4294901760
    %6491 = vmatpush.msra.mxu0 %v6490
    %v6492 = vand.u32 %v6347, 4294901760
    %v6493 = vsub.f32 %v6347, %v6492
    %v6494 = vand.u32 %v6493, 4294901760
    %6495 = vmatpush.msra.mxu0 %v6494
    %v6496 = vand.u32 %v6346, 4294901760
    %v6497 = vsub.f32 %v6346, %v6496
    %v6498 = vand.u32 %v6497, 4294901760
    %6499 = vmatpush.msra.mxu0 %v6498
    %v6500 = vand.u32 %v6345, 4294901760
    %v6501 = vsub.f32 %v6345, %v6500
    %v6502 = vand.u32 %v6501, 4294901760
    %6503 = vmatpush.msra.mxu0 %v6502
    %v6504 = vand.u32 %v1472, 4294901760
    %6505 = vmatmul.f32.gmra.mxu0 %v6504
    %v6506 = vpop.f32.mrf.mxu0
    %v6507 = vadd.f32 %v6474, %v6506
    %6508 = vdwg.mxu0
    %6509 = vmatpush.msra.mxu0 0.0
    %6510 = vmatpush.msra.mxu0 0.0
    %6511 = vmatpush.msra.mxu0 0.0
    %6512 = vmatpush.msra.mxu0 0.0
    %6513 = vmatpush.msra.mxu0 0.0
    %6514 = vmatpush.msra.mxu0 0.0
    %6515 = vmatpush.msra.mxu0 0.0
    %6516 = vmatpush.msra.mxu0 0.0
    %6517 = vmatpush.msra.mxu0 0.0
    %6518 = vmatpush.msra.mxu0 0.0
    %6519 = vmatpush.msra.mxu0 0.0
    %6520 = vmatpush.msra.mxu0 0.0
    %v6521 = vand.u32 %v6348, 4294901760
    %6522 = vmatpush.msra.mxu0 %v6521
    %v6523 = vand.u32 %v6347, 4294901760
    %6524 = vmatpush.msra.mxu0 %v6523
    %v6525 = vand.u32 %v6346, 4294901760
    %6526 = vmatpush.msra.mxu0 %v6525
    %v6527 = vand.u32 %v6345, 4294901760
    %6528 = vmatpush.msra.mxu0 %v6527
    %v6529 = vand.u32 %v1472, 4294901760
    %6530 = vmatmul.f32.gmra.mxu0 %v6529
    %v6531 = vpop.f32.mrf.mxu0
    %v6532 = vadd.f32 %v6507, %v6531
    %6533 = vdwg.mxu0
    %v6534 = vmul.f32 %v6532, 0.03125
    %v6535 = vperm.slane %v6534, 0
    %v6536 = vsub.f32 %v6345, %v6535
    %v6537 = vsub.f32 %v6346, %v6535
    %v6538 = vsub.f32 %v6347, %v6535
    %v6539 = vsub.f32 %v6348, %v6535
    %v6540 = vmul.f32 %v6536, %v6536
    %v6541 = vmul.f32 %v6537, %v6537
    %v6542 = vmul.f32 %v6538, %v6538
    %v6543 = vmul.f32 %v6539, %v6539
    %6544 = vmatpush.msra.mxu0 0.0
    %6545 = vmatpush.msra.mxu0 0.0
    %6546 = vmatpush.msra.mxu0 0.0
    %6547 = vmatpush.msra.mxu0 0.0
    %6548 = vmatpush.msra.mxu0 0.0
    %6549 = vmatpush.msra.mxu0 0.0
    %6550 = vmatpush.msra.mxu0 0.0
    %6551 = vmatpush.msra.mxu0 0.0
    %6552 = vmatpush.msra.mxu0 0.0
    %6553 = vmatpush.msra.mxu0 0.0
    %6554 = vmatpush.msra.mxu0 0.0
    %6555 = vmatpush.msra.mxu0 0.0
    %v6556 = vand.u32 %v6543, 4294901760
    %6557 = vmatpush.msra.mxu0 %v6556
    %v6558 = vand.u32 %v6542, 4294901760
    %6559 = vmatpush.msra.mxu0 %v6558
    %v6560 = vand.u32 %v6541, 4294901760
    %6561 = vmatpush.msra.mxu0 %v6560
    %v6562 = vand.u32 %v6540, 4294901760
    %6563 = vmatpush.msra.mxu0 %v6562
    %v6564 = vand.u32 %v1472, 4294901760
    %v6565 = vsub.f32 %v1472, %v6564
    %v6566 = vand.u32 %v6565, 4294901760
    %v6567 = vsub.f32 %v6565, %v6566
    %v6568 = vand.u32 %v6567, 4294901760
    %6569 = vmatmul.f32.gmra.mxu0 %v6568
    %v6570 = vpop.f32.mrf.mxu0
    %v6571 = vadd.f32 0.0, %v6570
    %6572 = vdwg.mxu0
    %6573 = vmatpush.msra.mxu0 0.0
    %6574 = vmatpush.msra.mxu0 0.0
    %6575 = vmatpush.msra.mxu0 0.0
    %6576 = vmatpush.msra.mxu0 0.0
    %6577 = vmatpush.msra.mxu0 0.0
    %6578 = vmatpush.msra.mxu0 0.0
    %6579 = vmatpush.msra.mxu0 0.0
    %6580 = vmatpush.msra.mxu0 0.0
    %6581 = vmatpush.msra.mxu0 0.0
    %6582 = vmatpush.msra.mxu0 0.0
    %6583 = vmatpush.msra.mxu0 0.0
    %6584 = vmatpush.msra.mxu0 0.0
    %v6585 = vand.u32 %v6543, 4294901760
    %v6586 = vsub.f32 %v6543, %v6585
    %v6587 = vand.u32 %v6586, 4294901760
    %v6588 = vsub.f32 %v6586, %v6587
    %v6589 = vand.u32 %v6588, 4294901760
    %6590 = vmatpush.msra.mxu0 %v6589
    %v6591 = vand.u32 %v6542, 4294901760
    %v6592 = vsub.f32 %v6542, %v6591
    %v6593 = vand.u32 %v6592, 4294901760
    %v6594 = vsub.f32 %v6592, %v6593
    %v6595 = vand.u32 %v6594, 4294901760
    %6596 = vmatpush.msra.mxu0 %v6595
    %v6597 = vand.u32 %v6541, 4294901760
    %v6598 = vsub.f32 %v6541, %v6597
    %v6599 = vand.u32 %v6598, 4294901760
    %v6600 = vsub.f32 %v6598, %v6599
    %v6601 = vand.u32 %v6600, 4294901760
    %6602 = vmatpush.msra.mxu0 %v6601
    %v6603 = vand.u32 %v6540, 4294901760
    %v6604 = vsub.f32 %v6540, %v6603
    %v6605 = vand.u32 %v6604, 4294901760
    %v6606 = vsub.f32 %v6604, %v6605
    %v6607 = vand.u32 %v6606, 4294901760
    %6608 = vmatpush.msra.mxu0 %v6607
    %v6609 = vand.u32 %v1472, 4294901760
    %6610 = vmatmul.f32.gmra.mxu0 %v6609
    %v6611 = vpop.f32.mrf.mxu0
    %v6612 = vadd.f32 %v6571, %v6611
    %6613 = vdwg.mxu0
    %6614 = vmatpush.msra.mxu0 0.0
    %6615 = vmatpush.msra.mxu0 0.0
    %6616 = vmatpush.msra.mxu0 0.0
    %6617 = vmatpush.msra.mxu0 0.0
    %6618 = vmatpush.msra.mxu0 0.0
    %6619 = vmatpush.msra.mxu0 0.0
    %6620 = vmatpush.msra.mxu0 0.0
    %6621 = vmatpush.msra.mxu0 0.0
    %6622 = vmatpush.msra.mxu0 0.0
    %6623 = vmatpush.msra.mxu0 0.0
    %6624 = vmatpush.msra.mxu0 0.0
    %6625 = vmatpush.msra.mxu0 0.0
    %v6626 = vand.u32 %v6543, 4294901760
    %v6627 = vsub.f32 %v6543, %v6626
    %6628 = vmatpush.msra.mxu0 %v6627
    %v6629 = vand.u32 %v6542, 4294901760
    %v6630 = vsub.f32 %v6542, %v6629
    %6631 = vmatpush.msra.mxu0 %v6630
    %v6632 = vand.u32 %v6541, 4294901760
    %v6633 = vsub.f32 %v6541, %v6632
    %6634 = vmatpush.msra.mxu0 %v6633
    %v6635 = vand.u32 %v6540, 4294901760
    %v6636 = vsub.f32 %v6540, %v6635
    %6637 = vmatpush.msra.mxu0 %v6636
    %v6638 = vand.u32 %v1472, 4294901760
    %v6639 = vsub.f32 %v1472, %v6638
    %6640 = vmatmul.f32.gmra.mxu0 %v6639
    %v6641 = vpop.f32.mrf.mxu0
    %v6642 = vadd.f32 %v6612, %v6641
    %6643 = vdwg.mxu0
    %6644 = vmatpush.msra.mxu0 0.0
    %6645 = vmatpush.msra.mxu0 0.0
    %6646 = vmatpush.msra.mxu0 0.0
    %6647 = vmatpush.msra.mxu0 0.0
    %6648 = vmatpush.msra.mxu0 0.0
    %6649 = vmatpush.msra.mxu0 0.0
    %6650 = vmatpush.msra.mxu0 0.0
    %6651 = vmatpush.msra.mxu0 0.0
    %6652 = vmatpush.msra.mxu0 0.0
    %6653 = vmatpush.msra.mxu0 0.0
    %6654 = vmatpush.msra.mxu0 0.0
    %6655 = vmatpush.msra.mxu0 0.0
    %v6656 = vand.u32 %v6543, 4294901760
    %6657 = vmatpush.msra.mxu0 %v6656
    %v6658 = vand.u32 %v6542, 4294901760
    %6659 = vmatpush.msra.mxu0 %v6658
    %v6660 = vand.u32 %v6541, 4294901760
    %6661 = vmatpush.msra.mxu0 %v6660
    %v6662 = vand.u32 %v6540, 4294901760
    %6663 = vmatpush.msra.mxu0 %v6662
    %v6664 = vand.u32 %v1472, 4294901760
    %v6665 = vsub.f32 %v1472, %v6664
    %v6666 = vand.u32 %v6665, 4294901760
    %6667 = vmatmul.f32.gmra.mxu0 %v6666
    %v6668 = vpop.f32.mrf.mxu0
    %v6669 = vadd.f32 %v6642, %v6668
    %6670 = vdwg.mxu0
    %6671 = vmatpush.msra.mxu0 0.0
    %6672 = vmatpush.msra.mxu0 0.0
    %6673 = vmatpush.msra.mxu0 0.0
    %6674 = vmatpush.msra.mxu0 0.0
    %6675 = vmatpush.msra.mxu0 0.0
    %6676 = vmatpush.msra.mxu0 0.0
    %6677 = vmatpush.msra.mxu0 0.0
    %6678 = vmatpush.msra.mxu0 0.0
    %6679 = vmatpush.msra.mxu0 0.0
    %6680 = vmatpush.msra.mxu0 0.0
    %6681 = vmatpush.msra.mxu0 0.0
    %6682 = vmatpush.msra.mxu0 0.0
    %v6683 = vand.u32 %v6543, 4294901760
    %v6684 = vsub.f32 %v6543, %v6683
    %v6685 = vand.u32 %v6684, 4294901760
    %6686 = vmatpush.msra.mxu0 %v6685
    %v6687 = vand.u32 %v6542, 4294901760
    %v6688 = vsub.f32 %v6542, %v6687
    %v6689 = vand.u32 %v6688, 4294901760
    %6690 = vmatpush.msra.mxu0 %v6689
    %v6691 = vand.u32 %v6541, 4294901760
    %v6692 = vsub.f32 %v6541, %v6691
    %v6693 = vand.u32 %v6692, 4294901760
    %6694 = vmatpush.msra.mxu0 %v6693
    %v6695 = vand.u32 %v6540, 4294901760
    %v6696 = vsub.f32 %v6540, %v6695
    %v6697 = vand.u32 %v6696, 4294901760
    %6698 = vmatpush.msra.mxu0 %v6697
    %v6699 = vand.u32 %v1472, 4294901760
    %6700 = vmatmul.f32.gmra.mxu0 %v6699
    %v6701 = vpop.f32.mrf.mxu0
    %v6702 = vadd.f32 %v6669, %v6701
    %6703 = vdwg.mxu0
    %6704 = vmatpush.msra.mxu0 0.0
    %6705 = vmatpush.msra.mxu0 0.0
    %6706 = vmatpush.msra.mxu0 0.0
    %6707 = vmatpush.msra.mxu0 0.0
    %6708 = vmatpush.msra.mxu0 0.0
    %6709 = vmatpush.msra.mxu0 0.0
    %6710 = vmatpush.msra.mxu0 0.0
    %6711 = vmatpush.msra.mxu0 0.0
    %6712 = vmatpush.msra.mxu0 0.0
    %6713 = vmatpush.msra.mxu0 0.0
    %6714 = vmatpush.msra.mxu0 0.0
    %6715 = vmatpush.msra.mxu0 0.0
    %v6716 = vand.u32 %v6543, 4294901760
    %6717 = vmatpush.msra.mxu0 %v6716
    %v6718 = vand.u32 %v6542, 4294901760
    %6719 = vmatpush.msra.mxu0 %v6718
    %v6720 = vand.u32 %v6541, 4294901760
    %6721 = vmatpush.msra.mxu0 %v6720
    %v6722 = vand.u32 %v6540, 4294901760
    %6723 = vmatpush.msra.mxu0 %v6722
    %v6724 = vand.u32 %v1472, 4294901760
    %6725 = vmatmul.f32.gmra.mxu0 %v6724
    %v6726 = vpop.f32.mrf.mxu0
    %v6727 = vadd.f32 %v6702, %v6726
    %6728 = vdwg.mxu0
    %v6729 = vmul.f32 %v6727, 0.03125
    %v6730 = vadd.f32 %v6729, 1e-05
    %v6731 = vrsqrt.pop %v6730
    %v6732 = vmul.f32 %v6731, %v6730
    %v6733 = vmul.f32 %v6732, %v6731
    %v6734 = vmul.f32 0.5, %v6733
    %v6735 = vsub.f32 1.5, %v6734
    %v6736 = vmul.f32 %v6731, %v6735
    %vm6737 = vweird.f32 %v6730
    %vm6738 = vweird.f32 %v6731
    %vm6739 = vmor %vm6737, %vm6738
    %v6740 = vsel %vm6739, %v6731, %v6736
    %v6741 = vld [vmem:[%s5] sm:$0x1]
    %v6742 = vmul.f32 %v6740, %v6741
    %v6743 = vperm.slane %v6742, 0
    %v6744 = vmul.f32 %v6536, %v6743
    %v6745 = vmul.f32 %v6537, %v6743
    %v6746 = vmul.f32 %v6538, %v6743
    %v6747 = vmul.f32 %v6539, %v6743
    %v6748 = vld [vmem:[%s6] sm:$0x1]
    %v6750 = vperm.slane %v6748, 0
    %v6752 = vadd.f32 %v6744, %v6750
    %v6753 = vadd.f32 %v6745, %v6750
    %v6754 = vadd.f32 %v6746, %v6750
    %v6755 = vadd.f32 %v6747, %v6750
    %v6756 = vtanh.pop %v6752
    %v6757 = vtanh.pop %v6753
    %v6758 = vtanh.pop %v6754
    %v6759 = vtanh.pop %v6755
    %6760 = vst [vmem:[#allocation11] sm:$0xff] %v6756
    %6761 = vst [vmem:[#allocation11 + $0x8] sm:$0xff] %v6757
    %6762 = vst [vmem:[#allocation11 + $0x10] sm:$0xff] %v6758
    %6763 = vst [vmem:[#allocation11 + $0x18] sm:$0xff] %v6759
    // Predicated region
    $region62: #{tpu_custom_call.1} parent=1 // pred_check
      _
    $region63: #{tpu_custom_call.1} parent=1 // pred_check_branch
      %6765 = sbr.rel (0) target = $region65
    $region64: #{tpu_custom_call.1} parent=1 // pred_region
      %6767 = vsyncadd [#allocation4], 0
      %s6768 = sshll.u32 [#allocation11], 4
      %s6769 = int_to_ptr.vmem [resolvable:$true] %s6768
      %s6770 = sshll.u32 %s10, 4
      %s6771 = int_to_ptr.hbm [resolvable:$true] %s6770
      %6776 = dma.vmem_to_hbm [thread:$0]  %s6769, 512, %s6771, [#allocation4], 128, 128, 8
    $region65: #{tpu_custom_call.1} parent=1 // pred_fallthru
      _
    // Predicated region
    $region66: #{tpu_custom_call.1} parent=1 // pred_check
      _
    $region67: #{tpu_custom_call.1} parent=1 // pred_check_branch
      %6778 = sbr.rel (0) target = $region69
    $region68: #{tpu_custom_call.1} parent=1 // pred_region
      %6780 = dma.done [#allocation4], 512
    $region69: #{tpu_custom_call.1} parent=1 // pred_fallthru
      _
    %6781 = vsyncpa [#allocation3], 1
    %6782 = vsyncpa [#allocation6], 1
    %6783 = vsyncpa [#allocation9], 1
    %6784 = vsyncpa [#allocation4], 1

</llo_original>
